<compile_context>
chip_gen: v7x
topology: tpu7x:2x2x1
jax: 0.10.0
libtpu: 0.0.40
codegen_flags: <defaults>
</compile_context>

<pallas_src>
import functools
import math

import jax
import jax.numpy as jnp
from jax.experimental import pallas as pl
from jax.experimental.pallas import tpu as pltpu

PADMAX = 3   # largest 'same' padding among the conv kernels (kernel 7 -> pad 3)
GM = 8       # global margin rows of the conv staging scratch (8 keeps the
             # interior staging store sublane-aligned; taps read <= 3 rows past it)


def _round8(n):
    return ((n + 7) // 8) * 8


# ------------------------------ fused kernel ---------------------------------

def simtsc_kernel(x_ref, adj_ref, w_ref, p_ref, out_ref, stage_ref, *, cfg):
    """Entire SimTSC forward (3 ResNet blocks + GCN head) in one kernel.

    Activation layout: flat (R, C) with R = N*LP, LP = round8(L + 2*PADMAX);
    time step t of series n lives at row n*LP + PADMAX + t, all other rows are
    padding ("margin") rows.  Margin rows carry don't-care values between ops;
    every use that matters (conv zero-padding, BN statistics, global pooling)
    masks them with a select, so they never influence the result.

    x_ref:   (R, Cin)      input series in the flat padded layout
    adj_ref: (N, N)        dense kNN adjacency
    w_ref:   (WR, F)       packed conv + GCN weights (im2col-flat contiguous blocks)
    p_ref:   (PR, F)       packed conv biases / BN gamma,beta / GCN bias (one row each)
    out_ref: (N, nb_classes) log-softmax logits
    stage_ref: VMEM (GM + R + GM, F) conv staging buffer
    """
    R, _cin = x_ref.shape
    F = stage_ref.shape[1]
    N, L, LP = cfg['N'], cfg['L'], cfg['LP']
    nc = cfg['nb_classes']
    inv_cnt = 1.0 / float(N * L)

    # Zero ONLY the global margin rows of the staging scratch (taps may read up
    # to PADMAX rows past the interior); the interior is rewritten by every
    # conv before it is read.  (Was: full-buffer clear.)
    stage_ref[0:GM, :] = jnp.zeros((GM, F), jnp.float32)
    stage_ref[GM + R:GM + R + GM, :] = jnp.zeros((GM, F), jnp.float32)

    # Interior-row mask: True for real time steps, False for padding rows.
    pos = jax.lax.broadcasted_iota(jnp.int32, (N, LP, 1), 1).reshape(R, 1)
    interior = (pos >= PADMAX) & (pos < PADMAX + L)

    def row(r):                               # one packed per-channel row (1, F)
        return p_ref[r:r + 1, :]

    def conv(x2, ci, ksz, woff, brow):
        """'same' Conv1d as ONE im2col MXU dot (contraction dim = ksz*ci)."""
        w = w_ref[woff: woff + ksz * ci, :]                  # contiguous block
        if ksz == 1:
            return jnp.dot(x2, w, preferred_element_type=jnp.float32) + row(brow)
        pad = (ksz - 1) // 2
        # Stage with padding rows forced to zero (select also cleans any
        # NaN/Inf garbage carried in margin rows).  Store offset GM is aligned.
        stage_ref[GM:GM + R, :ci] = jnp.where(interior, x2, 0.0)
        taps = [stage_ref[GM - pad + k: GM - pad + k + R, :ci]
                for k in range(ksz)]                         # plain 2-D slices
        im2col = jnp.concatenate(taps, axis=1)               # (R, ksz*ci)
        return jnp.dot(im2col, w, preferred_element_type=jnp.float32) + row(brow)

    def bn(v2, grow, hrow, relu):
        """Training-mode BatchNorm1d: biased batch stats over the N*L interior
        rows; sum and sum-of-squares from a single sublane reduction."""
        vm = jnp.where(interior, v2, 0.0)
        stats = jnp.sum(jnp.concatenate([vm, vm * vm], axis=1),
                        axis=0, keepdims=True)               # (1, 2F)
        mean = stats[:, :F] * inv_cnt
        var = jnp.maximum(stats[:, F:] * inv_cnt - mean * mean, 0.0)
        o = row(grow) * ((v2 - mean) * jax.lax.rsqrt(var + 1e-5)) + row(hrow)
        return jnp.maximum(o, 0.0) if relu else o

    def resblock(x2, b):
        ci = b['ci']
        out = bn(conv(x2, ci, 7, b['wx'], b['bx']), b['gx'], b['hx'], True)
        out = bn(conv(out, F, 5, b['wy'], b['by']), b['gy'], b['hy'], True)
        out = bn(conv(out, F, 3, b['wz'], b['bz']), b['gz'], b['hz'], False)
        sc = conv(x2, ci, 1, b['ws'], b['bs']) if b['expand'] else x2
        sc = bn(sc, b['gs'], b['hs'], False)
        return jnp.maximum(out + sc, 0.0)

    x = x_ref[...].astype(jnp.float32)                        # (R, Cin)
    # TODO(synk): for large N*L, tile the conv/BN chain over row blocks (two-pass
    # BN) so the v7x second TensorCore and the vreg budget are actually used.
    for b in cfg['blocks']:
        x = resblock(x, b)

    # Global average pool over length = masked sublane reduction
    # (no O(N^2*L) pooling matrix, no extra MXU dot).
    x3 = jnp.where(interior, x, 0.0).reshape(N, LP, F)
    pooled = jnp.sum(x3, axis=1) * (1.0 / L)                  # (N, F)

    # GCN head: weight stored padded to (F, F) in the blob (extra cols zero).
    gcw = w_ref[cfg['gcw']: cfg['gcw'] + F, :]
    support = jnp.dot(pooled, gcw, preferred_element_type=jnp.float32)   # (N, F)
    logits = jnp.dot(adj_ref[...], support,
                     preferred_element_type=jnp.float32) + row(cfg['gcb'])
    logits = logits[:, :nc]

    m = jnp.max(logits, axis=1, keepdims=True)
    z = logits - m
    out_ref[...] = z - jnp.log(jnp.sum(jnp.exp(z), axis=1, keepdims=True))


# ---------------------------- parameter packing --------------------------------

def pack_params(params, cin, F, nb_classes):
    """Pack all weights into one (WR, F) blob (im2col-flat, 8-row-aligned
    segments) and all per-channel vectors into one (PR, F) slab; return the
    static row-offset config for the kernel."""
    assert F >= cin and F >= nb_classes
    wsegs, prow_list, cfg_blocks = [], [], []
    woff = 0

    def add_w(arr2d):
        nonlocal woff
        arr2d = arr2d.astype(jnp.float32)
        rows = arr2d.shape[0]
        padded = _round8(rows)
        if padded != rows:
            arr2d = jnp.concatenate(
                [arr2d, jnp.zeros((padded - rows, F), jnp.float32)], axis=0)
        wsegs.append(arr2d)
        off = woff
        woff += padded
        return off

    def add_p(vec):
        v = jnp.reshape(vec, (-1,)).astype(jnp.float32)
        if v.shape[0] < F:
            v = jnp.pad(v, (0, F - v.shape[0]))
        prow_list.append(v)
        return len(prow_list) - 1

    for name in ('block1', 'block2', 'block3'):
        blk = params[name]
        b = {'ci': int(blk['wx'].shape[1]), 'expand': bool(blk['expand'])}
        # conv weights stored (ksz, ci, F) -> rows ordered k*ci + c, matching
        # the im2col operand column order in the kernel.
        b['wx'] = add_w(blk['wx'].reshape(-1, F))
        b['wy'] = add_w(blk['wy'].reshape(-1, F))
        b['wz'] = add_w(blk['wz'].reshape(-1, F))
        if b['expand']:
            b['ws'] = add_w(blk['ws'].reshape(-1, F))
            b['bs'] = add_p(blk['bs'])
        b['bx'] = add_p(blk['bx']); b['by'] = add_p(blk['by']); b['bz'] = add_p(blk['bz'])
        b['gx'] = add_p(blk['gx']); b['hx'] = add_p(blk['hx'])
        b['gy'] = add_p(blk['gy']); b['hy'] = add_p(blk['hy'])
        b['gz'] = add_p(blk['gz']); b['hz'] = add_p(blk['hz'])
        b['gs'] = add_p(blk['gs']); b['hs'] = add_p(blk['hs'])
        cfg_blocks.append(b)

    gcw_pad = jnp.pad(params['gc1_w'].astype(jnp.float32),
                      ((0, 0), (0, F - nb_classes)))
    gcw_off = add_w(gcw_pad)
    gcb_row = add_p(params['gc1_b'])

    wblob = jnp.concatenate(wsegs, axis=0)
    pblob = jnp.stack(prow_list, axis=0)
    cfg = {'blocks': tuple(cfg_blocks), 'gcw': gcw_off, 'gcb': gcb_row,
           'nb_classes': nb_classes}
    return wblob, pblob, cfg


# ------------------------------- JAX wrappers ----------------------------------

def build_knn_adj(adj, K, alpha):
    # TODO(synk): data-dependent top-K gather/scatter kept in plain-JAX glue;
    # lax.top_k tie-breaking may differ from torch.argsort on exact ties.
    N = adj.shape[0]
    neg_top, idx = jax.lax.top_k(-adj, K)                  # K smallest distances
    vals = jnp.exp(alpha * neg_top)                        # = exp(-alpha * adj[i, idx])
    vals = vals / jnp.sum(vals, axis=1, keepdims=True)
    dense = jnp.zeros((N, N), jnp.float32)
    return dense.at[jnp.arange(N)[:, None], idx].set(vals.astype(jnp.float32))


def simtsc_forward(x_ncl, adj, params, K, alpha, n_feature_maps, nb_classes):
    N, cin, L = x_ncl.shape
    F = n_feature_maps
    assert F >= cin and F >= nb_classes
    LP = _round8(L + 2 * PADMAX)          # per-sequence slot (sublane aligned)
    R = N * LP

    adj_dense = build_knn_adj(adj, K, alpha)

    # NCL -> flat zero-padded (R, Cin): time step t of series n at row
    # n*LP + PADMAX + t; every other row is a zero padding row.
    x_nlc = jnp.transpose(x_ncl, (0, 2, 1)).astype(jnp.float32)
    x_flat = jnp.pad(x_nlc, ((0, 0), (PADMAX, LP - L - PADMAX), (0, 0))
                     ).reshape(R, cin)

    wblob, pblob, cfg = pack_params(params, cin, F, nb_classes)
    cfg = dict(cfg, N=N, L=L, LP=LP)

    args = (x_flat, adj_dense, wblob, pblob)

    # Explicit VMEM budget: staging + inputs + packed params + live activation /
    # im2col temporaries, with headroom (default scoped limit is only 16-32 MiB).
    est = 4 * ((R + 2 * GM) * F + R * cin + N * N
               + wblob.shape[0] * F + pblob.shape[0] * F
               + 16 * R * F)
    vmem_limit = int(min(max(2 * est, 32 * 1024 * 1024), 100 * 1024 * 1024))

    return pl.pallas_call(
        functools.partial(simtsc_kernel, cfg=cfg),
        out_shape=jax.ShapeDtypeStruct((N, nb_classes), jnp.float32),
        grid=(1,),
        in_specs=[pl.BlockSpec(a.shape, lambda i, _nd=a.ndim: (0,) * _nd)
                  for a in args],
        out_specs=pl.BlockSpec((N, nb_classes), lambda i: (0, 0)),
        scratch_shapes=[pltpu.VMEM((GM + R + GM, F), jnp.float32)],
        compiler_params=pltpu.CompilerParams(
            dimension_semantics=("arbitrary",),
            vmem_limit_bytes=vmem_limit),
    )(*args)


# ------------------------------ parameter init ----------------------------------

def _conv_init(key, ksz, ci, co):
    # weight layout (ksz, ci, co); equals torch Conv1d weight.permute(2, 1, 0)
    k1, k2 = jax.random.split(key)
    bound = 1.0 / math.sqrt(ci * ksz)
    w = jax.random.uniform(k1, (ksz, ci, co), jnp.float32, -bound, bound)
    b = jax.random.uniform(k2, (co,), jnp.float32, -bound, bound)
    return w, b


def _init_block(key, ci, co):
    ks = jax.random.split(key, 4)
    expand = ci < co
    blk = {'expand': expand}
    blk['wx'], blk['bx'] = _conv_init(ks[0], 7, ci, co)
    blk['wy'], blk['by'] = _conv_init(ks[1], 5, co, co)
    blk['wz'], blk['bz'] = _conv_init(ks[2], 3, co, co)
    if expand:
        blk['ws'], blk['bs'] = _conv_init(ks[3], 1, ci, co)
    for nm in ('gx', 'gy', 'gz', 'gs'):
        blk[nm] = jnp.ones((co,), jnp.float32)
    for nm in ('hx', 'hy', 'hz', 'hs'):
        blk[nm] = jnp.zeros((co,), jnp.float32)
    return blk


def init_params(key, input_size, nb_classes, n_feature_maps):
    k1, k2, k3, k4, k5 = jax.random.split(key, 5)
    stdv = 1.0 / math.sqrt(n_feature_maps)
    return {
        'block1': _init_block(k1, input_size, n_feature_maps),
        'block2': _init_block(k2, n_feature_maps, n_feature_maps),
        'block3': _init_block(k3, n_feature_maps, n_feature_maps),
        'gc1_w': jax.random.uniform(k4, (n_feature_maps, nb_classes),
                                    jnp.float32, -stdv, stdv),
        'gc1_b': jax.random.uniform(k5, (nb_classes,),
                                    jnp.float32, -stdv, stdv),
    }


# ----------------------------------- main ----------------------------------------

if __name__ == "__main__":
    K = 3
    alpha = 0.3
    N, C_in, L = 8, 4, 16        # nodes / in-channels / series length
    n_feature_maps = 64          # module default
    nb_classes = 4

    key = jax.random.PRNGKey(0)
    kx, kadj, kp = jax.random.split(key, 3)
    x = jax.random.normal(kx, (N, C_in, L), jnp.float32)       # PyTorch NCL layout
    adj = jax.random.uniform(kadj, (N, N), jnp.float32)        # distance matrix
    params = init_params(kp, C_in, nb_classes, n_feature_maps)

    out = simtsc_forward(x, adj, params, K, alpha, n_feature_maps, nb_classes)
    out = jax.block_until_ready(out)
    assert out.shape == (N, nb_classes)
    assert bool(jnp.all(jnp.isfinite(out)))
    print("KERNEL_OK")
</pallas_src>

<mosaic_0001>
module attributes {stable_mosaic.version = 11 : i64} {
  func.func @simtsc_kernel(%arg0: i32, %arg1: memref<192x4xf32, #tpu.memory_space<vmem>>, %arg2: memref<8x8xf32, #tpu.memory_space<vmem>>, %arg3: memref<2536x64xf32, #tpu.memory_space<vmem>>, %arg4: memref<35x64xf32, #tpu.memory_space<vmem>>, %arg5: memref<8x4xf32, #tpu.memory_space<vmem>>, %arg6: memref<208x64xf32, #tpu.memory_space<vmem>>) attributes {dimension_semantics = [#tpu.dimension_semantics<arbitrary>], iteration_bounds = array<i64: 1>, scalar_prefetch = 0 : i64, scratch_operands = 1 : i64, tpu.core_type = #tpu.core_type<tc>, window_params = [{pipeline_mode = #tpu.pipeline_mode<synchronous>, transform_indices = @transform_0, window_bounds = array<i64: 192, 4>}, {pipeline_mode = #tpu.pipeline_mode<synchronous>, transform_indices = @transform_1, window_bounds = array<i64: 8, 8>}, {pipeline_mode = #tpu.pipeline_mode<synchronous>, transform_indices = @transform_2, window_bounds = array<i64: 2536, 64>}, {pipeline_mode = #tpu.pipeline_mode<synchronous>, transform_indices = @transform_3, window_bounds = array<i64: 35, 64>}, {pipeline_mode = #tpu.pipeline_mode<synchronous>, transform_indices = @transform_4, window_bounds = array<i64: 8, 4>}]} {
    %cst = arith.constant 0.000000e+00 : f32
    %0 = vector.broadcast %cst : f32 to vector<8x64xf32>
    %c0 = arith.constant 0 : index
    %c0_0 = arith.constant 0 : index
    %1 = vector.load %arg6[%c0, %c0_0] : memref<208x64xf32, #tpu.memory_space<vmem>>, vector<8x64xf32>
    tpu.vector_store %arg6[%c0, %c0_0], %0 {strides = array<i32>} : memref<208x64xf32, #tpu.memory_space<vmem>>, vector<8x64xf32>,
    %cst_1 = arith.constant 0.000000e+00 : f32
    %2 = vector.broadcast %cst_1 : f32 to vector<8x64xf32>
    %c200 = arith.constant 200 : index
    %c0_2 = arith.constant 0 : index
    %3 = vector.load %arg6[%c200, %c0_2] : memref<208x64xf32, #tpu.memory_space<vmem>>, vector<8x64xf32>
    tpu.vector_store %arg6[%c200, %c0_2], %2 {strides = array<i32>} : memref<208x64xf32, #tpu.memory_space<vmem>>, vector<8x64xf32>,
    %4 = tpu.iota {dimensions = array<i32: 1>} : vector<8x24x1xi32>
    %5 = vector.shape_cast %4 : vector<8x24x1xi32> to vector<192x1xi32>
    %c3_i32 = arith.constant 3 : i32
    %6 = vector.broadcast %c3_i32 : i32 to vector<192x1xi32>
    %7 = arith.cmpi sge, %5, %6 : vector<192x1xi32>
    %c19_i32 = arith.constant 19 : i32
    %8 = vector.broadcast %c19_i32 : i32 to vector<192x1xi32>
    %9 = arith.cmpi slt, %5, %8 : vector<192x1xi32>
    %10 = arith.andi %7, %9 : vector<192x1xi1>
    %c0_3 = arith.constant 0 : index
    %c0_4 = arith.constant 0 : index
    %11 = vector.load %arg1[%c0_3, %c0_4] : memref<192x4xf32, #tpu.memory_space<vmem>>, vector<192x4xf32>
    %c0_5 = arith.constant 0 : index
    %c0_6 = arith.constant 0 : index
    %12 = vector.load %arg3[%c0_5, %c0_6] : memref<2536x64xf32, #tpu.memory_space<vmem>>, vector<28x64xf32>
    %cst_7 = arith.constant 0.000000e+00 : f32
    %13 = vector.shape_cast %10 : vector<192x1xi1> to vector<192x1xi1>
    %14 = vector.broadcast %13 : vector<192x1xi1> to vector<192x4xi1>
    %15 = vector.broadcast %cst_7 : f32 to vector<192x4xf32>
    %16 = arith.select %14, %11, %15 : vector<192x4xi1>, vector<192x4xf32>
    %c8 = arith.constant 8 : index
    %c0_8 = arith.constant 0 : index
    %17 = vector.load %arg6[%c8, %c0_8] : memref<208x64xf32, #tpu.memory_space<vmem>>, vector<192x4xf32>
    tpu.vector_store %arg6[%c8, %c0_8], %16 {strides = array<i32>} : memref<208x64xf32, #tpu.memory_space<vmem>>, vector<192x4xf32>,
    %c5 = arith.constant 5 : index
    %c0_9 = arith.constant 0 : index
    %18 = vector.load %arg6[%c5, %c0_9] : memref<208x64xf32, #tpu.memory_space<vmem>>, vector<192x4xf32>
    %c6 = arith.constant 6 : index
    %c0_10 = arith.constant 0 : index
    %19 = vector.load %arg6[%c6, %c0_10] : memref<208x64xf32, #tpu.memory_space<vmem>>, vector<192x4xf32>
    %c7 = arith.constant 7 : index
    %c0_11 = arith.constant 0 : index
    %20 = vector.load %arg6[%c7, %c0_11] : memref<208x64xf32, #tpu.memory_space<vmem>>, vector<192x4xf32>
    %c8_12 = arith.constant 8 : index
    %c0_13 = arith.constant 0 : index
    %21 = vector.load %arg6[%c8_12, %c0_13] : memref<208x64xf32, #tpu.memory_space<vmem>>, vector<192x4xf32>
    %c9 = arith.constant 9 : index
    %c0_14 = arith.constant 0 : index
    %22 = vector.load %arg6[%c9, %c0_14] : memref<208x64xf32, #tpu.memory_space<vmem>>, vector<192x4xf32>
    %c10 = arith.constant 10 : index
    %c0_15 = arith.constant 0 : index
    %23 = vector.load %arg6[%c10, %c0_15] : memref<208x64xf32, #tpu.memory_space<vmem>>, vector<192x4xf32>
    %c11 = arith.constant 11 : index
    %c0_16 = arith.constant 0 : index
    %24 = vector.load %arg6[%c11, %c0_16] : memref<208x64xf32, #tpu.memory_space<vmem>>, vector<192x4xf32>
    %25 = tpu.concatenate %18, %19, %20, %21, %22, %23, %24 in 1 : vector<192x4xf32>, vector<192x4xf32>, vector<192x4xf32>, vector<192x4xf32>, vector<192x4xf32>, vector<192x4xf32>, vector<192x4xf32> -> vector<192x28xf32>
    %cst_17 = arith.constant dense<0.000000e+00> : vector<192x64xf32>
    %26 = tpu.matmul %25, %12, %cst_17 {dimension_numbers = #tpu.dot_dimension_numbers<[1], [0], [0], [1], [0, 0, 1, 1], [], []>} : vector<192x28xf32>, vector<28x64xf32>, vector<192x64xf32> -> vector<192x64xf32>
    %c1 = arith.constant 1 : index
    %c0_18 = arith.constant 0 : index
    %27 = vector.load %arg4[%c1, %c0_18] : memref<35x64xf32, #tpu.memory_space<vmem>>, vector<1x64xf32>
    %28 = vector.broadcast %27 : vector<1x64xf32> to vector<192x64xf32>
    %29 = arith.addf %26, %28 : vector<192x64xf32>
    %cst_19 = arith.constant 0.000000e+00 : f32
    %30 = vector.shape_cast %10 : vector<192x1xi1> to vector<192x1xi1>
    %31 = vector.broadcast %30 : vector<192x1xi1> to vector<192x64xi1>
    %32 = vector.broadcast %cst_19 : f32 to vector<192x64xf32>
    %33 = arith.select %31, %29, %32 : vector<192x64xi1>, vector<192x64xf32>
    %34 = arith.mulf %33, %33 : vector<192x64xf32>
    %35 = tpu.concatenate %33, %34 in 1 : vector<192x64xf32>, vector<192x64xf32> -> vector<192x128xf32>
    %cst_20 = arith.constant dense<0.000000e+00> : vector<128xf32>
    %36 = vector.multi_reduction <add>, %35, %cst_20 [0] : vector<192x128xf32> to vector<128xf32>
    %37 = vector.shape_cast %36 : vector<128xf32> to vector<1x128xf32>
    %38 = vector.extract_strided_slice %37 {offsets = [0, 0], sizes = [1, 64], strides = [1, 1]} : vector<1x128xf32> to vector<1x64xf32>
    %cst_21 = arith.constant 7.812500e-03 : f32
    %39 = vector.broadcast %cst_21 : f32 to vector<1x64xf32>
    %40 = arith.mulf %38, %39 : vector<1x64xf32>
    %41 = vector.extract_strided_slice %37 {offsets = [0, 64], sizes = [1, 64], strides = [1, 1]} : vector<1x128xf32> to vector<1x64xf32>
    %cst_22 = arith.constant 7.812500e-03 : f32
    %42 = vector.broadcast %cst_22 : f32 to vector<1x64xf32>
    %43 = arith.mulf %41, %42 : vector<1x64xf32>
    %44 = arith.mulf %40, %40 : vector<1x64xf32>
    %45 = arith.subf %43, %44 : vector<1x64xf32>
    %cst_23 = arith.constant 0.000000e+00 : f32
    %46 = vector.broadcast %cst_23 : f32 to vector<1x64xf32>
    %47 = arith.maximumf %45, %46 : vector<1x64xf32>
    %c4 = arith.constant 4 : index
    %c0_24 = arith.constant 0 : index
    %48 = vector.load %arg4[%c4, %c0_24] : memref<35x64xf32, #tpu.memory_space<vmem>>, vector<1x64xf32>
    %49 = vector.broadcast %40 : vector<1x64xf32> to vector<192x64xf32>
    %50 = arith.subf %29, %49 : vector<192x64xf32>
    %cst_25 = arith.constant 9.99999974E-6 : f32
    %51 = vector.broadcast %cst_25 : f32 to vector<1x64xf32>
    %52 = arith.addf %47, %51 : vector<1x64xf32>
    %53 = math.rsqrt %52 : vector<1x64xf32>
    %54 = vector.broadcast %53 : vector<1x64xf32> to vector<192x64xf32>
    %55 = arith.mulf %50, %54 : vector<192x64xf32>
    %56 = vector.broadcast %48 : vector<1x64xf32> to vector<192x64xf32>
    %57 = arith.mulf %56, %55 : vector<192x64xf32>
    %c5_26 = arith.constant 5 : index
    %c0_27 = arith.constant 0 : index
    %58 = vector.load %arg4[%c5_26, %c0_27] : memref<35x64xf32, #tpu.memory_space<vmem>>, vector<1x64xf32>
    %59 = vector.broadcast %58 : vector<1x64xf32> to vector<192x64xf32>
    %60 = arith.addf %57, %59 : vector<192x64xf32>
    %cst_28 = arith.constant 0.000000e+00 : f32
    %61 = vector.broadcast %cst_28 : f32 to vector<192x64xf32>
    %62 = arith.maximumf %60, %61 : vector<192x64xf32>
    %c32 = arith.constant 32 : index
    %c0_29 = arith.constant 0 : index
    %63 = vector.load %arg3[%c32, %c0_29] : memref<2536x64xf32, #tpu.memory_space<vmem>>, vector<320x64xf32>
    %cst_30 = arith.constant 0.000000e+00 : f32
    %64 = vector.shape_cast %10 : vector<192x1xi1> to vector<192x1xi1>
    %65 = vector.broadcast %64 : vector<192x1xi1> to vector<192x64xi1>
    %66 = vector.broadcast %cst_30 : f32 to vector<192x64xf32>
    %67 = arith.select %65, %62, %66 : vector<192x64xi1>, vector<192x64xf32>
    %c8_31 = arith.constant 8 : index
    %c0_32 = arith.constant 0 : index
    %68 = vector.load %arg6[%c8_31, %c0_32] : memref<208x64xf32, #tpu.memory_space<vmem>>, vector<192x64xf32>
    tpu.vector_store %arg6[%c8_31, %c0_32], %67 {strides = array<i32>} : memref<208x64xf32, #tpu.memory_space<vmem>>, vector<192x64xf32>,
    %c6_33 = arith.constant 6 : index
    %c0_34 = arith.constant 0 : index
    %69 = vector.load %arg6[%c6_33, %c0_34] : memref<208x64xf32, #tpu.memory_space<vmem>>, vector<192x64xf32>
    %c7_35 = arith.constant 7 : index
    %c0_36 = arith.constant 0 : index
    %70 = vector.load %arg6[%c7_35, %c0_36] : memref<208x64xf32, #tpu.memory_space<vmem>>, vector<192x64xf32>
    %c8_37 = arith.constant 8 : index
    %c0_38 = arith.constant 0 : index
    %71 = vector.load %arg6[%c8_37, %c0_38] : memref<208x64xf32, #tpu.memory_space<vmem>>, vector<192x64xf32>
    %c9_39 = arith.constant 9 : index
    %c0_40 = arith.constant 0 : index
    %72 = vector.load %arg6[%c9_39, %c0_40] : memref<208x64xf32, #tpu.memory_space<vmem>>, vector<192x64xf32>
    %c10_41 = arith.constant 10 : index
    %c0_42 = arith.constant 0 : index
    %73 = vector.load %arg6[%c10_41, %c0_42] : memref<208x64xf32, #tpu.memory_space<vmem>>, vector<192x64xf32>
    %74 = tpu.concatenate %69, %70, %71, %72, %73 in 1 : vector<192x64xf32>, vector<192x64xf32>, vector<192x64xf32>, vector<192x64xf32>, vector<192x64xf32> -> vector<192x320xf32>
    %cst_43 = arith.constant dense<0.000000e+00> : vector<192x64xf32>
    %75 = tpu.matmul %74, %63, %cst_43 {dimension_numbers = #tpu.dot_dimension_numbers<[1], [0], [0], [1], [0, 0, 1, 1], [], []>} : vector<192x320xf32>, vector<320x64xf32>, vector<192x64xf32> -> vector<192x64xf32>
    %c2 = arith.constant 2 : index
    %c0_44 = arith.constant 0 : index
    %76 = vector.load %arg4[%c2, %c0_44] : memref<35x64xf32, #tpu.memory_space<vmem>>, vector<1x64xf32>
    %77 = vector.broadcast %76 : vector<1x64xf32> to vector<192x64xf32>
    %78 = arith.addf %75, %77 : vector<192x64xf32>
    %cst_45 = arith.constant 0.000000e+00 : f32
    %79 = vector.shape_cast %10 : vector<192x1xi1> to vector<192x1xi1>
    %80 = vector.broadcast %79 : vector<192x1xi1> to vector<192x64xi1>
    %81 = vector.broadcast %cst_45 : f32 to vector<192x64xf32>
    %82 = arith.select %80, %78, %81 : vector<192x64xi1>, vector<192x64xf32>
    %83 = arith.mulf %82, %82 : vector<192x64xf32>
    %84 = tpu.concatenate %82, %83 in 1 : vector<192x64xf32>, vector<192x64xf32> -> vector<192x128xf32>
    %cst_46 = arith.constant dense<0.000000e+00> : vector<128xf32>
    %85 = vector.multi_reduction <add>, %84, %cst_46 [0] : vector<192x128xf32> to vector<128xf32>
    %86 = vector.shape_cast %85 : vector<128xf32> to vector<1x128xf32>
    %87 = vector.extract_strided_slice %86 {offsets = [0, 0], sizes = [1, 64], strides = [1, 1]} : vector<1x128xf32> to vector<1x64xf32>
    %cst_47 = arith.constant 7.812500e-03 : f32
    %88 = vector.broadcast %cst_47 : f32 to vector<1x64xf32>
    %89 = arith.mulf %87, %88 : vector<1x64xf32>
    %90 = vector.extract_strided_slice %86 {offsets = [0, 64], sizes = [1, 64], strides = [1, 1]} : vector<1x128xf32> to vector<1x64xf32>
    %cst_48 = arith.constant 7.812500e-03 : f32
    %91 = vector.broadcast %cst_48 : f32 to vector<1x64xf32>
    %92 = arith.mulf %90, %91 : vector<1x64xf32>
    %93 = arith.mulf %89, %89 : vector<1x64xf32>
    %94 = arith.subf %92, %93 : vector<1x64xf32>
    %cst_49 = arith.constant 0.000000e+00 : f32
    %95 = vector.broadcast %cst_49 : f32 to vector<1x64xf32>
    %96 = arith.maximumf %94, %95 : vector<1x64xf32>
    %c6_50 = arith.constant 6 : index
    %c0_51 = arith.constant 0 : index
    %97 = vector.load %arg4[%c6_50, %c0_51] : memref<35x64xf32, #tpu.memory_space<vmem>>, vector<1x64xf32>
    %98 = vector.broadcast %89 : vector<1x64xf32> to vector<192x64xf32>
    %99 = arith.subf %78, %98 : vector<192x64xf32>
    %cst_52 = arith.constant 9.99999974E-6 : f32
    %100 = vector.broadcast %cst_52 : f32 to vector<1x64xf32>
    %101 = arith.addf %96, %100 : vector<1x64xf32>
    %102 = math.rsqrt %101 : vector<1x64xf32>
    %103 = vector.broadcast %102 : vector<1x64xf32> to vector<192x64xf32>
    %104 = arith.mulf %99, %103 : vector<192x64xf32>
    %105 = vector.broadcast %97 : vector<1x64xf32> to vector<192x64xf32>
    %106 = arith.mulf %105, %104 : vector<192x64xf32>
    %c7_53 = arith.constant 7 : index
    %c0_54 = arith.constant 0 : index
    %107 = vector.load %arg4[%c7_53, %c0_54] : memref<35x64xf32, #tpu.memory_space<vmem>>, vector<1x64xf32>
    %108 = vector.broadcast %107 : vector<1x64xf32> to vector<192x64xf32>
    %109 = arith.addf %106, %108 : vector<192x64xf32>
    %cst_55 = arith.constant 0.000000e+00 : f32
    %110 = vector.broadcast %cst_55 : f32 to vector<192x64xf32>
    %111 = arith.maximumf %109, %110 : vector<192x64xf32>
    %c352 = arith.constant 352 : index
    %c0_56 = arith.constant 0 : index
    %112 = vector.load %arg3[%c352, %c0_56] : memref<2536x64xf32, #tpu.memory_space<vmem>>, vector<192x64xf32>
    %cst_57 = arith.constant 0.000000e+00 : f32
    %113 = vector.shape_cast %10 : vector<192x1xi1> to vector<192x1xi1>
    %114 = vector.broadcast %113 : vector<192x1xi1> to vector<192x64xi1>
    %115 = vector.broadcast %cst_57 : f32 to vector<192x64xf32>
    %116 = arith.select %114, %111, %115 : vector<192x64xi1>, vector<192x64xf32>
    %c8_58 = arith.constant 8 : index
    %c0_59 = arith.constant 0 : index
    %117 = vector.load %arg6[%c8_58, %c0_59] : memref<208x64xf32, #tpu.memory_space<vmem>>, vector<192x64xf32>
    tpu.vector_store %arg6[%c8_58, %c0_59], %116 {strides = array<i32>} : memref<208x64xf32, #tpu.memory_space<vmem>>, vector<192x64xf32>,
    %c7_60 = arith.constant 7 : index
    %c0_61 = arith.constant 0 : index
    %118 = vector.load %arg6[%c7_60, %c0_61] : memref<208x64xf32, #tpu.memory_space<vmem>>, vector<192x64xf32>
    %c8_62 = arith.constant 8 : index
    %c0_63 = arith.constant 0 : index
    %119 = vector.load %arg6[%c8_62, %c0_63] : memref<208x64xf32, #tpu.memory_space<vmem>>, vector<192x64xf32>
    %c9_64 = arith.constant 9 : index
    %c0_65 = arith.constant 0 : index
    %120 = vector.load %arg6[%c9_64, %c0_65] : memref<208x64xf32, #tpu.memory_space<vmem>>, vector<192x64xf32>
    %121 = tpu.concatenate %118, %119, %120 in 1 : vector<192x64xf32>, vector<192x64xf32>, vector<192x64xf32> -> vector<192x192xf32>
    %cst_66 = arith.constant dense<0.000000e+00> : vector<192x64xf32>
    %122 = tpu.matmul %121, %112, %cst_66 {dimension_numbers = #tpu.dot_dimension_numbers<[1], [0], [0], [1], [0, 0, 1, 1], [], []>} : vector<192x192xf32>, vector<192x64xf32>, vector<192x64xf32> -> vector<192x64xf32>
    %c3 = arith.constant 3 : index
    %c0_67 = arith.constant 0 : index
    %123 = vector.load %arg4[%c3, %c0_67] : memref<35x64xf32, #tpu.memory_space<vmem>>, vector<1x64xf32>
    %124 = vector.broadcast %123 : vector<1x64xf32> to vector<192x64xf32>
    %125 = arith.addf %122, %124 : vector<192x64xf32>
    %cst_68 = arith.constant 0.000000e+00 : f32
    %126 = vector.shape_cast %10 : vector<192x1xi1> to vector<192x1xi1>
    %127 = vector.broadcast %126 : vector<192x1xi1> to vector<192x64xi1>
    %128 = vector.broadcast %cst_68 : f32 to vector<192x64xf32>
    %129 = arith.select %127, %125, %128 : vector<192x64xi1>, vector<192x64xf32>
    %130 = arith.mulf %129, %129 : vector<192x64xf32>
    %131 = tpu.concatenate %129, %130 in 1 : vector<192x64xf32>, vector<192x64xf32> -> vector<192x128xf32>
    %cst_69 = arith.constant dense<0.000000e+00> : vector<128xf32>
    %132 = vector.multi_reduction <add>, %131, %cst_69 [0] : vector<192x128xf32> to vector<128xf32>
    %133 = vector.shape_cast %132 : vector<128xf32> to vector<1x128xf32>
    %134 = vector.extract_strided_slice %133 {offsets = [0, 0], sizes = [1, 64], strides = [1, 1]} : vector<1x128xf32> to vector<1x64xf32>
    %cst_70 = arith.constant 7.812500e-03 : f32
    %135 = vector.broadcast %cst_70 : f32 to vector<1x64xf32>
    %136 = arith.mulf %134, %135 : vector<1x64xf32>
    %137 = vector.extract_strided_slice %133 {offsets = [0, 64], sizes = [1, 64], strides = [1, 1]} : vector<1x128xf32> to vector<1x64xf32>
    %cst_71 = arith.constant 7.812500e-03 : f32
    %138 = vector.broadcast %cst_71 : f32 to vector<1x64xf32>
    %139 = arith.mulf %137, %138 : vector<1x64xf32>
    %140 = arith.mulf %136, %136 : vector<1x64xf32>
    %141 = arith.subf %139, %140 : vector<1x64xf32>
    %cst_72 = arith.constant 0.000000e+00 : f32
    %142 = vector.broadcast %cst_72 : f32 to vector<1x64xf32>
    %143 = arith.maximumf %141, %142 : vector<1x64xf32>
    %c8_73 = arith.constant 8 : index
    %c0_74 = arith.constant 0 : index
    %144 = vector.load %arg4[%c8_73, %c0_74] : memref<35x64xf32, #tpu.memory_space<vmem>>, vector<1x64xf32>
    %145 = vector.broadcast %136 : vector<1x64xf32> to vector<192x64xf32>
    %146 = arith.subf %125, %145 : vector<192x64xf32>
    %cst_75 = arith.constant 9.99999974E-6 : f32
    %147 = vector.broadcast %cst_75 : f32 to vector<1x64xf32>
    %148 = arith.addf %143, %147 : vector<1x64xf32>
    %149 = math.rsqrt %148 : vector<1x64xf32>
    %150 = vector.broadcast %149 : vector<1x64xf32> to vector<192x64xf32>
    %151 = arith.mulf %146, %150 : vector<192x64xf32>
    %152 = vector.broadcast %144 : vector<1x64xf32> to vector<192x64xf32>
    %153 = arith.mulf %152, %151 : vector<192x64xf32>
    %c9_76 = arith.constant 9 : index
    %c0_77 = arith.constant 0 : index
    %154 = vector.load %arg4[%c9_76, %c0_77] : memref<35x64xf32, #tpu.memory_space<vmem>>, vector<1x64xf32>
    %155 = vector.broadcast %154 : vector<1x64xf32> to vector<192x64xf32>
    %156 = arith.addf %153, %155 : vector<192x64xf32>
    %c544 = arith.constant 544 : index
    %c0_78 = arith.constant 0 : index
    %157 = vector.load %arg3[%c544, %c0_78] : memref<2536x64xf32, #tpu.memory_space<vmem>>, vector<4x64xf32>
    %cst_79 = arith.constant dense<0.000000e+00> : vector<192x64xf32>
    %158 = tpu.matmul %11, %157, %cst_79 {dimension_numbers = #tpu.dot_dimension_numbers<[1], [0], [0], [1], [0, 0, 1, 1], [], []>} : vector<192x4xf32>, vector<4x64xf32>, vector<192x64xf32> -> vector<192x64xf32>
    %c0_80 = arith.constant 0 : index
    %c0_81 = arith.constant 0 : index
    %159 = vector.load %arg4[%c0_80, %c0_81] : memref<35x64xf32, #tpu.memory_space<vmem>>, vector<1x64xf32>
    %160 = vector.broadcast %159 : vector<1x64xf32> to vector<192x64xf32>
    %161 = arith.addf %158, %160 : vector<192x64xf32>
    %cst_82 = arith.constant 0.000000e+00 : f32
    %162 = vector.shape_cast %10 : vector<192x1xi1> to vector<192x1xi1>
    %163 = vector.broadcast %162 : vector<192x1xi1> to vector<192x64xi1>
    %164 = vector.broadcast %cst_82 : f32 to vector<192x64xf32>
    %165 = arith.select %163, %161, %164 : vector<192x64xi1>, vector<192x64xf32>
    %166 = arith.mulf %165, %165 : vector<192x64xf32>
    %167 = tpu.concatenate %165, %166 in 1 : vector<192x64xf32>, vector<192x64xf32> -> vector<192x128xf32>
    %cst_83 = arith.constant dense<0.000000e+00> : vector<128xf32>
    %168 = vector.multi_reduction <add>, %167, %cst_83 [0] : vector<192x128xf32> to vector<128xf32>
    %169 = vector.shape_cast %168 : vector<128xf32> to vector<1x128xf32>
    %170 = vector.extract_strided_slice %169 {offsets = [0, 0], sizes = [1, 64], strides = [1, 1]} : vector<1x128xf32> to vector<1x64xf32>
    %cst_84 = arith.constant 7.812500e-03 : f32
    %171 = vector.broadcast %cst_84 : f32 to vector<1x64xf32>
    %172 = arith.mulf %170, %171 : vector<1x64xf32>
    %173 = vector.extract_strided_slice %169 {offsets = [0, 64], sizes = [1, 64], strides = [1, 1]} : vector<1x128xf32> to vector<1x64xf32>
    %cst_85 = arith.constant 7.812500e-03 : f32
    %174 = vector.broadcast %cst_85 : f32 to vector<1x64xf32>
    %175 = arith.mulf %173, %174 : vector<1x64xf32>
    %176 = arith.mulf %172, %172 : vector<1x64xf32>
    %177 = arith.subf %175, %176 : vector<1x64xf32>
    %cst_86 = arith.constant 0.000000e+00 : f32
    %178 = vector.broadcast %cst_86 : f32 to vector<1x64xf32>
    %179 = arith.maximumf %177, %178 : vector<1x64xf32>
    %c10_87 = arith.constant 10 : index
    %c0_88 = arith.constant 0 : index
    %180 = vector.load %arg4[%c10_87, %c0_88] : memref<35x64xf32, #tpu.memory_space<vmem>>, vector<1x64xf32>
    %181 = vector.broadcast %172 : vector<1x64xf32> to vector<192x64xf32>
    %182 = arith.subf %161, %181 : vector<192x64xf32>
    %cst_89 = arith.constant 9.99999974E-6 : f32
    %183 = vector.broadcast %cst_89 : f32 to vector<1x64xf32>
    %184 = arith.addf %179, %183 : vector<1x64xf32>
    %185 = math.rsqrt %184 : vector<1x64xf32>
    %186 = vector.broadcast %185 : vector<1x64xf32> to vector<192x64xf32>
    %187 = arith.mulf %182, %186 : vector<192x64xf32>
    %188 = vector.broadcast %180 : vector<1x64xf32> to vector<192x64xf32>
    %189 = arith.mulf %188, %187 : vector<192x64xf32>
    %c11_90 = arith.constant 11 : index
    %c0_91 = arith.constant 0 : index
    %190 = vector.load %arg4[%c11_90, %c0_91] : memref<35x64xf32, #tpu.memory_space<vmem>>, vector<1x64xf32>
    %191 = vector.broadcast %190 : vector<1x64xf32> to vector<192x64xf32>
    %192 = arith.addf %189, %191 : vector<192x64xf32>
    %193 = arith.addf %156, %192 : vector<192x64xf32>
    %cst_92 = arith.constant 0.000000e+00 : f32
    %194 = vector.broadcast %cst_92 : f32 to vector<192x64xf32>
    %195 = arith.maximumf %193, %194 : vector<192x64xf32>
    %c552 = arith.constant 552 : index
    %c0_93 = arith.constant 0 : index
    %196 = vector.load %arg3[%c552, %c0_93] : memref<2536x64xf32, #tpu.memory_space<vmem>>, vector<448x64xf32>
    %cst_94 = arith.constant 0.000000e+00 : f32
    %197 = vector.shape_cast %10 : vector<192x1xi1> to vector<192x1xi1>
    %198 = vector.broadcast %197 : vector<192x1xi1> to vector<192x64xi1>
    %199 = vector.broadcast %cst_94 : f32 to vector<192x64xf32>
    %200 = arith.select %198, %195, %199 : vector<192x64xi1>, vector<192x64xf32>
    %c8_95 = arith.constant 8 : index
    %c0_96 = arith.constant 0 : index
    %201 = vector.load %arg6[%c8_95, %c0_96] : memref<208x64xf32, #tpu.memory_space<vmem>>, vector<192x64xf32>
    tpu.vector_store %arg6[%c8_95, %c0_96], %200 {strides = array<i32>} : memref<208x64xf32, #tpu.memory_space<vmem>>, vector<192x64xf32>,
    %c5_97 = arith.constant 5 : index
    %c0_98 = arith.constant 0 : index
    %202 = vector.load %arg6[%c5_97, %c0_98] : memref<208x64xf32, #tpu.memory_space<vmem>>, vector<192x64xf32>
    %c6_99 = arith.constant 6 : index
    %c0_100 = arith.constant 0 : index
    %203 = vector.load %arg6[%c6_99, %c0_100] : memref<208x64xf32, #tpu.memory_space<vmem>>, vector<192x64xf32>
    %c7_101 = arith.constant 7 : index
    %c0_102 = arith.constant 0 : index
    %204 = vector.load %arg6[%c7_101, %c0_102] : memref<208x64xf32, #tpu.memory_space<vmem>>, vector<192x64xf32>
    %c8_103 = arith.constant 8 : index
    %c0_104 = arith.constant 0 : index
    %205 = vector.load %arg6[%c8_103, %c0_104] : memref<208x64xf32, #tpu.memory_space<vmem>>, vector<192x64xf32>
    %c9_105 = arith.constant 9 : index
    %c0_106 = arith.constant 0 : index
    %206 = vector.load %arg6[%c9_105, %c0_106] : memref<208x64xf32, #tpu.memory_space<vmem>>, vector<192x64xf32>
    %c10_107 = arith.constant 10 : index
    %c0_108 = arith.constant 0 : index
    %207 = vector.load %arg6[%c10_107, %c0_108] : memref<208x64xf32, #tpu.memory_space<vmem>>, vector<192x64xf32>
    %c11_109 = arith.constant 11 : index
    %c0_110 = arith.constant 0 : index
    %208 = vector.load %arg6[%c11_109, %c0_110] : memref<208x64xf32, #tpu.memory_space<vmem>>, vector<192x64xf32>
    %209 = tpu.concatenate %202, %203, %204, %205, %206, %207, %208 in 1 : vector<192x64xf32>, vector<192x64xf32>, vector<192x64xf32>, vector<192x64xf32>, vector<192x64xf32>, vector<192x64xf32>, vector<192x64xf32> -> vector<192x448xf32>
    %cst_111 = arith.constant dense<0.000000e+00> : vector<192x64xf32>
    %210 = tpu.matmul %209, %196, %cst_111 {dimension_numbers = #tpu.dot_dimension_numbers<[1], [0], [0], [1], [0, 0, 1, 1], [], []>} : vector<192x448xf32>, vector<448x64xf32>, vector<192x64xf32> -> vector<192x64xf32>
    %c12 = arith.constant 12 : index
    %c0_112 = arith.constant 0 : index
    %211 = vector.load %arg4[%c12, %c0_112] : memref<35x64xf32, #tpu.memory_space<vmem>>, vector<1x64xf32>
    %212 = vector.broadcast %211 : vector<1x64xf32> to vector<192x64xf32>
    %213 = arith.addf %210, %212 : vector<192x64xf32>
    %cst_113 = arith.constant 0.000000e+00 : f32
    %214 = vector.shape_cast %10 : vector<192x1xi1> to vector<192x1xi1>
    %215 = vector.broadcast %214 : vector<192x1xi1> to vector<192x64xi1>
    %216 = vector.broadcast %cst_113 : f32 to vector<192x64xf32>
    %217 = arith.select %215, %213, %216 : vector<192x64xi1>, vector<192x64xf32>
    %218 = arith.mulf %217, %217 : vector<192x64xf32>
    %219 = tpu.concatenate %217, %218 in 1 : vector<192x64xf32>, vector<192x64xf32> -> vector<192x128xf32>
    %cst_114 = arith.constant dense<0.000000e+00> : vector<128xf32>
    %220 = vector.multi_reduction <add>, %219, %cst_114 [0] : vector<192x128xf32> to vector<128xf32>
    %221 = vector.shape_cast %220 : vector<128xf32> to vector<1x128xf32>
    %222 = vector.extract_strided_slice %221 {offsets = [0, 0], sizes = [1, 64], strides = [1, 1]} : vector<1x128xf32> to vector<1x64xf32>
    %cst_115 = arith.constant 7.812500e-03 : f32
    %223 = vector.broadcast %cst_115 : f32 to vector<1x64xf32>
    %224 = arith.mulf %222, %223 : vector<1x64xf32>
    %225 = vector.extract_strided_slice %221 {offsets = [0, 64], sizes = [1, 64], strides = [1, 1]} : vector<1x128xf32> to vector<1x64xf32>
    %cst_116 = arith.constant 7.812500e-03 : f32
    %226 = vector.broadcast %cst_116 : f32 to vector<1x64xf32>
    %227 = arith.mulf %225, %226 : vector<1x64xf32>
    %228 = arith.mulf %224, %224 : vector<1x64xf32>
    %229 = arith.subf %227, %228 : vector<1x64xf32>
    %cst_117 = arith.constant 0.000000e+00 : f32
    %230 = vector.broadcast %cst_117 : f32 to vector<1x64xf32>
    %231 = arith.maximumf %229, %230 : vector<1x64xf32>
    %c15 = arith.constant 15 : index
    %c0_118 = arith.constant 0 : index
    %232 = vector.load %arg4[%c15, %c0_118] : memref<35x64xf32, #tpu.memory_space<vmem>>, vector<1x64xf32>
    %233 = vector.broadcast %224 : vector<1x64xf32> to vector<192x64xf32>
    %234 = arith.subf %213, %233 : vector<192x64xf32>
    %cst_119 = arith.constant 9.99999974E-6 : f32
    %235 = vector.broadcast %cst_119 : f32 to vector<1x64xf32>
    %236 = arith.addf %231, %235 : vector<1x64xf32>
    %237 = math.rsqrt %236 : vector<1x64xf32>
    %238 = vector.broadcast %237 : vector<1x64xf32> to vector<192x64xf32>
    %239 = arith.mulf %234, %238 : vector<192x64xf32>
    %240 = vector.broadcast %232 : vector<1x64xf32> to vector<192x64xf32>
    %241 = arith.mulf %240, %239 : vector<192x64xf32>
    %c16 = arith.constant 16 : index
    %c0_120 = arith.constant 0 : index
    %242 = vector.load %arg4[%c16, %c0_120] : memref<35x64xf32, #tpu.memory_space<vmem>>, vector<1x64xf32>
    %243 = vector.broadcast %242 : vector<1x64xf32> to vector<192x64xf32>
    %244 = arith.addf %241, %243 : vector<192x64xf32>
    %cst_121 = arith.constant 0.000000e+00 : f32
    %245 = vector.broadcast %cst_121 : f32 to vector<192x64xf32>
    %246 = arith.maximumf %244, %245 : vector<192x64xf32>
    %c1000 = arith.constant 1000 : index
    %c0_122 = arith.constant 0 : index
    %247 = vector.load %arg3[%c1000, %c0_122] : memref<2536x64xf32, #tpu.memory_space<vmem>>, vector<320x64xf32>
    %cst_123 = arith.constant 0.000000e+00 : f32
    %248 = vector.shape_cast %10 : vector<192x1xi1> to vector<192x1xi1>
    %249 = vector.broadcast %248 : vector<192x1xi1> to vector<192x64xi1>
    %250 = vector.broadcast %cst_123 : f32 to vector<192x64xf32>
    %251 = arith.select %249, %246, %250 : vector<192x64xi1>, vector<192x64xf32>
    %c8_124 = arith.constant 8 : index
    %c0_125 = arith.constant 0 : index
    %252 = vector.load %arg6[%c8_124, %c0_125] : memref<208x64xf32, #tpu.memory_space<vmem>>, vector<192x64xf32>
    tpu.vector_store %arg6[%c8_124, %c0_125], %251 {strides = array<i32>} : memref<208x64xf32, #tpu.memory_space<vmem>>, vector<192x64xf32>,
    %c6_126 = arith.constant 6 : index
    %c0_127 = arith.constant 0 : index
    %253 = vector.load %arg6[%c6_126, %c0_127] : memref<208x64xf32, #tpu.memory_space<vmem>>, vector<192x64xf32>
    %c7_128 = arith.constant 7 : index
    %c0_129 = arith.constant 0 : index
    %254 = vector.load %arg6[%c7_128, %c0_129] : memref<208x64xf32, #tpu.memory_space<vmem>>, vector<192x64xf32>
    %c8_130 = arith.constant 8 : index
    %c0_131 = arith.constant 0 : index
    %255 = vector.load %arg6[%c8_130, %c0_131] : memref<208x64xf32, #tpu.memory_space<vmem>>, vector<192x64xf32>
    %c9_132 = arith.constant 9 : index
    %c0_133 = arith.constant 0 : index
    %256 = vector.load %arg6[%c9_132, %c0_133] : memref<208x64xf32, #tpu.memory_space<vmem>>, vector<192x64xf32>
    %c10_134 = arith.constant 10 : index
    %c0_135 = arith.constant 0 : index
    %257 = vector.load %arg6[%c10_134, %c0_135] : memref<208x64xf32, #tpu.memory_space<vmem>>, vector<192x64xf32>
    %258 = tpu.concatenate %253, %254, %255, %256, %257 in 1 : vector<192x64xf32>, vector<192x64xf32>, vector<192x64xf32>, vector<192x64xf32>, vector<192x64xf32> -> vector<192x320xf32>
    %cst_136 = arith.constant dense<0.000000e+00> : vector<192x64xf32>
    %259 = tpu.matmul %258, %247, %cst_136 {dimension_numbers = #tpu.dot_dimension_numbers<[1], [0], [0], [1], [0, 0, 1, 1], [], []>} : vector<192x320xf32>, vector<320x64xf32>, vector<192x64xf32> -> vector<192x64xf32>
    %c13 = arith.constant 13 : index
    %c0_137 = arith.constant 0 : index
    %260 = vector.load %arg4[%c13, %c0_137] : memref<35x64xf32, #tpu.memory_space<vmem>>, vector<1x64xf32>
    %261 = vector.broadcast %260 : vector<1x64xf32> to vector<192x64xf32>
    %262 = arith.addf %259, %261 : vector<192x64xf32>
    %cst_138 = arith.constant 0.000000e+00 : f32
    %263 = vector.shape_cast %10 : vector<192x1xi1> to vector<192x1xi1>
    %264 = vector.broadcast %263 : vector<192x1xi1> to vector<192x64xi1>
    %265 = vector.broadcast %cst_138 : f32 to vector<192x64xf32>
    %266 = arith.select %264, %262, %265 : vector<192x64xi1>, vector<192x64xf32>
    %267 = arith.mulf %266, %266 : vector<192x64xf32>
    %268 = tpu.concatenate %266, %267 in 1 : vector<192x64xf32>, vector<192x64xf32> -> vector<192x128xf32>
    %cst_139 = arith.constant dense<0.000000e+00> : vector<128xf32>
    %269 = vector.multi_reduction <add>, %268, %cst_139 [0] : vector<192x128xf32> to vector<128xf32>
    %270 = vector.shape_cast %269 : vector<128xf32> to vector<1x128xf32>
    %271 = vector.extract_strided_slice %270 {offsets = [0, 0], sizes = [1, 64], strides = [1, 1]} : vector<1x128xf32> to vector<1x64xf32>
    %cst_140 = arith.constant 7.812500e-03 : f32
    %272 = vector.broadcast %cst_140 : f32 to vector<1x64xf32>
    %273 = arith.mulf %271, %272 : vector<1x64xf32>
    %274 = vector.extract_strided_slice %270 {offsets = [0, 64], sizes = [1, 64], strides = [1, 1]} : vector<1x128xf32> to vector<1x64xf32>
    %cst_141 = arith.constant 7.812500e-03 : f32
    %275 = vector.broadcast %cst_141 : f32 to vector<1x64xf32>
    %276 = arith.mulf %274, %275 : vector<1x64xf32>
    %277 = arith.mulf %273, %273 : vector<1x64xf32>
    %278 = arith.subf %276, %277 : vector<1x64xf32>
    %cst_142 = arith.constant 0.000000e+00 : f32
    %279 = vector.broadcast %cst_142 : f32 to vector<1x64xf32>
    %280 = arith.maximumf %278, %279 : vector<1x64xf32>
    %c17 = arith.constant 17 : index
    %c0_143 = arith.constant 0 : index
    %281 = vector.load %arg4[%c17, %c0_143] : memref<35x64xf32, #tpu.memory_space<vmem>>, vector<1x64xf32>
    %282 = vector.broadcast %273 : vector<1x64xf32> to vector<192x64xf32>
    %283 = arith.subf %262, %282 : vector<192x64xf32>
    %cst_144 = arith.constant 9.99999974E-6 : f32
    %284 = vector.broadcast %cst_144 : f32 to vector<1x64xf32>
    %285 = arith.addf %280, %284 : vector<1x64xf32>
    %286 = math.rsqrt %285 : vector<1x64xf32>
    %287 = vector.broadcast %286 : vector<1x64xf32> to vector<192x64xf32>
    %288 = arith.mulf %283, %287 : vector<192x64xf32>
    %289 = vector.broadcast %281 : vector<1x64xf32> to vector<192x64xf32>
    %290 = arith.mulf %289, %288 : vector<192x64xf32>
    %c18 = arith.constant 18 : index
    %c0_145 = arith.constant 0 : index
    %291 = vector.load %arg4[%c18, %c0_145] : memref<35x64xf32, #tpu.memory_space<vmem>>, vector<1x64xf32>
    %292 = vector.broadcast %291 : vector<1x64xf32> to vector<192x64xf32>
    %293 = arith.addf %290, %292 : vector<192x64xf32>
    %cst_146 = arith.constant 0.000000e+00 : f32
    %294 = vector.broadcast %cst_146 : f32 to vector<192x64xf32>
    %295 = arith.maximumf %293, %294 : vector<192x64xf32>
    %c1320 = arith.constant 1320 : index
    %c0_147 = arith.constant 0 : index
    %296 = vector.load %arg3[%c1320, %c0_147] : memref<2536x64xf32, #tpu.memory_space<vmem>>, vector<192x64xf32>
    %cst_148 = arith.constant 0.000000e+00 : f32
    %297 = vector.shape_cast %10 : vector<192x1xi1> to vector<192x1xi1>
    %298 = vector.broadcast %297 : vector<192x1xi1> to vector<192x64xi1>
    %299 = vector.broadcast %cst_148 : f32 to vector<192x64xf32>
    %300 = arith.select %298, %295, %299 : vector<192x64xi1>, vector<192x64xf32>
    %c8_149 = arith.constant 8 : index
    %c0_150 = arith.constant 0 : index
    %301 = vector.load %arg6[%c8_149, %c0_150] : memref<208x64xf32, #tpu.memory_space<vmem>>, vector<192x64xf32>
    tpu.vector_store %arg6[%c8_149, %c0_150], %300 {strides = array<i32>} : memref<208x64xf32, #tpu.memory_space<vmem>>, vector<192x64xf32>,
    %c7_151 = arith.constant 7 : index
    %c0_152 = arith.constant 0 : index
    %302 = vector.load %arg6[%c7_151, %c0_152] : memref<208x64xf32, #tpu.memory_space<vmem>>, vector<192x64xf32>
    %c8_153 = arith.constant 8 : index
    %c0_154 = arith.constant 0 : index
    %303 = vector.load %arg6[%c8_153, %c0_154] : memref<208x64xf32, #tpu.memory_space<vmem>>, vector<192x64xf32>
    %c9_155 = arith.constant 9 : index
    %c0_156 = arith.constant 0 : index
    %304 = vector.load %arg6[%c9_155, %c0_156] : memref<208x64xf32, #tpu.memory_space<vmem>>, vector<192x64xf32>
    %305 = tpu.concatenate %302, %303, %304 in 1 : vector<192x64xf32>, vector<192x64xf32>, vector<192x64xf32> -> vector<192x192xf32>
    %cst_157 = arith.constant dense<0.000000e+00> : vector<192x64xf32>
    %306 = tpu.matmul %305, %296, %cst_157 {dimension_numbers = #tpu.dot_dimension_numbers<[1], [0], [0], [1], [0, 0, 1, 1], [], []>} : vector<192x192xf32>, vector<192x64xf32>, vector<192x64xf32> -> vector<192x64xf32>
    %c14 = arith.constant 14 : index
    %c0_158 = arith.constant 0 : index
    %307 = vector.load %arg4[%c14, %c0_158] : memref<35x64xf32, #tpu.memory_space<vmem>>, vector<1x64xf32>
    %308 = vector.broadcast %307 : vector<1x64xf32> to vector<192x64xf32>
    %309 = arith.addf %306, %308 : vector<192x64xf32>
    %cst_159 = arith.constant 0.000000e+00 : f32
    %310 = vector.shape_cast %10 : vector<192x1xi1> to vector<192x1xi1>
    %311 = vector.broadcast %310 : vector<192x1xi1> to vector<192x64xi1>
    %312 = vector.broadcast %cst_159 : f32 to vector<192x64xf32>
    %313 = arith.select %311, %309, %312 : vector<192x64xi1>, vector<192x64xf32>
    %314 = arith.mulf %313, %313 : vector<192x64xf32>
    %315 = tpu.concatenate %313, %314 in 1 : vector<192x64xf32>, vector<192x64xf32> -> vector<192x128xf32>
    %cst_160 = arith.constant dense<0.000000e+00> : vector<128xf32>
    %316 = vector.multi_reduction <add>, %315, %cst_160 [0] : vector<192x128xf32> to vector<128xf32>
    %317 = vector.shape_cast %316 : vector<128xf32> to vector<1x128xf32>
    %318 = vector.extract_strided_slice %317 {offsets = [0, 0], sizes = [1, 64], strides = [1, 1]} : vector<1x128xf32> to vector<1x64xf32>
    %cst_161 = arith.constant 7.812500e-03 : f32
    %319 = vector.broadcast %cst_161 : f32 to vector<1x64xf32>
    %320 = arith.mulf %318, %319 : vector<1x64xf32>
    %321 = vector.extract_strided_slice %317 {offsets = [0, 64], sizes = [1, 64], strides = [1, 1]} : vector<1x128xf32> to vector<1x64xf32>
    %cst_162 = arith.constant 7.812500e-03 : f32
    %322 = vector.broadcast %cst_162 : f32 to vector<1x64xf32>
    %323 = arith.mulf %321, %322 : vector<1x64xf32>
    %324 = arith.mulf %320, %320 : vector<1x64xf32>
    %325 = arith.subf %323, %324 : vector<1x64xf32>
    %cst_163 = arith.constant 0.000000e+00 : f32
    %326 = vector.broadcast %cst_163 : f32 to vector<1x64xf32>
    %327 = arith.maximumf %325, %326 : vector<1x64xf32>
    %c19 = arith.constant 19 : index
    %c0_164 = arith.constant 0 : index
    %328 = vector.load %arg4[%c19, %c0_164] : memref<35x64xf32, #tpu.memory_space<vmem>>, vector<1x64xf32>
    %329 = vector.broadcast %320 : vector<1x64xf32> to vector<192x64xf32>
    %330 = arith.subf %309, %329 : vector<192x64xf32>
    %cst_165 = arith.constant 9.99999974E-6 : f32
    %331 = vector.broadcast %cst_165 : f32 to vector<1x64xf32>
    %332 = arith.addf %327, %331 : vector<1x64xf32>
    %333 = math.rsqrt %332 : vector<1x64xf32>
    %334 = vector.broadcast %333 : vector<1x64xf32> to vector<192x64xf32>
    %335 = arith.mulf %330, %334 : vector<192x64xf32>
    %336 = vector.broadcast %328 : vector<1x64xf32> to vector<192x64xf32>
    %337 = arith.mulf %336, %335 : vector<192x64xf32>
    %c20 = arith.constant 20 : index
    %c0_166 = arith.constant 0 : index
    %338 = vector.load %arg4[%c20, %c0_166] : memref<35x64xf32, #tpu.memory_space<vmem>>, vector<1x64xf32>
    %339 = vector.broadcast %338 : vector<1x64xf32> to vector<192x64xf32>
    %340 = arith.addf %337, %339 : vector<192x64xf32>
    %cst_167 = arith.constant 0.000000e+00 : f32
    %341 = vector.shape_cast %10 : vector<192x1xi1> to vector<192x1xi1>
    %342 = vector.broadcast %341 : vector<192x1xi1> to vector<192x64xi1>
    %343 = vector.broadcast %cst_167 : f32 to vector<192x64xf32>
    %344 = arith.select %342, %195, %343 : vector<192x64xi1>, vector<192x64xf32>
    %345 = arith.mulf %344, %344 : vector<192x64xf32>
    %346 = tpu.concatenate %344, %345 in 1 : vector<192x64xf32>, vector<192x64xf32> -> vector<192x128xf32>
    %cst_168 = arith.constant dense<0.000000e+00> : vector<128xf32>
    %347 = vector.multi_reduction <add>, %346, %cst_168 [0] : vector<192x128xf32> to vector<128xf32>
    %348 = vector.shape_cast %347 : vector<128xf32> to vector<1x128xf32>
    %349 = vector.extract_strided_slice %348 {offsets = [0, 0], sizes = [1, 64], strides = [1, 1]} : vector<1x128xf32> to vector<1x64xf32>
    %cst_169 = arith.constant 7.812500e-03 : f32
    %350 = vector.broadcast %cst_169 : f32 to vector<1x64xf32>
    %351 = arith.mulf %349, %350 : vector<1x64xf32>
    %352 = vector.extract_strided_slice %348 {offsets = [0, 64], sizes = [1, 64], strides = [1, 1]} : vector<1x128xf32> to vector<1x64xf32>
    %cst_170 = arith.constant 7.812500e-03 : f32
    %353 = vector.broadcast %cst_170 : f32 to vector<1x64xf32>
    %354 = arith.mulf %352, %353 : vector<1x64xf32>
    %355 = arith.mulf %351, %351 : vector<1x64xf32>
    %356 = arith.subf %354, %355 : vector<1x64xf32>
    %cst_171 = arith.constant 0.000000e+00 : f32
    %357 = vector.broadcast %cst_171 : f32 to vector<1x64xf32>
    %358 = arith.maximumf %356, %357 : vector<1x64xf32>
    %c21 = arith.constant 21 : index
    %c0_172 = arith.constant 0 : index
    %359 = vector.load %arg4[%c21, %c0_172] : memref<35x64xf32, #tpu.memory_space<vmem>>, vector<1x64xf32>
    %360 = vector.broadcast %351 : vector<1x64xf32> to vector<192x64xf32>
    %361 = arith.subf %195, %360 : vector<192x64xf32>
    %cst_173 = arith.constant 9.99999974E-6 : f32
    %362 = vector.broadcast %cst_173 : f32 to vector<1x64xf32>
    %363 = arith.addf %358, %362 : vector<1x64xf32>
    %364 = math.rsqrt %363 : vector<1x64xf32>
    %365 = vector.broadcast %364 : vector<1x64xf32> to vector<192x64xf32>
    %366 = arith.mulf %361, %365 : vector<192x64xf32>
    %367 = vector.broadcast %359 : vector<1x64xf32> to vector<192x64xf32>
    %368 = arith.mulf %367, %366 : vector<192x64xf32>
    %c22 = arith.constant 22 : index
    %c0_174 = arith.constant 0 : index
    %369 = vector.load %arg4[%c22, %c0_174] : memref<35x64xf32, #tpu.memory_space<vmem>>, vector<1x64xf32>
    %370 = vector.broadcast %369 : vector<1x64xf32> to vector<192x64xf32>
    %371 = arith.addf %368, %370 : vector<192x64xf32>
    %372 = arith.addf %340, %371 : vector<192x64xf32>
    %cst_175 = arith.constant 0.000000e+00 : f32
    %373 = vector.broadcast %cst_175 : f32 to vector<192x64xf32>
    %374 = arith.maximumf %372, %373 : vector<192x64xf32>
    %c1512 = arith.constant 1512 : index
    %c0_176 = arith.constant 0 : index
    %375 = vector.load %arg3[%c1512, %c0_176] : memref<2536x64xf32, #tpu.memory_space<vmem>>, vector<448x64xf32>
    %cst_177 = arith.constant 0.000000e+00 : f32
    %376 = vector.shape_cast %10 : vector<192x1xi1> to vector<192x1xi1>
    %377 = vector.broadcast %376 : vector<192x1xi1> to vector<192x64xi1>
    %378 = vector.broadcast %cst_177 : f32 to vector<192x64xf32>
    %379 = arith.select %377, %374, %378 : vector<192x64xi1>, vector<192x64xf32>
    %c8_178 = arith.constant 8 : index
    %c0_179 = arith.constant 0 : index
    %380 = vector.load %arg6[%c8_178, %c0_179] : memref<208x64xf32, #tpu.memory_space<vmem>>, vector<192x64xf32>
    tpu.vector_store %arg6[%c8_178, %c0_179], %379 {strides = array<i32>} : memref<208x64xf32, #tpu.memory_space<vmem>>, vector<192x64xf32>,
    %c5_180 = arith.constant 5 : index
    %c0_181 = arith.constant 0 : index
    %381 = vector.load %arg6[%c5_180, %c0_181] : memref<208x64xf32, #tpu.memory_space<vmem>>, vector<192x64xf32>
    %c6_182 = arith.constant 6 : index
    %c0_183 = arith.constant 0 : index
    %382 = vector.load %arg6[%c6_182, %c0_183] : memref<208x64xf32, #tpu.memory_space<vmem>>, vector<192x64xf32>
    %c7_184 = arith.constant 7 : index
    %c0_185 = arith.constant 0 : index
    %383 = vector.load %arg6[%c7_184, %c0_185] : memref<208x64xf32, #tpu.memory_space<vmem>>, vector<192x64xf32>
    %c8_186 = arith.constant 8 : index
    %c0_187 = arith.constant 0 : index
    %384 = vector.load %arg6[%c8_186, %c0_187] : memref<208x64xf32, #tpu.memory_space<vmem>>, vector<192x64xf32>
    %c9_188 = arith.constant 9 : index
    %c0_189 = arith.constant 0 : index
    %385 = vector.load %arg6[%c9_188, %c0_189] : memref<208x64xf32, #tpu.memory_space<vmem>>, vector<192x64xf32>
    %c10_190 = arith.constant 10 : index
    %c0_191 = arith.constant 0 : index
    %386 = vector.load %arg6[%c10_190, %c0_191] : memref<208x64xf32, #tpu.memory_space<vmem>>, vector<192x64xf32>
    %c11_192 = arith.constant 11 : index
    %c0_193 = arith.constant 0 : index
    %387 = vector.load %arg6[%c11_192, %c0_193] : memref<208x64xf32, #tpu.memory_space<vmem>>, vector<192x64xf32>
    %388 = tpu.concatenate %381, %382, %383, %384, %385, %386, %387 in 1 : vector<192x64xf32>, vector<192x64xf32>, vector<192x64xf32>, vector<192x64xf32>, vector<192x64xf32>, vector<192x64xf32>, vector<192x64xf32> -> vector<192x448xf32>
    %cst_194 = arith.constant dense<0.000000e+00> : vector<192x64xf32>
    %389 = tpu.matmul %388, %375, %cst_194 {dimension_numbers = #tpu.dot_dimension_numbers<[1], [0], [0], [1], [0, 0, 1, 1], [], []>} : vector<192x448xf32>, vector<448x64xf32>, vector<192x64xf32> -> vector<192x64xf32>
    %c23 = arith.constant 23 : index
    %c0_195 = arith.constant 0 : index
    %390 = vector.load %arg4[%c23, %c0_195] : memref<35x64xf32, #tpu.memory_space<vmem>>, vector<1x64xf32>
    %391 = vector.broadcast %390 : vector<1x64xf32> to vector<192x64xf32>
    %392 = arith.addf %389, %391 : vector<192x64xf32>
    %cst_196 = arith.constant 0.000000e+00 : f32
    %393 = vector.shape_cast %10 : vector<192x1xi1> to vector<192x1xi1>
    %394 = vector.broadcast %393 : vector<192x1xi1> to vector<192x64xi1>
    %395 = vector.broadcast %cst_196 : f32 to vector<192x64xf32>
    %396 = arith.select %394, %392, %395 : vector<192x64xi1>, vector<192x64xf32>
    %397 = arith.mulf %396, %396 : vector<192x64xf32>
    %398 = tpu.concatenate %396, %397 in 1 : vector<192x64xf32>, vector<192x64xf32> -> vector<192x128xf32>
    %cst_197 = arith.constant dense<0.000000e+00> : vector<128xf32>
    %399 = vector.multi_reduction <add>, %398, %cst_197 [0] : vector<192x128xf32> to vector<128xf32>
    %400 = vector.shape_cast %399 : vector<128xf32> to vector<1x128xf32>
    %401 = vector.extract_strided_slice %400 {offsets = [0, 0], sizes = [1, 64], strides = [1, 1]} : vector<1x128xf32> to vector<1x64xf32>
    %cst_198 = arith.constant 7.812500e-03 : f32
    %402 = vector.broadcast %cst_198 : f32 to vector<1x64xf32>
    %403 = arith.mulf %401, %402 : vector<1x64xf32>
    %404 = vector.extract_strided_slice %400 {offsets = [0, 64], sizes = [1, 64], strides = [1, 1]} : vector<1x128xf32> to vector<1x64xf32>
    %cst_199 = arith.constant 7.812500e-03 : f32
    %405 = vector.broadcast %cst_199 : f32 to vector<1x64xf32>
    %406 = arith.mulf %404, %405 : vector<1x64xf32>
    %407 = arith.mulf %403, %403 : vector<1x64xf32>
    %408 = arith.subf %406, %407 : vector<1x64xf32>
    %cst_200 = arith.constant 0.000000e+00 : f32
    %409 = vector.broadcast %cst_200 : f32 to vector<1x64xf32>
    %410 = arith.maximumf %408, %409 : vector<1x64xf32>
    %c26 = arith.constant 26 : index
    %c0_201 = arith.constant 0 : index
    %411 = vector.load %arg4[%c26, %c0_201] : memref<35x64xf32, #tpu.memory_space<vmem>>, vector<1x64xf32>
    %412 = vector.broadcast %403 : vector<1x64xf32> to vector<192x64xf32>
    %413 = arith.subf %392, %412 : vector<192x64xf32>
    %cst_202 = arith.constant 9.99999974E-6 : f32
    %414 = vector.broadcast %cst_202 : f32 to vector<1x64xf32>
    %415 = arith.addf %410, %414 : vector<1x64xf32>
    %416 = math.rsqrt %415 : vector<1x64xf32>
    %417 = vector.broadcast %416 : vector<1x64xf32> to vector<192x64xf32>
    %418 = arith.mulf %413, %417 : vector<192x64xf32>
    %419 = vector.broadcast %411 : vector<1x64xf32> to vector<192x64xf32>
    %420 = arith.mulf %419, %418 : vector<192x64xf32>
    %c27 = arith.constant 27 : index
    %c0_203 = arith.constant 0 : index
    %421 = vector.load %arg4[%c27, %c0_203] : memref<35x64xf32, #tpu.memory_space<vmem>>, vector<1x64xf32>
    %422 = vector.broadcast %421 : vector<1x64xf32> to vector<192x64xf32>
    %423 = arith.addf %420, %422 : vector<192x64xf32>
    %cst_204 = arith.constant 0.000000e+00 : f32
    %424 = vector.broadcast %cst_204 : f32 to vector<192x64xf32>
    %425 = arith.maximumf %423, %424 : vector<192x64xf32>
    %c1960 = arith.constant 1960 : index
    %c0_205 = arith.constant 0 : index
    %426 = vector.load %arg3[%c1960, %c0_205] : memref<2536x64xf32, #tpu.memory_space<vmem>>, vector<320x64xf32>
    %cst_206 = arith.constant 0.000000e+00 : f32
    %427 = vector.shape_cast %10 : vector<192x1xi1> to vector<192x1xi1>
    %428 = vector.broadcast %427 : vector<192x1xi1> to vector<192x64xi1>
    %429 = vector.broadcast %cst_206 : f32 to vector<192x64xf32>
    %430 = arith.select %428, %425, %429 : vector<192x64xi1>, vector<192x64xf32>
    %c8_207 = arith.constant 8 : index
    %c0_208 = arith.constant 0 : index
    %431 = vector.load %arg6[%c8_207, %c0_208] : memref<208x64xf32, #tpu.memory_space<vmem>>, vector<192x64xf32>
    tpu.vector_store %arg6[%c8_207, %c0_208], %430 {strides = array<i32>} : memref<208x64xf32, #tpu.memory_space<vmem>>, vector<192x64xf32>,
    %c6_209 = arith.constant 6 : index
    %c0_210 = arith.constant 0 : index
    %432 = vector.load %arg6[%c6_209, %c0_210] : memref<208x64xf32, #tpu.memory_space<vmem>>, vector<192x64xf32>
    %c7_211 = arith.constant 7 : index
    %c0_212 = arith.constant 0 : index
    %433 = vector.load %arg6[%c7_211, %c0_212] : memref<208x64xf32, #tpu.memory_space<vmem>>, vector<192x64xf32>
    %c8_213 = arith.constant 8 : index
    %c0_214 = arith.constant 0 : index
    %434 = vector.load %arg6[%c8_213, %c0_214] : memref<208x64xf32, #tpu.memory_space<vmem>>, vector<192x64xf32>
    %c9_215 = arith.constant 9 : index
    %c0_216 = arith.constant 0 : index
    %435 = vector.load %arg6[%c9_215, %c0_216] : memref<208x64xf32, #tpu.memory_space<vmem>>, vector<192x64xf32>
    %c10_217 = arith.constant 10 : index
    %c0_218 = arith.constant 0 : index
    %436 = vector.load %arg6[%c10_217, %c0_218] : memref<208x64xf32, #tpu.memory_space<vmem>>, vector<192x64xf32>
    %437 = tpu.concatenate %432, %433, %434, %435, %436 in 1 : vector<192x64xf32>, vector<192x64xf32>, vector<192x64xf32>, vector<192x64xf32>, vector<192x64xf32> -> vector<192x320xf32>
    %cst_219 = arith.constant dense<0.000000e+00> : vector<192x64xf32>
    %438 = tpu.matmul %437, %426, %cst_219 {dimension_numbers = #tpu.dot_dimension_numbers<[1], [0], [0], [1], [0, 0, 1, 1], [], []>} : vector<192x320xf32>, vector<320x64xf32>, vector<192x64xf32> -> vector<192x64xf32>
    %c24 = arith.constant 24 : index
    %c0_220 = arith.constant 0 : index
    %439 = vector.load %arg4[%c24, %c0_220] : memref<35x64xf32, #tpu.memory_space<vmem>>, vector<1x64xf32>
    %440 = vector.broadcast %439 : vector<1x64xf32> to vector<192x64xf32>
    %441 = arith.addf %438, %440 : vector<192x64xf32>
    %cst_221 = arith.constant 0.000000e+00 : f32
    %442 = vector.shape_cast %10 : vector<192x1xi1> to vector<192x1xi1>
    %443 = vector.broadcast %442 : vector<192x1xi1> to vector<192x64xi1>
    %444 = vector.broadcast %cst_221 : f32 to vector<192x64xf32>
    %445 = arith.select %443, %441, %444 : vector<192x64xi1>, vector<192x64xf32>
    %446 = arith.mulf %445, %445 : vector<192x64xf32>
    %447 = tpu.concatenate %445, %446 in 1 : vector<192x64xf32>, vector<192x64xf32> -> vector<192x128xf32>
    %cst_222 = arith.constant dense<0.000000e+00> : vector<128xf32>
    %448 = vector.multi_reduction <add>, %447, %cst_222 [0] : vector<192x128xf32> to vector<128xf32>
    %449 = vector.shape_cast %448 : vector<128xf32> to vector<1x128xf32>
    %450 = vector.extract_strided_slice %449 {offsets = [0, 0], sizes = [1, 64], strides = [1, 1]} : vector<1x128xf32> to vector<1x64xf32>
    %cst_223 = arith.constant 7.812500e-03 : f32
    %451 = vector.broadcast %cst_223 : f32 to vector<1x64xf32>
    %452 = arith.mulf %450, %451 : vector<1x64xf32>
    %453 = vector.extract_strided_slice %449 {offsets = [0, 64], sizes = [1, 64], strides = [1, 1]} : vector<1x128xf32> to vector<1x64xf32>
    %cst_224 = arith.constant 7.812500e-03 : f32
    %454 = vector.broadcast %cst_224 : f32 to vector<1x64xf32>
    %455 = arith.mulf %453, %454 : vector<1x64xf32>
    %456 = arith.mulf %452, %452 : vector<1x64xf32>
    %457 = arith.subf %455, %456 : vector<1x64xf32>
    %cst_225 = arith.constant 0.000000e+00 : f32
    %458 = vector.broadcast %cst_225 : f32 to vector<1x64xf32>
    %459 = arith.maximumf %457, %458 : vector<1x64xf32>
    %c28 = arith.constant 28 : index
    %c0_226 = arith.constant 0 : index
    %460 = vector.load %arg4[%c28, %c0_226] : memref<35x64xf32, #tpu.memory_space<vmem>>, vector<1x64xf32>
    %461 = vector.broadcast %452 : vector<1x64xf32> to vector<192x64xf32>
    %462 = arith.subf %441, %461 : vector<192x64xf32>
    %cst_227 = arith.constant 9.99999974E-6 : f32
    %463 = vector.broadcast %cst_227 : f32 to vector<1x64xf32>
    %464 = arith.addf %459, %463 : vector<1x64xf32>
    %465 = math.rsqrt %464 : vector<1x64xf32>
    %466 = vector.broadcast %465 : vector<1x64xf32> to vector<192x64xf32>
    %467 = arith.mulf %462, %466 : vector<192x64xf32>
    %468 = vector.broadcast %460 : vector<1x64xf32> to vector<192x64xf32>
    %469 = arith.mulf %468, %467 : vector<192x64xf32>
    %c29 = arith.constant 29 : index
    %c0_228 = arith.constant 0 : index
    %470 = vector.load %arg4[%c29, %c0_228] : memref<35x64xf32, #tpu.memory_space<vmem>>, vector<1x64xf32>
    %471 = vector.broadcast %470 : vector<1x64xf32> to vector<192x64xf32>
    %472 = arith.addf %469, %471 : vector<192x64xf32>
    %cst_229 = arith.constant 0.000000e+00 : f32
    %473 = vector.broadcast %cst_229 : f32 to vector<192x64xf32>
    %474 = arith.maximumf %472, %473 : vector<192x64xf32>
    %c2280 = arith.constant 2280 : index
    %c0_230 = arith.constant 0 : index
    %475 = vector.load %arg3[%c2280, %c0_230] : memref<2536x64xf32, #tpu.memory_space<vmem>>, vector<192x64xf32>
    %cst_231 = arith.constant 0.000000e+00 : f32
    %476 = vector.shape_cast %10 : vector<192x1xi1> to vector<192x1xi1>
    %477 = vector.broadcast %476 : vector<192x1xi1> to vector<192x64xi1>
    %478 = vector.broadcast %cst_231 : f32 to vector<192x64xf32>
    %479 = arith.select %477, %474, %478 : vector<192x64xi1>, vector<192x64xf32>
    %c8_232 = arith.constant 8 : index
    %c0_233 = arith.constant 0 : index
    %480 = vector.load %arg6[%c8_232, %c0_233] : memref<208x64xf32, #tpu.memory_space<vmem>>, vector<192x64xf32>
    tpu.vector_store %arg6[%c8_232, %c0_233], %479 {strides = array<i32>} : memref<208x64xf32, #tpu.memory_space<vmem>>, vector<192x64xf32>,
    %c7_234 = arith.constant 7 : index
    %c0_235 = arith.constant 0 : index
    %481 = vector.load %arg6[%c7_234, %c0_235] : memref<208x64xf32, #tpu.memory_space<vmem>>, vector<192x64xf32>
    %c8_236 = arith.constant 8 : index
    %c0_237 = arith.constant 0 : index
    %482 = vector.load %arg6[%c8_236, %c0_237] : memref<208x64xf32, #tpu.memory_space<vmem>>, vector<192x64xf32>
    %c9_238 = arith.constant 9 : index
    %c0_239 = arith.constant 0 : index
    %483 = vector.load %arg6[%c9_238, %c0_239] : memref<208x64xf32, #tpu.memory_space<vmem>>, vector<192x64xf32>
    %484 = tpu.concatenate %481, %482, %483 in 1 : vector<192x64xf32>, vector<192x64xf32>, vector<192x64xf32> -> vector<192x192xf32>
    %cst_240 = arith.constant dense<0.000000e+00> : vector<192x64xf32>
    %485 = tpu.matmul %484, %475, %cst_240 {dimension_numbers = #tpu.dot_dimension_numbers<[1], [0], [0], [1], [0, 0, 1, 1], [], []>} : vector<192x192xf32>, vector<192x64xf32>, vector<192x64xf32> -> vector<192x64xf32>
    %c25 = arith.constant 25 : index
    %c0_241 = arith.constant 0 : index
    %486 = vector.load %arg4[%c25, %c0_241] : memref<35x64xf32, #tpu.memory_space<vmem>>, vector<1x64xf32>
    %487 = vector.broadcast %486 : vector<1x64xf32> to vector<192x64xf32>
    %488 = arith.addf %485, %487 : vector<192x64xf32>
    %cst_242 = arith.constant 0.000000e+00 : f32
    %489 = vector.shape_cast %10 : vector<192x1xi1> to vector<192x1xi1>
    %490 = vector.broadcast %489 : vector<192x1xi1> to vector<192x64xi1>
    %491 = vector.broadcast %cst_242 : f32 to vector<192x64xf32>
    %492 = arith.select %490, %488, %491 : vector<192x64xi1>, vector<192x64xf32>
    %493 = arith.mulf %492, %492 : vector<192x64xf32>
    %494 = tpu.concatenate %492, %493 in 1 : vector<192x64xf32>, vector<192x64xf32> -> vector<192x128xf32>
    %cst_243 = arith.constant dense<0.000000e+00> : vector<128xf32>
    %495 = vector.multi_reduction <add>, %494, %cst_243 [0] : vector<192x128xf32> to vector<128xf32>
    %496 = vector.shape_cast %495 : vector<128xf32> to vector<1x128xf32>
    %497 = vector.extract_strided_slice %496 {offsets = [0, 0], sizes = [1, 64], strides = [1, 1]} : vector<1x128xf32> to vector<1x64xf32>
    %cst_244 = arith.constant 7.812500e-03 : f32
    %498 = vector.broadcast %cst_244 : f32 to vector<1x64xf32>
    %499 = arith.mulf %497, %498 : vector<1x64xf32>
    %500 = vector.extract_strided_slice %496 {offsets = [0, 64], sizes = [1, 64], strides = [1, 1]} : vector<1x128xf32> to vector<1x64xf32>
    %cst_245 = arith.constant 7.812500e-03 : f32
    %501 = vector.broadcast %cst_245 : f32 to vector<1x64xf32>
    %502 = arith.mulf %500, %501 : vector<1x64xf32>
    %503 = arith.mulf %499, %499 : vector<1x64xf32>
    %504 = arith.subf %502, %503 : vector<1x64xf32>
    %cst_246 = arith.constant 0.000000e+00 : f32
    %505 = vector.broadcast %cst_246 : f32 to vector<1x64xf32>
    %506 = arith.maximumf %504, %505 : vector<1x64xf32>
    %c30 = arith.constant 30 : index
    %c0_247 = arith.constant 0 : index
    %507 = vector.load %arg4[%c30, %c0_247] : memref<35x64xf32, #tpu.memory_space<vmem>>, vector<1x64xf32>
    %508 = vector.broadcast %499 : vector<1x64xf32> to vector<192x64xf32>
    %509 = arith.subf %488, %508 : vector<192x64xf32>
    %cst_248 = arith.constant 9.99999974E-6 : f32
    %510 = vector.broadcast %cst_248 : f32 to vector<1x64xf32>
    %511 = arith.addf %506, %510 : vector<1x64xf32>
    %512 = math.rsqrt %511 : vector<1x64xf32>
    %513 = vector.broadcast %512 : vector<1x64xf32> to vector<192x64xf32>
    %514 = arith.mulf %509, %513 : vector<192x64xf32>
    %515 = vector.broadcast %507 : vector<1x64xf32> to vector<192x64xf32>
    %516 = arith.mulf %515, %514 : vector<192x64xf32>
    %c31 = arith.constant 31 : index
    %c0_249 = arith.constant 0 : index
    %517 = vector.load %arg4[%c31, %c0_249] : memref<35x64xf32, #tpu.memory_space<vmem>>, vector<1x64xf32>
    %518 = vector.broadcast %517 : vector<1x64xf32> to vector<192x64xf32>
    %519 = arith.addf %516, %518 : vector<192x64xf32>
    %cst_250 = arith.constant 0.000000e+00 : f32
    %520 = vector.shape_cast %10 : vector<192x1xi1> to vector<192x1xi1>
    %521 = vector.broadcast %520 : vector<192x1xi1> to vector<192x64xi1>
    %522 = vector.broadcast %cst_250 : f32 to vector<192x64xf32>
    %523 = arith.select %521, %374, %522 : vector<192x64xi1>, vector<192x64xf32>
    %524 = arith.mulf %523, %523 : vector<192x64xf32>
    %525 = tpu.concatenate %523, %524 in 1 : vector<192x64xf32>, vector<192x64xf32> -> vector<192x128xf32>
    %cst_251 = arith.constant dense<0.000000e+00> : vector<128xf32>
    %526 = vector.multi_reduction <add>, %525, %cst_251 [0] : vector<192x128xf32> to vector<128xf32>
    %527 = vector.shape_cast %526 : vector<128xf32> to vector<1x128xf32>
    %528 = vector.extract_strided_slice %527 {offsets = [0, 0], sizes = [1, 64], strides = [1, 1]} : vector<1x128xf32> to vector<1x64xf32>
    %cst_252 = arith.constant 7.812500e-03 : f32
    %529 = vector.broadcast %cst_252 : f32 to vector<1x64xf32>
    %530 = arith.mulf %528, %529 : vector<1x64xf32>
    %531 = vector.extract_strided_slice %527 {offsets = [0, 64], sizes = [1, 64], strides = [1, 1]} : vector<1x128xf32> to vector<1x64xf32>
    %cst_253 = arith.constant 7.812500e-03 : f32
    %532 = vector.broadcast %cst_253 : f32 to vector<1x64xf32>
    %533 = arith.mulf %531, %532 : vector<1x64xf32>
    %534 = arith.mulf %530, %530 : vector<1x64xf32>
    %535 = arith.subf %533, %534 : vector<1x64xf32>
    %cst_254 = arith.constant 0.000000e+00 : f32
    %536 = vector.broadcast %cst_254 : f32 to vector<1x64xf32>
    %537 = arith.maximumf %535, %536 : vector<1x64xf32>
    %c32_255 = arith.constant 32 : index
    %c0_256 = arith.constant 0 : index
    %538 = vector.load %arg4[%c32_255, %c0_256] : memref<35x64xf32, #tpu.memory_space<vmem>>, vector<1x64xf32>
    %539 = vector.broadcast %530 : vector<1x64xf32> to vector<192x64xf32>
    %540 = arith.subf %374, %539 : vector<192x64xf32>
    %cst_257 = arith.constant 9.99999974E-6 : f32
    %541 = vector.broadcast %cst_257 : f32 to vector<1x64xf32>
    %542 = arith.addf %537, %541 : vector<1x64xf32>
    %543 = math.rsqrt %542 : vector<1x64xf32>
    %544 = vector.broadcast %543 : vector<1x64xf32> to vector<192x64xf32>
    %545 = arith.mulf %540, %544 : vector<192x64xf32>
    %546 = vector.broadcast %538 : vector<1x64xf32> to vector<192x64xf32>
    %547 = arith.mulf %546, %545 : vector<192x64xf32>
    %c33 = arith.constant 33 : index
    %c0_258 = arith.constant 0 : index
    %548 = vector.load %arg4[%c33, %c0_258] : memref<35x64xf32, #tpu.memory_space<vmem>>, vector<1x64xf32>
    %549 = vector.broadcast %548 : vector<1x64xf32> to vector<192x64xf32>
    %550 = arith.addf %547, %549 : vector<192x64xf32>
    %551 = arith.addf %519, %550 : vector<192x64xf32>
    %cst_259 = arith.constant 0.000000e+00 : f32
    %552 = vector.broadcast %cst_259 : f32 to vector<192x64xf32>
    %553 = arith.maximumf %551, %552 : vector<192x64xf32>
    %cst_260 = arith.constant 0.000000e+00 : f32
    %554 = vector.shape_cast %10 : vector<192x1xi1> to vector<192x1xi1>
    %555 = vector.broadcast %554 : vector<192x1xi1> to vector<192x64xi1>
    %556 = vector.broadcast %cst_260 : f32 to vector<192x64xf32>
    %557 = arith.select %555, %553, %556 : vector<192x64xi1>, vector<192x64xf32>
    %558 = vector.shape_cast %557 : vector<192x64xf32> to vector<8x24x64xf32>
    %cst_261 = arith.constant dense<0.000000e+00> : vector<8x64xf32>
    %559 = vector.multi_reduction <add>, %558, %cst_261 [1] : vector<8x24x64xf32> to vector<8x64xf32>
    %cst_262 = arith.constant 6.250000e-02 : f32
    %560 = vector.broadcast %cst_262 : f32 to vector<8x64xf32>
    %561 = arith.mulf %559, %560 : vector<8x64xf32>
    %c2472 = arith.constant 2472 : index
    %c0_263 = arith.constant 0 : index
    %562 = vector.load %arg3[%c2472, %c0_263] : memref<2536x64xf32, #tpu.memory_space<vmem>>, vector<64x64xf32>
    %cst_264 = arith.constant dense<0.000000e+00> : vector<8x64xf32>
    %563 = tpu.matmul %561, %562, %cst_264 {dimension_numbers = #tpu.dot_dimension_numbers<[1], [0], [0], [1], [0, 0, 1, 1], [], []>} : vector<8x64xf32>, vector<64x64xf32>, vector<8x64xf32> -> vector<8x64xf32>
    %c0_265 = arith.constant 0 : index
    %c0_266 = arith.constant 0 : index
    %564 = vector.load %arg2[%c0_265, %c0_266] : memref<8x8xf32, #tpu.memory_space<vmem>>, vector<8x8xf32>
    %cst_267 = arith.constant dense<0.000000e+00> : vector<8x64xf32>
    %565 = tpu.matmul %564, %563, %cst_267 {dimension_numbers = #tpu.dot_dimension_numbers<[1], [0], [0], [1], [0, 0, 1, 1], [], []>} : vector<8x8xf32>, vector<8x64xf32>, vector<8x64xf32> -> vector<8x64xf32>
    %c34 = arith.constant 34 : index
    %c0_268 = arith.constant 0 : index
    %566 = vector.load %arg4[%c34, %c0_268] : memref<35x64xf32, #tpu.memory_space<vmem>>, vector<1x64xf32>
    %567 = vector.broadcast %566 : vector<1x64xf32> to vector<8x64xf32>
    %568 = arith.addf %565, %567 : vector<8x64xf32>
    %569 = vector.extract_strided_slice %568 {offsets = [0, 0], sizes = [8, 4], strides = [1, 1]} : vector<8x64xf32> to vector<8x4xf32>
    %cst_269 = arith.constant dense<0xFF800000> : vector<8xf32>
    %570 = vector.multi_reduction <maximumf>, %569, %cst_269 [1] : vector<8x4xf32> to vector<8xf32>
    %571 = vector.shape_cast %570 : vector<8xf32> to vector<8x1xf32>
    %572 = vector.broadcast %571 : vector<8x1xf32> to vector<8x4xf32>
    %573 = arith.subf %569, %572 : vector<8x4xf32>
    %574 = math.exp %573 : vector<8x4xf32>
    %cst_270 = arith.constant dense<0.000000e+00> : vector<8xf32>
    %575 = vector.multi_reduction <add>, %574, %cst_270 [1] : vector<8x4xf32> to vector<8xf32>
    %576 = vector.shape_cast %575 : vector<8xf32> to vector<8x1xf32>
    %577 = math.log %576 : vector<8x1xf32>
    %578 = vector.broadcast %577 : vector<8x1xf32> to vector<8x4xf32>
    %579 = arith.subf %573, %578 : vector<8x4xf32>
    %c0_271 = arith.constant 0 : index
    %c0_272 = arith.constant 0 : index
    %580 = vector.load %arg5[%c0_271, %c0_272] : memref<8x4xf32, #tpu.memory_space<vmem>>, vector<8x4xf32>
    tpu.vector_store %arg5[%c0_271, %c0_272], %579 {strides = array<i32>} : memref<8x4xf32, #tpu.memory_space<vmem>>, vector<8x4xf32>,
    return
  }
  func.func @transform_0(%arg0: i32) -> (i32, i32) {
    %c0_i32 = arith.constant 0 : i32
    %c0_i32_0 = arith.constant 0 : i32
    %c0_i32_1 = arith.constant 0 : i32
    return %c0_i32, %c0_i32_0 : i32, i32
  }
  func.func @transform_1(%arg0: i32) -> (i32, i32) {
    %c0_i32 = arith.constant 0 : i32
    %c0_i32_0 = arith.constant 0 : i32
    %c0_i32_1 = arith.constant 0 : i32
    return %c0_i32, %c0_i32_0 : i32, i32
  }
  func.func @transform_2(%arg0: i32) -> (i32, i32) {
    %c0_i32 = arith.constant 0 : i32
    %c0_i32_0 = arith.constant 0 : i32
    %c0_i32_1 = arith.constant 0 : i32
    return %c0_i32, %c0_i32_0 : i32, i32
  }
  func.func @transform_3(%arg0: i32) -> (i32, i32) {
    %c0_i32 = arith.constant 0 : i32
    %c0_i32_0 = arith.constant 0 : i32
    %c0_i32_1 = arith.constant 0 : i32
    return %c0_i32, %c0_i32_0 : i32, i32
  }
  func.func @transform_4(%arg0: i32) -> (i32, i32) {
    %c0_i32 = arith.constant 0 : i32
    %c0_i32_0 = arith.constant 0 : i32
    %c0_i32_1 = arith.constant 0 : i32
    return %c0_i32, %c0_i32_0 : i32, i32
  }
}

</mosaic_0001>

<llo_original>
// kernel: tpu_custom_call.1
$region0: #{tpu_custom_call.1}
  #allocation0 [shape = 'u32[]', space=smem, size = 0x4, offset = 0x4, fixed_abs, tag = 'smem constant byte address 0x4 - core index']
  #allocation1 [shape = 'u32[144,128]{1,0:T(1,128)}', space=vmem, size = 0x12000, scoped, tag = 'internal scratch']
  #allocation2 [shape = 'f32[208,64]{1,0:T(8,128)}', space=vmem, size = 0x1a000, scoped, tag = 'scratch operand']
  %s0 = inlined_call_operand.vmem [shape: f32[192,4], index: 0, kind: input, shape index: {}]
  %s1 = inlined_call_operand.vmem [shape: f32[8,8], index: 1, kind: input, shape index: {}]
  %s2 = inlined_call_operand.vmem [shape: f32[2536,64], index: 2, kind: input, shape index: {}]
  %s3 = inlined_call_operand.vmem [shape: f32[35,64], index: 3, kind: input, shape index: {}]
  %s4 = inlined_call_operand.vmem [shape: f32[8,4], index: 4, kind: output, shape index: {}]
  %s5 = sld [smem:[#allocation0]]
  $region26: #{tpu_custom_call.1} parent=0
    _
  %s7 = ssub.s32 1, %s5
  %s8 = scalar_select 0, %s7, %s5
  // Predicated region
  $region2: #{tpu_custom_call.1} parent=0 // pred_check
    _
  $region3: #{tpu_custom_call.1} parent=0 // pred_check_branch
    %10 = sbr.rel (0) target = $region5
  $region4: #{tpu_custom_call.1} parent=0 // pred_region
    _
  $region5: #{tpu_custom_call.1} parent=0 // pred_fallthru
    _
  // Predicated region
  $region6: #{tpu_custom_call.1} parent=0 // pred_check
    _
  $region7: #{tpu_custom_call.1} parent=0 // pred_check_branch
    %12 = sbr.rel (0) target = $region9
  $region8: #{tpu_custom_call.1} parent=0 // pred_region
    _
  $region9: #{tpu_custom_call.1} parent=0 // pred_fallthru
    _
  // Predicated region
  $region10: #{tpu_custom_call.1} parent=0 // pred_check
    _
  $region11: #{tpu_custom_call.1} parent=0 // pred_check_branch
    %14 = sbr.rel (0) target = $region13
  $region12: #{tpu_custom_call.1} parent=0 // pred_region
    _
  $region13: #{tpu_custom_call.1} parent=0 // pred_fallthru
    _
  // Predicated region
  $region14: #{tpu_custom_call.1} parent=0 // pred_check
    _
  $region15: #{tpu_custom_call.1} parent=0 // pred_check_branch
    %16 = sbr.rel (0) target = $region17
  $region16: #{tpu_custom_call.1} parent=0 // pred_region
    _
  $region17: #{tpu_custom_call.1} parent=0 // pred_fallthru
    _
  %vm17 = vcmask 523264
  %18 = vst.msk [vmem:[#allocation2] sm:$0xff] %vm17, 0.0
  %19 = vst.msk [vmem:[#allocation2 + $0xc8] sm:$0xff] %vm17, 0.0
  %v20 = vlaneseq
  %v21 = vshrl.u32 %v20, 7
  %v22 = vadd.s32 %v21, 8
  %v23 = vadd.s32 %v21, 16
  %vm24 = vcmp.ge.s32.totalorder %v21, 3
  %vm25 = vcmp.ge.s32.totalorder %v22, 3
  %vm26 = vcmp.ge.s32.totalorder %v23, 3
  %vm27 = vcmp.lt.s32.totalorder %v21, 19
  %vm28 = vcmp.lt.s32.totalorder %v22, 19
  %vm29 = vcmp.lt.s32.totalorder %v23, 19
  %vm30 = vmand %vm24, %vm27
  %vm31 = vmand %vm25, %vm28
  %vm32 = vmand %vm26, %vm29
  %v33 = vld [vmem:[%s0] sm:$0xff]
  %v34 = vld [vmem:[%s0 + $0x8] sm:$0xff]
  %v35 = vld [vmem:[%s0 + $0x10] sm:$0xff]
  %v36 = vld [vmem:[%s0 + $0x18] sm:$0xff]
  %v37 = vld [vmem:[%s0 + $0x20] sm:$0xff]
  %v38 = vld [vmem:[%s0 + $0x28] sm:$0xff]
  %v39 = vld [vmem:[%s0 + $0x30] sm:$0xff]
  %v40 = vld [vmem:[%s0 + $0x38] sm:$0xff]
  %v41 = vld [vmem:[%s0 + $0x40] sm:$0xff]
  %v42 = vld [vmem:[%s0 + $0x48] sm:$0xff]
  %v43 = vld [vmem:[%s0 + $0x50] sm:$0xff]
  %v44 = vld [vmem:[%s0 + $0x58] sm:$0xff]
  %v45 = vld [vmem:[%s0 + $0x60] sm:$0xff]
  %v46 = vld [vmem:[%s0 + $0x68] sm:$0xff]
  %v47 = vld [vmem:[%s0 + $0x70] sm:$0xff]
  %v48 = vld [vmem:[%s0 + $0x78] sm:$0xff]
  %v49 = vld [vmem:[%s0 + $0x80] sm:$0xff]
  %v50 = vld [vmem:[%s0 + $0x88] sm:$0xff]
  %v51 = vld [vmem:[%s0 + $0x90] sm:$0xff]
  %v52 = vld [vmem:[%s0 + $0x98] sm:$0xff]
  %v53 = vld [vmem:[%s0 + $0xa0] sm:$0xff]
  %v54 = vld [vmem:[%s0 + $0xa8] sm:$0xff]
  %v55 = vld [vmem:[%s0 + $0xb0] sm:$0xff]
  %v56 = vld [vmem:[%s0 + $0xb8] sm:$0xff]
  %v57 = vld [vmem:[%s2] sm:$0xff]
  %v58 = vld [vmem:[%s2 + $0x8] sm:$0xff]
  %v59 = vld [vmem:[%s2 + $0x10] sm:$0xff]
  %v60 = vld [vmem:[%s2 + $0x18] sm:$0xf]
  %v61 = vsel %vm30, 1, 0
  %v62 = vsel %vm31, 1, 0
  %v63 = vsel %vm32, 1, 0
  %vm64 = vcmp.eq.s32.totalorder %v61, 1
  %vm65 = vcmp.eq.s32.totalorder %v62, 1
  %vm66 = vcmp.eq.s32.totalorder %v63, 1
  %v67 = vsel %vm64, %v33, 0.0
  %v68 = vsel %vm65, %v34, 0.0
  %v69 = vsel %vm66, %v35, 0.0
  %v70 = vsel %vm64, %v36, 0.0
  %v71 = vsel %vm65, %v37, 0.0
  %v72 = vsel %vm66, %v38, 0.0
  %v73 = vsel %vm64, %v39, 0.0
  %v74 = vsel %vm65, %v40, 0.0
  %v75 = vsel %vm66, %v41, 0.0
  %v76 = vsel %vm64, %v42, 0.0
  %v77 = vsel %vm65, %v43, 0.0
  %v78 = vsel %vm66, %v44, 0.0
  %v79 = vsel %vm64, %v45, 0.0
  %v80 = vsel %vm65, %v46, 0.0
  %v81 = vsel %vm66, %v47, 0.0
  %v82 = vsel %vm64, %v48, 0.0
  %v83 = vsel %vm65, %v49, 0.0
  %v84 = vsel %vm66, %v50, 0.0
  %v85 = vsel %vm64, %v51, 0.0
  %v86 = vsel %vm65, %v52, 0.0
  %v87 = vsel %vm66, %v53, 0.0
  %v88 = vsel %vm64, %v54, 0.0
  %v89 = vsel %vm65, %v55, 0.0
  %v90 = vsel %vm66, %v56, 0.0
  %vm91 = vcmask 31744
  %92 = vst.msk [vmem:[#allocation2 + $0x8] sm:$0xff] %vm91, %v67
  %93 = vst.msk [vmem:[#allocation2 + $0x10] sm:$0xff] %vm91, %v68
  %94 = vst.msk [vmem:[#allocation2 + $0x18] sm:$0xff] %vm91, %v69
  %95 = vst.msk [vmem:[#allocation2 + $0x20] sm:$0xff] %vm91, %v70
  %96 = vst.msk [vmem:[#allocation2 + $0x28] sm:$0xff] %vm91, %v71
  %97 = vst.msk [vmem:[#allocation2 + $0x30] sm:$0xff] %vm91, %v72
  %98 = vst.msk [vmem:[#allocation2 + $0x38] sm:$0xff] %vm91, %v73
  %99 = vst.msk [vmem:[#allocation2 + $0x40] sm:$0xff] %vm91, %v74
  %100 = vst.msk [vmem:[#allocation2 + $0x48] sm:$0xff] %vm91, %v75
  %101 = vst.msk [vmem:[#allocation2 + $0x50] sm:$0xff] %vm91, %v76
  %102 = vst.msk [vmem:[#allocation2 + $0x58] sm:$0xff] %vm91, %v77
  %103 = vst.msk [vmem:[#allocation2 + $0x60] sm:$0xff] %vm91, %v78
  %104 = vst.msk [vmem:[#allocation2 + $0x68] sm:$0xff] %vm91, %v79
  %105 = vst.msk [vmem:[#allocation2 + $0x70] sm:$0xff] %vm91, %v80
  %106 = vst.msk [vmem:[#allocation2 + $0x78] sm:$0xff] %vm91, %v81
  %107 = vst.msk [vmem:[#allocation2 + $0x80] sm:$0xff] %vm91, %v82
  %108 = vst.msk [vmem:[#allocation2 + $0x88] sm:$0xff] %vm91, %v83
  %109 = vst.msk [vmem:[#allocation2 + $0x90] sm:$0xff] %vm91, %v84
  %110 = vst.msk [vmem:[#allocation2 + $0x98] sm:$0xff] %vm91, %v85
  %111 = vst.msk [vmem:[#allocation2 + $0xa0] sm:$0xff] %vm91, %v86
  %112 = vst.msk [vmem:[#allocation2 + $0xa8] sm:$0xff] %vm91, %v87
  %113 = vst.msk [vmem:[#allocation2 + $0xb0] sm:$0xff] %vm91, %v88
  %114 = vst.msk [vmem:[#allocation2 + $0xb8] sm:$0xff] %vm91, %v89
  %115 = vst.msk [vmem:[#allocation2 + $0xc0] sm:$0xff] %vm91, %v90
  %v116 = vld [vmem:[#allocation2 + $0x5] sm:$0xff]
  %v117 = vld [vmem:[#allocation2 + $0xd] sm:$0xff]
  %v118 = vld [vmem:[#allocation2 + $0x15] sm:$0xff]
  %v119 = vld [vmem:[#allocation2 + $0x1d] sm:$0xff]
  %v120 = vld [vmem:[#allocation2 + $0x25] sm:$0xff]
  %v121 = vld [vmem:[#allocation2 + $0x2d] sm:$0xff]
  %v122 = vld [vmem:[#allocation2 + $0x35] sm:$0xff]
  %v123 = vld [vmem:[#allocation2 + $0x3d] sm:$0xff]
  %v124 = vld [vmem:[#allocation2 + $0x45] sm:$0xff]
  %v125 = vld [vmem:[#allocation2 + $0x4d] sm:$0xff]
  %v126 = vld [vmem:[#allocation2 + $0x55] sm:$0xff]
  %v127 = vld [vmem:[#allocation2 + $0x5d] sm:$0xff]
  %v128 = vld [vmem:[#allocation2 + $0x65] sm:$0xff]
  %v129 = vld [vmem:[#allocation2 + $0x6d] sm:$0xff]
  %v130 = vld [vmem:[#allocation2 + $0x75] sm:$0xff]
  %v131 = vld [vmem:[#allocation2 + $0x7d] sm:$0xff]
  %v132 = vld [vmem:[#allocation2 + $0x85] sm:$0xff]
  %v133 = vld [vmem:[#allocation2 + $0x8d] sm:$0xff]
  %v134 = vld [vmem:[#allocation2 + $0x95] sm:$0xff]
  %v135 = vld [vmem:[#allocation2 + $0x9d] sm:$0xff]
  %v136 = vld [vmem:[#allocation2 + $0xa5] sm:$0xff]
  %v137 = vld [vmem:[#allocation2 + $0xad] sm:$0xff]
  %v138 = vld [vmem:[#allocation2 + $0xb5] sm:$0xff]
  %v139 = vld [vmem:[#allocation2 + $0xbd] sm:$0xff]
  %v140 = vld [vmem:[#allocation2 + $0x6] sm:$0xff]
  %v141 = vld [vmem:[#allocation2 + $0xe] sm:$0xff]
  %v142 = vld [vmem:[#allocation2 + $0x16] sm:$0xff]
  %v143 = vld [vmem:[#allocation2 + $0x1e] sm:$0xff]
  %v144 = vld [vmem:[#allocation2 + $0x26] sm:$0xff]
  %v145 = vld [vmem:[#allocation2 + $0x2e] sm:$0xff]
  %v146 = vld [vmem:[#allocation2 + $0x36] sm:$0xff]
  %v147 = vld [vmem:[#allocation2 + $0x3e] sm:$0xff]
  %v148 = vld [vmem:[#allocation2 + $0x46] sm:$0xff]
  %v149 = vld [vmem:[#allocation2 + $0x4e] sm:$0xff]
  %v150 = vld [vmem:[#allocation2 + $0x56] sm:$0xff]
  %v151 = vld [vmem:[#allocation2 + $0x5e] sm:$0xff]
  %v152 = vld [vmem:[#allocation2 + $0x66] sm:$0xff]
  %v153 = vld [vmem:[#allocation2 + $0x6e] sm:$0xff]
  %v154 = vld [vmem:[#allocation2 + $0x76] sm:$0xff]
  %v155 = vld [vmem:[#allocation2 + $0x7e] sm:$0xff]
  %v156 = vld [vmem:[#allocation2 + $0x86] sm:$0xff]
  %v157 = vld [vmem:[#allocation2 + $0x8e] sm:$0xff]
  %v158 = vld [vmem:[#allocation2 + $0x96] sm:$0xff]
  %v159 = vld [vmem:[#allocation2 + $0x9e] sm:$0xff]
  %v160 = vld [vmem:[#allocation2 + $0xa6] sm:$0xff]
  %v161 = vld [vmem:[#allocation2 + $0xae] sm:$0xff]
  %v162 = vld [vmem:[#allocation2 + $0xb6] sm:$0xff]
  %v163 = vld [vmem:[#allocation2 + $0xbe] sm:$0xff]
  %v164 = vld [vmem:[#allocation2 + $0x7] sm:$0xff]
  %v165 = vld [vmem:[#allocation2 + $0xf] sm:$0xff]
  %v166 = vld [vmem:[#allocation2 + $0x17] sm:$0xff]
  %v167 = vld [vmem:[#allocation2 + $0x1f] sm:$0xff]
  %v168 = vld [vmem:[#allocation2 + $0x27] sm:$0xff]
  %v169 = vld [vmem:[#allocation2 + $0x2f] sm:$0xff]
  %v170 = vld [vmem:[#allocation2 + $0x37] sm:$0xff]
  %v171 = vld [vmem:[#allocation2 + $0x3f] sm:$0xff]
  %v172 = vld [vmem:[#allocation2 + $0x47] sm:$0xff]
  %v173 = vld [vmem:[#allocation2 + $0x4f] sm:$0xff]
  %v174 = vld [vmem:[#allocation2 + $0x57] sm:$0xff]
  %v175 = vld [vmem:[#allocation2 + $0x5f] sm:$0xff]
  %v176 = vld [vmem:[#allocation2 + $0x67] sm:$0xff]
  %v177 = vld [vmem:[#allocation2 + $0x6f] sm:$0xff]
  %v178 = vld [vmem:[#allocation2 + $0x77] sm:$0xff]
  %v179 = vld [vmem:[#allocation2 + $0x7f] sm:$0xff]
  %v180 = vld [vmem:[#allocation2 + $0x87] sm:$0xff]
  %v181 = vld [vmem:[#allocation2 + $0x8f] sm:$0xff]
  %v182 = vld [vmem:[#allocation2 + $0x97] sm:$0xff]
  %v183 = vld [vmem:[#allocation2 + $0x9f] sm:$0xff]
  %v184 = vld [vmem:[#allocation2 + $0xa7] sm:$0xff]
  %v185 = vld [vmem:[#allocation2 + $0xaf] sm:$0xff]
  %v186 = vld [vmem:[#allocation2 + $0xb7] sm:$0xff]
  %v187 = vld [vmem:[#allocation2 + $0xbf] sm:$0xff]
  %v188 = vld [vmem:[#allocation2 + $0x8] sm:$0xff]
  %v189 = vld [vmem:[#allocation2 + $0x10] sm:$0xff]
  %v190 = vld [vmem:[#allocation2 + $0x18] sm:$0xff]
  %v191 = vld [vmem:[#allocation2 + $0x20] sm:$0xff]
  %v192 = vld [vmem:[#allocation2 + $0x28] sm:$0xff]
  %v193 = vld [vmem:[#allocation2 + $0x30] sm:$0xff]
  %v194 = vld [vmem:[#allocation2 + $0x38] sm:$0xff]
  %v195 = vld [vmem:[#allocation2 + $0x40] sm:$0xff]
  %v196 = vld [vmem:[#allocation2 + $0x48] sm:$0xff]
  %v197 = vld [vmem:[#allocation2 + $0x50] sm:$0xff]
  %v198 = vld [vmem:[#allocation2 + $0x58] sm:$0xff]
  %v199 = vld [vmem:[#allocation2 + $0x60] sm:$0xff]
  %v200 = vld [vmem:[#allocation2 + $0x68] sm:$0xff]
  %v201 = vld [vmem:[#allocation2 + $0x70] sm:$0xff]
  %v202 = vld [vmem:[#allocation2 + $0x78] sm:$0xff]
  %v203 = vld [vmem:[#allocation2 + $0x80] sm:$0xff]
  %v204 = vld [vmem:[#allocation2 + $0x88] sm:$0xff]
  %v205 = vld [vmem:[#allocation2 + $0x90] sm:$0xff]
  %v206 = vld [vmem:[#allocation2 + $0x98] sm:$0xff]
  %v207 = vld [vmem:[#allocation2 + $0xa0] sm:$0xff]
  %v208 = vld [vmem:[#allocation2 + $0xa8] sm:$0xff]
  %v209 = vld [vmem:[#allocation2 + $0xb0] sm:$0xff]
  %v210 = vld [vmem:[#allocation2 + $0xb8] sm:$0xff]
  %v211 = vld [vmem:[#allocation2 + $0xc0] sm:$0xff]
  %v212 = vld [vmem:[#allocation2 + $0x9] sm:$0xff]
  %v213 = vld [vmem:[#allocation2 + $0x11] sm:$0xff]
  %v214 = vld [vmem:[#allocation2 + $0x19] sm:$0xff]
  %v215 = vld [vmem:[#allocation2 + $0x21] sm:$0xff]
  %v216 = vld [vmem:[#allocation2 + $0x29] sm:$0xff]
  %v217 = vld [vmem:[#allocation2 + $0x31] sm:$0xff]
  %v218 = vld [vmem:[#allocation2 + $0x39] sm:$0xff]
  %v219 = vld [vmem:[#allocation2 + $0x41] sm:$0xff]
  %v220 = vld [vmem:[#allocation2 + $0x49] sm:$0xff]
  %v221 = vld [vmem:[#allocation2 + $0x51] sm:$0xff]
  %v222 = vld [vmem:[#allocation2 + $0x59] sm:$0xff]
  %v223 = vld [vmem:[#allocation2 + $0x61] sm:$0xff]
  %v224 = vld [vmem:[#allocation2 + $0x69] sm:$0xff]
  %v225 = vld [vmem:[#allocation2 + $0x71] sm:$0xff]
  %v226 = vld [vmem:[#allocation2 + $0x79] sm:$0xff]
  %v227 = vld [vmem:[#allocation2 + $0x81] sm:$0xff]
  %v228 = vld [vmem:[#allocation2 + $0x89] sm:$0xff]
  %v229 = vld [vmem:[#allocation2 + $0x91] sm:$0xff]
  %v230 = vld [vmem:[#allocation2 + $0x99] sm:$0xff]
  %v231 = vld [vmem:[#allocation2 + $0xa1] sm:$0xff]
  %v232 = vld [vmem:[#allocation2 + $0xa9] sm:$0xff]
  %v233 = vld [vmem:[#allocation2 + $0xb1] sm:$0xff]
  %v234 = vld [vmem:[#allocation2 + $0xb9] sm:$0xff]
  %v235 = vld [vmem:[#allocation2 + $0xc1] sm:$0xff]
  %v236 = vld [vmem:[#allocation2 + $0xa] sm:$0xff]
  %v237 = vld [vmem:[#allocation2 + $0x12] sm:$0xff]
  %v238 = vld [vmem:[#allocation2 + $0x1a] sm:$0xff]
  %v239 = vld [vmem:[#allocation2 + $0x22] sm:$0xff]
  %v240 = vld [vmem:[#allocation2 + $0x2a] sm:$0xff]
  %v241 = vld [vmem:[#allocation2 + $0x32] sm:$0xff]
  %v242 = vld [vmem:[#allocation2 + $0x3a] sm:$0xff]
  %v243 = vld [vmem:[#allocation2 + $0x42] sm:$0xff]
  %v244 = vld [vmem:[#allocation2 + $0x4a] sm:$0xff]
  %v245 = vld [vmem:[#allocation2 + $0x52] sm:$0xff]
  %v246 = vld [vmem:[#allocation2 + $0x5a] sm:$0xff]
  %v247 = vld [vmem:[#allocation2 + $0x62] sm:$0xff]
  %v248 = vld [vmem:[#allocation2 + $0x6a] sm:$0xff]
  %v249 = vld [vmem:[#allocation2 + $0x72] sm:$0xff]
  %v250 = vld [vmem:[#allocation2 + $0x7a] sm:$0xff]
  %v251 = vld [vmem:[#allocation2 + $0x82] sm:$0xff]
  %v252 = vld [vmem:[#allocation2 + $0x8a] sm:$0xff]
  %v253 = vld [vmem:[#allocation2 + $0x92] sm:$0xff]
  %v254 = vld [vmem:[#allocation2 + $0x9a] sm:$0xff]
  %v255 = vld [vmem:[#allocation2 + $0xa2] sm:$0xff]
  %v256 = vld [vmem:[#allocation2 + $0xaa] sm:$0xff]
  %v257 = vld [vmem:[#allocation2 + $0xb2] sm:$0xff]
  %v258 = vld [vmem:[#allocation2 + $0xba] sm:$0xff]
  %v259 = vld [vmem:[#allocation2 + $0xc2] sm:$0xff]
  %v260 = vld [vmem:[#allocation2 + $0xb] sm:$0xff]
  %v261 = vld [vmem:[#allocation2 + $0x13] sm:$0xff]
  %v262 = vld [vmem:[#allocation2 + $0x1b] sm:$0xff]
  %v263 = vld [vmem:[#allocation2 + $0x23] sm:$0xff]
  %v264 = vld [vmem:[#allocation2 + $0x2b] sm:$0xff]
  %v265 = vld [vmem:[#allocation2 + $0x33] sm:$0xff]
  %v266 = vld [vmem:[#allocation2 + $0x3b] sm:$0xff]
  %v267 = vld [vmem:[#allocation2 + $0x43] sm:$0xff]
  %v268 = vld [vmem:[#allocation2 + $0x4b] sm:$0xff]
  %v269 = vld [vmem:[#allocation2 + $0x53] sm:$0xff]
  %v270 = vld [vmem:[#allocation2 + $0x5b] sm:$0xff]
  %v271 = vld [vmem:[#allocation2 + $0x63] sm:$0xff]
  %v272 = vld [vmem:[#allocation2 + $0x6b] sm:$0xff]
  %v273 = vld [vmem:[#allocation2 + $0x73] sm:$0xff]
  %v274 = vld [vmem:[#allocation2 + $0x7b] sm:$0xff]
  %v275 = vld [vmem:[#allocation2 + $0x83] sm:$0xff]
  %v276 = vld [vmem:[#allocation2 + $0x8b] sm:$0xff]
  %v277 = vld [vmem:[#allocation2 + $0x93] sm:$0xff]
  %v278 = vld [vmem:[#allocation2 + $0x9b] sm:$0xff]
  %v279 = vld [vmem:[#allocation2 + $0xa3] sm:$0xff]
  %v280 = vld [vmem:[#allocation2 + $0xab] sm:$0xff]
  %v281 = vld [vmem:[#allocation2 + $0xb3] sm:$0xff]
  %v282 = vld [vmem:[#allocation2 + $0xbb] sm:$0xff]
  %v283 = vld [vmem:[#allocation2 + $0xc3] sm:$0xff]
  %308 = vrot.lane.b32.xlu0 %v140, 4
  %v309 = vpop.permute.xlu0 %308
  %310 = vrot.lane.b32.xlu0 %v141, 4
  %v311 = vpop.permute.xlu0 %310
  %312 = vrot.lane.b32.xlu0 %v142, 4
  %v313 = vpop.permute.xlu0 %312
  %314 = vrot.lane.b32.xlu0 %v143, 4
  %v315 = vpop.permute.xlu0 %314
  %316 = vrot.lane.b32.xlu0 %v144, 4
  %v317 = vpop.permute.xlu0 %316
  %318 = vrot.lane.b32.xlu0 %v145, 4
  %v319 = vpop.permute.xlu0 %318
  %320 = vrot.lane.b32.xlu0 %v146, 4
  %v321 = vpop.permute.xlu0 %320
  %322 = vrot.lane.b32.xlu0 %v147, 4
  %v323 = vpop.permute.xlu0 %322
  %324 = vrot.lane.b32.xlu0 %v148, 4
  %v325 = vpop.permute.xlu0 %324
  %326 = vrot.lane.b32.xlu0 %v149, 4
  %v327 = vpop.permute.xlu0 %326
  %328 = vrot.lane.b32.xlu0 %v150, 4
  %v329 = vpop.permute.xlu0 %328
  %330 = vrot.lane.b32.xlu0 %v151, 4
  %v331 = vpop.permute.xlu0 %330
  %332 = vrot.lane.b32.xlu0 %v152, 4
  %v333 = vpop.permute.xlu0 %332
  %334 = vrot.lane.b32.xlu0 %v153, 4
  %v335 = vpop.permute.xlu0 %334
  %336 = vrot.lane.b32.xlu0 %v154, 4
  %v337 = vpop.permute.xlu0 %336
  %338 = vrot.lane.b32.xlu0 %v155, 4
  %v339 = vpop.permute.xlu0 %338
  %340 = vrot.lane.b32.xlu0 %v156, 4
  %v341 = vpop.permute.xlu0 %340
  %342 = vrot.lane.b32.xlu0 %v157, 4
  %v343 = vpop.permute.xlu0 %342
  %344 = vrot.lane.b32.xlu0 %v158, 4
  %v345 = vpop.permute.xlu0 %344
  %346 = vrot.lane.b32.xlu0 %v159, 4
  %v347 = vpop.permute.xlu0 %346
  %348 = vrot.lane.b32.xlu0 %v160, 4
  %v349 = vpop.permute.xlu0 %348
  %350 = vrot.lane.b32.xlu0 %v161, 4
  %v351 = vpop.permute.xlu0 %350
  %352 = vrot.lane.b32.xlu0 %v162, 4
  %v353 = vpop.permute.xlu0 %352
  %354 = vrot.lane.b32.xlu0 %v163, 4
  %v355 = vpop.permute.xlu0 %354
  %404 = vrot.lane.b32.xlu0 %v164, 8
  %v405 = vpop.permute.xlu0 %404
  %406 = vrot.lane.b32.xlu0 %v165, 8
  %v407 = vpop.permute.xlu0 %406
  %408 = vrot.lane.b32.xlu0 %v166, 8
  %v409 = vpop.permute.xlu0 %408
  %410 = vrot.lane.b32.xlu0 %v167, 8
  %v411 = vpop.permute.xlu0 %410
  %412 = vrot.lane.b32.xlu0 %v168, 8
  %v413 = vpop.permute.xlu0 %412
  %414 = vrot.lane.b32.xlu0 %v169, 8
  %v415 = vpop.permute.xlu0 %414
  %416 = vrot.lane.b32.xlu0 %v170, 8
  %v417 = vpop.permute.xlu0 %416
  %418 = vrot.lane.b32.xlu0 %v171, 8
  %v419 = vpop.permute.xlu0 %418
  %420 = vrot.lane.b32.xlu0 %v172, 8
  %v421 = vpop.permute.xlu0 %420
  %422 = vrot.lane.b32.xlu0 %v173, 8
  %v423 = vpop.permute.xlu0 %422
  %424 = vrot.lane.b32.xlu0 %v174, 8
  %v425 = vpop.permute.xlu0 %424
  %426 = vrot.lane.b32.xlu0 %v175, 8
  %v427 = vpop.permute.xlu0 %426
  %428 = vrot.lane.b32.xlu0 %v176, 8
  %v429 = vpop.permute.xlu0 %428
  %430 = vrot.lane.b32.xlu0 %v177, 8
  %v431 = vpop.permute.xlu0 %430
  %432 = vrot.lane.b32.xlu0 %v178, 8
  %v433 = vpop.permute.xlu0 %432
  %434 = vrot.lane.b32.xlu0 %v179, 8
  %v435 = vpop.permute.xlu0 %434
  %436 = vrot.lane.b32.xlu0 %v180, 8
  %v437 = vpop.permute.xlu0 %436
  %438 = vrot.lane.b32.xlu0 %v181, 8
  %v439 = vpop.permute.xlu0 %438
  %440 = vrot.lane.b32.xlu0 %v182, 8
  %v441 = vpop.permute.xlu0 %440
  %442 = vrot.lane.b32.xlu0 %v183, 8
  %v443 = vpop.permute.xlu0 %442
  %444 = vrot.lane.b32.xlu0 %v184, 8
  %v445 = vpop.permute.xlu0 %444
  %446 = vrot.lane.b32.xlu0 %v185, 8
  %v447 = vpop.permute.xlu0 %446
  %448 = vrot.lane.b32.xlu0 %v186, 8
  %v449 = vpop.permute.xlu0 %448
  %450 = vrot.lane.b32.xlu0 %v187, 8
  %v451 = vpop.permute.xlu0 %450
  %500 = vrot.lane.b32.xlu0 %v188, 12
  %v501 = vpop.permute.xlu0 %500
  %502 = vrot.lane.b32.xlu0 %v189, 12
  %v503 = vpop.permute.xlu0 %502
  %504 = vrot.lane.b32.xlu0 %v190, 12
  %v505 = vpop.permute.xlu0 %504
  %506 = vrot.lane.b32.xlu0 %v191, 12
  %v507 = vpop.permute.xlu0 %506
  %508 = vrot.lane.b32.xlu0 %v192, 12
  %v509 = vpop.permute.xlu0 %508
  %510 = vrot.lane.b32.xlu0 %v193, 12
  %v511 = vpop.permute.xlu0 %510
  %512 = vrot.lane.b32.xlu0 %v194, 12
  %v513 = vpop.permute.xlu0 %512
  %514 = vrot.lane.b32.xlu0 %v195, 12
  %v515 = vpop.permute.xlu0 %514
  %516 = vrot.lane.b32.xlu0 %v196, 12
  %v517 = vpop.permute.xlu0 %516
  %518 = vrot.lane.b32.xlu0 %v197, 12
  %v519 = vpop.permute.xlu0 %518
  %520 = vrot.lane.b32.xlu0 %v198, 12
  %v521 = vpop.permute.xlu0 %520
  %522 = vrot.lane.b32.xlu0 %v199, 12
  %v523 = vpop.permute.xlu0 %522
  %524 = vrot.lane.b32.xlu0 %v200, 12
  %v525 = vpop.permute.xlu0 %524
  %526 = vrot.lane.b32.xlu0 %v201, 12
  %v527 = vpop.permute.xlu0 %526
  %528 = vrot.lane.b32.xlu0 %v202, 12
  %v529 = vpop.permute.xlu0 %528
  %530 = vrot.lane.b32.xlu0 %v203, 12
  %v531 = vpop.permute.xlu0 %530
  %532 = vrot.lane.b32.xlu0 %v204, 12
  %v533 = vpop.permute.xlu0 %532
  %534 = vrot.lane.b32.xlu0 %v205, 12
  %v535 = vpop.permute.xlu0 %534
  %536 = vrot.lane.b32.xlu0 %v206, 12
  %v537 = vpop.permute.xlu0 %536
  %538 = vrot.lane.b32.xlu0 %v207, 12
  %v539 = vpop.permute.xlu0 %538
  %540 = vrot.lane.b32.xlu0 %v208, 12
  %v541 = vpop.permute.xlu0 %540
  %542 = vrot.lane.b32.xlu0 %v209, 12
  %v543 = vpop.permute.xlu0 %542
  %544 = vrot.lane.b32.xlu0 %v210, 12
  %v545 = vpop.permute.xlu0 %544
  %546 = vrot.lane.b32.xlu0 %v211, 12
  %v547 = vpop.permute.xlu0 %546
  %596 = vrot.lane.b32.xlu0 %v212, 16
  %v597 = vpop.permute.xlu0 %596
  %598 = vrot.lane.b32.xlu0 %v213, 16
  %v599 = vpop.permute.xlu0 %598
  %600 = vrot.lane.b32.xlu0 %v214, 16
  %v601 = vpop.permute.xlu0 %600
  %602 = vrot.lane.b32.xlu0 %v215, 16
  %v603 = vpop.permute.xlu0 %602
  %604 = vrot.lane.b32.xlu0 %v216, 16
  %v605 = vpop.permute.xlu0 %604
  %606 = vrot.lane.b32.xlu0 %v217, 16
  %v607 = vpop.permute.xlu0 %606
  %608 = vrot.lane.b32.xlu0 %v218, 16
  %v609 = vpop.permute.xlu0 %608
  %610 = vrot.lane.b32.xlu0 %v219, 16
  %v611 = vpop.permute.xlu0 %610
  %612 = vrot.lane.b32.xlu0 %v220, 16
  %v613 = vpop.permute.xlu0 %612
  %614 = vrot.lane.b32.xlu0 %v221, 16
  %v615 = vpop.permute.xlu0 %614
  %616 = vrot.lane.b32.xlu0 %v222, 16
  %v617 = vpop.permute.xlu0 %616
  %618 = vrot.lane.b32.xlu0 %v223, 16
  %v619 = vpop.permute.xlu0 %618
  %620 = vrot.lane.b32.xlu0 %v224, 16
  %v621 = vpop.permute.xlu0 %620
  %622 = vrot.lane.b32.xlu0 %v225, 16
  %v623 = vpop.permute.xlu0 %622
  %624 = vrot.lane.b32.xlu0 %v226, 16
  %v625 = vpop.permute.xlu0 %624
  %626 = vrot.lane.b32.xlu0 %v227, 16
  %v627 = vpop.permute.xlu0 %626
  %628 = vrot.lane.b32.xlu0 %v228, 16
  %v629 = vpop.permute.xlu0 %628
  %630 = vrot.lane.b32.xlu0 %v229, 16
  %v631 = vpop.permute.xlu0 %630
  %632 = vrot.lane.b32.xlu0 %v230, 16
  %v633 = vpop.permute.xlu0 %632
  %634 = vrot.lane.b32.xlu0 %v231, 16
  %v635 = vpop.permute.xlu0 %634
  %636 = vrot.lane.b32.xlu0 %v232, 16
  %v637 = vpop.permute.xlu0 %636
  %638 = vrot.lane.b32.xlu0 %v233, 16
  %v639 = vpop.permute.xlu0 %638
  %640 = vrot.lane.b32.xlu0 %v234, 16
  %v641 = vpop.permute.xlu0 %640
  %642 = vrot.lane.b32.xlu0 %v235, 16
  %v643 = vpop.permute.xlu0 %642
  %692 = vrot.lane.b32.xlu0 %v236, 20
  %v693 = vpop.permute.xlu0 %692
  %694 = vrot.lane.b32.xlu0 %v237, 20
  %v695 = vpop.permute.xlu0 %694
  %696 = vrot.lane.b32.xlu0 %v238, 20
  %v697 = vpop.permute.xlu0 %696
  %698 = vrot.lane.b32.xlu0 %v239, 20
  %v699 = vpop.permute.xlu0 %698
  %700 = vrot.lane.b32.xlu0 %v240, 20
  %v701 = vpop.permute.xlu0 %700
  %702 = vrot.lane.b32.xlu0 %v241, 20
  %v703 = vpop.permute.xlu0 %702
  %704 = vrot.lane.b32.xlu0 %v242, 20
  %v705 = vpop.permute.xlu0 %704
  %706 = vrot.lane.b32.xlu0 %v243, 20
  %v707 = vpop.permute.xlu0 %706
  %708 = vrot.lane.b32.xlu0 %v244, 20
  %v709 = vpop.permute.xlu0 %708
  %710 = vrot.lane.b32.xlu0 %v245, 20
  %v711 = vpop.permute.xlu0 %710
  %712 = vrot.lane.b32.xlu0 %v246, 20
  %v713 = vpop.permute.xlu0 %712
  %714 = vrot.lane.b32.xlu0 %v247, 20
  %v715 = vpop.permute.xlu0 %714
  %716 = vrot.lane.b32.xlu0 %v248, 20
  %v717 = vpop.permute.xlu0 %716
  %718 = vrot.lane.b32.xlu0 %v249, 20
  %v719 = vpop.permute.xlu0 %718
  %720 = vrot.lane.b32.xlu0 %v250, 20
  %v721 = vpop.permute.xlu0 %720
  %722 = vrot.lane.b32.xlu0 %v251, 20
  %v723 = vpop.permute.xlu0 %722
  %724 = vrot.lane.b32.xlu0 %v252, 20
  %v725 = vpop.permute.xlu0 %724
  %726 = vrot.lane.b32.xlu0 %v253, 20
  %v727 = vpop.permute.xlu0 %726
  %728 = vrot.lane.b32.xlu0 %v254, 20
  %v729 = vpop.permute.xlu0 %728
  %730 = vrot.lane.b32.xlu0 %v255, 20
  %v731 = vpop.permute.xlu0 %730
  %732 = vrot.lane.b32.xlu0 %v256, 20
  %v733 = vpop.permute.xlu0 %732
  %734 = vrot.lane.b32.xlu0 %v257, 20
  %v735 = vpop.permute.xlu0 %734
  %736 = vrot.lane.b32.xlu0 %v258, 20
  %v737 = vpop.permute.xlu0 %736
  %738 = vrot.lane.b32.xlu0 %v259, 20
  %v739 = vpop.permute.xlu0 %738
  %788 = vrot.lane.b32.xlu0 %v260, 24
  %v789 = vpop.permute.xlu0 %788
  %790 = vrot.lane.b32.xlu0 %v261, 24
  %v791 = vpop.permute.xlu0 %790
  %792 = vrot.lane.b32.xlu0 %v262, 24
  %v793 = vpop.permute.xlu0 %792
  %794 = vrot.lane.b32.xlu0 %v263, 24
  %v795 = vpop.permute.xlu0 %794
  %796 = vrot.lane.b32.xlu0 %v264, 24
  %v797 = vpop.permute.xlu0 %796
  %798 = vrot.lane.b32.xlu0 %v265, 24
  %v799 = vpop.permute.xlu0 %798
  %800 = vrot.lane.b32.xlu0 %v266, 24
  %v801 = vpop.permute.xlu0 %800
  %802 = vrot.lane.b32.xlu0 %v267, 24
  %v803 = vpop.permute.xlu0 %802
  %804 = vrot.lane.b32.xlu0 %v268, 24
  %v805 = vpop.permute.xlu0 %804
  %806 = vrot.lane.b32.xlu0 %v269, 24
  %v807 = vpop.permute.xlu0 %806
  %808 = vrot.lane.b32.xlu0 %v270, 24
  %v809 = vpop.permute.xlu0 %808
  %810 = vrot.lane.b32.xlu0 %v271, 24
  %v811 = vpop.permute.xlu0 %810
  %812 = vrot.lane.b32.xlu0 %v272, 24
  %v813 = vpop.permute.xlu0 %812
  %814 = vrot.lane.b32.xlu0 %v273, 24
  %v815 = vpop.permute.xlu0 %814
  %816 = vrot.lane.b32.xlu0 %v274, 24
  %v817 = vpop.permute.xlu0 %816
  %818 = vrot.lane.b32.xlu0 %v275, 24
  %v819 = vpop.permute.xlu0 %818
  %820 = vrot.lane.b32.xlu0 %v276, 24
  %v821 = vpop.permute.xlu0 %820
  %822 = vrot.lane.b32.xlu0 %v277, 24
  %v823 = vpop.permute.xlu0 %822
  %824 = vrot.lane.b32.xlu0 %v278, 24
  %v825 = vpop.permute.xlu0 %824
  %826 = vrot.lane.b32.xlu0 %v279, 24
  %v827 = vpop.permute.xlu0 %826
  %828 = vrot.lane.b32.xlu0 %v280, 24
  %v829 = vpop.permute.xlu0 %828
  %830 = vrot.lane.b32.xlu0 %v281, 24
  %v831 = vpop.permute.xlu0 %830
  %832 = vrot.lane.b32.xlu0 %v282, 24
  %v833 = vpop.permute.xlu0 %832
  %834 = vrot.lane.b32.xlu0 %v283, 24
  %v835 = vpop.permute.xlu0 %834
  %v860 = vsel %vm91, %v116, %v309
  %v861 = vsel %vm91, %v117, %v311
  %v862 = vsel %vm91, %v118, %v313
  %v863 = vsel %vm91, %v119, %v315
  %v864 = vsel %vm91, %v120, %v317
  %v865 = vsel %vm91, %v121, %v319
  %v866 = vsel %vm91, %v122, %v321
  %v867 = vsel %vm91, %v123, %v323
  %v868 = vsel %vm91, %v124, %v325
  %v869 = vsel %vm91, %v125, %v327
  %v870 = vsel %vm91, %v126, %v329
  %v871 = vsel %vm91, %v127, %v331
  %v872 = vsel %vm91, %v128, %v333
  %v873 = vsel %vm91, %v129, %v335
  %v874 = vsel %vm91, %v130, %v337
  %v875 = vsel %vm91, %v131, %v339
  %v876 = vsel %vm91, %v132, %v341
  %v877 = vsel %vm91, %v133, %v343
  %v878 = vsel %vm91, %v134, %v345
  %v879 = vsel %vm91, %v135, %v347
  %v880 = vsel %vm91, %v136, %v349
  %v881 = vsel %vm91, %v137, %v351
  %v882 = vsel %vm91, %v138, %v353
  %v883 = vsel %vm91, %v139, %v355
  %vm884 = vcmask 64512
  %v885 = vsel %vm884, %v860, %v405
  %v886 = vsel %vm884, %v861, %v407
  %v887 = vsel %vm884, %v862, %v409
  %v888 = vsel %vm884, %v863, %v411
  %v889 = vsel %vm884, %v864, %v413
  %v890 = vsel %vm884, %v865, %v415
  %v891 = vsel %vm884, %v866, %v417
  %v892 = vsel %vm884, %v867, %v419
  %v893 = vsel %vm884, %v868, %v421
  %v894 = vsel %vm884, %v869, %v423
  %v895 = vsel %vm884, %v870, %v425
  %v896 = vsel %vm884, %v871, %v427
  %v897 = vsel %vm884, %v872, %v429
  %v898 = vsel %vm884, %v873, %v431
  %v899 = vsel %vm884, %v874, %v433
  %v900 = vsel %vm884, %v875, %v435
  %v901 = vsel %vm884, %v876, %v437
  %v902 = vsel %vm884, %v877, %v439
  %v903 = vsel %vm884, %v878, %v441
  %v904 = vsel %vm884, %v879, %v443
  %v905 = vsel %vm884, %v880, %v445
  %v906 = vsel %vm884, %v881, %v447
  %v907 = vsel %vm884, %v882, %v449
  %v908 = vsel %vm884, %v883, %v451
  %vm909 = vcmask 97280
  %v910 = vsel %vm909, %v885, %v501
  %v911 = vsel %vm909, %v886, %v503
  %v912 = vsel %vm909, %v887, %v505
  %v913 = vsel %vm909, %v888, %v507
  %v914 = vsel %vm909, %v889, %v509
  %v915 = vsel %vm909, %v890, %v511
  %v916 = vsel %vm909, %v891, %v513
  %v917 = vsel %vm909, %v892, %v515
  %v918 = vsel %vm909, %v893, %v517
  %v919 = vsel %vm909, %v894, %v519
  %v920 = vsel %vm909, %v895, %v521
  %v921 = vsel %vm909, %v896, %v523
  %v922 = vsel %vm909, %v897, %v525
  %v923 = vsel %vm909, %v898, %v527
  %v924 = vsel %vm909, %v899, %v529
  %v925 = vsel %vm909, %v900, %v531
  %v926 = vsel %vm909, %v901, %v533
  %v927 = vsel %vm909, %v902, %v535
  %v928 = vsel %vm909, %v903, %v537
  %v929 = vsel %vm909, %v904, %v539
  %v930 = vsel %vm909, %v905, %v541
  %v931 = vsel %vm909, %v906, %v543
  %v932 = vsel %vm909, %v907, %v545
  %v933 = vsel %vm909, %v908, %v547
  %vm934 = vcmask 130048
  %v935 = vsel %vm934, %v910, %v597
  %v936 = vsel %vm934, %v911, %v599
  %v937 = vsel %vm934, %v912, %v601
  %v938 = vsel %vm934, %v913, %v603
  %v939 = vsel %vm934, %v914, %v605
  %v940 = vsel %vm934, %v915, %v607
  %v941 = vsel %vm934, %v916, %v609
  %v942 = vsel %vm934, %v917, %v611
  %v943 = vsel %vm934, %v918, %v613
  %v944 = vsel %vm934, %v919, %v615
  %v945 = vsel %vm934, %v920, %v617
  %v946 = vsel %vm934, %v921, %v619
  %v947 = vsel %vm934, %v922, %v621
  %v948 = vsel %vm934, %v923, %v623
  %v949 = vsel %vm934, %v924, %v625
  %v950 = vsel %vm934, %v925, %v627
  %v951 = vsel %vm934, %v926, %v629
  %v952 = vsel %vm934, %v927, %v631
  %v953 = vsel %vm934, %v928, %v633
  %v954 = vsel %vm934, %v929, %v635
  %v955 = vsel %vm934, %v930, %v637
  %v956 = vsel %vm934, %v931, %v639
  %v957 = vsel %vm934, %v932, %v641
  %v958 = vsel %vm934, %v933, %v643
  %vm959 = vcmask 162816
  %v960 = vsel %vm959, %v935, %v693
  %v961 = vsel %vm959, %v936, %v695
  %v962 = vsel %vm959, %v937, %v697
  %v963 = vsel %vm959, %v938, %v699
  %v964 = vsel %vm959, %v939, %v701
  %v965 = vsel %vm959, %v940, %v703
  %v966 = vsel %vm959, %v941, %v705
  %v967 = vsel %vm959, %v942, %v707
  %v968 = vsel %vm959, %v943, %v709
  %v969 = vsel %vm959, %v944, %v711
  %v970 = vsel %vm959, %v945, %v713
  %v971 = vsel %vm959, %v946, %v715
  %v972 = vsel %vm959, %v947, %v717
  %v973 = vsel %vm959, %v948, %v719
  %v974 = vsel %vm959, %v949, %v721
  %v975 = vsel %vm959, %v950, %v723
  %v976 = vsel %vm959, %v951, %v725
  %v977 = vsel %vm959, %v952, %v727
  %v978 = vsel %vm959, %v953, %v729
  %v979 = vsel %vm959, %v954, %v731
  %v980 = vsel %vm959, %v955, %v733
  %v981 = vsel %vm959, %v956, %v735
  %v982 = vsel %vm959, %v957, %v737
  %v983 = vsel %vm959, %v958, %v739
  %vm984 = vcmask 195584
  %v985 = vsel %vm984, %v960, %v789
  %v986 = vsel %vm984, %v961, %v791
  %v987 = vsel %vm984, %v962, %v793
  %v988 = vsel %vm984, %v963, %v795
  %v989 = vsel %vm984, %v964, %v797
  %v990 = vsel %vm984, %v965, %v799
  %v991 = vsel %vm984, %v966, %v801
  %v992 = vsel %vm984, %v967, %v803
  %v993 = vsel %vm984, %v968, %v805
  %v994 = vsel %vm984, %v969, %v807
  %v995 = vsel %vm984, %v970, %v809
  %v996 = vsel %vm984, %v971, %v811
  %v997 = vsel %vm984, %v972, %v813
  %v998 = vsel %vm984, %v973, %v815
  %v999 = vsel %vm984, %v974, %v817
  %v1000 = vsel %vm984, %v975, %v819
  %v1001 = vsel %vm984, %v976, %v821
  %v1002 = vsel %vm984, %v977, %v823
  %v1003 = vsel %vm984, %v978, %v825
  %v1004 = vsel %vm984, %v979, %v827
  %v1005 = vsel %vm984, %v980, %v829
  %v1006 = vsel %vm984, %v981, %v831
  %v1007 = vsel %vm984, %v982, %v833
  %v1008 = vsel %vm984, %v983, %v835
  %v1009 = vld [vmem:[%s3 + $0x1] sm:$0x1]
  %v1010 = vlaneseq
  %v1011 = vshrl.u32 %v1010, 7
  %v1012 = vsub.s32 0, %v1011
  %v1013 = vrot.slane %v1009, %v1012
  %vm1014 = vcmask 228352
  %v1016 = vsel %vm1014, %v985, 0
  %v1019 = vsel %vm1014, %v986, 0
  %v1022 = vsel %vm1014, %v987, 0
  %v1025 = vsel %vm1014, %v988, 0
  %v1028 = vsel %vm1014, %v989, 0
  %v1031 = vsel %vm1014, %v990, 0
  %v1034 = vsel %vm1014, %v991, 0
  %v1037 = vsel %vm1014, %v992, 0
  %v1040 = vsel %vm1014, %v993, 0
  %v1043 = vsel %vm1014, %v994, 0
  %v1046 = vsel %vm1014, %v995, 0
  %v1049 = vsel %vm1014, %v996, 0
  %v1052 = vsel %vm1014, %v997, 0
  %v1055 = vsel %vm1014, %v998, 0
  %v1058 = vsel %vm1014, %v999, 0
  %v1061 = vsel %vm1014, %v1000, 0
  %v1064 = vsel %vm1014, %v1001, 0
  %v1067 = vsel %vm1014, %v1002, 0
  %v1070 = vsel %vm1014, %v1003, 0
  %v1073 = vsel %vm1014, %v1004, 0
  %v1076 = vsel %vm1014, %v1005, 0
  %v1079 = vsel %vm1014, %v1006, 0
  %v1082 = vsel %vm1014, %v1007, 0
  %v1085 = vsel %vm1014, %v1008, 0
  %vm1087 = vcmask 1043456
  %v1089 = vsel %vm1087, %v60, 0
  %1091 = vmatprep.subr.mxu0 0.0
  %1092 = vmatpush1.msra.mxu0 %v57
  %1093 = vmatprep.subr.mxu0 0.0
  %1094 = vmatpush1.msra.mxu0 %v58
  %1095 = vmatprep.subr.mxu0 0.0
  %1096 = vmatpush1.msra.mxu0 %v59
  %1097 = vmatprep.subr.mxu0 0.0
  %1098 = vmatpush1.msra.mxu0 %v1089
  %1099 = vmatprep.subr.mxu0 0.0
  %1100 = vmatpush1.msra.mxu0 0.0
  %1101 = vmatprep.subr.mxu0 0.0
  %1102 = vmatpush1.msra.mxu0 0.0
  %1103 = vmatprep.subr.mxu0 0.0
  %1104 = vmatpush1.msra.mxu0 0.0
  %1105 = vmatprep.subr.mxu0 0.0
  %1106 = vmatpush1.msra.mxu0 0.0
  %1107 = vmatprep.subr.mxu0 0.0
  %1108 = vmatpush1.msra.mxu0 0.0
  %1109 = vmatprep.subr.mxu0 0.0
  %1110 = vmatpush1.msra.mxu0 0.0
  %1111 = vmatprep.subr.mxu0 0.0
  %1112 = vmatpush1.msra.mxu0 0.0
  %1113 = vmatprep.subr.mxu0 0.0
  %1114 = vmatpush1.msra.mxu0 0.0
  %1115 = vmatprep.subr.mxu0 0.0
  %1116 = vmatpush1.msra.mxu0 0.0
  %1117 = vmatprep.subr.mxu0 0.0
  %1118 = vmatpush1.msra.mxu0 0.0
  %1119 = vmatprep.subr.mxu0 0.0
  %1120 = vmatpush1.msra.mxu0 0.0
  %1121 = vmatprep.subr.mxu0 0.0
  %1122 = vmatpush1.msra.mxu0 0.0
  %1123 = vmatprep.subr.mxu0 0.0
  %1124 = vmatpush1.msra.mxu0 0.0
  %1125 = vmatprep.subr.mxu0 0.0
  %1126 = vmatpush1.msra.mxu0 0.0
  %1127 = vmatprep.subr.mxu0 0.0
  %1128 = vmatpush1.msra.mxu0 0.0
  %1129 = vmatprep.subr.mxu0 0.0
  %1130 = vmatpush1.msra.mxu0 0.0
  %1131 = vmatprep.subr.mxu0 0.0
  %1132 = vmatpush1.msra.mxu0 0.0
  %1133 = vmatprep.subr.mxu0 0.0
  %1134 = vmatpush1.msra.mxu0 0.0
  %1135 = vmatprep.subr.mxu0 0.0
  %1136 = vmatpush1.msra.mxu0 0.0
  %1137 = vmatprep.subr.mxu0 0.0
  %1138 = vmatpush1.msra.mxu0 0.0
  %1139 = vmatprep.subr.mxu0 0.0
  %1140 = vmatpush1.msra.mxu0 0.0
  %1141 = vmatprep.subr.mxu0 0.0
  %1142 = vmatpush1.msra.mxu0 0.0
  %1143 = vmatprep.subr.mxu0 0.0
  %1144 = vmatpush1.msra.mxu0 0.0
  %1145 = vmatprep.subr.mxu0 0.0
  %1146 = vmatpush1.msra.mxu0 0.0
  %1147 = vmatprep.subr.mxu0 0.0
  %1148 = vmatpush1.msra.mxu0 0.0
  %1149 = vmatprep.subr.mxu0 0.0
  %1150 = vmatpush1.msra.mxu0 0.0
  %1151 = vmatprep.subr.mxu0 0.0
  %1152 = vmatpush1.msra.mxu0 0.0
  %1153 = vmatprep.subr.mxu0 0.0
  %1154 = vmatpush1.msra.mxu0 0.0
  %1155 = vmatprep.mubr.f32.mxu0 0.0
  %1156 = vmatmul.mubr.f32.gmra.mrb[0].mxu0 %v1016
  %v1157 = vpop.f32.mrb[0].mxu0
  %v1158 = vadd.f32 %v1013, %v1157
  %v1159 = vpop.f32.mrb[0].mxu0
  %1160 = vmatprep.mubr.f32.mxu0 0.0
  %1161 = vmatmul.mubr.f32.gmra.mrb[0].mxu0 %v1019
  %v1162 = vpop.f32.mrb[0].mxu0
  %v1163 = vadd.f32 %v1013, %v1162
  %v1164 = vpop.f32.mrb[0].mxu0
  %1165 = vmatprep.mubr.f32.mxu0 0.0
  %1166 = vmatmul.mubr.f32.gmra.mrb[0].mxu0 %v1022
  %v1167 = vpop.f32.mrb[0].mxu0
  %v1168 = vadd.f32 %v1013, %v1167
  %v1169 = vpop.f32.mrb[0].mxu0
  %1170 = vmatprep.mubr.f32.mxu0 0.0
  %1171 = vmatmul.mubr.f32.gmra.mrb[0].mxu0 %v1025
  %v1172 = vpop.f32.mrb[0].mxu0
  %v1173 = vadd.f32 %v1013, %v1172
  %v1174 = vpop.f32.mrb[0].mxu0
  %1175 = vmatprep.mubr.f32.mxu0 0.0
  %1176 = vmatmul.mubr.f32.gmra.mrb[0].mxu0 %v1028
  %v1177 = vpop.f32.mrb[0].mxu0
  %v1178 = vadd.f32 %v1013, %v1177
  %v1179 = vpop.f32.mrb[0].mxu0
  %1180 = vmatprep.mubr.f32.mxu0 0.0
  %1181 = vmatmul.mubr.f32.gmra.mrb[0].mxu0 %v1031
  %v1182 = vpop.f32.mrb[0].mxu0
  %v1183 = vadd.f32 %v1013, %v1182
  %v1184 = vpop.f32.mrb[0].mxu0
  %1185 = vmatprep.mubr.f32.mxu0 0.0
  %1186 = vmatmul.mubr.f32.gmra.mrb[0].mxu0 %v1034
  %v1187 = vpop.f32.mrb[0].mxu0
  %v1188 = vadd.f32 %v1013, %v1187
  %v1189 = vpop.f32.mrb[0].mxu0
  %1190 = vmatprep.mubr.f32.mxu0 0.0
  %1191 = vmatmul.mubr.f32.gmra.mrb[0].mxu0 %v1037
  %v1192 = vpop.f32.mrb[0].mxu0
  %v1193 = vadd.f32 %v1013, %v1192
  %v1194 = vpop.f32.mrb[0].mxu0
  %1195 = vmatprep.mubr.f32.mxu0 0.0
  %1196 = vmatmul.mubr.f32.gmra.mrb[0].mxu0 %v1040
  %v1197 = vpop.f32.mrb[0].mxu0
  %v1198 = vadd.f32 %v1013, %v1197
  %v1199 = vpop.f32.mrb[0].mxu0
  %1200 = vmatprep.mubr.f32.mxu0 0.0
  %1201 = vmatmul.mubr.f32.gmra.mrb[0].mxu0 %v1043
  %v1202 = vpop.f32.mrb[0].mxu0
  %v1203 = vadd.f32 %v1013, %v1202
  %v1204 = vpop.f32.mrb[0].mxu0
  %1205 = vmatprep.mubr.f32.mxu0 0.0
  %1206 = vmatmul.mubr.f32.gmra.mrb[0].mxu0 %v1046
  %v1207 = vpop.f32.mrb[0].mxu0
  %v1208 = vadd.f32 %v1013, %v1207
  %v1209 = vpop.f32.mrb[0].mxu0
  %1210 = vmatprep.mubr.f32.mxu0 0.0
  %1211 = vmatmul.mubr.f32.gmra.mrb[0].mxu0 %v1049
  %v1212 = vpop.f32.mrb[0].mxu0
  %v1213 = vadd.f32 %v1013, %v1212
  %v1214 = vpop.f32.mrb[0].mxu0
  %1215 = vmatprep.mubr.f32.mxu0 0.0
  %1216 = vmatmul.mubr.f32.gmra.mrb[0].mxu0 %v1052
  %v1217 = vpop.f32.mrb[0].mxu0
  %v1218 = vadd.f32 %v1013, %v1217
  %v1219 = vpop.f32.mrb[0].mxu0
  %1220 = vmatprep.mubr.f32.mxu0 0.0
  %1221 = vmatmul.mubr.f32.gmra.mrb[0].mxu0 %v1055
  %v1222 = vpop.f32.mrb[0].mxu0
  %v1223 = vadd.f32 %v1013, %v1222
  %v1224 = vpop.f32.mrb[0].mxu0
  %1225 = vmatprep.mubr.f32.mxu0 0.0
  %1226 = vmatmul.mubr.f32.gmra.mrb[0].mxu0 %v1058
  %v1227 = vpop.f32.mrb[0].mxu0
  %v1228 = vadd.f32 %v1013, %v1227
  %v1229 = vpop.f32.mrb[0].mxu0
  %1230 = vmatprep.mubr.f32.mxu0 0.0
  %1231 = vmatmul.mubr.f32.gmra.mrb[0].mxu0 %v1061
  %v1232 = vpop.f32.mrb[0].mxu0
  %v1233 = vadd.f32 %v1013, %v1232
  %v1234 = vpop.f32.mrb[0].mxu0
  %1235 = vmatprep.mubr.f32.mxu0 0.0
  %1236 = vmatmul.mubr.f32.gmra.mrb[0].mxu0 %v1064
  %v1237 = vpop.f32.mrb[0].mxu0
  %v1238 = vadd.f32 %v1013, %v1237
  %v1239 = vpop.f32.mrb[0].mxu0
  %1240 = vmatprep.mubr.f32.mxu0 0.0
  %1241 = vmatmul.mubr.f32.gmra.mrb[0].mxu0 %v1067
  %v1242 = vpop.f32.mrb[0].mxu0
  %v1243 = vadd.f32 %v1013, %v1242
  %v1244 = vpop.f32.mrb[0].mxu0
  %1245 = vmatprep.mubr.f32.mxu0 0.0
  %1246 = vmatmul.mubr.f32.gmra.mrb[0].mxu0 %v1070
  %v1247 = vpop.f32.mrb[0].mxu0
  %v1248 = vadd.f32 %v1013, %v1247
  %v1249 = vpop.f32.mrb[0].mxu0
  %1250 = vmatprep.mubr.f32.mxu0 0.0
  %1251 = vmatmul.mubr.f32.gmra.mrb[0].mxu0 %v1073
  %v1252 = vpop.f32.mrb[0].mxu0
  %v1253 = vadd.f32 %v1013, %v1252
  %v1254 = vpop.f32.mrb[0].mxu0
  %1255 = vmatprep.mubr.f32.mxu0 0.0
  %1256 = vmatmul.mubr.f32.gmra.mrb[0].mxu0 %v1076
  %v1257 = vpop.f32.mrb[0].mxu0
  %v1258 = vadd.f32 %v1013, %v1257
  %v1259 = vpop.f32.mrb[0].mxu0
  %1260 = vmatprep.mubr.f32.mxu0 0.0
  %1261 = vmatmul.mubr.f32.gmra.mrb[0].mxu0 %v1079
  %v1262 = vpop.f32.mrb[0].mxu0
  %v1263 = vadd.f32 %v1013, %v1262
  %v1264 = vpop.f32.mrb[0].mxu0
  %1265 = vmatprep.mubr.f32.mxu0 0.0
  %1266 = vmatmul.mubr.f32.gmra.mrb[0].mxu0 %v1082
  %v1267 = vpop.f32.mrb[0].mxu0
  %v1268 = vadd.f32 %v1013, %v1267
  %v1269 = vpop.f32.mrb[0].mxu0
  %1270 = vmatprep.mubr.f32.mxu0 0.0
  %1271 = vmatmul.mubr.f32.gmra.mrb[0].mxu0 %v1085
  %v1272 = vpop.f32.mrb[0].mxu0
  %v1273 = vadd.f32 %v1013, %v1272
  %v1274 = vpop.f32.mrb[0].mxu0
  %1275 = vdwg.mxu0
  %v1276 = vsel %vm64, %v1158, 0.0
  %v1277 = vsel %vm65, %v1163, 0.0
  %v1278 = vsel %vm66, %v1168, 0.0
  %v1279 = vsel %vm64, %v1173, 0.0
  %v1280 = vsel %vm65, %v1178, 0.0
  %v1281 = vsel %vm66, %v1183, 0.0
  %v1282 = vsel %vm64, %v1188, 0.0
  %v1283 = vsel %vm65, %v1193, 0.0
  %v1284 = vsel %vm66, %v1198, 0.0
  %v1285 = vsel %vm64, %v1203, 0.0
  %v1286 = vsel %vm65, %v1208, 0.0
  %v1287 = vsel %vm66, %v1213, 0.0
  %v1288 = vsel %vm64, %v1218, 0.0
  %v1289 = vsel %vm65, %v1223, 0.0
  %v1290 = vsel %vm66, %v1228, 0.0
  %v1291 = vsel %vm64, %v1233, 0.0
  %v1292 = vsel %vm65, %v1238, 0.0
  %v1293 = vsel %vm66, %v1243, 0.0
  %v1294 = vsel %vm64, %v1248, 0.0
  %v1295 = vsel %vm65, %v1253, 0.0
  %v1296 = vsel %vm66, %v1258, 0.0
  %v1297 = vsel %vm64, %v1263, 0.0
  %v1298 = vsel %vm65, %v1268, 0.0
  %v1299 = vsel %vm66, %v1273, 0.0
  %v1300 = vmul.f32 %v1276, %v1276
  %v1301 = vmul.f32 %v1277, %v1277
  %v1302 = vmul.f32 %v1278, %v1278
  %v1303 = vmul.f32 %v1279, %v1279
  %v1304 = vmul.f32 %v1280, %v1280
  %v1305 = vmul.f32 %v1281, %v1281
  %v1306 = vmul.f32 %v1282, %v1282
  %v1307 = vmul.f32 %v1283, %v1283
  %v1308 = vmul.f32 %v1284, %v1284
  %v1309 = vmul.f32 %v1285, %v1285
  %v1310 = vmul.f32 %v1286, %v1286
  %v1311 = vmul.f32 %v1287, %v1287
  %v1312 = vmul.f32 %v1288, %v1288
  %v1313 = vmul.f32 %v1289, %v1289
  %v1314 = vmul.f32 %v1290, %v1290
  %v1315 = vmul.f32 %v1291, %v1291
  %v1316 = vmul.f32 %v1292, %v1292
  %v1317 = vmul.f32 %v1293, %v1293
  %v1318 = vmul.f32 %v1294, %v1294
  %v1319 = vmul.f32 %v1295, %v1295
  %v1320 = vmul.f32 %v1296, %v1296
  %v1321 = vmul.f32 %v1297, %v1297
  %v1322 = vmul.f32 %v1298, %v1298
  %v1323 = vmul.f32 %v1299, %v1299
  %1348 = vrot.lane.b32.xlu0 %v1300, 64
  %v1349 = vpop.permute.xlu0 %1348
  %1350 = vrot.lane.b32.xlu0 %v1301, 64
  %v1351 = vpop.permute.xlu0 %1350
  %1352 = vrot.lane.b32.xlu0 %v1302, 64
  %v1353 = vpop.permute.xlu0 %1352
  %1354 = vrot.lane.b32.xlu0 %v1303, 64
  %v1355 = vpop.permute.xlu0 %1354
  %1356 = vrot.lane.b32.xlu0 %v1304, 64
  %v1357 = vpop.permute.xlu0 %1356
  %1358 = vrot.lane.b32.xlu0 %v1305, 64
  %v1359 = vpop.permute.xlu0 %1358
  %1360 = vrot.lane.b32.xlu0 %v1306, 64
  %v1361 = vpop.permute.xlu0 %1360
  %1362 = vrot.lane.b32.xlu0 %v1307, 64
  %v1363 = vpop.permute.xlu0 %1362
  %1364 = vrot.lane.b32.xlu0 %v1308, 64
  %v1365 = vpop.permute.xlu0 %1364
  %1366 = vrot.lane.b32.xlu0 %v1309, 64
  %v1367 = vpop.permute.xlu0 %1366
  %1368 = vrot.lane.b32.xlu0 %v1310, 64
  %v1369 = vpop.permute.xlu0 %1368
  %1370 = vrot.lane.b32.xlu0 %v1311, 64
  %v1371 = vpop.permute.xlu0 %1370
  %1372 = vrot.lane.b32.xlu0 %v1312, 64
  %v1373 = vpop.permute.xlu0 %1372
  %1374 = vrot.lane.b32.xlu0 %v1313, 64
  %v1375 = vpop.permute.xlu0 %1374
  %1376 = vrot.lane.b32.xlu0 %v1314, 64
  %v1377 = vpop.permute.xlu0 %1376
  %1378 = vrot.lane.b32.xlu0 %v1315, 64
  %v1379 = vpop.permute.xlu0 %1378
  %1380 = vrot.lane.b32.xlu0 %v1316, 64
  %v1381 = vpop.permute.xlu0 %1380
  %1382 = vrot.lane.b32.xlu0 %v1317, 64
  %v1383 = vpop.permute.xlu0 %1382
  %1384 = vrot.lane.b32.xlu0 %v1318, 64
  %v1385 = vpop.permute.xlu0 %1384
  %1386 = vrot.lane.b32.xlu0 %v1319, 64
  %v1387 = vpop.permute.xlu0 %1386
  %1388 = vrot.lane.b32.xlu0 %v1320, 64
  %v1389 = vpop.permute.xlu0 %1388
  %1390 = vrot.lane.b32.xlu0 %v1321, 64
  %v1391 = vpop.permute.xlu0 %1390
  %1392 = vrot.lane.b32.xlu0 %v1322, 64
  %v1393 = vpop.permute.xlu0 %1392
  %1394 = vrot.lane.b32.xlu0 %v1323, 64
  %v1395 = vpop.permute.xlu0 %1394
  %v1420 = vsel %vm17, %v1276, %v1349
  %v1421 = vsel %vm17, %v1277, %v1351
  %v1422 = vsel %vm17, %v1278, %v1353
  %v1423 = vsel %vm17, %v1279, %v1355
  %v1424 = vsel %vm17, %v1280, %v1357
  %v1425 = vsel %vm17, %v1281, %v1359
  %v1426 = vsel %vm17, %v1282, %v1361
  %v1427 = vsel %vm17, %v1283, %v1363
  %v1428 = vsel %vm17, %v1284, %v1365
  %v1429 = vsel %vm17, %v1285, %v1367
  %v1430 = vsel %vm17, %v1286, %v1369
  %v1431 = vsel %vm17, %v1287, %v1371
  %v1432 = vsel %vm17, %v1288, %v1373
  %v1433 = vsel %vm17, %v1289, %v1375
  %v1434 = vsel %vm17, %v1290, %v1377
  %v1435 = vsel %vm17, %v1291, %v1379
  %v1436 = vsel %vm17, %v1292, %v1381
  %v1437 = vsel %vm17, %v1293, %v1383
  %v1438 = vsel %vm17, %v1294, %v1385
  %v1439 = vsel %vm17, %v1295, %v1387
  %v1440 = vsel %vm17, %v1296, %v1389
  %v1441 = vsel %vm17, %v1297, %v1391
  %v1442 = vsel %vm17, %v1298, %v1393
  %v1443 = vsel %vm17, %v1299, %v1395
  %v1444 = vadd.f32 %v1420, %v1421
  %v1445 = vadd.f32 %v1444, %v1422
  %v1446 = vadd.f32 %v1445, %v1423
  %v1447 = vadd.f32 %v1446, %v1424
  %v1448 = vadd.f32 %v1447, %v1425
  %v1449 = vadd.f32 %v1448, %v1426
  %v1450 = vadd.f32 %v1449, %v1427
  %v1451 = vadd.f32 %v1450, %v1428
  %v1452 = vadd.f32 %v1451, %v1429
  %v1453 = vadd.f32 %v1452, %v1430
  %v1454 = vadd.f32 %v1453, %v1431
  %v1455 = vadd.f32 %v1454, %v1432
  %v1456 = vadd.f32 %v1455, %v1433
  %v1457 = vadd.f32 %v1456, %v1434
  %v1458 = vadd.f32 %v1457, %v1435
  %v1459 = vadd.f32 %v1458, %v1436
  %v1460 = vadd.f32 %v1459, %v1437
  %v1461 = vadd.f32 %v1460, %v1438
  %v1462 = vadd.f32 %v1461, %v1439
  %v1463 = vadd.f32 %v1462, %v1440
  %v1464 = vadd.f32 %v1463, %v1441
  %v1465 = vadd.f32 %v1464, %v1442
  %v1466 = vadd.f32 %v1465, %v1443
  %v1467 = vrot.slane %v1466, 4
  %v1468 = vadd.f32 %v1466, %v1467
  %v1469 = vrot.slane %v1468, 2
  %v1470 = vadd.f32 %v1468, %v1469
  %v1471 = vrot.slane %v1470, 1
  %v1472 = vadd.f32 %v1470, %v1471
  %v1473 = vmul.f32 %v1472, 0.0078125
  %v1474 = vmul.f32 %v1473, %v1473
  %1476 = vrot.lane.b32.xlu0 %v1474, 64
  %v1477 = vpop.permute.xlu0 %1476
  %v1479 = vsub.f32 %v1473, %v1477
  %v1480 = vmax.f32 %v1479, 0.0
  %v1481 = vld [vmem:[%s3 + $0x4] sm:$0x1]
  %v1482 = vsub.f32 %v1158, %v1473
  %v1483 = vsub.f32 %v1163, %v1473
  %v1484 = vsub.f32 %v1168, %v1473
  %v1485 = vsub.f32 %v1173, %v1473
  %v1486 = vsub.f32 %v1178, %v1473
  %v1487 = vsub.f32 %v1183, %v1473
  %v1488 = vsub.f32 %v1188, %v1473
  %v1489 = vsub.f32 %v1193, %v1473
  %v1490 = vsub.f32 %v1198, %v1473
  %v1491 = vsub.f32 %v1203, %v1473
  %v1492 = vsub.f32 %v1208, %v1473
  %v1493 = vsub.f32 %v1213, %v1473
  %v1494 = vsub.f32 %v1218, %v1473
  %v1495 = vsub.f32 %v1223, %v1473
  %v1496 = vsub.f32 %v1228, %v1473
  %v1497 = vsub.f32 %v1233, %v1473
  %v1498 = vsub.f32 %v1238, %v1473
  %v1499 = vsub.f32 %v1243, %v1473
  %v1500 = vsub.f32 %v1248, %v1473
  %v1501 = vsub.f32 %v1253, %v1473
  %v1502 = vsub.f32 %v1258, %v1473
  %v1503 = vsub.f32 %v1263, %v1473
  %v1504 = vsub.f32 %v1268, %v1473
  %v1505 = vsub.f32 %v1273, %v1473
  %v1506 = vadd.f32 %v1480, 1e-05
  %v1507 = vrsqrt.pop %v1506
  %v1508 = vlaneseq
  %v1509 = vshrl.u32 %v1508, 7
  %v1510 = vsub.s32 0, %v1509
  %v1511 = vrot.slane %v1507, %v1510
  %1513 = vrot.lane.b32.xlu0 %v1511, 64
  %v1514 = vpop.permute.xlu0 %1513
  %v1516 = vmul.f32 %v1482, %v1514
  %v1517 = vmul.f32 %v1483, %v1514
  %v1518 = vmul.f32 %v1484, %v1514
  %v1519 = vmul.f32 %v1485, %v1514
  %v1520 = vmul.f32 %v1486, %v1514
  %v1521 = vmul.f32 %v1487, %v1514
  %v1522 = vmul.f32 %v1488, %v1514
  %v1523 = vmul.f32 %v1489, %v1514
  %v1524 = vmul.f32 %v1490, %v1514
  %v1525 = vmul.f32 %v1491, %v1514
  %v1526 = vmul.f32 %v1492, %v1514
  %v1527 = vmul.f32 %v1493, %v1514
  %v1528 = vmul.f32 %v1494, %v1514
  %v1529 = vmul.f32 %v1495, %v1514
  %v1530 = vmul.f32 %v1496, %v1514
  %v1531 = vmul.f32 %v1497, %v1514
  %v1532 = vmul.f32 %v1498, %v1514
  %v1533 = vmul.f32 %v1499, %v1514
  %v1534 = vmul.f32 %v1500, %v1514
  %v1535 = vmul.f32 %v1501, %v1514
  %v1536 = vmul.f32 %v1502, %v1514
  %v1537 = vmul.f32 %v1503, %v1514
  %v1538 = vmul.f32 %v1504, %v1514
  %v1539 = vmul.f32 %v1505, %v1514
  %v1540 = vlaneseq
  %v1541 = vshrl.u32 %v1540, 7
  %v1542 = vsub.s32 0, %v1541
  %v1543 = vrot.slane %v1481, %v1542
  %v1544 = vmul.f32 %v1543, %v1516
  %v1545 = vmul.f32 %v1543, %v1517
  %v1546 = vmul.f32 %v1543, %v1518
  %v1547 = vmul.f32 %v1543, %v1519
  %v1548 = vmul.f32 %v1543, %v1520
  %v1549 = vmul.f32 %v1543, %v1521
  %v1550 = vmul.f32 %v1543, %v1522
  %v1551 = vmul.f32 %v1543, %v1523
  %v1552 = vmul.f32 %v1543, %v1524
  %v1553 = vmul.f32 %v1543, %v1525
  %v1554 = vmul.f32 %v1543, %v1526
  %v1555 = vmul.f32 %v1543, %v1527
  %v1556 = vmul.f32 %v1543, %v1528
  %v1557 = vmul.f32 %v1543, %v1529
  %v1558 = vmul.f32 %v1543, %v1530
  %v1559 = vmul.f32 %v1543, %v1531
  %v1560 = vmul.f32 %v1543, %v1532
  %v1561 = vmul.f32 %v1543, %v1533
  %v1562 = vmul.f32 %v1543, %v1534
  %v1563 = vmul.f32 %v1543, %v1535
  %v1564 = vmul.f32 %v1543, %v1536
  %v1565 = vmul.f32 %v1543, %v1537
  %v1566 = vmul.f32 %v1543, %v1538
  %v1567 = vmul.f32 %v1543, %v1539
  %v1568 = vld [vmem:[%s3 + $0x5] sm:$0x1]
  %v1569 = vlaneseq
  %v1570 = vshrl.u32 %v1569, 7
  %v1571 = vsub.s32 0, %v1570
  %v1572 = vrot.slane %v1568, %v1571
  %v1573 = vadd.f32 %v1544, %v1572
  %v1574 = vadd.f32 %v1545, %v1572
  %v1575 = vadd.f32 %v1546, %v1572
  %v1576 = vadd.f32 %v1547, %v1572
  %v1577 = vadd.f32 %v1548, %v1572
  %v1578 = vadd.f32 %v1549, %v1572
  %v1579 = vadd.f32 %v1550, %v1572
  %v1580 = vadd.f32 %v1551, %v1572
  %v1581 = vadd.f32 %v1552, %v1572
  %v1582 = vadd.f32 %v1553, %v1572
  %v1583 = vadd.f32 %v1554, %v1572
  %v1584 = vadd.f32 %v1555, %v1572
  %v1585 = vadd.f32 %v1556, %v1572
  %v1586 = vadd.f32 %v1557, %v1572
  %v1587 = vadd.f32 %v1558, %v1572
  %v1588 = vadd.f32 %v1559, %v1572
  %v1589 = vadd.f32 %v1560, %v1572
  %v1590 = vadd.f32 %v1561, %v1572
  %v1591 = vadd.f32 %v1562, %v1572
  %v1592 = vadd.f32 %v1563, %v1572
  %v1593 = vadd.f32 %v1564, %v1572
  %v1594 = vadd.f32 %v1565, %v1572
  %v1595 = vadd.f32 %v1566, %v1572
  %v1596 = vadd.f32 %v1567, %v1572
  %v1597 = vmax.f32 %v1573, 0.0
  %v1598 = vmax.f32 %v1574, 0.0
  %v1599 = vmax.f32 %v1575, 0.0
  %v1600 = vmax.f32 %v1576, 0.0
  %v1601 = vmax.f32 %v1577, 0.0
  %v1602 = vmax.f32 %v1578, 0.0
  %v1603 = vmax.f32 %v1579, 0.0
  %v1604 = vmax.f32 %v1580, 0.0
  %v1605 = vmax.f32 %v1581, 0.0
  %v1606 = vmax.f32 %v1582, 0.0
  %v1607 = vmax.f32 %v1583, 0.0
  %v1608 = vmax.f32 %v1584, 0.0
  %v1609 = vmax.f32 %v1585, 0.0
  %v1610 = vmax.f32 %v1586, 0.0
  %v1611 = vmax.f32 %v1587, 0.0
  %v1612 = vmax.f32 %v1588, 0.0
  %v1613 = vmax.f32 %v1589, 0.0
  %v1614 = vmax.f32 %v1590, 0.0
  %v1615 = vmax.f32 %v1591, 0.0
  %v1616 = vmax.f32 %v1592, 0.0
  %v1617 = vmax.f32 %v1593, 0.0
  %v1618 = vmax.f32 %v1594, 0.0
  %v1619 = vmax.f32 %v1595, 0.0
  %v1620 = vmax.f32 %v1596, 0.0
  %v1621 = vld [vmem:[%s2 + $0x20] sm:$0xff]
  %v1622 = vld [vmem:[%s2 + $0x28] sm:$0xff]
  %v1623 = vld [vmem:[%s2 + $0x30] sm:$0xff]
  %v1624 = vld [vmem:[%s2 + $0x38] sm:$0xff]
  %v1625 = vld [vmem:[%s2 + $0x40] sm:$0xff]
  %v1626 = vld [vmem:[%s2 + $0x48] sm:$0xff]
  %v1627 = vld [vmem:[%s2 + $0x50] sm:$0xff]
  %v1628 = vld [vmem:[%s2 + $0x58] sm:$0xff]
  %v1629 = vld [vmem:[%s2 + $0x60] sm:$0xff]
  %v1630 = vld [vmem:[%s2 + $0x68] sm:$0xff]
  %v1631 = vld [vmem:[%s2 + $0x70] sm:$0xff]
  %v1632 = vld [vmem:[%s2 + $0x78] sm:$0xff]
  %v1633 = vld [vmem:[%s2 + $0x80] sm:$0xff]
  %v1634 = vld [vmem:[%s2 + $0x88] sm:$0xff]
  %v1635 = vld [vmem:[%s2 + $0x90] sm:$0xff]
  %v1636 = vld [vmem:[%s2 + $0x98] sm:$0xff]
  %v1637 = vld [vmem:[%s2 + $0xa0] sm:$0xff]
  %v1638 = vld [vmem:[%s2 + $0xa8] sm:$0xff]
  %v1639 = vld [vmem:[%s2 + $0xb0] sm:$0xff]
  %v1640 = vld [vmem:[%s2 + $0xb8] sm:$0xff]
  %v1641 = vld [vmem:[%s2 + $0xc0] sm:$0xff]
  %v1642 = vld [vmem:[%s2 + $0xc8] sm:$0xff]
  %v1643 = vld [vmem:[%s2 + $0xd0] sm:$0xff]
  %v1644 = vld [vmem:[%s2 + $0xd8] sm:$0xff]
  %v1645 = vld [vmem:[%s2 + $0xe0] sm:$0xff]
  %v1646 = vld [vmem:[%s2 + $0xe8] sm:$0xff]
  %v1647 = vld [vmem:[%s2 + $0xf0] sm:$0xff]
  %v1648 = vld [vmem:[%s2 + $0xf8] sm:$0xff]
  %v1649 = vld [vmem:[%s2 + $0x100] sm:$0xff]
  %v1650 = vld [vmem:[%s2 + $0x108] sm:$0xff]
  %v1651 = vld [vmem:[%s2 + $0x110] sm:$0xff]
  %v1652 = vld [vmem:[%s2 + $0x118] sm:$0xff]
  %v1653 = vld [vmem:[%s2 + $0x120] sm:$0xff]
  %v1654 = vld [vmem:[%s2 + $0x128] sm:$0xff]
  %v1655 = vld [vmem:[%s2 + $0x130] sm:$0xff]
  %v1656 = vld [vmem:[%s2 + $0x138] sm:$0xff]
  %v1657 = vld [vmem:[%s2 + $0x140] sm:$0xff]
  %v1658 = vld [vmem:[%s2 + $0x148] sm:$0xff]
  %v1659 = vld [vmem:[%s2 + $0x150] sm:$0xff]
  %v1660 = vld [vmem:[%s2 + $0x158] sm:$0xff]
  %v1661 = vsel %vm64, %v1597, 0.0
  %v1662 = vsel %vm65, %v1598, 0.0
  %v1663 = vsel %vm66, %v1599, 0.0
  %v1664 = vsel %vm64, %v1600, 0.0
  %v1665 = vsel %vm65, %v1601, 0.0
  %v1666 = vsel %vm66, %v1602, 0.0
  %v1667 = vsel %vm64, %v1603, 0.0
  %v1668 = vsel %vm65, %v1604, 0.0
  %v1669 = vsel %vm66, %v1605, 0.0
  %v1670 = vsel %vm64, %v1606, 0.0
  %v1671 = vsel %vm65, %v1607, 0.0
  %v1672 = vsel %vm66, %v1608, 0.0
  %v1673 = vsel %vm64, %v1609, 0.0
  %v1674 = vsel %vm65, %v1610, 0.0
  %v1675 = vsel %vm66, %v1611, 0.0
  %v1676 = vsel %vm64, %v1612, 0.0
  %v1677 = vsel %vm65, %v1613, 0.0
  %v1678 = vsel %vm66, %v1614, 0.0
  %v1679 = vsel %vm64, %v1615, 0.0
  %v1680 = vsel %vm65, %v1616, 0.0
  %v1681 = vsel %vm66, %v1617, 0.0
  %v1682 = vsel %vm64, %v1618, 0.0
  %v1683 = vsel %vm65, %v1619, 0.0
  %v1684 = vsel %vm66, %v1620, 0.0
  %1685 = vst.msk [vmem:[#allocation2 + $0x8] sm:$0xff] %vm17, %v1661
  %1686 = vst.msk [vmem:[#allocation2 + $0x10] sm:$0xff] %vm17, %v1662
  %1687 = vst.msk [vmem:[#allocation2 + $0x18] sm:$0xff] %vm17, %v1663
  %1688 = vst.msk [vmem:[#allocation2 + $0x20] sm:$0xff] %vm17, %v1664
  %1689 = vst.msk [vmem:[#allocation2 + $0x28] sm:$0xff] %vm17, %v1665
  %1690 = vst.msk [vmem:[#allocation2 + $0x30] sm:$0xff] %vm17, %v1666
  %1691 = vst.msk [vmem:[#allocation2 + $0x38] sm:$0xff] %vm17, %v1667
  %1692 = vst.msk [vmem:[#allocation2 + $0x40] sm:$0xff] %vm17, %v1668
  %1693 = vst.msk [vmem:[#allocation2 + $0x48] sm:$0xff] %vm17, %v1669
  %1694 = vst.msk [vmem:[#allocation2 + $0x50] sm:$0xff] %vm17, %v1670
  %1695 = vst.msk [vmem:[#allocation2 + $0x58] sm:$0xff] %vm17, %v1671
  %1696 = vst.msk [vmem:[#allocation2 + $0x60] sm:$0xff] %vm17, %v1672
  %1697 = vst.msk [vmem:[#allocation2 + $0x68] sm:$0xff] %vm17, %v1673
  %1698 = vst.msk [vmem:[#allocation2 + $0x70] sm:$0xff] %vm17, %v1674
  %1699 = vst.msk [vmem:[#allocation2 + $0x78] sm:$0xff] %vm17, %v1675
  %1700 = vst.msk [vmem:[#allocation2 + $0x80] sm:$0xff] %vm17, %v1676
  %1701 = vst.msk [vmem:[#allocation2 + $0x88] sm:$0xff] %vm17, %v1677
  %1702 = vst.msk [vmem:[#allocation2 + $0x90] sm:$0xff] %vm17, %v1678
  %1703 = vst.msk [vmem:[#allocation2 + $0x98] sm:$0xff] %vm17, %v1679
  %1704 = vst.msk [vmem:[#allocation2 + $0xa0] sm:$0xff] %vm17, %v1680
  %1705 = vst.msk [vmem:[#allocation2 + $0xa8] sm:$0xff] %vm17, %v1681
  %1706 = vst.msk [vmem:[#allocation2 + $0xb0] sm:$0xff] %vm17, %v1682
  %1707 = vst.msk [vmem:[#allocation2 + $0xb8] sm:$0xff] %vm17, %v1683
  %1708 = vst.msk [vmem:[#allocation2 + $0xc0] sm:$0xff] %vm17, %v1684
  %v1709 = vld [vmem:[#allocation2 + $0x6] sm:$0xff]
  %v1710 = vld [vmem:[#allocation2 + $0xe] sm:$0xff]
  %v1711 = vld [vmem:[#allocation2 + $0x16] sm:$0xff]
  %v1712 = vld [vmem:[#allocation2 + $0x1e] sm:$0xff]
  %v1713 = vld [vmem:[#allocation2 + $0x26] sm:$0xff]
  %v1714 = vld [vmem:[#allocation2 + $0x2e] sm:$0xff]
  %v1715 = vld [vmem:[#allocation2 + $0x36] sm:$0xff]
  %v1716 = vld [vmem:[#allocation2 + $0x3e] sm:$0xff]
  %v1717 = vld [vmem:[#allocation2 + $0x46] sm:$0xff]
  %v1718 = vld [vmem:[#allocation2 + $0x4e] sm:$0xff]
  %v1719 = vld [vmem:[#allocation2 + $0x56] sm:$0xff]
  %v1720 = vld [vmem:[#allocation2 + $0x5e] sm:$0xff]
  %v1721 = vld [vmem:[#allocation2 + $0x66] sm:$0xff]
  %v1722 = vld [vmem:[#allocation2 + $0x6e] sm:$0xff]
  %v1723 = vld [vmem:[#allocation2 + $0x76] sm:$0xff]
  %v1724 = vld [vmem:[#allocation2 + $0x7e] sm:$0xff]
  %v1725 = vld [vmem:[#allocation2 + $0x86] sm:$0xff]
  %v1726 = vld [vmem:[#allocation2 + $0x8e] sm:$0xff]
  %v1727 = vld [vmem:[#allocation2 + $0x96] sm:$0xff]
  %v1728 = vld [vmem:[#allocation2 + $0x9e] sm:$0xff]
  %v1729 = vld [vmem:[#allocation2 + $0xa6] sm:$0xff]
  %v1730 = vld [vmem:[#allocation2 + $0xae] sm:$0xff]
  %v1731 = vld [vmem:[#allocation2 + $0xb6] sm:$0xff]
  %v1732 = vld [vmem:[#allocation2 + $0xbe] sm:$0xff]
  %v1733 = vld [vmem:[#allocation2 + $0x7] sm:$0xff]
  %v1734 = vld [vmem:[#allocation2 + $0xf] sm:$0xff]
  %v1735 = vld [vmem:[#allocation2 + $0x17] sm:$0xff]
  %v1736 = vld [vmem:[#allocation2 + $0x1f] sm:$0xff]
  %v1737 = vld [vmem:[#allocation2 + $0x27] sm:$0xff]
  %v1738 = vld [vmem:[#allocation2 + $0x2f] sm:$0xff]
  %v1739 = vld [vmem:[#allocation2 + $0x37] sm:$0xff]
  %v1740 = vld [vmem:[#allocation2 + $0x3f] sm:$0xff]
  %v1741 = vld [vmem:[#allocation2 + $0x47] sm:$0xff]
  %v1742 = vld [vmem:[#allocation2 + $0x4f] sm:$0xff]
  %v1743 = vld [vmem:[#allocation2 + $0x57] sm:$0xff]
  %v1744 = vld [vmem:[#allocation2 + $0x5f] sm:$0xff]
  %v1745 = vld [vmem:[#allocation2 + $0x67] sm:$0xff]
  %v1746 = vld [vmem:[#allocation2 + $0x6f] sm:$0xff]
  %v1747 = vld [vmem:[#allocation2 + $0x77] sm:$0xff]
  %v1748 = vld [vmem:[#allocation2 + $0x7f] sm:$0xff]
  %v1749 = vld [vmem:[#allocation2 + $0x87] sm:$0xff]
  %v1750 = vld [vmem:[#allocation2 + $0x8f] sm:$0xff]
  %v1751 = vld [vmem:[#allocation2 + $0x97] sm:$0xff]
  %v1752 = vld [vmem:[#allocation2 + $0x9f] sm:$0xff]
  %v1753 = vld [vmem:[#allocation2 + $0xa7] sm:$0xff]
  %v1754 = vld [vmem:[#allocation2 + $0xaf] sm:$0xff]
  %v1755 = vld [vmem:[#allocation2 + $0xb7] sm:$0xff]
  %v1756 = vld [vmem:[#allocation2 + $0xbf] sm:$0xff]
  %v1757 = vld [vmem:[#allocation2 + $0x8] sm:$0xff]
  %v1758 = vld [vmem:[#allocation2 + $0x10] sm:$0xff]
  %v1759 = vld [vmem:[#allocation2 + $0x18] sm:$0xff]
  %v1760 = vld [vmem:[#allocation2 + $0x20] sm:$0xff]
  %v1761 = vld [vmem:[#allocation2 + $0x28] sm:$0xff]
  %v1762 = vld [vmem:[#allocation2 + $0x30] sm:$0xff]
  %v1763 = vld [vmem:[#allocation2 + $0x38] sm:$0xff]
  %v1764 = vld [vmem:[#allocation2 + $0x40] sm:$0xff]
  %v1765 = vld [vmem:[#allocation2 + $0x48] sm:$0xff]
  %v1766 = vld [vmem:[#allocation2 + $0x50] sm:$0xff]
  %v1767 = vld [vmem:[#allocation2 + $0x58] sm:$0xff]
  %v1768 = vld [vmem:[#allocation2 + $0x60] sm:$0xff]
  %v1769 = vld [vmem:[#allocation2 + $0x68] sm:$0xff]
  %v1770 = vld [vmem:[#allocation2 + $0x70] sm:$0xff]
  %v1771 = vld [vmem:[#allocation2 + $0x78] sm:$0xff]
  %v1772 = vld [vmem:[#allocation2 + $0x80] sm:$0xff]
  %v1773 = vld [vmem:[#allocation2 + $0x88] sm:$0xff]
  %v1774 = vld [vmem:[#allocation2 + $0x90] sm:$0xff]
  %v1775 = vld [vmem:[#allocation2 + $0x98] sm:$0xff]
  %v1776 = vld [vmem:[#allocation2 + $0xa0] sm:$0xff]
  %v1777 = vld [vmem:[#allocation2 + $0xa8] sm:$0xff]
  %v1778 = vld [vmem:[#allocation2 + $0xb0] sm:$0xff]
  %v1779 = vld [vmem:[#allocation2 + $0xb8] sm:$0xff]
  %v1780 = vld [vmem:[#allocation2 + $0xc0] sm:$0xff]
  %v1781 = vld [vmem:[#allocation2 + $0x9] sm:$0xff]
  %v1782 = vld [vmem:[#allocation2 + $0x11] sm:$0xff]
  %v1783 = vld [vmem:[#allocation2 + $0x19] sm:$0xff]
  %v1784 = vld [vmem:[#allocation2 + $0x21] sm:$0xff]
  %v1785 = vld [vmem:[#allocation2 + $0x29] sm:$0xff]
  %v1786 = vld [vmem:[#allocation2 + $0x31] sm:$0xff]
  %v1787 = vld [vmem:[#allocation2 + $0x39] sm:$0xff]
  %v1788 = vld [vmem:[#allocation2 + $0x41] sm:$0xff]
  %v1789 = vld [vmem:[#allocation2 + $0x49] sm:$0xff]
  %v1790 = vld [vmem:[#allocation2 + $0x51] sm:$0xff]
  %v1791 = vld [vmem:[#allocation2 + $0x59] sm:$0xff]
  %v1792 = vld [vmem:[#allocation2 + $0x61] sm:$0xff]
  %v1793 = vld [vmem:[#allocation2 + $0x69] sm:$0xff]
  %v1794 = vld [vmem:[#allocation2 + $0x71] sm:$0xff]
  %v1795 = vld [vmem:[#allocation2 + $0x79] sm:$0xff]
  %v1796 = vld [vmem:[#allocation2 + $0x81] sm:$0xff]
  %v1797 = vld [vmem:[#allocation2 + $0x89] sm:$0xff]
  %v1798 = vld [vmem:[#allocation2 + $0x91] sm:$0xff]
  %v1799 = vld [vmem:[#allocation2 + $0x99] sm:$0xff]
  %v1800 = vld [vmem:[#allocation2 + $0xa1] sm:$0xff]
  %v1801 = vld [vmem:[#allocation2 + $0xa9] sm:$0xff]
  %v1802 = vld [vmem:[#allocation2 + $0xb1] sm:$0xff]
  %v1803 = vld [vmem:[#allocation2 + $0xb9] sm:$0xff]
  %v1804 = vld [vmem:[#allocation2 + $0xc1] sm:$0xff]
  %v1805 = vld [vmem:[#allocation2 + $0xa] sm:$0xff]
  %v1806 = vld [vmem:[#allocation2 + $0x12] sm:$0xff]
  %v1807 = vld [vmem:[#allocation2 + $0x1a] sm:$0xff]
  %v1808 = vld [vmem:[#allocation2 + $0x22] sm:$0xff]
  %v1809 = vld [vmem:[#allocation2 + $0x2a] sm:$0xff]
  %v1810 = vld [vmem:[#allocation2 + $0x32] sm:$0xff]
  %v1811 = vld [vmem:[#allocation2 + $0x3a] sm:$0xff]
  %v1812 = vld [vmem:[#allocation2 + $0x42] sm:$0xff]
  %v1813 = vld [vmem:[#allocation2 + $0x4a] sm:$0xff]
  %v1814 = vld [vmem:[#allocation2 + $0x52] sm:$0xff]
  %v1815 = vld [vmem:[#allocation2 + $0x5a] sm:$0xff]
  %v1816 = vld [vmem:[#allocation2 + $0x62] sm:$0xff]
  %v1817 = vld [vmem:[#allocation2 + $0x6a] sm:$0xff]
  %v1818 = vld [vmem:[#allocation2 + $0x72] sm:$0xff]
  %v1819 = vld [vmem:[#allocation2 + $0x7a] sm:$0xff]
  %v1820 = vld [vmem:[#allocation2 + $0x82] sm:$0xff]
  %v1821 = vld [vmem:[#allocation2 + $0x8a] sm:$0xff]
  %v1822 = vld [vmem:[#allocation2 + $0x92] sm:$0xff]
  %v1823 = vld [vmem:[#allocation2 + $0x9a] sm:$0xff]
  %v1824 = vld [vmem:[#allocation2 + $0xa2] sm:$0xff]
  %v1825 = vld [vmem:[#allocation2 + $0xaa] sm:$0xff]
  %v1826 = vld [vmem:[#allocation2 + $0xb2] sm:$0xff]
  %v1827 = vld [vmem:[#allocation2 + $0xba] sm:$0xff]
  %v1828 = vld [vmem:[#allocation2 + $0xc2] sm:$0xff]
  %1853 = vrot.lane.b32.xlu0 %v1733, 64
  %v1854 = vpop.permute.xlu0 %1853
  %1855 = vrot.lane.b32.xlu0 %v1734, 64
  %v1856 = vpop.permute.xlu0 %1855
  %1857 = vrot.lane.b32.xlu0 %v1735, 64
  %v1858 = vpop.permute.xlu0 %1857
  %1859 = vrot.lane.b32.xlu0 %v1736, 64
  %v1860 = vpop.permute.xlu0 %1859
  %1861 = vrot.lane.b32.xlu0 %v1737, 64
  %v1862 = vpop.permute.xlu0 %1861
  %1863 = vrot.lane.b32.xlu0 %v1738, 64
  %v1864 = vpop.permute.xlu0 %1863
  %1865 = vrot.lane.b32.xlu0 %v1739, 64
  %v1866 = vpop.permute.xlu0 %1865
  %1867 = vrot.lane.b32.xlu0 %v1740, 64
  %v1868 = vpop.permute.xlu0 %1867
  %1869 = vrot.lane.b32.xlu0 %v1741, 64
  %v1870 = vpop.permute.xlu0 %1869
  %1871 = vrot.lane.b32.xlu0 %v1742, 64
  %v1872 = vpop.permute.xlu0 %1871
  %1873 = vrot.lane.b32.xlu0 %v1743, 64
  %v1874 = vpop.permute.xlu0 %1873
  %1875 = vrot.lane.b32.xlu0 %v1744, 64
  %v1876 = vpop.permute.xlu0 %1875
  %1877 = vrot.lane.b32.xlu0 %v1745, 64
  %v1878 = vpop.permute.xlu0 %1877
  %1879 = vrot.lane.b32.xlu0 %v1746, 64
  %v1880 = vpop.permute.xlu0 %1879
  %1881 = vrot.lane.b32.xlu0 %v1747, 64
  %v1882 = vpop.permute.xlu0 %1881
  %1883 = vrot.lane.b32.xlu0 %v1748, 64
  %v1884 = vpop.permute.xlu0 %1883
  %1885 = vrot.lane.b32.xlu0 %v1749, 64
  %v1886 = vpop.permute.xlu0 %1885
  %1887 = vrot.lane.b32.xlu0 %v1750, 64
  %v1888 = vpop.permute.xlu0 %1887
  %1889 = vrot.lane.b32.xlu0 %v1751, 64
  %v1890 = vpop.permute.xlu0 %1889
  %1891 = vrot.lane.b32.xlu0 %v1752, 64
  %v1892 = vpop.permute.xlu0 %1891
  %1893 = vrot.lane.b32.xlu0 %v1753, 64
  %v1894 = vpop.permute.xlu0 %1893
  %1895 = vrot.lane.b32.xlu0 %v1754, 64
  %v1896 = vpop.permute.xlu0 %1895
  %1897 = vrot.lane.b32.xlu0 %v1755, 64
  %v1898 = vpop.permute.xlu0 %1897
  %1899 = vrot.lane.b32.xlu0 %v1756, 64
  %v1900 = vpop.permute.xlu0 %1899
  %1949 = vrot.lane.b32.xlu0 %v1781, 64
  %v1950 = vpop.permute.xlu0 %1949
  %1951 = vrot.lane.b32.xlu0 %v1782, 64
  %v1952 = vpop.permute.xlu0 %1951
  %1953 = vrot.lane.b32.xlu0 %v1783, 64
  %v1954 = vpop.permute.xlu0 %1953
  %1955 = vrot.lane.b32.xlu0 %v1784, 64
  %v1956 = vpop.permute.xlu0 %1955
  %1957 = vrot.lane.b32.xlu0 %v1785, 64
  %v1958 = vpop.permute.xlu0 %1957
  %1959 = vrot.lane.b32.xlu0 %v1786, 64
  %v1960 = vpop.permute.xlu0 %1959
  %1961 = vrot.lane.b32.xlu0 %v1787, 64
  %v1962 = vpop.permute.xlu0 %1961
  %1963 = vrot.lane.b32.xlu0 %v1788, 64
  %v1964 = vpop.permute.xlu0 %1963
  %1965 = vrot.lane.b32.xlu0 %v1789, 64
  %v1966 = vpop.permute.xlu0 %1965
  %1967 = vrot.lane.b32.xlu0 %v1790, 64
  %v1968 = vpop.permute.xlu0 %1967
  %1969 = vrot.lane.b32.xlu0 %v1791, 64
  %v1970 = vpop.permute.xlu0 %1969
  %1971 = vrot.lane.b32.xlu0 %v1792, 64
  %v1972 = vpop.permute.xlu0 %1971
  %1973 = vrot.lane.b32.xlu0 %v1793, 64
  %v1974 = vpop.permute.xlu0 %1973
  %1975 = vrot.lane.b32.xlu0 %v1794, 64
  %v1976 = vpop.permute.xlu0 %1975
  %1977 = vrot.lane.b32.xlu0 %v1795, 64
  %v1978 = vpop.permute.xlu0 %1977
  %1979 = vrot.lane.b32.xlu0 %v1796, 64
  %v1980 = vpop.permute.xlu0 %1979
  %1981 = vrot.lane.b32.xlu0 %v1797, 64
  %v1982 = vpop.permute.xlu0 %1981
  %1983 = vrot.lane.b32.xlu0 %v1798, 64
  %v1984 = vpop.permute.xlu0 %1983
  %1985 = vrot.lane.b32.xlu0 %v1799, 64
  %v1986 = vpop.permute.xlu0 %1985
  %1987 = vrot.lane.b32.xlu0 %v1800, 64
  %v1988 = vpop.permute.xlu0 %1987
  %1989 = vrot.lane.b32.xlu0 %v1801, 64
  %v1990 = vpop.permute.xlu0 %1989
  %1991 = vrot.lane.b32.xlu0 %v1802, 64
  %v1992 = vpop.permute.xlu0 %1991
  %1993 = vrot.lane.b32.xlu0 %v1803, 64
  %v1994 = vpop.permute.xlu0 %1993
  %1995 = vrot.lane.b32.xlu0 %v1804, 64
  %v1996 = vpop.permute.xlu0 %1995
  %v2021 = vsel %vm17, %v1709, %v1854
  %v2022 = vsel %vm17, %v1710, %v1856
  %v2023 = vsel %vm17, %v1711, %v1858
  %v2024 = vsel %vm17, %v1712, %v1860
  %v2025 = vsel %vm17, %v1713, %v1862
  %v2026 = vsel %vm17, %v1714, %v1864
  %v2027 = vsel %vm17, %v1715, %v1866
  %v2028 = vsel %vm17, %v1716, %v1868
  %v2029 = vsel %vm17, %v1717, %v1870
  %v2030 = vsel %vm17, %v1718, %v1872
  %v2031 = vsel %vm17, %v1719, %v1874
  %v2032 = vsel %vm17, %v1720, %v1876
  %v2033 = vsel %vm17, %v1721, %v1878
  %v2034 = vsel %vm17, %v1722, %v1880
  %v2035 = vsel %vm17, %v1723, %v1882
  %v2036 = vsel %vm17, %v1724, %v1884
  %v2037 = vsel %vm17, %v1725, %v1886
  %v2038 = vsel %vm17, %v1726, %v1888
  %v2039 = vsel %vm17, %v1727, %v1890
  %v2040 = vsel %vm17, %v1728, %v1892
  %v2041 = vsel %vm17, %v1729, %v1894
  %v2042 = vsel %vm17, %v1730, %v1896
  %v2043 = vsel %vm17, %v1731, %v1898
  %v2044 = vsel %vm17, %v1732, %v1900
  %v2045 = vsel %vm17, %v1757, %v1950
  %v2046 = vsel %vm17, %v1758, %v1952
  %v2047 = vsel %vm17, %v1759, %v1954
  %v2048 = vsel %vm17, %v1760, %v1956
  %v2049 = vsel %vm17, %v1761, %v1958
  %v2050 = vsel %vm17, %v1762, %v1960
  %v2051 = vsel %vm17, %v1763, %v1962
  %v2052 = vsel %vm17, %v1764, %v1964
  %v2053 = vsel %vm17, %v1765, %v1966
  %v2054 = vsel %vm17, %v1766, %v1968
  %v2055 = vsel %vm17, %v1767, %v1970
  %v2056 = vsel %vm17, %v1768, %v1972
  %v2057 = vsel %vm17, %v1769, %v1974
  %v2058 = vsel %vm17, %v1770, %v1976
  %v2059 = vsel %vm17, %v1771, %v1978
  %v2060 = vsel %vm17, %v1772, %v1980
  %v2061 = vsel %vm17, %v1773, %v1982
  %v2062 = vsel %vm17, %v1774, %v1984
  %v2063 = vsel %vm17, %v1775, %v1986
  %v2064 = vsel %vm17, %v1776, %v1988
  %v2065 = vsel %vm17, %v1777, %v1990
  %v2066 = vsel %vm17, %v1778, %v1992
  %v2067 = vsel %vm17, %v1779, %v1994
  %v2068 = vsel %vm17, %v1780, %v1996
  %v2069 = vld [vmem:[%s3 + $0x2] sm:$0x1]
  %v2070 = vlaneseq
  %v2071 = vshrl.u32 %v2070, 7
  %v2072 = vsub.s32 0, %v2071
  %v2073 = vrot.slane %v2069, %v2072
  %v2075 = vsel %vm17, %v1805, 0
  %v2078 = vsel %vm17, %v1806, 0
  %v2081 = vsel %vm17, %v1807, 0
  %v2084 = vsel %vm17, %v1808, 0
  %v2087 = vsel %vm17, %v1809, 0
  %v2090 = vsel %vm17, %v1810, 0
  %v2093 = vsel %vm17, %v1811, 0
  %v2096 = vsel %vm17, %v1812, 0
  %v2099 = vsel %vm17, %v1813, 0
  %v2102 = vsel %vm17, %v1814, 0
  %v2105 = vsel %vm17, %v1815, 0
  %v2108 = vsel %vm17, %v1816, 0
  %v2111 = vsel %vm17, %v1817, 0
  %v2114 = vsel %vm17, %v1818, 0
  %v2117 = vsel %vm17, %v1819, 0
  %v2120 = vsel %vm17, %v1820, 0
  %v2123 = vsel %vm17, %v1821, 0
  %v2126 = vsel %vm17, %v1822, 0
  %v2129 = vsel %vm17, %v1823, 0
  %v2132 = vsel %vm17, %v1824, 0
  %v2135 = vsel %vm17, %v1825, 0
  %v2138 = vsel %vm17, %v1826, 0
  %v2141 = vsel %vm17, %v1827, 0
  %v2144 = vsel %vm17, %v1828, 0
  %2146 = vmatprep.subr.mxu0 0.0
  %2147 = vmatpush1.msra.mxu0 %v1621
  %2148 = vmatprep.subr.mxu0 0.0
  %2149 = vmatpush1.msra.mxu0 %v1622
  %2150 = vmatprep.subr.mxu0 0.0
  %2151 = vmatpush1.msra.mxu0 %v1623
  %2152 = vmatprep.subr.mxu0 0.0
  %2153 = vmatpush1.msra.mxu0 %v1624
  %2154 = vmatprep.subr.mxu0 0.0
  %2155 = vmatpush1.msra.mxu0 %v1625
  %2156 = vmatprep.subr.mxu0 0.0
  %2157 = vmatpush1.msra.mxu0 %v1626
  %2158 = vmatprep.subr.mxu0 0.0
  %2159 = vmatpush1.msra.mxu0 %v1627
  %2160 = vmatprep.subr.mxu0 0.0
  %2161 = vmatpush1.msra.mxu0 %v1628
  %2162 = vmatprep.subr.mxu0 0.0
  %2163 = vmatpush1.msra.mxu0 %v1629
  %2164 = vmatprep.subr.mxu0 0.0
  %2165 = vmatpush1.msra.mxu0 %v1630
  %2166 = vmatprep.subr.mxu0 0.0
  %2167 = vmatpush1.msra.mxu0 %v1631
  %2168 = vmatprep.subr.mxu0 0.0
  %2169 = vmatpush1.msra.mxu0 %v1632
  %2170 = vmatprep.subr.mxu0 0.0
  %2171 = vmatpush1.msra.mxu0 %v1633
  %2172 = vmatprep.subr.mxu0 0.0
  %2173 = vmatpush1.msra.mxu0 %v1634
  %2174 = vmatprep.subr.mxu0 0.0
  %2175 = vmatpush1.msra.mxu0 %v1635
  %2176 = vmatprep.subr.mxu0 0.0
  %2177 = vmatpush1.msra.mxu0 %v1636
  %2178 = vmatprep.subr.mxu0 0.0
  %2179 = vmatpush1.msra.mxu0 %v1637
  %2180 = vmatprep.subr.mxu0 0.0
  %2181 = vmatpush1.msra.mxu0 %v1638
  %2182 = vmatprep.subr.mxu0 0.0
  %2183 = vmatpush1.msra.mxu0 %v1639
  %2184 = vmatprep.subr.mxu0 0.0
  %2185 = vmatpush1.msra.mxu0 %v1640
  %2186 = vmatprep.subr.mxu0 0.0
  %2187 = vmatpush1.msra.mxu0 %v1641
  %2188 = vmatprep.subr.mxu0 0.0
  %2189 = vmatpush1.msra.mxu0 %v1642
  %2190 = vmatprep.subr.mxu0 0.0
  %2191 = vmatpush1.msra.mxu0 %v1643
  %2192 = vmatprep.subr.mxu0 0.0
  %2193 = vmatpush1.msra.mxu0 %v1644
  %2194 = vmatprep.subr.mxu0 0.0
  %2195 = vmatpush1.msra.mxu0 %v1645
  %2196 = vmatprep.subr.mxu0 0.0
  %2197 = vmatpush1.msra.mxu0 %v1646
  %2198 = vmatprep.subr.mxu0 0.0
  %2199 = vmatpush1.msra.mxu0 %v1647
  %2200 = vmatprep.subr.mxu0 0.0
  %2201 = vmatpush1.msra.mxu0 %v1648
  %2202 = vmatprep.subr.mxu0 0.0
  %2203 = vmatpush1.msra.mxu0 %v1649
  %2204 = vmatprep.subr.mxu0 0.0
  %2205 = vmatpush1.msra.mxu0 %v1650
  %2206 = vmatprep.subr.mxu0 0.0
  %2207 = vmatpush1.msra.mxu0 %v1651
  %2208 = vmatprep.subr.mxu0 0.0
  %2209 = vmatpush1.msra.mxu0 %v1652
  %2210 = vmatprep.mubr.f32.mxu0 %v2045
  %2211 = vmatmul.mubr.f32.gmra.mrb[0].mxu0 %v2021
  %v2212 = vpop.f32.mrb[0].mxu0
  %v2213 = vadd.f32 %v2073, %v2212
  %v2214 = vpop.f32.mrb[0].mxu0
  %2215 = vmatprep.mubr.f32.mxu0 %v2046
  %2216 = vmatmul.mubr.f32.gmra.mrb[0].mxu0 %v2022
  %v2217 = vpop.f32.mrb[0].mxu0
  %v2218 = vadd.f32 %v2073, %v2217
  %v2219 = vpop.f32.mrb[0].mxu0
  %2220 = vmatprep.mubr.f32.mxu0 %v2047
  %2221 = vmatmul.mubr.f32.gmra.mrb[0].mxu0 %v2023
  %v2222 = vpop.f32.mrb[0].mxu0
  %v2223 = vadd.f32 %v2073, %v2222
  %v2224 = vpop.f32.mrb[0].mxu0
  %2225 = vmatprep.mubr.f32.mxu0 %v2048
  %2226 = vmatmul.mubr.f32.gmra.mrb[0].mxu0 %v2024
  %v2227 = vpop.f32.mrb[0].mxu0
  %v2228 = vadd.f32 %v2073, %v2227
  %v2229 = vpop.f32.mrb[0].mxu0
  %2230 = vmatprep.mubr.f32.mxu0 %v2049
  %2231 = vmatmul.mubr.f32.gmra.mrb[0].mxu0 %v2025
  %v2232 = vpop.f32.mrb[0].mxu0
  %v2233 = vadd.f32 %v2073, %v2232
  %v2234 = vpop.f32.mrb[0].mxu0
  %2235 = vmatprep.mubr.f32.mxu0 %v2050
  %2236 = vmatmul.mubr.f32.gmra.mrb[0].mxu0 %v2026
  %v2237 = vpop.f32.mrb[0].mxu0
  %v2238 = vadd.f32 %v2073, %v2237
  %v2239 = vpop.f32.mrb[0].mxu0
  %2240 = vmatprep.mubr.f32.mxu0 %v2051
  %2241 = vmatmul.mubr.f32.gmra.mrb[0].mxu0 %v2027
  %v2242 = vpop.f32.mrb[0].mxu0
  %v2243 = vadd.f32 %v2073, %v2242
  %v2244 = vpop.f32.mrb[0].mxu0
  %2245 = vmatprep.mubr.f32.mxu0 %v2052
  %2246 = vmatmul.mubr.f32.gmra.mrb[0].mxu0 %v2028
  %v2247 = vpop.f32.mrb[0].mxu0
  %v2248 = vadd.f32 %v2073, %v2247
  %v2249 = vpop.f32.mrb[0].mxu0
  %2250 = vmatprep.mubr.f32.mxu0 %v2053
  %2251 = vmatmul.mubr.f32.gmra.mrb[0].mxu0 %v2029
  %v2252 = vpop.f32.mrb[0].mxu0
  %v2253 = vadd.f32 %v2073, %v2252
  %v2254 = vpop.f32.mrb[0].mxu0
  %2255 = vmatprep.mubr.f32.mxu0 %v2054
  %2256 = vmatmul.mubr.f32.gmra.mrb[0].mxu0 %v2030
  %v2257 = vpop.f32.mrb[0].mxu0
  %v2258 = vadd.f32 %v2073, %v2257
  %v2259 = vpop.f32.mrb[0].mxu0
  %2260 = vmatprep.mubr.f32.mxu0 %v2055
  %2261 = vmatmul.mubr.f32.gmra.mrb[0].mxu0 %v2031
  %v2262 = vpop.f32.mrb[0].mxu0
  %v2263 = vadd.f32 %v2073, %v2262
  %v2264 = vpop.f32.mrb[0].mxu0
  %2265 = vmatprep.mubr.f32.mxu0 %v2056
  %2266 = vmatmul.mubr.f32.gmra.mrb[0].mxu0 %v2032
  %v2267 = vpop.f32.mrb[0].mxu0
  %v2268 = vadd.f32 %v2073, %v2267
  %v2269 = vpop.f32.mrb[0].mxu0
  %2270 = vmatprep.mubr.f32.mxu0 %v2057
  %2271 = vmatmul.mubr.f32.gmra.mrb[0].mxu0 %v2033
  %v2272 = vpop.f32.mrb[0].mxu0
  %v2273 = vadd.f32 %v2073, %v2272
  %v2274 = vpop.f32.mrb[0].mxu0
  %2275 = vmatprep.mubr.f32.mxu0 %v2058
  %2276 = vmatmul.mubr.f32.gmra.mrb[0].mxu0 %v2034
  %v2277 = vpop.f32.mrb[0].mxu0
  %v2278 = vadd.f32 %v2073, %v2277
  %v2279 = vpop.f32.mrb[0].mxu0
  %2280 = vmatprep.mubr.f32.mxu0 %v2059
  %2281 = vmatmul.mubr.f32.gmra.mrb[0].mxu0 %v2035
  %v2282 = vpop.f32.mrb[0].mxu0
  %v2283 = vadd.f32 %v2073, %v2282
  %v2284 = vpop.f32.mrb[0].mxu0
  %2285 = vmatprep.mubr.f32.mxu0 %v2060
  %2286 = vmatmul.mubr.f32.gmra.mrb[0].mxu0 %v2036
  %v2287 = vpop.f32.mrb[0].mxu0
  %v2288 = vadd.f32 %v2073, %v2287
  %v2289 = vpop.f32.mrb[0].mxu0
  %2290 = vmatprep.mubr.f32.mxu0 %v2061
  %2291 = vmatmul.mubr.f32.gmra.mrb[0].mxu0 %v2037
  %v2292 = vpop.f32.mrb[0].mxu0
  %v2293 = vadd.f32 %v2073, %v2292
  %v2294 = vpop.f32.mrb[0].mxu0
  %2295 = vmatprep.mubr.f32.mxu0 %v2062
  %2296 = vmatmul.mubr.f32.gmra.mrb[0].mxu0 %v2038
  %v2297 = vpop.f32.mrb[0].mxu0
  %v2298 = vadd.f32 %v2073, %v2297
  %v2299 = vpop.f32.mrb[0].mxu0
  %2300 = vmatprep.mubr.f32.mxu0 %v2063
  %2301 = vmatmul.mubr.f32.gmra.mrb[0].mxu0 %v2039
  %v2302 = vpop.f32.mrb[0].mxu0
  %v2303 = vadd.f32 %v2073, %v2302
  %v2304 = vpop.f32.mrb[0].mxu0
  %2305 = vmatprep.mubr.f32.mxu0 %v2064
  %2306 = vmatmul.mubr.f32.gmra.mrb[0].mxu0 %v2040
  %v2307 = vpop.f32.mrb[0].mxu0
  %v2308 = vadd.f32 %v2073, %v2307
  %v2309 = vpop.f32.mrb[0].mxu0
  %2310 = vmatprep.mubr.f32.mxu0 %v2065
  %2311 = vmatmul.mubr.f32.gmra.mrb[0].mxu0 %v2041
  %v2312 = vpop.f32.mrb[0].mxu0
  %v2313 = vadd.f32 %v2073, %v2312
  %v2314 = vpop.f32.mrb[0].mxu0
  %2315 = vmatprep.mubr.f32.mxu0 %v2066
  %2316 = vmatmul.mubr.f32.gmra.mrb[0].mxu0 %v2042
  %v2317 = vpop.f32.mrb[0].mxu0
  %v2318 = vadd.f32 %v2073, %v2317
  %v2319 = vpop.f32.mrb[0].mxu0
  %2320 = vmatprep.mubr.f32.mxu0 %v2067
  %2321 = vmatmul.mubr.f32.gmra.mrb[0].mxu0 %v2043
  %v2322 = vpop.f32.mrb[0].mxu0
  %v2323 = vadd.f32 %v2073, %v2322
  %v2324 = vpop.f32.mrb[0].mxu0
  %2325 = vmatprep.mubr.f32.mxu0 %v2068
  %2326 = vmatmul.mubr.f32.gmra.mrb[0].mxu0 %v2044
  %v2327 = vpop.f32.mrb[0].mxu0
  %v2328 = vadd.f32 %v2073, %v2327
  %v2329 = vpop.f32.mrb[0].mxu0
  %2330 = vdwg.mxu0
  %2331 = vmatprep.subr.mxu0 0.0
  %2332 = vmatpush1.msra.mxu0 %v1653
  %2333 = vmatprep.subr.mxu0 0.0
  %2334 = vmatpush1.msra.mxu0 %v1654
  %2335 = vmatprep.subr.mxu0 0.0
  %2336 = vmatpush1.msra.mxu0 %v1655
  %2337 = vmatprep.subr.mxu0 0.0
  %2338 = vmatpush1.msra.mxu0 %v1656
  %2339 = vmatprep.subr.mxu0 0.0
  %2340 = vmatpush1.msra.mxu0 %v1657
  %2341 = vmatprep.subr.mxu0 0.0
  %2342 = vmatpush1.msra.mxu0 %v1658
  %2343 = vmatprep.subr.mxu0 0.0
  %2344 = vmatpush1.msra.mxu0 %v1659
  %2345 = vmatprep.subr.mxu0 0.0
  %2346 = vmatpush1.msra.mxu0 %v1660
  %2347 = vmatprep.subr.mxu0 0.0
  %2348 = vmatpush1.msra.mxu0 0.0
  %2349 = vmatprep.subr.mxu0 0.0
  %2350 = vmatpush1.msra.mxu0 0.0
  %2351 = vmatprep.subr.mxu0 0.0
  %2352 = vmatpush1.msra.mxu0 0.0
  %2353 = vmatprep.subr.mxu0 0.0
  %2354 = vmatpush1.msra.mxu0 0.0
  %2355 = vmatprep.subr.mxu0 0.0
  %2356 = vmatpush1.msra.mxu0 0.0
  %2357 = vmatprep.subr.mxu0 0.0
  %2358 = vmatpush1.msra.mxu0 0.0
  %2359 = vmatprep.subr.mxu0 0.0
  %2360 = vmatpush1.msra.mxu0 0.0
  %2361 = vmatprep.subr.mxu0 0.0
  %2362 = vmatpush1.msra.mxu0 0.0
  %2363 = vmatprep.subr.mxu0 0.0
  %2364 = vmatpush1.msra.mxu0 0.0
  %2365 = vmatprep.subr.mxu0 0.0
  %2366 = vmatpush1.msra.mxu0 0.0
  %2367 = vmatprep.subr.mxu0 0.0
  %2368 = vmatpush1.msra.mxu0 0.0
  %2369 = vmatprep.subr.mxu0 0.0
  %2370 = vmatpush1.msra.mxu0 0.0
  %2371 = vmatprep.subr.mxu0 0.0
  %2372 = vmatpush1.msra.mxu0 0.0
  %2373 = vmatprep.subr.mxu0 0.0
  %2374 = vmatpush1.msra.mxu0 0.0
  %2375 = vmatprep.subr.mxu0 0.0
  %2376 = vmatpush1.msra.mxu0 0.0
  %2377 = vmatprep.subr.mxu0 0.0
  %2378 = vmatpush1.msra.mxu0 0.0
  %2379 = vmatprep.subr.mxu0 0.0
  %2380 = vmatpush1.msra.mxu0 0.0
  %2381 = vmatprep.subr.mxu0 0.0
  %2382 = vmatpush1.msra.mxu0 0.0
  %2383 = vmatprep.subr.mxu0 0.0
  %2384 = vmatpush1.msra.mxu0 0.0
  %2385 = vmatprep.subr.mxu0 0.0
  %2386 = vmatpush1.msra.mxu0 0.0
  %2387 = vmatprep.subr.mxu0 0.0
  %2388 = vmatpush1.msra.mxu0 0.0
  %2389 = vmatprep.subr.mxu0 0.0
  %2390 = vmatpush1.msra.mxu0 0.0
  %2391 = vmatprep.subr.mxu0 0.0
  %2392 = vmatpush1.msra.mxu0 0.0
  %2393 = vmatprep.subr.mxu0 0.0
  %2394 = vmatpush1.msra.mxu0 0.0
  %2395 = vmatprep.mubr.f32.mxu0 0.0
  %2396 = vmatmul.mubr.f32.gmra.mrb[0].mxu0 %v2075
  %v2397 = vpop.f32.mrb[0].mxu0
  %v2398 = vadd.f32 %v2213, %v2397
  %v2399 = vpop.f32.mrb[0].mxu0
  %2400 = vmatprep.mubr.f32.mxu0 0.0
  %2401 = vmatmul.mubr.f32.gmra.mrb[0].mxu0 %v2078
  %v2402 = vpop.f32.mrb[0].mxu0
  %v2403 = vadd.f32 %v2218, %v2402
  %v2404 = vpop.f32.mrb[0].mxu0
  %2405 = vmatprep.mubr.f32.mxu0 0.0
  %2406 = vmatmul.mubr.f32.gmra.mrb[0].mxu0 %v2081
  %v2407 = vpop.f32.mrb[0].mxu0
  %v2408 = vadd.f32 %v2223, %v2407
  %v2409 = vpop.f32.mrb[0].mxu0
  %2410 = vmatprep.mubr.f32.mxu0 0.0
  %2411 = vmatmul.mubr.f32.gmra.mrb[0].mxu0 %v2084
  %v2412 = vpop.f32.mrb[0].mxu0
  %v2413 = vadd.f32 %v2228, %v2412
  %v2414 = vpop.f32.mrb[0].mxu0
  %2415 = vmatprep.mubr.f32.mxu0 0.0
  %2416 = vmatmul.mubr.f32.gmra.mrb[0].mxu0 %v2087
  %v2417 = vpop.f32.mrb[0].mxu0
  %v2418 = vadd.f32 %v2233, %v2417
  %v2419 = vpop.f32.mrb[0].mxu0
  %2420 = vmatprep.mubr.f32.mxu0 0.0
  %2421 = vmatmul.mubr.f32.gmra.mrb[0].mxu0 %v2090
  %v2422 = vpop.f32.mrb[0].mxu0
  %v2423 = vadd.f32 %v2238, %v2422
  %v2424 = vpop.f32.mrb[0].mxu0
  %2425 = vmatprep.mubr.f32.mxu0 0.0
  %2426 = vmatmul.mubr.f32.gmra.mrb[0].mxu0 %v2093
  %v2427 = vpop.f32.mrb[0].mxu0
  %v2428 = vadd.f32 %v2243, %v2427
  %v2429 = vpop.f32.mrb[0].mxu0
  %2430 = vmatprep.mubr.f32.mxu0 0.0
  %2431 = vmatmul.mubr.f32.gmra.mrb[0].mxu0 %v2096
  %v2432 = vpop.f32.mrb[0].mxu0
  %v2433 = vadd.f32 %v2248, %v2432
  %v2434 = vpop.f32.mrb[0].mxu0
  %2435 = vmatprep.mubr.f32.mxu0 0.0
  %2436 = vmatmul.mubr.f32.gmra.mrb[0].mxu0 %v2099
  %v2437 = vpop.f32.mrb[0].mxu0
  %v2438 = vadd.f32 %v2253, %v2437
  %v2439 = vpop.f32.mrb[0].mxu0
  %2440 = vmatprep.mubr.f32.mxu0 0.0
  %2441 = vmatmul.mubr.f32.gmra.mrb[0].mxu0 %v2102
  %v2442 = vpop.f32.mrb[0].mxu0
  %v2443 = vadd.f32 %v2258, %v2442
  %v2444 = vpop.f32.mrb[0].mxu0
  %2445 = vmatprep.mubr.f32.mxu0 0.0
  %2446 = vmatmul.mubr.f32.gmra.mrb[0].mxu0 %v2105
  %v2447 = vpop.f32.mrb[0].mxu0
  %v2448 = vadd.f32 %v2263, %v2447
  %v2449 = vpop.f32.mrb[0].mxu0
  %2450 = vmatprep.mubr.f32.mxu0 0.0
  %2451 = vmatmul.mubr.f32.gmra.mrb[0].mxu0 %v2108
  %v2452 = vpop.f32.mrb[0].mxu0
  %v2453 = vadd.f32 %v2268, %v2452
  %v2454 = vpop.f32.mrb[0].mxu0
  %2455 = vmatprep.mubr.f32.mxu0 0.0
  %2456 = vmatmul.mubr.f32.gmra.mrb[0].mxu0 %v2111
  %v2457 = vpop.f32.mrb[0].mxu0
  %v2458 = vadd.f32 %v2273, %v2457
  %v2459 = vpop.f32.mrb[0].mxu0
  %2460 = vmatprep.mubr.f32.mxu0 0.0
  %2461 = vmatmul.mubr.f32.gmra.mrb[0].mxu0 %v2114
  %v2462 = vpop.f32.mrb[0].mxu0
  %v2463 = vadd.f32 %v2278, %v2462
  %v2464 = vpop.f32.mrb[0].mxu0
  %2465 = vmatprep.mubr.f32.mxu0 0.0
  %2466 = vmatmul.mubr.f32.gmra.mrb[0].mxu0 %v2117
  %v2467 = vpop.f32.mrb[0].mxu0
  %v2468 = vadd.f32 %v2283, %v2467
  %v2469 = vpop.f32.mrb[0].mxu0
  %2470 = vmatprep.mubr.f32.mxu0 0.0
  %2471 = vmatmul.mubr.f32.gmra.mrb[0].mxu0 %v2120
  %v2472 = vpop.f32.mrb[0].mxu0
  %v2473 = vadd.f32 %v2288, %v2472
  %v2474 = vpop.f32.mrb[0].mxu0
  %2475 = vmatprep.mubr.f32.mxu0 0.0
  %2476 = vmatmul.mubr.f32.gmra.mrb[0].mxu0 %v2123
  %v2477 = vpop.f32.mrb[0].mxu0
  %v2478 = vadd.f32 %v2293, %v2477
  %v2479 = vpop.f32.mrb[0].mxu0
  %2480 = vmatprep.mubr.f32.mxu0 0.0
  %2481 = vmatmul.mubr.f32.gmra.mrb[0].mxu0 %v2126
  %v2482 = vpop.f32.mrb[0].mxu0
  %v2483 = vadd.f32 %v2298, %v2482
  %v2484 = vpop.f32.mrb[0].mxu0
  %2485 = vmatprep.mubr.f32.mxu0 0.0
  %2486 = vmatmul.mubr.f32.gmra.mrb[0].mxu0 %v2129
  %v2487 = vpop.f32.mrb[0].mxu0
  %v2488 = vadd.f32 %v2303, %v2487
  %v2489 = vpop.f32.mrb[0].mxu0
  %2490 = vmatprep.mubr.f32.mxu0 0.0
  %2491 = vmatmul.mubr.f32.gmra.mrb[0].mxu0 %v2132
  %v2492 = vpop.f32.mrb[0].mxu0
  %v2493 = vadd.f32 %v2308, %v2492
  %v2494 = vpop.f32.mrb[0].mxu0
  %2495 = vmatprep.mubr.f32.mxu0 0.0
  %2496 = vmatmul.mubr.f32.gmra.mrb[0].mxu0 %v2135
  %v2497 = vpop.f32.mrb[0].mxu0
  %v2498 = vadd.f32 %v2313, %v2497
  %v2499 = vpop.f32.mrb[0].mxu0
  %2500 = vmatprep.mubr.f32.mxu0 0.0
  %2501 = vmatmul.mubr.f32.gmra.mrb[0].mxu0 %v2138
  %v2502 = vpop.f32.mrb[0].mxu0
  %v2503 = vadd.f32 %v2318, %v2502
  %v2504 = vpop.f32.mrb[0].mxu0
  %2505 = vmatprep.mubr.f32.mxu0 0.0
  %2506 = vmatmul.mubr.f32.gmra.mrb[0].mxu0 %v2141
  %v2507 = vpop.f32.mrb[0].mxu0
  %v2508 = vadd.f32 %v2323, %v2507
  %v2509 = vpop.f32.mrb[0].mxu0
  %2510 = vmatprep.mubr.f32.mxu0 0.0
  %2511 = vmatmul.mubr.f32.gmra.mrb[0].mxu0 %v2144
  %v2512 = vpop.f32.mrb[0].mxu0
  %v2513 = vadd.f32 %v2328, %v2512
  %v2514 = vpop.f32.mrb[0].mxu0
  %2515 = vdwg.mxu0
  %v2516 = vsel %vm64, %v2398, 0.0
  %v2517 = vsel %vm65, %v2403, 0.0
  %v2518 = vsel %vm66, %v2408, 0.0
  %v2519 = vsel %vm64, %v2413, 0.0
  %v2520 = vsel %vm65, %v2418, 0.0
  %v2521 = vsel %vm66, %v2423, 0.0
  %v2522 = vsel %vm64, %v2428, 0.0
  %v2523 = vsel %vm65, %v2433, 0.0
  %v2524 = vsel %vm66, %v2438, 0.0
  %v2525 = vsel %vm64, %v2443, 0.0
  %v2526 = vsel %vm65, %v2448, 0.0
  %v2527 = vsel %vm66, %v2453, 0.0
  %v2528 = vsel %vm64, %v2458, 0.0
  %v2529 = vsel %vm65, %v2463, 0.0
  %v2530 = vsel %vm66, %v2468, 0.0
  %v2531 = vsel %vm64, %v2473, 0.0
  %v2532 = vsel %vm65, %v2478, 0.0
  %v2533 = vsel %vm66, %v2483, 0.0
  %v2534 = vsel %vm64, %v2488, 0.0
  %v2535 = vsel %vm65, %v2493, 0.0
  %v2536 = vsel %vm66, %v2498, 0.0
  %v2537 = vsel %vm64, %v2503, 0.0
  %v2538 = vsel %vm65, %v2508, 0.0
  %v2539 = vsel %vm66, %v2513, 0.0
  %v2540 = vmul.f32 %v2516, %v2516
  %v2541 = vmul.f32 %v2517, %v2517
  %v2542 = vmul.f32 %v2518, %v2518
  %v2543 = vmul.f32 %v2519, %v2519
  %v2544 = vmul.f32 %v2520, %v2520
  %v2545 = vmul.f32 %v2521, %v2521
  %v2546 = vmul.f32 %v2522, %v2522
  %v2547 = vmul.f32 %v2523, %v2523
  %v2548 = vmul.f32 %v2524, %v2524
  %v2549 = vmul.f32 %v2525, %v2525
  %v2550 = vmul.f32 %v2526, %v2526
  %v2551 = vmul.f32 %v2527, %v2527
  %v2552 = vmul.f32 %v2528, %v2528
  %v2553 = vmul.f32 %v2529, %v2529
  %v2554 = vmul.f32 %v2530, %v2530
  %v2555 = vmul.f32 %v2531, %v2531
  %v2556 = vmul.f32 %v2532, %v2532
  %v2557 = vmul.f32 %v2533, %v2533
  %v2558 = vmul.f32 %v2534, %v2534
  %v2559 = vmul.f32 %v2535, %v2535
  %v2560 = vmul.f32 %v2536, %v2536
  %v2561 = vmul.f32 %v2537, %v2537
  %v2562 = vmul.f32 %v2538, %v2538
  %v2563 = vmul.f32 %v2539, %v2539
  %2588 = vrot.lane.b32.xlu0 %v2540, 64
  %v2589 = vpop.permute.xlu0 %2588
  %2590 = vrot.lane.b32.xlu0 %v2541, 64
  %v2591 = vpop.permute.xlu0 %2590
  %2592 = vrot.lane.b32.xlu0 %v2542, 64
  %v2593 = vpop.permute.xlu0 %2592
  %2594 = vrot.lane.b32.xlu0 %v2543, 64
  %v2595 = vpop.permute.xlu0 %2594
  %2596 = vrot.lane.b32.xlu0 %v2544, 64
  %v2597 = vpop.permute.xlu0 %2596
  %2598 = vrot.lane.b32.xlu0 %v2545, 64
  %v2599 = vpop.permute.xlu0 %2598
  %2600 = vrot.lane.b32.xlu0 %v2546, 64
  %v2601 = vpop.permute.xlu0 %2600
  %2602 = vrot.lane.b32.xlu0 %v2547, 64
  %v2603 = vpop.permute.xlu0 %2602
  %2604 = vrot.lane.b32.xlu0 %v2548, 64
  %v2605 = vpop.permute.xlu0 %2604
  %2606 = vrot.lane.b32.xlu0 %v2549, 64
  %v2607 = vpop.permute.xlu0 %2606
  %2608 = vrot.lane.b32.xlu0 %v2550, 64
  %v2609 = vpop.permute.xlu0 %2608
  %2610 = vrot.lane.b32.xlu0 %v2551, 64
  %v2611 = vpop.permute.xlu0 %2610
  %2612 = vrot.lane.b32.xlu0 %v2552, 64
  %v2613 = vpop.permute.xlu0 %2612
  %2614 = vrot.lane.b32.xlu0 %v2553, 64
  %v2615 = vpop.permute.xlu0 %2614
  %2616 = vrot.lane.b32.xlu0 %v2554, 64
  %v2617 = vpop.permute.xlu0 %2616
  %2618 = vrot.lane.b32.xlu0 %v2555, 64
  %v2619 = vpop.permute.xlu0 %2618
  %2620 = vrot.lane.b32.xlu0 %v2556, 64
  %v2621 = vpop.permute.xlu0 %2620
  %2622 = vrot.lane.b32.xlu0 %v2557, 64
  %v2623 = vpop.permute.xlu0 %2622
  %2624 = vrot.lane.b32.xlu0 %v2558, 64
  %v2625 = vpop.permute.xlu0 %2624
  %2626 = vrot.lane.b32.xlu0 %v2559, 64
  %v2627 = vpop.permute.xlu0 %2626
  %2628 = vrot.lane.b32.xlu0 %v2560, 64
  %v2629 = vpop.permute.xlu0 %2628
  %2630 = vrot.lane.b32.xlu0 %v2561, 64
  %v2631 = vpop.permute.xlu0 %2630
  %2632 = vrot.lane.b32.xlu0 %v2562, 64
  %v2633 = vpop.permute.xlu0 %2632
  %2634 = vrot.lane.b32.xlu0 %v2563, 64
  %v2635 = vpop.permute.xlu0 %2634
  %v2660 = vsel %vm17, %v2516, %v2589
  %v2661 = vsel %vm17, %v2517, %v2591
  %v2662 = vsel %vm17, %v2518, %v2593
  %v2663 = vsel %vm17, %v2519, %v2595
  %v2664 = vsel %vm17, %v2520, %v2597
  %v2665 = vsel %vm17, %v2521, %v2599
  %v2666 = vsel %vm17, %v2522, %v2601
  %v2667 = vsel %vm17, %v2523, %v2603
  %v2668 = vsel %vm17, %v2524, %v2605
  %v2669 = vsel %vm17, %v2525, %v2607
  %v2670 = vsel %vm17, %v2526, %v2609
  %v2671 = vsel %vm17, %v2527, %v2611
  %v2672 = vsel %vm17, %v2528, %v2613
  %v2673 = vsel %vm17, %v2529, %v2615
  %v2674 = vsel %vm17, %v2530, %v2617
  %v2675 = vsel %vm17, %v2531, %v2619
  %v2676 = vsel %vm17, %v2532, %v2621
  %v2677 = vsel %vm17, %v2533, %v2623
  %v2678 = vsel %vm17, %v2534, %v2625
  %v2679 = vsel %vm17, %v2535, %v2627
  %v2680 = vsel %vm17, %v2536, %v2629
  %v2681 = vsel %vm17, %v2537, %v2631
  %v2682 = vsel %vm17, %v2538, %v2633
  %v2683 = vsel %vm17, %v2539, %v2635
  %v2684 = vadd.f32 %v2660, %v2661
  %v2685 = vadd.f32 %v2684, %v2662
  %v2686 = vadd.f32 %v2685, %v2663
  %v2687 = vadd.f32 %v2686, %v2664
  %v2688 = vadd.f32 %v2687, %v2665
  %v2689 = vadd.f32 %v2688, %v2666
  %v2690 = vadd.f32 %v2689, %v2667
  %v2691 = vadd.f32 %v2690, %v2668
  %v2692 = vadd.f32 %v2691, %v2669
  %v2693 = vadd.f32 %v2692, %v2670
  %v2694 = vadd.f32 %v2693, %v2671
  %v2695 = vadd.f32 %v2694, %v2672
  %v2696 = vadd.f32 %v2695, %v2673
  %v2697 = vadd.f32 %v2696, %v2674
  %v2698 = vadd.f32 %v2697, %v2675
  %v2699 = vadd.f32 %v2698, %v2676
  %v2700 = vadd.f32 %v2699, %v2677
  %v2701 = vadd.f32 %v2700, %v2678
  %v2702 = vadd.f32 %v2701, %v2679
  %v2703 = vadd.f32 %v2702, %v2680
  %v2704 = vadd.f32 %v2703, %v2681
  %v2705 = vadd.f32 %v2704, %v2682
  %v2706 = vadd.f32 %v2705, %v2683
  %v2707 = vrot.slane %v2706, 4
  %v2708 = vadd.f32 %v2706, %v2707
  %v2709 = vrot.slane %v2708, 2
  %v2710 = vadd.f32 %v2708, %v2709
  %v2711 = vrot.slane %v2710, 1
  %v2712 = vadd.f32 %v2710, %v2711
  %v2713 = vmul.f32 %v2712, 0.0078125
  %v2714 = vmul.f32 %v2713, %v2713
  %2716 = vrot.lane.b32.xlu0 %v2714, 64
  %v2717 = vpop.permute.xlu0 %2716
  %v2719 = vsub.f32 %v2713, %v2717
  %v2720 = vmax.f32 %v2719, 0.0
  %v2721 = vld [vmem:[%s3 + $0x6] sm:$0x1]
  %v2722 = vsub.f32 %v2398, %v2713
  %v2723 = vsub.f32 %v2403, %v2713
  %v2724 = vsub.f32 %v2408, %v2713
  %v2725 = vsub.f32 %v2413, %v2713
  %v2726 = vsub.f32 %v2418, %v2713
  %v2727 = vsub.f32 %v2423, %v2713
  %v2728 = vsub.f32 %v2428, %v2713
  %v2729 = vsub.f32 %v2433, %v2713
  %v2730 = vsub.f32 %v2438, %v2713
  %v2731 = vsub.f32 %v2443, %v2713
  %v2732 = vsub.f32 %v2448, %v2713
  %v2733 = vsub.f32 %v2453, %v2713
  %v2734 = vsub.f32 %v2458, %v2713
  %v2735 = vsub.f32 %v2463, %v2713
  %v2736 = vsub.f32 %v2468, %v2713
  %v2737 = vsub.f32 %v2473, %v2713
  %v2738 = vsub.f32 %v2478, %v2713
  %v2739 = vsub.f32 %v2483, %v2713
  %v2740 = vsub.f32 %v2488, %v2713
  %v2741 = vsub.f32 %v2493, %v2713
  %v2742 = vsub.f32 %v2498, %v2713
  %v2743 = vsub.f32 %v2503, %v2713
  %v2744 = vsub.f32 %v2508, %v2713
  %v2745 = vsub.f32 %v2513, %v2713
  %v2746 = vadd.f32 %v2720, 1e-05
  %v2747 = vrsqrt.pop %v2746
  %v2748 = vlaneseq
  %v2749 = vshrl.u32 %v2748, 7
  %v2750 = vsub.s32 0, %v2749
  %v2751 = vrot.slane %v2747, %v2750
  %2753 = vrot.lane.b32.xlu0 %v2751, 64
  %v2754 = vpop.permute.xlu0 %2753
  %v2756 = vmul.f32 %v2722, %v2754
  %v2757 = vmul.f32 %v2723, %v2754
  %v2758 = vmul.f32 %v2724, %v2754
  %v2759 = vmul.f32 %v2725, %v2754
  %v2760 = vmul.f32 %v2726, %v2754
  %v2761 = vmul.f32 %v2727, %v2754
  %v2762 = vmul.f32 %v2728, %v2754
  %v2763 = vmul.f32 %v2729, %v2754
  %v2764 = vmul.f32 %v2730, %v2754
  %v2765 = vmul.f32 %v2731, %v2754
  %v2766 = vmul.f32 %v2732, %v2754
  %v2767 = vmul.f32 %v2733, %v2754
  %v2768 = vmul.f32 %v2734, %v2754
  %v2769 = vmul.f32 %v2735, %v2754
  %v2770 = vmul.f32 %v2736, %v2754
  %v2771 = vmul.f32 %v2737, %v2754
  %v2772 = vmul.f32 %v2738, %v2754
  %v2773 = vmul.f32 %v2739, %v2754
  %v2774 = vmul.f32 %v2740, %v2754
  %v2775 = vmul.f32 %v2741, %v2754
  %v2776 = vmul.f32 %v2742, %v2754
  %v2777 = vmul.f32 %v2743, %v2754
  %v2778 = vmul.f32 %v2744, %v2754
  %v2779 = vmul.f32 %v2745, %v2754
  %v2780 = vlaneseq
  %v2781 = vshrl.u32 %v2780, 7
  %v2782 = vsub.s32 0, %v2781
  %v2783 = vrot.slane %v2721, %v2782
  %v2784 = vmul.f32 %v2783, %v2756
  %v2785 = vmul.f32 %v2783, %v2757
  %v2786 = vmul.f32 %v2783, %v2758
  %v2787 = vmul.f32 %v2783, %v2759
  %v2788 = vmul.f32 %v2783, %v2760
  %v2789 = vmul.f32 %v2783, %v2761
  %v2790 = vmul.f32 %v2783, %v2762
  %v2791 = vmul.f32 %v2783, %v2763
  %v2792 = vmul.f32 %v2783, %v2764
  %v2793 = vmul.f32 %v2783, %v2765
  %v2794 = vmul.f32 %v2783, %v2766
  %v2795 = vmul.f32 %v2783, %v2767
  %v2796 = vmul.f32 %v2783, %v2768
  %v2797 = vmul.f32 %v2783, %v2769
  %v2798 = vmul.f32 %v2783, %v2770
  %v2799 = vmul.f32 %v2783, %v2771
  %v2800 = vmul.f32 %v2783, %v2772
  %v2801 = vmul.f32 %v2783, %v2773
  %v2802 = vmul.f32 %v2783, %v2774
  %v2803 = vmul.f32 %v2783, %v2775
  %v2804 = vmul.f32 %v2783, %v2776
  %v2805 = vmul.f32 %v2783, %v2777
  %v2806 = vmul.f32 %v2783, %v2778
  %v2807 = vmul.f32 %v2783, %v2779
  %v2808 = vld [vmem:[%s3 + $0x7] sm:$0x1]
  %v2809 = vlaneseq
  %v2810 = vshrl.u32 %v2809, 7
  %v2811 = vsub.s32 0, %v2810
  %v2812 = vrot.slane %v2808, %v2811
  %v2813 = vadd.f32 %v2784, %v2812
  %v2814 = vadd.f32 %v2785, %v2812
  %v2815 = vadd.f32 %v2786, %v2812
  %v2816 = vadd.f32 %v2787, %v2812
  %v2817 = vadd.f32 %v2788, %v2812
  %v2818 = vadd.f32 %v2789, %v2812
  %v2819 = vadd.f32 %v2790, %v2812
  %v2820 = vadd.f32 %v2791, %v2812
  %v2821 = vadd.f32 %v2792, %v2812
  %v2822 = vadd.f32 %v2793, %v2812
  %v2823 = vadd.f32 %v2794, %v2812
  %v2824 = vadd.f32 %v2795, %v2812
  %v2825 = vadd.f32 %v2796, %v2812
  %v2826 = vadd.f32 %v2797, %v2812
  %v2827 = vadd.f32 %v2798, %v2812
  %v2828 = vadd.f32 %v2799, %v2812
  %v2829 = vadd.f32 %v2800, %v2812
  %v2830 = vadd.f32 %v2801, %v2812
  %v2831 = vadd.f32 %v2802, %v2812
  %v2832 = vadd.f32 %v2803, %v2812
  %v2833 = vadd.f32 %v2804, %v2812
  %v2834 = vadd.f32 %v2805, %v2812
  %v2835 = vadd.f32 %v2806, %v2812
  %v2836 = vadd.f32 %v2807, %v2812
  %v2837 = vmax.f32 %v2813, 0.0
  %v2838 = vmax.f32 %v2814, 0.0
  %v2839 = vmax.f32 %v2815, 0.0
  %v2840 = vmax.f32 %v2816, 0.0
  %v2841 = vmax.f32 %v2817, 0.0
  %v2842 = vmax.f32 %v2818, 0.0
  %v2843 = vmax.f32 %v2819, 0.0
  %v2844 = vmax.f32 %v2820, 0.0
  %v2845 = vmax.f32 %v2821, 0.0
  %v2846 = vmax.f32 %v2822, 0.0
  %v2847 = vmax.f32 %v2823, 0.0
  %v2848 = vmax.f32 %v2824, 0.0
  %v2849 = vmax.f32 %v2825, 0.0
  %v2850 = vmax.f32 %v2826, 0.0
  %v2851 = vmax.f32 %v2827, 0.0
  %v2852 = vmax.f32 %v2828, 0.0
  %v2853 = vmax.f32 %v2829, 0.0
  %v2854 = vmax.f32 %v2830, 0.0
  %v2855 = vmax.f32 %v2831, 0.0
  %v2856 = vmax.f32 %v2832, 0.0
  %v2857 = vmax.f32 %v2833, 0.0
  %v2858 = vmax.f32 %v2834, 0.0
  %v2859 = vmax.f32 %v2835, 0.0
  %v2860 = vmax.f32 %v2836, 0.0
  %v2861 = vld [vmem:[%s2 + $0x160] sm:$0xff]
  %v2862 = vld [vmem:[%s2 + $0x168] sm:$0xff]
  %v2863 = vld [vmem:[%s2 + $0x170] sm:$0xff]
  %v2864 = vld [vmem:[%s2 + $0x178] sm:$0xff]
  %v2865 = vld [vmem:[%s2 + $0x180] sm:$0xff]
  %v2866 = vld [vmem:[%s2 + $0x188] sm:$0xff]
  %v2867 = vld [vmem:[%s2 + $0x190] sm:$0xff]
  %v2868 = vld [vmem:[%s2 + $0x198] sm:$0xff]
  %v2869 = vld [vmem:[%s2 + $0x1a0] sm:$0xff]
  %v2870 = vld [vmem:[%s2 + $0x1a8] sm:$0xff]
  %v2871 = vld [vmem:[%s2 + $0x1b0] sm:$0xff]
  %v2872 = vld [vmem:[%s2 + $0x1b8] sm:$0xff]
  %v2873 = vld [vmem:[%s2 + $0x1c0] sm:$0xff]
  %v2874 = vld [vmem:[%s2 + $0x1c8] sm:$0xff]
  %v2875 = vld [vmem:[%s2 + $0x1d0] sm:$0xff]
  %v2876 = vld [vmem:[%s2 + $0x1d8] sm:$0xff]
  %v2877 = vld [vmem:[%s2 + $0x1e0] sm:$0xff]
  %v2878 = vld [vmem:[%s2 + $0x1e8] sm:$0xff]
  %v2879 = vld [vmem:[%s2 + $0x1f0] sm:$0xff]
  %v2880 = vld [vmem:[%s2 + $0x1f8] sm:$0xff]
  %v2881 = vld [vmem:[%s2 + $0x200] sm:$0xff]
  %v2882 = vld [vmem:[%s2 + $0x208] sm:$0xff]
  %v2883 = vld [vmem:[%s2 + $0x210] sm:$0xff]
  %v2884 = vld [vmem:[%s2 + $0x218] sm:$0xff]
  %v2885 = vsel %vm64, %v2837, 0.0
  %v2886 = vsel %vm65, %v2838, 0.0
  %v2887 = vsel %vm66, %v2839, 0.0
  %v2888 = vsel %vm64, %v2840, 0.0
  %v2889 = vsel %vm65, %v2841, 0.0
  %v2890 = vsel %vm66, %v2842, 0.0
  %v2891 = vsel %vm64, %v2843, 0.0
  %v2892 = vsel %vm65, %v2844, 0.0
  %v2893 = vsel %vm66, %v2845, 0.0
  %v2894 = vsel %vm64, %v2846, 0.0
  %v2895 = vsel %vm65, %v2847, 0.0
  %v2896 = vsel %vm66, %v2848, 0.0
  %v2897 = vsel %vm64, %v2849, 0.0
  %v2898 = vsel %vm65, %v2850, 0.0
  %v2899 = vsel %vm66, %v2851, 0.0
  %v2900 = vsel %vm64, %v2852, 0.0
  %v2901 = vsel %vm65, %v2853, 0.0
  %v2902 = vsel %vm66, %v2854, 0.0
  %v2903 = vsel %vm64, %v2855, 0.0
  %v2904 = vsel %vm65, %v2856, 0.0
  %v2905 = vsel %vm66, %v2857, 0.0
  %v2906 = vsel %vm64, %v2858, 0.0
  %v2907 = vsel %vm65, %v2859, 0.0
  %v2908 = vsel %vm66, %v2860, 0.0
  %2909 = vst.msk [vmem:[#allocation2 + $0x8] sm:$0xff] %vm17, %v2885
  %2910 = vst.msk [vmem:[#allocation2 + $0x10] sm:$0xff] %vm17, %v2886
  %2911 = vst.msk [vmem:[#allocation2 + $0x18] sm:$0xff] %vm17, %v2887
  %2912 = vst.msk [vmem:[#allocation2 + $0x20] sm:$0xff] %vm17, %v2888
  %2913 = vst.msk [vmem:[#allocation2 + $0x28] sm:$0xff] %vm17, %v2889
  %2914 = vst.msk [vmem:[#allocation2 + $0x30] sm:$0xff] %vm17, %v2890
  %2915 = vst.msk [vmem:[#allocation2 + $0x38] sm:$0xff] %vm17, %v2891
  %2916 = vst.msk [vmem:[#allocation2 + $0x40] sm:$0xff] %vm17, %v2892
  %2917 = vst.msk [vmem:[#allocation2 + $0x48] sm:$0xff] %vm17, %v2893
  %2918 = vst.msk [vmem:[#allocation2 + $0x50] sm:$0xff] %vm17, %v2894
  %2919 = vst.msk [vmem:[#allocation2 + $0x58] sm:$0xff] %vm17, %v2895
  %2920 = vst.msk [vmem:[#allocation2 + $0x60] sm:$0xff] %vm17, %v2896
  %2921 = vst.msk [vmem:[#allocation2 + $0x68] sm:$0xff] %vm17, %v2897
  %2922 = vst.msk [vmem:[#allocation2 + $0x70] sm:$0xff] %vm17, %v2898
  %2923 = vst.msk [vmem:[#allocation2 + $0x78] sm:$0xff] %vm17, %v2899
  %2924 = vst.msk [vmem:[#allocation2 + $0x80] sm:$0xff] %vm17, %v2900
  %2925 = vst.msk [vmem:[#allocation2 + $0x88] sm:$0xff] %vm17, %v2901
  %2926 = vst.msk [vmem:[#allocation2 + $0x90] sm:$0xff] %vm17, %v2902
  %2927 = vst.msk [vmem:[#allocation2 + $0x98] sm:$0xff] %vm17, %v2903
  %2928 = vst.msk [vmem:[#allocation2 + $0xa0] sm:$0xff] %vm17, %v2904
  %2929 = vst.msk [vmem:[#allocation2 + $0xa8] sm:$0xff] %vm17, %v2905
  %2930 = vst.msk [vmem:[#allocation2 + $0xb0] sm:$0xff] %vm17, %v2906
  %2931 = vst.msk [vmem:[#allocation2 + $0xb8] sm:$0xff] %vm17, %v2907
  %2932 = vst.msk [vmem:[#allocation2 + $0xc0] sm:$0xff] %vm17, %v2908
  %v2933 = vld [vmem:[#allocation2 + $0x7] sm:$0xff]
  %v2934 = vld [vmem:[#allocation2 + $0xf] sm:$0xff]
  %v2935 = vld [vmem:[#allocation2 + $0x17] sm:$0xff]
  %v2936 = vld [vmem:[#allocation2 + $0x1f] sm:$0xff]
  %v2937 = vld [vmem:[#allocation2 + $0x27] sm:$0xff]
  %v2938 = vld [vmem:[#allocation2 + $0x2f] sm:$0xff]
  %v2939 = vld [vmem:[#allocation2 + $0x37] sm:$0xff]
  %v2940 = vld [vmem:[#allocation2 + $0x3f] sm:$0xff]
  %v2941 = vld [vmem:[#allocation2 + $0x47] sm:$0xff]
  %v2942 = vld [vmem:[#allocation2 + $0x4f] sm:$0xff]
  %v2943 = vld [vmem:[#allocation2 + $0x57] sm:$0xff]
  %v2944 = vld [vmem:[#allocation2 + $0x5f] sm:$0xff]
  %v2945 = vld [vmem:[#allocation2 + $0x67] sm:$0xff]
  %v2946 = vld [vmem:[#allocation2 + $0x6f] sm:$0xff]
  %v2947 = vld [vmem:[#allocation2 + $0x77] sm:$0xff]
  %v2948 = vld [vmem:[#allocation2 + $0x7f] sm:$0xff]
  %v2949 = vld [vmem:[#allocation2 + $0x87] sm:$0xff]
  %v2950 = vld [vmem:[#allocation2 + $0x8f] sm:$0xff]
  %v2951 = vld [vmem:[#allocation2 + $0x97] sm:$0xff]
  %v2952 = vld [vmem:[#allocation2 + $0x9f] sm:$0xff]
  %v2953 = vld [vmem:[#allocation2 + $0xa7] sm:$0xff]
  %v2954 = vld [vmem:[#allocation2 + $0xaf] sm:$0xff]
  %v2955 = vld [vmem:[#allocation2 + $0xb7] sm:$0xff]
  %v2956 = vld [vmem:[#allocation2 + $0xbf] sm:$0xff]
  %v2957 = vld [vmem:[#allocation2 + $0x8] sm:$0xff]
  %v2958 = vld [vmem:[#allocation2 + $0x10] sm:$0xff]
  %v2959 = vld [vmem:[#allocation2 + $0x18] sm:$0xff]
  %v2960 = vld [vmem:[#allocation2 + $0x20] sm:$0xff]
  %v2961 = vld [vmem:[#allocation2 + $0x28] sm:$0xff]
  %v2962 = vld [vmem:[#allocation2 + $0x30] sm:$0xff]
  %v2963 = vld [vmem:[#allocation2 + $0x38] sm:$0xff]
  %v2964 = vld [vmem:[#allocation2 + $0x40] sm:$0xff]
  %v2965 = vld [vmem:[#allocation2 + $0x48] sm:$0xff]
  %v2966 = vld [vmem:[#allocation2 + $0x50] sm:$0xff]
  %v2967 = vld [vmem:[#allocation2 + $0x58] sm:$0xff]
  %v2968 = vld [vmem:[#allocation2 + $0x60] sm:$0xff]
  %v2969 = vld [vmem:[#allocation2 + $0x68] sm:$0xff]
  %v2970 = vld [vmem:[#allocation2 + $0x70] sm:$0xff]
  %v2971 = vld [vmem:[#allocation2 + $0x78] sm:$0xff]
  %v2972 = vld [vmem:[#allocation2 + $0x80] sm:$0xff]
  %v2973 = vld [vmem:[#allocation2 + $0x88] sm:$0xff]
  %v2974 = vld [vmem:[#allocation2 + $0x90] sm:$0xff]
  %v2975 = vld [vmem:[#allocation2 + $0x98] sm:$0xff]
  %v2976 = vld [vmem:[#allocation2 + $0xa0] sm:$0xff]
  %v2977 = vld [vmem:[#allocation2 + $0xa8] sm:$0xff]
  %v2978 = vld [vmem:[#allocation2 + $0xb0] sm:$0xff]
  %v2979 = vld [vmem:[#allocation2 + $0xb8] sm:$0xff]
  %v2980 = vld [vmem:[#allocation2 + $0xc0] sm:$0xff]
  %v2981 = vld [vmem:[#allocation2 + $0x9] sm:$0xff]
  %v2982 = vld [vmem:[#allocation2 + $0x11] sm:$0xff]
  %v2983 = vld [vmem:[#allocation2 + $0x19] sm:$0xff]
  %v2984 = vld [vmem:[#allocation2 + $0x21] sm:$0xff]
  %v2985 = vld [vmem:[#allocation2 + $0x29] sm:$0xff]
  %v2986 = vld [vmem:[#allocation2 + $0x31] sm:$0xff]
  %v2987 = vld [vmem:[#allocation2 + $0x39] sm:$0xff]
  %v2988 = vld [vmem:[#allocation2 + $0x41] sm:$0xff]
  %v2989 = vld [vmem:[#allocation2 + $0x49] sm:$0xff]
  %v2990 = vld [vmem:[#allocation2 + $0x51] sm:$0xff]
  %v2991 = vld [vmem:[#allocation2 + $0x59] sm:$0xff]
  %v2992 = vld [vmem:[#allocation2 + $0x61] sm:$0xff]
  %v2993 = vld [vmem:[#allocation2 + $0x69] sm:$0xff]
  %v2994 = vld [vmem:[#allocation2 + $0x71] sm:$0xff]
  %v2995 = vld [vmem:[#allocation2 + $0x79] sm:$0xff]
  %v2996 = vld [vmem:[#allocation2 + $0x81] sm:$0xff]
  %v2997 = vld [vmem:[#allocation2 + $0x89] sm:$0xff]
  %v2998 = vld [vmem:[#allocation2 + $0x91] sm:$0xff]
  %v2999 = vld [vmem:[#allocation2 + $0x99] sm:$0xff]
  %v3000 = vld [vmem:[#allocation2 + $0xa1] sm:$0xff]
  %v3001 = vld [vmem:[#allocation2 + $0xa9] sm:$0xff]
  %v3002 = vld [vmem:[#allocation2 + $0xb1] sm:$0xff]
  %v3003 = vld [vmem:[#allocation2 + $0xb9] sm:$0xff]
  %v3004 = vld [vmem:[#allocation2 + $0xc1] sm:$0xff]
  %3029 = vrot.lane.b32.xlu0 %v2957, 64
  %v3030 = vpop.permute.xlu0 %3029
  %3031 = vrot.lane.b32.xlu0 %v2958, 64
  %v3032 = vpop.permute.xlu0 %3031
  %3033 = vrot.lane.b32.xlu0 %v2959, 64
  %v3034 = vpop.permute.xlu0 %3033
  %3035 = vrot.lane.b32.xlu0 %v2960, 64
  %v3036 = vpop.permute.xlu0 %3035
  %3037 = vrot.lane.b32.xlu0 %v2961, 64
  %v3038 = vpop.permute.xlu0 %3037
  %3039 = vrot.lane.b32.xlu0 %v2962, 64
  %v3040 = vpop.permute.xlu0 %3039
  %3041 = vrot.lane.b32.xlu0 %v2963, 64
  %v3042 = vpop.permute.xlu0 %3041
  %3043 = vrot.lane.b32.xlu0 %v2964, 64
  %v3044 = vpop.permute.xlu0 %3043
  %3045 = vrot.lane.b32.xlu0 %v2965, 64
  %v3046 = vpop.permute.xlu0 %3045
  %3047 = vrot.lane.b32.xlu0 %v2966, 64
  %v3048 = vpop.permute.xlu0 %3047
  %3049 = vrot.lane.b32.xlu0 %v2967, 64
  %v3050 = vpop.permute.xlu0 %3049
  %3051 = vrot.lane.b32.xlu0 %v2968, 64
  %v3052 = vpop.permute.xlu0 %3051
  %3053 = vrot.lane.b32.xlu0 %v2969, 64
  %v3054 = vpop.permute.xlu0 %3053
  %3055 = vrot.lane.b32.xlu0 %v2970, 64
  %v3056 = vpop.permute.xlu0 %3055
  %3057 = vrot.lane.b32.xlu0 %v2971, 64
  %v3058 = vpop.permute.xlu0 %3057
  %3059 = vrot.lane.b32.xlu0 %v2972, 64
  %v3060 = vpop.permute.xlu0 %3059
  %3061 = vrot.lane.b32.xlu0 %v2973, 64
  %v3062 = vpop.permute.xlu0 %3061
  %3063 = vrot.lane.b32.xlu0 %v2974, 64
  %v3064 = vpop.permute.xlu0 %3063
  %3065 = vrot.lane.b32.xlu0 %v2975, 64
  %v3066 = vpop.permute.xlu0 %3065
  %3067 = vrot.lane.b32.xlu0 %v2976, 64
  %v3068 = vpop.permute.xlu0 %3067
  %3069 = vrot.lane.b32.xlu0 %v2977, 64
  %v3070 = vpop.permute.xlu0 %3069
  %3071 = vrot.lane.b32.xlu0 %v2978, 64
  %v3072 = vpop.permute.xlu0 %3071
  %3073 = vrot.lane.b32.xlu0 %v2979, 64
  %v3074 = vpop.permute.xlu0 %3073
  %3075 = vrot.lane.b32.xlu0 %v2980, 64
  %v3076 = vpop.permute.xlu0 %3075
  %v3101 = vsel %vm17, %v2933, %v3030
  %v3102 = vsel %vm17, %v2934, %v3032
  %v3103 = vsel %vm17, %v2935, %v3034
  %v3104 = vsel %vm17, %v2936, %v3036
  %v3105 = vsel %vm17, %v2937, %v3038
  %v3106 = vsel %vm17, %v2938, %v3040
  %v3107 = vsel %vm17, %v2939, %v3042
  %v3108 = vsel %vm17, %v2940, %v3044
  %v3109 = vsel %vm17, %v2941, %v3046
  %v3110 = vsel %vm17, %v2942, %v3048
  %v3111 = vsel %vm17, %v2943, %v3050
  %v3112 = vsel %vm17, %v2944, %v3052
  %v3113 = vsel %vm17, %v2945, %v3054
  %v3114 = vsel %vm17, %v2946, %v3056
  %v3115 = vsel %vm17, %v2947, %v3058
  %v3116 = vsel %vm17, %v2948, %v3060
  %v3117 = vsel %vm17, %v2949, %v3062
  %v3118 = vsel %vm17, %v2950, %v3064
  %v3119 = vsel %vm17, %v2951, %v3066
  %v3120 = vsel %vm17, %v2952, %v3068
  %v3121 = vsel %vm17, %v2953, %v3070
  %v3122 = vsel %vm17, %v2954, %v3072
  %v3123 = vsel %vm17, %v2955, %v3074
  %v3124 = vsel %vm17, %v2956, %v3076
  %v3125 = vld [vmem:[%s3 + $0x3] sm:$0x1]
  %v3126 = vlaneseq
  %v3127 = vshrl.u32 %v3126, 7
  %v3128 = vsub.s32 0, %v3127
  %v3129 = vrot.slane %v3125, %v3128
  %v3131 = vsel %vm17, %v2981, 0
  %v3134 = vsel %vm17, %v2982, 0
  %v3137 = vsel %vm17, %v2983, 0
  %v3140 = vsel %vm17, %v2984, 0
  %v3143 = vsel %vm17, %v2985, 0
  %v3146 = vsel %vm17, %v2986, 0
  %v3149 = vsel %vm17, %v2987, 0
  %v3152 = vsel %vm17, %v2988, 0
  %v3155 = vsel %vm17, %v2989, 0
  %v3158 = vsel %vm17, %v2990, 0
  %v3161 = vsel %vm17, %v2991, 0
  %v3164 = vsel %vm17, %v2992, 0
  %v3167 = vsel %vm17, %v2993, 0
  %v3170 = vsel %vm17, %v2994, 0
  %v3173 = vsel %vm17, %v2995, 0
  %v3176 = vsel %vm17, %v2996, 0
  %v3179 = vsel %vm17, %v2997, 0
  %v3182 = vsel %vm17, %v2998, 0
  %v3185 = vsel %vm17, %v2999, 0
  %v3188 = vsel %vm17, %v3000, 0
  %v3191 = vsel %vm17, %v3001, 0
  %v3194 = vsel %vm17, %v3002, 0
  %v3197 = vsel %vm17, %v3003, 0
  %v3200 = vsel %vm17, %v3004, 0
  %3202 = vmatprep.subr.mxu0 0.0
  %3203 = vmatpush1.msra.mxu0 %v2861
  %3204 = vmatprep.subr.mxu0 0.0
  %3205 = vmatpush1.msra.mxu0 %v2862
  %3206 = vmatprep.subr.mxu0 0.0
  %3207 = vmatpush1.msra.mxu0 %v2863
  %3208 = vmatprep.subr.mxu0 0.0
  %3209 = vmatpush1.msra.mxu0 %v2864
  %3210 = vmatprep.subr.mxu0 0.0
  %3211 = vmatpush1.msra.mxu0 %v2865
  %3212 = vmatprep.subr.mxu0 0.0
  %3213 = vmatpush1.msra.mxu0 %v2866
  %3214 = vmatprep.subr.mxu0 0.0
  %3215 = vmatpush1.msra.mxu0 %v2867
  %3216 = vmatprep.subr.mxu0 0.0
  %3217 = vmatpush1.msra.mxu0 %v2868
  %3218 = vmatprep.subr.mxu0 0.0
  %3219 = vmatpush1.msra.mxu0 %v2869
  %3220 = vmatprep.subr.mxu0 0.0
  %3221 = vmatpush1.msra.mxu0 %v2870
  %3222 = vmatprep.subr.mxu0 0.0
  %3223 = vmatpush1.msra.mxu0 %v2871
  %3224 = vmatprep.subr.mxu0 0.0
  %3225 = vmatpush1.msra.mxu0 %v2872
  %3226 = vmatprep.subr.mxu0 0.0
  %3227 = vmatpush1.msra.mxu0 %v2873
  %3228 = vmatprep.subr.mxu0 0.0
  %3229 = vmatpush1.msra.mxu0 %v2874
  %3230 = vmatprep.subr.mxu0 0.0
  %3231 = vmatpush1.msra.mxu0 %v2875
  %3232 = vmatprep.subr.mxu0 0.0
  %3233 = vmatpush1.msra.mxu0 %v2876
  %3234 = vmatprep.subr.mxu0 0.0
  %3235 = vmatpush1.msra.mxu0 %v2877
  %3236 = vmatprep.subr.mxu0 0.0
  %3237 = vmatpush1.msra.mxu0 %v2878
  %3238 = vmatprep.subr.mxu0 0.0
  %3239 = vmatpush1.msra.mxu0 %v2879
  %3240 = vmatprep.subr.mxu0 0.0
  %3241 = vmatpush1.msra.mxu0 %v2880
  %3242 = vmatprep.subr.mxu0 0.0
  %3243 = vmatpush1.msra.mxu0 %v2881
  %3244 = vmatprep.subr.mxu0 0.0
  %3245 = vmatpush1.msra.mxu0 %v2882
  %3246 = vmatprep.subr.mxu0 0.0
  %3247 = vmatpush1.msra.mxu0 %v2883
  %3248 = vmatprep.subr.mxu0 0.0
  %3249 = vmatpush1.msra.mxu0 %v2884
  %3250 = vmatprep.subr.mxu0 0.0
  %3251 = vmatpush1.msra.mxu0 0.0
  %3252 = vmatprep.subr.mxu0 0.0
  %3253 = vmatpush1.msra.mxu0 0.0
  %3254 = vmatprep.subr.mxu0 0.0
  %3255 = vmatpush1.msra.mxu0 0.0
  %3256 = vmatprep.subr.mxu0 0.0
  %3257 = vmatpush1.msra.mxu0 0.0
  %3258 = vmatprep.subr.mxu0 0.0
  %3259 = vmatpush1.msra.mxu0 0.0
  %3260 = vmatprep.subr.mxu0 0.0
  %3261 = vmatpush1.msra.mxu0 0.0
  %3262 = vmatprep.subr.mxu0 0.0
  %3263 = vmatpush1.msra.mxu0 0.0
  %3264 = vmatprep.subr.mxu0 0.0
  %3265 = vmatpush1.msra.mxu0 0.0
  %3266 = vmatprep.mubr.f32.mxu0 %v3131
  %3267 = vmatmul.mubr.f32.gmra.mrb[0].mxu0 %v3101
  %v3268 = vpop.f32.mrb[0].mxu0
  %v3269 = vadd.f32 %v3129, %v3268
  %v3270 = vpop.f32.mrb[0].mxu0
  %3271 = vmatprep.mubr.f32.mxu0 %v3134
  %3272 = vmatmul.mubr.f32.gmra.mrb[0].mxu0 %v3102
  %v3273 = vpop.f32.mrb[0].mxu0
  %v3274 = vadd.f32 %v3129, %v3273
  %v3275 = vpop.f32.mrb[0].mxu0
  %3276 = vmatprep.mubr.f32.mxu0 %v3137
  %3277 = vmatmul.mubr.f32.gmra.mrb[0].mxu0 %v3103
  %v3278 = vpop.f32.mrb[0].mxu0
  %v3279 = vadd.f32 %v3129, %v3278
  %v3280 = vpop.f32.mrb[0].mxu0
  %3281 = vmatprep.mubr.f32.mxu0 %v3140
  %3282 = vmatmul.mubr.f32.gmra.mrb[0].mxu0 %v3104
  %v3283 = vpop.f32.mrb[0].mxu0
  %v3284 = vadd.f32 %v3129, %v3283
  %v3285 = vpop.f32.mrb[0].mxu0
  %3286 = vmatprep.mubr.f32.mxu0 %v3143
  %3287 = vmatmul.mubr.f32.gmra.mrb[0].mxu0 %v3105
  %v3288 = vpop.f32.mrb[0].mxu0
  %v3289 = vadd.f32 %v3129, %v3288
  %v3290 = vpop.f32.mrb[0].mxu0
  %3291 = vmatprep.mubr.f32.mxu0 %v3146
  %3292 = vmatmul.mubr.f32.gmra.mrb[0].mxu0 %v3106
  %v3293 = vpop.f32.mrb[0].mxu0
  %v3294 = vadd.f32 %v3129, %v3293
  %v3295 = vpop.f32.mrb[0].mxu0
  %3296 = vmatprep.mubr.f32.mxu0 %v3149
  %3297 = vmatmul.mubr.f32.gmra.mrb[0].mxu0 %v3107
  %v3298 = vpop.f32.mrb[0].mxu0
  %v3299 = vadd.f32 %v3129, %v3298
  %v3300 = vpop.f32.mrb[0].mxu0
  %3301 = vmatprep.mubr.f32.mxu0 %v3152
  %3302 = vmatmul.mubr.f32.gmra.mrb[0].mxu0 %v3108
  %v3303 = vpop.f32.mrb[0].mxu0
  %v3304 = vadd.f32 %v3129, %v3303
  %v3305 = vpop.f32.mrb[0].mxu0
  %3306 = vmatprep.mubr.f32.mxu0 %v3155
  %3307 = vmatmul.mubr.f32.gmra.mrb[0].mxu0 %v3109
  %v3308 = vpop.f32.mrb[0].mxu0
  %v3309 = vadd.f32 %v3129, %v3308
  %v3310 = vpop.f32.mrb[0].mxu0
  %3311 = vmatprep.mubr.f32.mxu0 %v3158
  %3312 = vmatmul.mubr.f32.gmra.mrb[0].mxu0 %v3110
  %v3313 = vpop.f32.mrb[0].mxu0
  %v3314 = vadd.f32 %v3129, %v3313
  %v3315 = vpop.f32.mrb[0].mxu0
  %3316 = vmatprep.mubr.f32.mxu0 %v3161
  %3317 = vmatmul.mubr.f32.gmra.mrb[0].mxu0 %v3111
  %v3318 = vpop.f32.mrb[0].mxu0
  %v3319 = vadd.f32 %v3129, %v3318
  %v3320 = vpop.f32.mrb[0].mxu0
  %3321 = vmatprep.mubr.f32.mxu0 %v3164
  %3322 = vmatmul.mubr.f32.gmra.mrb[0].mxu0 %v3112
  %v3323 = vpop.f32.mrb[0].mxu0
  %v3324 = vadd.f32 %v3129, %v3323
  %v3325 = vpop.f32.mrb[0].mxu0
  %3326 = vmatprep.mubr.f32.mxu0 %v3167
  %3327 = vmatmul.mubr.f32.gmra.mrb[0].mxu0 %v3113
  %v3328 = vpop.f32.mrb[0].mxu0
  %v3329 = vadd.f32 %v3129, %v3328
  %v3330 = vpop.f32.mrb[0].mxu0
  %3331 = vmatprep.mubr.f32.mxu0 %v3170
  %3332 = vmatmul.mubr.f32.gmra.mrb[0].mxu0 %v3114
  %v3333 = vpop.f32.mrb[0].mxu0
  %v3334 = vadd.f32 %v3129, %v3333
  %v3335 = vpop.f32.mrb[0].mxu0
  %3336 = vmatprep.mubr.f32.mxu0 %v3173
  %3337 = vmatmul.mubr.f32.gmra.mrb[0].mxu0 %v3115
  %v3338 = vpop.f32.mrb[0].mxu0
  %v3339 = vadd.f32 %v3129, %v3338
  %v3340 = vpop.f32.mrb[0].mxu0
  %3341 = vmatprep.mubr.f32.mxu0 %v3176
  %3342 = vmatmul.mubr.f32.gmra.mrb[0].mxu0 %v3116
  %v3343 = vpop.f32.mrb[0].mxu0
  %v3344 = vadd.f32 %v3129, %v3343
  %v3345 = vpop.f32.mrb[0].mxu0
  %3346 = vmatprep.mubr.f32.mxu0 %v3179
  %3347 = vmatmul.mubr.f32.gmra.mrb[0].mxu0 %v3117
  %v3348 = vpop.f32.mrb[0].mxu0
  %v3349 = vadd.f32 %v3129, %v3348
  %v3350 = vpop.f32.mrb[0].mxu0
  %3351 = vmatprep.mubr.f32.mxu0 %v3182
  %3352 = vmatmul.mubr.f32.gmra.mrb[0].mxu0 %v3118
  %v3353 = vpop.f32.mrb[0].mxu0
  %v3354 = vadd.f32 %v3129, %v3353
  %v3355 = vpop.f32.mrb[0].mxu0
  %3356 = vmatprep.mubr.f32.mxu0 %v3185
  %3357 = vmatmul.mubr.f32.gmra.mrb[0].mxu0 %v3119
  %v3358 = vpop.f32.mrb[0].mxu0
  %v3359 = vadd.f32 %v3129, %v3358
  %v3360 = vpop.f32.mrb[0].mxu0
  %3361 = vmatprep.mubr.f32.mxu0 %v3188
  %3362 = vmatmul.mubr.f32.gmra.mrb[0].mxu0 %v3120
  %v3363 = vpop.f32.mrb[0].mxu0
  %v3364 = vadd.f32 %v3129, %v3363
  %v3365 = vpop.f32.mrb[0].mxu0
  %3366 = vmatprep.mubr.f32.mxu0 %v3191
  %3367 = vmatmul.mubr.f32.gmra.mrb[0].mxu0 %v3121
  %v3368 = vpop.f32.mrb[0].mxu0
  %v3369 = vadd.f32 %v3129, %v3368
  %v3370 = vpop.f32.mrb[0].mxu0
  %3371 = vmatprep.mubr.f32.mxu0 %v3194
  %3372 = vmatmul.mubr.f32.gmra.mrb[0].mxu0 %v3122
  %v3373 = vpop.f32.mrb[0].mxu0
  %v3374 = vadd.f32 %v3129, %v3373
  %v3375 = vpop.f32.mrb[0].mxu0
  %3376 = vmatprep.mubr.f32.mxu0 %v3197
  %3377 = vmatmul.mubr.f32.gmra.mrb[0].mxu0 %v3123
  %v3378 = vpop.f32.mrb[0].mxu0
  %v3379 = vadd.f32 %v3129, %v3378
  %v3380 = vpop.f32.mrb[0].mxu0
  %3381 = vmatprep.mubr.f32.mxu0 %v3200
  %3382 = vmatmul.mubr.f32.gmra.mrb[0].mxu0 %v3124
  %v3383 = vpop.f32.mrb[0].mxu0
  %v3384 = vadd.f32 %v3129, %v3383
  %v3385 = vpop.f32.mrb[0].mxu0
  %3386 = vdwg.mxu0
  %v3387 = vsel %vm64, %v3269, 0.0
  %v3388 = vsel %vm65, %v3274, 0.0
  %v3389 = vsel %vm66, %v3279, 0.0
  %v3390 = vsel %vm64, %v3284, 0.0
  %v3391 = vsel %vm65, %v3289, 0.0
  %v3392 = vsel %vm66, %v3294, 0.0
  %v3393 = vsel %vm64, %v3299, 0.0
  %v3394 = vsel %vm65, %v3304, 0.0
  %v3395 = vsel %vm66, %v3309, 0.0
  %v3396 = vsel %vm64, %v3314, 0.0
  %v3397 = vsel %vm65, %v3319, 0.0
  %v3398 = vsel %vm66, %v3324, 0.0
  %v3399 = vsel %vm64, %v3329, 0.0
  %v3400 = vsel %vm65, %v3334, 0.0
  %v3401 = vsel %vm66, %v3339, 0.0
  %v3402 = vsel %vm64, %v3344, 0.0
  %v3403 = vsel %vm65, %v3349, 0.0
  %v3404 = vsel %vm66, %v3354, 0.0
  %v3405 = vsel %vm64, %v3359, 0.0
  %v3406 = vsel %vm65, %v3364, 0.0
  %v3407 = vsel %vm66, %v3369, 0.0
  %v3408 = vsel %vm64, %v3374, 0.0
  %v3409 = vsel %vm65, %v3379, 0.0
  %v3410 = vsel %vm66, %v3384, 0.0
  %v3411 = vmul.f32 %v3387, %v3387
  %v3412 = vmul.f32 %v3388, %v3388
  %v3413 = vmul.f32 %v3389, %v3389
  %v3414 = vmul.f32 %v3390, %v3390
  %v3415 = vmul.f32 %v3391, %v3391
  %v3416 = vmul.f32 %v3392, %v3392
  %v3417 = vmul.f32 %v3393, %v3393
  %v3418 = vmul.f32 %v3394, %v3394
  %v3419 = vmul.f32 %v3395, %v3395
  %v3420 = vmul.f32 %v3396, %v3396
  %v3421 = vmul.f32 %v3397, %v3397
  %v3422 = vmul.f32 %v3398, %v3398
  %v3423 = vmul.f32 %v3399, %v3399
  %v3424 = vmul.f32 %v3400, %v3400
  %v3425 = vmul.f32 %v3401, %v3401
  %v3426 = vmul.f32 %v3402, %v3402
  %v3427 = vmul.f32 %v3403, %v3403
  %v3428 = vmul.f32 %v3404, %v3404
  %v3429 = vmul.f32 %v3405, %v3405
  %v3430 = vmul.f32 %v3406, %v3406
  %v3431 = vmul.f32 %v3407, %v3407
  %v3432 = vmul.f32 %v3408, %v3408
  %v3433 = vmul.f32 %v3409, %v3409
  %v3434 = vmul.f32 %v3410, %v3410
  %3459 = vrot.lane.b32.xlu0 %v3411, 64
  %v3460 = vpop.permute.xlu0 %3459
  %3461 = vrot.lane.b32.xlu0 %v3412, 64
  %v3462 = vpop.permute.xlu0 %3461
  %3463 = vrot.lane.b32.xlu0 %v3413, 64
  %v3464 = vpop.permute.xlu0 %3463
  %3465 = vrot.lane.b32.xlu0 %v3414, 64
  %v3466 = vpop.permute.xlu0 %3465
  %3467 = vrot.lane.b32.xlu0 %v3415, 64
  %v3468 = vpop.permute.xlu0 %3467
  %3469 = vrot.lane.b32.xlu0 %v3416, 64
  %v3470 = vpop.permute.xlu0 %3469
  %3471 = vrot.lane.b32.xlu0 %v3417, 64
  %v3472 = vpop.permute.xlu0 %3471
  %3473 = vrot.lane.b32.xlu0 %v3418, 64
  %v3474 = vpop.permute.xlu0 %3473
  %3475 = vrot.lane.b32.xlu0 %v3419, 64
  %v3476 = vpop.permute.xlu0 %3475
  %3477 = vrot.lane.b32.xlu0 %v3420, 64
  %v3478 = vpop.permute.xlu0 %3477
  %3479 = vrot.lane.b32.xlu0 %v3421, 64
  %v3480 = vpop.permute.xlu0 %3479
  %3481 = vrot.lane.b32.xlu0 %v3422, 64
  %v3482 = vpop.permute.xlu0 %3481
  %3483 = vrot.lane.b32.xlu0 %v3423, 64
  %v3484 = vpop.permute.xlu0 %3483
  %3485 = vrot.lane.b32.xlu0 %v3424, 64
  %v3486 = vpop.permute.xlu0 %3485
  %3487 = vrot.lane.b32.xlu0 %v3425, 64
  %v3488 = vpop.permute.xlu0 %3487
  %3489 = vrot.lane.b32.xlu0 %v3426, 64
  %v3490 = vpop.permute.xlu0 %3489
  %3491 = vrot.lane.b32.xlu0 %v3427, 64
  %v3492 = vpop.permute.xlu0 %3491
  %3493 = vrot.lane.b32.xlu0 %v3428, 64
  %v3494 = vpop.permute.xlu0 %3493
  %3495 = vrot.lane.b32.xlu0 %v3429, 64
  %v3496 = vpop.permute.xlu0 %3495
  %3497 = vrot.lane.b32.xlu0 %v3430, 64
  %v3498 = vpop.permute.xlu0 %3497
  %3499 = vrot.lane.b32.xlu0 %v3431, 64
  %v3500 = vpop.permute.xlu0 %3499
  %3501 = vrot.lane.b32.xlu0 %v3432, 64
  %v3502 = vpop.permute.xlu0 %3501
  %3503 = vrot.lane.b32.xlu0 %v3433, 64
  %v3504 = vpop.permute.xlu0 %3503
  %3505 = vrot.lane.b32.xlu0 %v3434, 64
  %v3506 = vpop.permute.xlu0 %3505
  %v3531 = vsel %vm17, %v3387, %v3460
  %v3532 = vsel %vm17, %v3388, %v3462
  %v3533 = vsel %vm17, %v3389, %v3464
  %v3534 = vsel %vm17, %v3390, %v3466
  %v3535 = vsel %vm17, %v3391, %v3468
  %v3536 = vsel %vm17, %v3392, %v3470
  %v3537 = vsel %vm17, %v3393, %v3472
  %v3538 = vsel %vm17, %v3394, %v3474
  %v3539 = vsel %vm17, %v3395, %v3476
  %v3540 = vsel %vm17, %v3396, %v3478
  %v3541 = vsel %vm17, %v3397, %v3480
  %v3542 = vsel %vm17, %v3398, %v3482
  %v3543 = vsel %vm17, %v3399, %v3484
  %v3544 = vsel %vm17, %v3400, %v3486
  %v3545 = vsel %vm17, %v3401, %v3488
  %v3546 = vsel %vm17, %v3402, %v3490
  %v3547 = vsel %vm17, %v3403, %v3492
  %v3548 = vsel %vm17, %v3404, %v3494
  %v3549 = vsel %vm17, %v3405, %v3496
  %v3550 = vsel %vm17, %v3406, %v3498
  %v3551 = vsel %vm17, %v3407, %v3500
  %v3552 = vsel %vm17, %v3408, %v3502
  %v3553 = vsel %vm17, %v3409, %v3504
  %v3554 = vsel %vm17, %v3410, %v3506
  %v3555 = vadd.f32 %v3531, %v3532
  %v3556 = vadd.f32 %v3555, %v3533
  %v3557 = vadd.f32 %v3556, %v3534
  %v3558 = vadd.f32 %v3557, %v3535
  %v3559 = vadd.f32 %v3558, %v3536
  %v3560 = vadd.f32 %v3559, %v3537
  %v3561 = vadd.f32 %v3560, %v3538
  %v3562 = vadd.f32 %v3561, %v3539
  %v3563 = vadd.f32 %v3562, %v3540
  %v3564 = vadd.f32 %v3563, %v3541
  %v3565 = vadd.f32 %v3564, %v3542
  %v3566 = vadd.f32 %v3565, %v3543
  %v3567 = vadd.f32 %v3566, %v3544
  %v3568 = vadd.f32 %v3567, %v3545
  %v3569 = vadd.f32 %v3568, %v3546
  %v3570 = vadd.f32 %v3569, %v3547
  %v3571 = vadd.f32 %v3570, %v3548
  %v3572 = vadd.f32 %v3571, %v3549
  %v3573 = vadd.f32 %v3572, %v3550
  %v3574 = vadd.f32 %v3573, %v3551
  %v3575 = vadd.f32 %v3574, %v3552
  %v3576 = vadd.f32 %v3575, %v3553
  %v3577 = vadd.f32 %v3576, %v3554
  %v3578 = vrot.slane %v3577, 4
  %v3579 = vadd.f32 %v3577, %v3578
  %v3580 = vrot.slane %v3579, 2
  %v3581 = vadd.f32 %v3579, %v3580
  %v3582 = vrot.slane %v3581, 1
  %v3583 = vadd.f32 %v3581, %v3582
  %v3584 = vmul.f32 %v3583, 0.0078125
  %v3585 = vmul.f32 %v3584, %v3584
  %3587 = vrot.lane.b32.xlu0 %v3585, 64
  %v3588 = vpop.permute.xlu0 %3587
  %v3590 = vsub.f32 %v3584, %v3588
  %v3591 = vmax.f32 %v3590, 0.0
  %v3592 = vld [vmem:[%s3 + $0x8] sm:$0x1]
  %v3593 = vsub.f32 %v3269, %v3584
  %v3594 = vsub.f32 %v3274, %v3584
  %v3595 = vsub.f32 %v3279, %v3584
  %v3596 = vsub.f32 %v3284, %v3584
  %v3597 = vsub.f32 %v3289, %v3584
  %v3598 = vsub.f32 %v3294, %v3584
  %v3599 = vsub.f32 %v3299, %v3584
  %v3600 = vsub.f32 %v3304, %v3584
  %v3601 = vsub.f32 %v3309, %v3584
  %v3602 = vsub.f32 %v3314, %v3584
  %v3603 = vsub.f32 %v3319, %v3584
  %v3604 = vsub.f32 %v3324, %v3584
  %v3605 = vsub.f32 %v3329, %v3584
  %v3606 = vsub.f32 %v3334, %v3584
  %v3607 = vsub.f32 %v3339, %v3584
  %v3608 = vsub.f32 %v3344, %v3584
  %v3609 = vsub.f32 %v3349, %v3584
  %v3610 = vsub.f32 %v3354, %v3584
  %v3611 = vsub.f32 %v3359, %v3584
  %v3612 = vsub.f32 %v3364, %v3584
  %v3613 = vsub.f32 %v3369, %v3584
  %v3614 = vsub.f32 %v3374, %v3584
  %v3615 = vsub.f32 %v3379, %v3584
  %v3616 = vsub.f32 %v3384, %v3584
  %v3617 = vadd.f32 %v3591, 1e-05
  %v3618 = vrsqrt.pop %v3617
  %v3619 = vlaneseq
  %v3620 = vshrl.u32 %v3619, 7
  %v3621 = vsub.s32 0, %v3620
  %v3622 = vrot.slane %v3618, %v3621
  %3624 = vrot.lane.b32.xlu0 %v3622, 64
  %v3625 = vpop.permute.xlu0 %3624
  %v3627 = vmul.f32 %v3593, %v3625
  %v3628 = vmul.f32 %v3594, %v3625
  %v3629 = vmul.f32 %v3595, %v3625
  %v3630 = vmul.f32 %v3596, %v3625
  %v3631 = vmul.f32 %v3597, %v3625
  %v3632 = vmul.f32 %v3598, %v3625
  %v3633 = vmul.f32 %v3599, %v3625
  %v3634 = vmul.f32 %v3600, %v3625
  %v3635 = vmul.f32 %v3601, %v3625
  %v3636 = vmul.f32 %v3602, %v3625
  %v3637 = vmul.f32 %v3603, %v3625
  %v3638 = vmul.f32 %v3604, %v3625
  %v3639 = vmul.f32 %v3605, %v3625
  %v3640 = vmul.f32 %v3606, %v3625
  %v3641 = vmul.f32 %v3607, %v3625
  %v3642 = vmul.f32 %v3608, %v3625
  %v3643 = vmul.f32 %v3609, %v3625
  %v3644 = vmul.f32 %v3610, %v3625
  %v3645 = vmul.f32 %v3611, %v3625
  %v3646 = vmul.f32 %v3612, %v3625
  %v3647 = vmul.f32 %v3613, %v3625
  %v3648 = vmul.f32 %v3614, %v3625
  %v3649 = vmul.f32 %v3615, %v3625
  %v3650 = vmul.f32 %v3616, %v3625
  %v3651 = vlaneseq
  %v3652 = vshrl.u32 %v3651, 7
  %v3653 = vsub.s32 0, %v3652
  %v3654 = vrot.slane %v3592, %v3653
  %v3655 = vmul.f32 %v3654, %v3627
  %v3656 = vmul.f32 %v3654, %v3628
  %v3657 = vmul.f32 %v3654, %v3629
  %v3658 = vmul.f32 %v3654, %v3630
  %v3659 = vmul.f32 %v3654, %v3631
  %v3660 = vmul.f32 %v3654, %v3632
  %v3661 = vmul.f32 %v3654, %v3633
  %v3662 = vmul.f32 %v3654, %v3634
  %v3663 = vmul.f32 %v3654, %v3635
  %v3664 = vmul.f32 %v3654, %v3636
  %v3665 = vmul.f32 %v3654, %v3637
  %v3666 = vmul.f32 %v3654, %v3638
  %v3667 = vmul.f32 %v3654, %v3639
  %v3668 = vmul.f32 %v3654, %v3640
  %v3669 = vmul.f32 %v3654, %v3641
  %v3670 = vmul.f32 %v3654, %v3642
  %v3671 = vmul.f32 %v3654, %v3643
  %v3672 = vmul.f32 %v3654, %v3644
  %v3673 = vmul.f32 %v3654, %v3645
  %v3674 = vmul.f32 %v3654, %v3646
  %v3675 = vmul.f32 %v3654, %v3647
  %v3676 = vmul.f32 %v3654, %v3648
  %v3677 = vmul.f32 %v3654, %v3649
  %v3678 = vmul.f32 %v3654, %v3650
  %v3679 = vld [vmem:[%s3 + $0x9] sm:$0x1]
  %v3680 = vlaneseq
  %v3681 = vshrl.u32 %v3680, 7
  %v3682 = vsub.s32 0, %v3681
  %v3683 = vrot.slane %v3679, %v3682
  %v3684 = vadd.f32 %v3655, %v3683
  %v3685 = vadd.f32 %v3656, %v3683
  %v3686 = vadd.f32 %v3657, %v3683
  %v3687 = vadd.f32 %v3658, %v3683
  %v3688 = vadd.f32 %v3659, %v3683
  %v3689 = vadd.f32 %v3660, %v3683
  %v3690 = vadd.f32 %v3661, %v3683
  %v3691 = vadd.f32 %v3662, %v3683
  %v3692 = vadd.f32 %v3663, %v3683
  %v3693 = vadd.f32 %v3664, %v3683
  %v3694 = vadd.f32 %v3665, %v3683
  %v3695 = vadd.f32 %v3666, %v3683
  %v3696 = vadd.f32 %v3667, %v3683
  %v3697 = vadd.f32 %v3668, %v3683
  %v3698 = vadd.f32 %v3669, %v3683
  %v3699 = vadd.f32 %v3670, %v3683
  %v3700 = vadd.f32 %v3671, %v3683
  %v3701 = vadd.f32 %v3672, %v3683
  %v3702 = vadd.f32 %v3673, %v3683
  %v3703 = vadd.f32 %v3674, %v3683
  %v3704 = vadd.f32 %v3675, %v3683
  %v3705 = vadd.f32 %v3676, %v3683
  %v3706 = vadd.f32 %v3677, %v3683
  %v3707 = vadd.f32 %v3678, %v3683
  %v3708 = vld [vmem:[%s2 + $0x220] sm:$0xf]
  %v3709 = vld [vmem:[%s3] sm:$0x1]
  %v3710 = vlaneseq
  %v3711 = vshrl.u32 %v3710, 7
  %v3712 = vsub.s32 0, %v3711
  %v3713 = vrot.slane %v3709, %v3712
  %v3715 = vsel %vm91, %v33, 0
  %v3718 = vsel %vm91, %v34, 0
  %v3721 = vsel %vm91, %v35, 0
  %v3724 = vsel %vm91, %v36, 0
  %v3727 = vsel %vm91, %v37, 0
  %v3730 = vsel %vm91, %v38, 0
  %v3733 = vsel %vm91, %v39, 0
  %v3736 = vsel %vm91, %v40, 0
  %v3739 = vsel %vm91, %v41, 0
  %v3742 = vsel %vm91, %v42, 0
  %v3745 = vsel %vm91, %v43, 0
  %v3748 = vsel %vm91, %v44, 0
  %v3751 = vsel %vm91, %v45, 0
  %v3754 = vsel %vm91, %v46, 0
  %v3757 = vsel %vm91, %v47, 0
  %v3760 = vsel %vm91, %v48, 0
  %v3763 = vsel %vm91, %v49, 0
  %v3766 = vsel %vm91, %v50, 0
  %v3769 = vsel %vm91, %v51, 0
  %v3772 = vsel %vm91, %v52, 0
  %v3775 = vsel %vm91, %v53, 0
  %v3778 = vsel %vm91, %v54, 0
  %v3781 = vsel %vm91, %v55, 0
  %v3784 = vsel %vm91, %v56, 0
  %v3787 = vsel %vm1087, %v3708, 0
  %3789 = vmatprep.subr.mxu0 0.0
  %3790 = vmatpush1.msra.mxu0 %v3787
  %3791 = vmatprep.subr.mxu0 0.0
  %3792 = vmatpush1.msra.mxu0 0.0
  %3793 = vmatprep.subr.mxu0 0.0
  %3794 = vmatpush1.msra.mxu0 0.0
  %3795 = vmatprep.subr.mxu0 0.0
  %3796 = vmatpush1.msra.mxu0 0.0
  %3797 = vmatprep.subr.mxu0 0.0
  %3798 = vmatpush1.msra.mxu0 0.0
  %3799 = vmatprep.subr.mxu0 0.0
  %3800 = vmatpush1.msra.mxu0 0.0
  %3801 = vmatprep.subr.mxu0 0.0
  %3802 = vmatpush1.msra.mxu0 0.0
  %3803 = vmatprep.subr.mxu0 0.0
  %3804 = vmatpush1.msra.mxu0 0.0
  %3805 = vmatprep.subr.mxu0 0.0
  %3806 = vmatpush1.msra.mxu0 0.0
  %3807 = vmatprep.subr.mxu0 0.0
  %3808 = vmatpush1.msra.mxu0 0.0
  %3809 = vmatprep.subr.mxu0 0.0
  %3810 = vmatpush1.msra.mxu0 0.0
  %3811 = vmatprep.subr.mxu0 0.0
  %3812 = vmatpush1.msra.mxu0 0.0
  %3813 = vmatprep.subr.mxu0 0.0
  %3814 = vmatpush1.msra.mxu0 0.0
  %3815 = vmatprep.subr.mxu0 0.0
  %3816 = vmatpush1.msra.mxu0 0.0
  %3817 = vmatprep.subr.mxu0 0.0
  %3818 = vmatpush1.msra.mxu0 0.0
  %3819 = vmatprep.subr.mxu0 0.0
  %3820 = vmatpush1.msra.mxu0 0.0
  %3821 = vmatprep.subr.mxu0 0.0
  %3822 = vmatpush1.msra.mxu0 0.0
  %3823 = vmatprep.subr.mxu0 0.0
  %3824 = vmatpush1.msra.mxu0 0.0
  %3825 = vmatprep.subr.mxu0 0.0
  %3826 = vmatpush1.msra.mxu0 0.0
  %3827 = vmatprep.subr.mxu0 0.0
  %3828 = vmatpush1.msra.mxu0 0.0
  %3829 = vmatprep.subr.mxu0 0.0
  %3830 = vmatpush1.msra.mxu0 0.0
  %3831 = vmatprep.subr.mxu0 0.0
  %3832 = vmatpush1.msra.mxu0 0.0
  %3833 = vmatprep.subr.mxu0 0.0
  %3834 = vmatpush1.msra.mxu0 0.0
  %3835 = vmatprep.subr.mxu0 0.0
  %3836 = vmatpush1.msra.mxu0 0.0
  %3837 = vmatprep.subr.mxu0 0.0
  %3838 = vmatpush1.msra.mxu0 0.0
  %3839 = vmatprep.subr.mxu0 0.0
  %3840 = vmatpush1.msra.mxu0 0.0
  %3841 = vmatprep.subr.mxu0 0.0
  %3842 = vmatpush1.msra.mxu0 0.0
  %3843 = vmatprep.subr.mxu0 0.0
  %3844 = vmatpush1.msra.mxu0 0.0
  %3845 = vmatprep.subr.mxu0 0.0
  %3846 = vmatpush1.msra.mxu0 0.0
  %3847 = vmatprep.subr.mxu0 0.0
  %3848 = vmatpush1.msra.mxu0 0.0
  %3849 = vmatprep.subr.mxu0 0.0
  %3850 = vmatpush1.msra.mxu0 0.0
  %3851 = vmatprep.subr.mxu0 0.0
  %3852 = vmatpush1.msra.mxu0 0.0
  %3853 = vmatprep.mubr.f32.mxu0 0.0
  %3854 = vmatmul.mubr.f32.gmra.mrb[0].mxu0 %v3715
  %v3855 = vpop.f32.mrb[0].mxu0
  %v3856 = vadd.f32 %v3713, %v3855
  %v3857 = vpop.f32.mrb[0].mxu0
  %3858 = vmatprep.mubr.f32.mxu0 0.0
  %3859 = vmatmul.mubr.f32.gmra.mrb[0].mxu0 %v3718
  %v3860 = vpop.f32.mrb[0].mxu0
  %v3861 = vadd.f32 %v3713, %v3860
  %v3862 = vpop.f32.mrb[0].mxu0
  %3863 = vmatprep.mubr.f32.mxu0 0.0
  %3864 = vmatmul.mubr.f32.gmra.mrb[0].mxu0 %v3721
  %v3865 = vpop.f32.mrb[0].mxu0
  %v3866 = vadd.f32 %v3713, %v3865
  %v3867 = vpop.f32.mrb[0].mxu0
  %3868 = vmatprep.mubr.f32.mxu0 0.0
  %3869 = vmatmul.mubr.f32.gmra.mrb[0].mxu0 %v3724
  %v3870 = vpop.f32.mrb[0].mxu0
  %v3871 = vadd.f32 %v3713, %v3870
  %v3872 = vpop.f32.mrb[0].mxu0
  %3873 = vmatprep.mubr.f32.mxu0 0.0
  %3874 = vmatmul.mubr.f32.gmra.mrb[0].mxu0 %v3727
  %v3875 = vpop.f32.mrb[0].mxu0
  %v3876 = vadd.f32 %v3713, %v3875
  %v3877 = vpop.f32.mrb[0].mxu0
  %3878 = vmatprep.mubr.f32.mxu0 0.0
  %3879 = vmatmul.mubr.f32.gmra.mrb[0].mxu0 %v3730
  %v3880 = vpop.f32.mrb[0].mxu0
  %v3881 = vadd.f32 %v3713, %v3880
  %v3882 = vpop.f32.mrb[0].mxu0
  %3883 = vmatprep.mubr.f32.mxu0 0.0
  %3884 = vmatmul.mubr.f32.gmra.mrb[0].mxu0 %v3733
  %v3885 = vpop.f32.mrb[0].mxu0
  %v3886 = vadd.f32 %v3713, %v3885
  %v3887 = vpop.f32.mrb[0].mxu0
  %3888 = vmatprep.mubr.f32.mxu0 0.0
  %3889 = vmatmul.mubr.f32.gmra.mrb[0].mxu0 %v3736
  %v3890 = vpop.f32.mrb[0].mxu0
  %v3891 = vadd.f32 %v3713, %v3890
  %v3892 = vpop.f32.mrb[0].mxu0
  %3893 = vmatprep.mubr.f32.mxu0 0.0
  %3894 = vmatmul.mubr.f32.gmra.mrb[0].mxu0 %v3739
  %v3895 = vpop.f32.mrb[0].mxu0
  %v3896 = vadd.f32 %v3713, %v3895
  %v3897 = vpop.f32.mrb[0].mxu0
  %3898 = vmatprep.mubr.f32.mxu0 0.0
  %3899 = vmatmul.mubr.f32.gmra.mrb[0].mxu0 %v3742
  %v3900 = vpop.f32.mrb[0].mxu0
  %v3901 = vadd.f32 %v3713, %v3900
  %v3902 = vpop.f32.mrb[0].mxu0
  %3903 = vmatprep.mubr.f32.mxu0 0.0
  %3904 = vmatmul.mubr.f32.gmra.mrb[0].mxu0 %v3745
  %v3905 = vpop.f32.mrb[0].mxu0
  %v3906 = vadd.f32 %v3713, %v3905
  %v3907 = vpop.f32.mrb[0].mxu0
  %3908 = vmatprep.mubr.f32.mxu0 0.0
  %3909 = vmatmul.mubr.f32.gmra.mrb[0].mxu0 %v3748
  %v3910 = vpop.f32.mrb[0].mxu0
  %v3911 = vadd.f32 %v3713, %v3910
  %v3912 = vpop.f32.mrb[0].mxu0
  %3913 = vmatprep.mubr.f32.mxu0 0.0
  %3914 = vmatmul.mubr.f32.gmra.mrb[0].mxu0 %v3751
  %v3915 = vpop.f32.mrb[0].mxu0
  %v3916 = vadd.f32 %v3713, %v3915
  %v3917 = vpop.f32.mrb[0].mxu0
  %3918 = vmatprep.mubr.f32.mxu0 0.0
  %3919 = vmatmul.mubr.f32.gmra.mrb[0].mxu0 %v3754
  %v3920 = vpop.f32.mrb[0].mxu0
  %v3921 = vadd.f32 %v3713, %v3920
  %v3922 = vpop.f32.mrb[0].mxu0
  %3923 = vmatprep.mubr.f32.mxu0 0.0
  %3924 = vmatmul.mubr.f32.gmra.mrb[0].mxu0 %v3757
  %v3925 = vpop.f32.mrb[0].mxu0
  %v3926 = vadd.f32 %v3713, %v3925
  %v3927 = vpop.f32.mrb[0].mxu0
  %3928 = vmatprep.mubr.f32.mxu0 0.0
  %3929 = vmatmul.mubr.f32.gmra.mrb[0].mxu0 %v3760
  %v3930 = vpop.f32.mrb[0].mxu0
  %v3931 = vadd.f32 %v3713, %v3930
  %v3932 = vpop.f32.mrb[0].mxu0
  %3933 = vmatprep.mubr.f32.mxu0 0.0
  %3934 = vmatmul.mubr.f32.gmra.mrb[0].mxu0 %v3763
  %v3935 = vpop.f32.mrb[0].mxu0
  %v3936 = vadd.f32 %v3713, %v3935
  %v3937 = vpop.f32.mrb[0].mxu0
  %3938 = vmatprep.mubr.f32.mxu0 0.0
  %3939 = vmatmul.mubr.f32.gmra.mrb[0].mxu0 %v3766
  %v3940 = vpop.f32.mrb[0].mxu0
  %v3941 = vadd.f32 %v3713, %v3940
  %v3942 = vpop.f32.mrb[0].mxu0
  %3943 = vmatprep.mubr.f32.mxu0 0.0
  %3944 = vmatmul.mubr.f32.gmra.mrb[0].mxu0 %v3769
  %v3945 = vpop.f32.mrb[0].mxu0
  %v3946 = vadd.f32 %v3713, %v3945
  %v3947 = vpop.f32.mrb[0].mxu0
  %3948 = vmatprep.mubr.f32.mxu0 0.0
  %3949 = vmatmul.mubr.f32.gmra.mrb[0].mxu0 %v3772
  %v3950 = vpop.f32.mrb[0].mxu0
  %v3951 = vadd.f32 %v3713, %v3950
  %v3952 = vpop.f32.mrb[0].mxu0
  %3953 = vmatprep.mubr.f32.mxu0 0.0
  %3954 = vmatmul.mubr.f32.gmra.mrb[0].mxu0 %v3775
  %v3955 = vpop.f32.mrb[0].mxu0
  %v3956 = vadd.f32 %v3713, %v3955
  %v3957 = vpop.f32.mrb[0].mxu0
  %3958 = vmatprep.mubr.f32.mxu0 0.0
  %3959 = vmatmul.mubr.f32.gmra.mrb[0].mxu0 %v3778
  %v3960 = vpop.f32.mrb[0].mxu0
  %v3961 = vadd.f32 %v3713, %v3960
  %v3962 = vpop.f32.mrb[0].mxu0
  %3963 = vmatprep.mubr.f32.mxu0 0.0
  %3964 = vmatmul.mubr.f32.gmra.mrb[0].mxu0 %v3781
  %v3965 = vpop.f32.mrb[0].mxu0
  %v3966 = vadd.f32 %v3713, %v3965
  %v3967 = vpop.f32.mrb[0].mxu0
  %3968 = vmatprep.mubr.f32.mxu0 0.0
  %3969 = vmatmul.mubr.f32.gmra.mrb[0].mxu0 %v3784
  %v3970 = vpop.f32.mrb[0].mxu0
  %v3971 = vadd.f32 %v3713, %v3970
  %v3972 = vpop.f32.mrb[0].mxu0
  %3973 = vdwg.mxu0
  %v3974 = vsel %vm64, %v3856, 0.0
  %v3975 = vsel %vm65, %v3861, 0.0
  %v3976 = vsel %vm66, %v3866, 0.0
  %v3977 = vsel %vm64, %v3871, 0.0
  %v3978 = vsel %vm65, %v3876, 0.0
  %v3979 = vsel %vm66, %v3881, 0.0
  %v3980 = vsel %vm64, %v3886, 0.0
  %v3981 = vsel %vm65, %v3891, 0.0
  %v3982 = vsel %vm66, %v3896, 0.0
  %v3983 = vsel %vm64, %v3901, 0.0
  %v3984 = vsel %vm65, %v3906, 0.0
  %v3985 = vsel %vm66, %v3911, 0.0
  %v3986 = vsel %vm64, %v3916, 0.0
  %v3987 = vsel %vm65, %v3921, 0.0
  %v3988 = vsel %vm66, %v3926, 0.0
  %v3989 = vsel %vm64, %v3931, 0.0
  %v3990 = vsel %vm65, %v3936, 0.0
  %v3991 = vsel %vm66, %v3941, 0.0
  %v3992 = vsel %vm64, %v3946, 0.0
  %v3993 = vsel %vm65, %v3951, 0.0
  %v3994 = vsel %vm66, %v3956, 0.0
  %v3995 = vsel %vm64, %v3961, 0.0
  %v3996 = vsel %vm65, %v3966, 0.0
  %v3997 = vsel %vm66, %v3971, 0.0
  %v3998 = vmul.f32 %v3974, %v3974
  %v3999 = vmul.f32 %v3975, %v3975
  %v4000 = vmul.f32 %v3976, %v3976
  %v4001 = vmul.f32 %v3977, %v3977
  %v4002 = vmul.f32 %v3978, %v3978
  %v4003 = vmul.f32 %v3979, %v3979
  %v4004 = vmul.f32 %v3980, %v3980
  %v4005 = vmul.f32 %v3981, %v3981
  %v4006 = vmul.f32 %v3982, %v3982
  %v4007 = vmul.f32 %v3983, %v3983
  %v4008 = vmul.f32 %v3984, %v3984
  %v4009 = vmul.f32 %v3985, %v3985
  %v4010 = vmul.f32 %v3986, %v3986
  %v4011 = vmul.f32 %v3987, %v3987
  %v4012 = vmul.f32 %v3988, %v3988
  %v4013 = vmul.f32 %v3989, %v3989
  %v4014 = vmul.f32 %v3990, %v3990
  %v4015 = vmul.f32 %v3991, %v3991
  %v4016 = vmul.f32 %v3992, %v3992
  %v4017 = vmul.f32 %v3993, %v3993
  %v4018 = vmul.f32 %v3994, %v3994
  %v4019 = vmul.f32 %v3995, %v3995
  %v4020 = vmul.f32 %v3996, %v3996
  %v4021 = vmul.f32 %v3997, %v3997
  %4046 = vrot.lane.b32.xlu0 %v3998, 64
  %v4047 = vpop.permute.xlu0 %4046
  %4048 = vrot.lane.b32.xlu0 %v3999, 64
  %v4049 = vpop.permute.xlu0 %4048
  %4050 = vrot.lane.b32.xlu0 %v4000, 64
  %v4051 = vpop.permute.xlu0 %4050
  %4052 = vrot.lane.b32.xlu0 %v4001, 64
  %v4053 = vpop.permute.xlu0 %4052
  %4054 = vrot.lane.b32.xlu0 %v4002, 64
  %v4055 = vpop.permute.xlu0 %4054
  %4056 = vrot.lane.b32.xlu0 %v4003, 64
  %v4057 = vpop.permute.xlu0 %4056
  %4058 = vrot.lane.b32.xlu0 %v4004, 64
  %v4059 = vpop.permute.xlu0 %4058
  %4060 = vrot.lane.b32.xlu0 %v4005, 64
  %v4061 = vpop.permute.xlu0 %4060
  %4062 = vrot.lane.b32.xlu0 %v4006, 64
  %v4063 = vpop.permute.xlu0 %4062
  %4064 = vrot.lane.b32.xlu0 %v4007, 64
  %v4065 = vpop.permute.xlu0 %4064
  %4066 = vrot.lane.b32.xlu0 %v4008, 64
  %v4067 = vpop.permute.xlu0 %4066
  %4068 = vrot.lane.b32.xlu0 %v4009, 64
  %v4069 = vpop.permute.xlu0 %4068
  %4070 = vrot.lane.b32.xlu0 %v4010, 64
  %v4071 = vpop.permute.xlu0 %4070
  %4072 = vrot.lane.b32.xlu0 %v4011, 64
  %v4073 = vpop.permute.xlu0 %4072
  %4074 = vrot.lane.b32.xlu0 %v4012, 64
  %v4075 = vpop.permute.xlu0 %4074
  %4076 = vrot.lane.b32.xlu0 %v4013, 64
  %v4077 = vpop.permute.xlu0 %4076
  %4078 = vrot.lane.b32.xlu0 %v4014, 64
  %v4079 = vpop.permute.xlu0 %4078
  %4080 = vrot.lane.b32.xlu0 %v4015, 64
  %v4081 = vpop.permute.xlu0 %4080
  %4082 = vrot.lane.b32.xlu0 %v4016, 64
  %v4083 = vpop.permute.xlu0 %4082
  %4084 = vrot.lane.b32.xlu0 %v4017, 64
  %v4085 = vpop.permute.xlu0 %4084
  %4086 = vrot.lane.b32.xlu0 %v4018, 64
  %v4087 = vpop.permute.xlu0 %4086
  %4088 = vrot.lane.b32.xlu0 %v4019, 64
  %v4089 = vpop.permute.xlu0 %4088
  %4090 = vrot.lane.b32.xlu0 %v4020, 64
  %v4091 = vpop.permute.xlu0 %4090
  %4092 = vrot.lane.b32.xlu0 %v4021, 64
  %v4093 = vpop.permute.xlu0 %4092
  %v4118 = vsel %vm17, %v3974, %v4047
  %v4119 = vsel %vm17, %v3975, %v4049
  %v4120 = vsel %vm17, %v3976, %v4051
  %v4121 = vsel %vm17, %v3977, %v4053
  %v4122 = vsel %vm17, %v3978, %v4055
  %v4123 = vsel %vm17, %v3979, %v4057
  %v4124 = vsel %vm17, %v3980, %v4059
  %v4125 = vsel %vm17, %v3981, %v4061
  %v4126 = vsel %vm17, %v3982, %v4063
  %v4127 = vsel %vm17, %v3983, %v4065
  %v4128 = vsel %vm17, %v3984, %v4067
  %v4129 = vsel %vm17, %v3985, %v4069
  %v4130 = vsel %vm17, %v3986, %v4071
  %v4131 = vsel %vm17, %v3987, %v4073
  %v4132 = vsel %vm17, %v3988, %v4075
  %v4133 = vsel %vm17, %v3989, %v4077
  %v4134 = vsel %vm17, %v3990, %v4079
  %v4135 = vsel %vm17, %v3991, %v4081
  %v4136 = vsel %vm17, %v3992, %v4083
  %v4137 = vsel %vm17, %v3993, %v4085
  %v4138 = vsel %vm17, %v3994, %v4087
  %v4139 = vsel %vm17, %v3995, %v4089
  %v4140 = vsel %vm17, %v3996, %v4091
  %v4141 = vsel %vm17, %v3997, %v4093
  %v4142 = vadd.f32 %v4118, %v4119
  %v4143 = vadd.f32 %v4142, %v4120
  %v4144 = vadd.f32 %v4143, %v4121
  %v4145 = vadd.f32 %v4144, %v4122
  %v4146 = vadd.f32 %v4145, %v4123
  %v4147 = vadd.f32 %v4146, %v4124
  %v4148 = vadd.f32 %v4147, %v4125
  %v4149 = vadd.f32 %v4148, %v4126
  %v4150 = vadd.f32 %v4149, %v4127
  %v4151 = vadd.f32 %v4150, %v4128
  %v4152 = vadd.f32 %v4151, %v4129
  %v4153 = vadd.f32 %v4152, %v4130
  %v4154 = vadd.f32 %v4153, %v4131
  %v4155 = vadd.f32 %v4154, %v4132
  %v4156 = vadd.f32 %v4155, %v4133
  %v4157 = vadd.f32 %v4156, %v4134
  %v4158 = vadd.f32 %v4157, %v4135
  %v4159 = vadd.f32 %v4158, %v4136
  %v4160 = vadd.f32 %v4159, %v4137
  %v4161 = vadd.f32 %v4160, %v4138
  %v4162 = vadd.f32 %v4161, %v4139
  %v4163 = vadd.f32 %v4162, %v4140
  %v4164 = vadd.f32 %v4163, %v4141
  %v4165 = vrot.slane %v4164, 4
  %v4166 = vadd.f32 %v4164, %v4165
  %v4167 = vrot.slane %v4166, 2
  %v4168 = vadd.f32 %v4166, %v4167
  %v4169 = vrot.slane %v4168, 1
  %v4170 = vadd.f32 %v4168, %v4169
  %v4171 = vmul.f32 %v4170, 0.0078125
  %v4172 = vmul.f32 %v4171, %v4171
  %4174 = vrot.lane.b32.xlu0 %v4172, 64
  %v4175 = vpop.permute.xlu0 %4174
  %v4177 = vsub.f32 %v4171, %v4175
  %v4178 = vmax.f32 %v4177, 0.0
  %v4179 = vld [vmem:[%s3 + $0xa] sm:$0x1]
  %v4180 = vsub.f32 %v3856, %v4171
  %v4181 = vsub.f32 %v3861, %v4171
  %v4182 = vsub.f32 %v3866, %v4171
  %v4183 = vsub.f32 %v3871, %v4171
  %v4184 = vsub.f32 %v3876, %v4171
  %v4185 = vsub.f32 %v3881, %v4171
  %v4186 = vsub.f32 %v3886, %v4171
  %v4187 = vsub.f32 %v3891, %v4171
  %v4188 = vsub.f32 %v3896, %v4171
  %v4189 = vsub.f32 %v3901, %v4171
  %v4190 = vsub.f32 %v3906, %v4171
  %v4191 = vsub.f32 %v3911, %v4171
  %v4192 = vsub.f32 %v3916, %v4171
  %v4193 = vsub.f32 %v3921, %v4171
  %v4194 = vsub.f32 %v3926, %v4171
  %v4195 = vsub.f32 %v3931, %v4171
  %v4196 = vsub.f32 %v3936, %v4171
  %v4197 = vsub.f32 %v3941, %v4171
  %v4198 = vsub.f32 %v3946, %v4171
  %v4199 = vsub.f32 %v3951, %v4171
  %v4200 = vsub.f32 %v3956, %v4171
  %v4201 = vsub.f32 %v3961, %v4171
  %v4202 = vsub.f32 %v3966, %v4171
  %v4203 = vsub.f32 %v3971, %v4171
  %v4204 = vadd.f32 %v4178, 1e-05
  %v4205 = vrsqrt.pop %v4204
  %v4206 = vlaneseq
  %v4207 = vshrl.u32 %v4206, 7
  %v4208 = vsub.s32 0, %v4207
  %v4209 = vrot.slane %v4205, %v4208
  %4211 = vrot.lane.b32.xlu0 %v4209, 64
  %v4212 = vpop.permute.xlu0 %4211
  %v4214 = vmul.f32 %v4180, %v4212
  %v4215 = vmul.f32 %v4181, %v4212
  %v4216 = vmul.f32 %v4182, %v4212
  %v4217 = vmul.f32 %v4183, %v4212
  %v4218 = vmul.f32 %v4184, %v4212
  %v4219 = vmul.f32 %v4185, %v4212
  %v4220 = vmul.f32 %v4186, %v4212
  %v4221 = vmul.f32 %v4187, %v4212
  %v4222 = vmul.f32 %v4188, %v4212
  %v4223 = vmul.f32 %v4189, %v4212
  %v4224 = vmul.f32 %v4190, %v4212
  %v4225 = vmul.f32 %v4191, %v4212
  %v4226 = vmul.f32 %v4192, %v4212
  %v4227 = vmul.f32 %v4193, %v4212
  %v4228 = vmul.f32 %v4194, %v4212
  %v4229 = vmul.f32 %v4195, %v4212
  %v4230 = vmul.f32 %v4196, %v4212
  %v4231 = vmul.f32 %v4197, %v4212
  %v4232 = vmul.f32 %v4198, %v4212
  %v4233 = vmul.f32 %v4199, %v4212
  %v4234 = vmul.f32 %v4200, %v4212
  %v4235 = vmul.f32 %v4201, %v4212
  %v4236 = vmul.f32 %v4202, %v4212
  %v4237 = vmul.f32 %v4203, %v4212
  %v4238 = vlaneseq
  %v4239 = vshrl.u32 %v4238, 7
  %v4240 = vsub.s32 0, %v4239
  %v4241 = vrot.slane %v4179, %v4240
  %v4242 = vmul.f32 %v4241, %v4214
  %v4243 = vmul.f32 %v4241, %v4215
  %v4244 = vmul.f32 %v4241, %v4216
  %v4245 = vmul.f32 %v4241, %v4217
  %v4246 = vmul.f32 %v4241, %v4218
  %v4247 = vmul.f32 %v4241, %v4219
  %v4248 = vmul.f32 %v4241, %v4220
  %v4249 = vmul.f32 %v4241, %v4221
  %v4250 = vmul.f32 %v4241, %v4222
  %v4251 = vmul.f32 %v4241, %v4223
  %v4252 = vmul.f32 %v4241, %v4224
  %v4253 = vmul.f32 %v4241, %v4225
  %v4254 = vmul.f32 %v4241, %v4226
  %v4255 = vmul.f32 %v4241, %v4227
  %v4256 = vmul.f32 %v4241, %v4228
  %v4257 = vmul.f32 %v4241, %v4229
  %v4258 = vmul.f32 %v4241, %v4230
  %v4259 = vmul.f32 %v4241, %v4231
  %v4260 = vmul.f32 %v4241, %v4232
  %v4261 = vmul.f32 %v4241, %v4233
  %v4262 = vmul.f32 %v4241, %v4234
  %v4263 = vmul.f32 %v4241, %v4235
  %v4264 = vmul.f32 %v4241, %v4236
  %v4265 = vmul.f32 %v4241, %v4237
  %v4266 = vld [vmem:[%s3 + $0xb] sm:$0x1]
  %v4267 = vlaneseq
  %v4268 = vshrl.u32 %v4267, 7
  %v4269 = vsub.s32 0, %v4268
  %v4270 = vrot.slane %v4266, %v4269
  %v4271 = vadd.f32 %v4242, %v4270
  %v4272 = vadd.f32 %v4243, %v4270
  %v4273 = vadd.f32 %v4244, %v4270
  %v4274 = vadd.f32 %v4245, %v4270
  %v4275 = vadd.f32 %v4246, %v4270
  %v4276 = vadd.f32 %v4247, %v4270
  %v4277 = vadd.f32 %v4248, %v4270
  %v4278 = vadd.f32 %v4249, %v4270
  %v4279 = vadd.f32 %v4250, %v4270
  %v4280 = vadd.f32 %v4251, %v4270
  %v4281 = vadd.f32 %v4252, %v4270
  %v4282 = vadd.f32 %v4253, %v4270
  %v4283 = vadd.f32 %v4254, %v4270
  %v4284 = vadd.f32 %v4255, %v4270
  %v4285 = vadd.f32 %v4256, %v4270
  %v4286 = vadd.f32 %v4257, %v4270
  %v4287 = vadd.f32 %v4258, %v4270
  %v4288 = vadd.f32 %v4259, %v4270
  %v4289 = vadd.f32 %v4260, %v4270
  %v4290 = vadd.f32 %v4261, %v4270
  %v4291 = vadd.f32 %v4262, %v4270
  %v4292 = vadd.f32 %v4263, %v4270
  %v4293 = vadd.f32 %v4264, %v4270
  %v4294 = vadd.f32 %v4265, %v4270
  %v4295 = vadd.f32 %v3684, %v4271
  %v4296 = vadd.f32 %v3685, %v4272
  %v4297 = vadd.f32 %v3686, %v4273
  %v4298 = vadd.f32 %v3687, %v4274
  %v4299 = vadd.f32 %v3688, %v4275
  %v4300 = vadd.f32 %v3689, %v4276
  %v4301 = vadd.f32 %v3690, %v4277
  %v4302 = vadd.f32 %v3691, %v4278
  %v4303 = vadd.f32 %v3692, %v4279
  %v4304 = vadd.f32 %v3693, %v4280
  %v4305 = vadd.f32 %v3694, %v4281
  %v4306 = vadd.f32 %v3695, %v4282
  %v4307 = vadd.f32 %v3696, %v4283
  %v4308 = vadd.f32 %v3697, %v4284
  %v4309 = vadd.f32 %v3698, %v4285
  %v4310 = vadd.f32 %v3699, %v4286
  %v4311 = vadd.f32 %v3700, %v4287
  %v4312 = vadd.f32 %v3701, %v4288
  %v4313 = vadd.f32 %v3702, %v4289
  %v4314 = vadd.f32 %v3703, %v4290
  %v4315 = vadd.f32 %v3704, %v4291
  %v4316 = vadd.f32 %v3705, %v4292
  %v4317 = vadd.f32 %v3706, %v4293
  %v4318 = vadd.f32 %v3707, %v4294
  %v4319 = vmax.f32 %v4295, 0.0
  %v4320 = vmax.f32 %v4296, 0.0
  %v4321 = vmax.f32 %v4297, 0.0
  %v4322 = vmax.f32 %v4298, 0.0
  %v4323 = vmax.f32 %v4299, 0.0
  %v4324 = vmax.f32 %v4300, 0.0
  %v4325 = vmax.f32 %v4301, 0.0
  %v4326 = vmax.f32 %v4302, 0.0
  %v4327 = vmax.f32 %v4303, 0.0
  %v4328 = vmax.f32 %v4304, 0.0
  %v4329 = vmax.f32 %v4305, 0.0
  %v4330 = vmax.f32 %v4306, 0.0
  %v4331 = vmax.f32 %v4307, 0.0
  %v4332 = vmax.f32 %v4308, 0.0
  %v4333 = vmax.f32 %v4309, 0.0
  %v4334 = vmax.f32 %v4310, 0.0
  %v4335 = vmax.f32 %v4311, 0.0
  %v4336 = vmax.f32 %v4312, 0.0
  %v4337 = vmax.f32 %v4313, 0.0
  %v4338 = vmax.f32 %v4314, 0.0
  %v4339 = vmax.f32 %v4315, 0.0
  %v4340 = vmax.f32 %v4316, 0.0
  %v4341 = vmax.f32 %v4317, 0.0
  %v4342 = vmax.f32 %v4318, 0.0
  %v4343 = vld [vmem:[%s2 + $0x228] sm:$0xff]
  %v4344 = vld [vmem:[%s2 + $0x230] sm:$0xff]
  %v4345 = vld [vmem:[%s2 + $0x238] sm:$0xff]
  %v4346 = vld [vmem:[%s2 + $0x240] sm:$0xff]
  %v4347 = vld [vmem:[%s2 + $0x248] sm:$0xff]
  %v4348 = vld [vmem:[%s2 + $0x250] sm:$0xff]
  %v4349 = vld [vmem:[%s2 + $0x258] sm:$0xff]
  %v4350 = vld [vmem:[%s2 + $0x260] sm:$0xff]
  %v4351 = vld [vmem:[%s2 + $0x268] sm:$0xff]
  %v4352 = vld [vmem:[%s2 + $0x270] sm:$0xff]
  %v4353 = vld [vmem:[%s2 + $0x278] sm:$0xff]
  %v4354 = vld [vmem:[%s2 + $0x280] sm:$0xff]
  %v4355 = vld [vmem:[%s2 + $0x288] sm:$0xff]
  %v4356 = vld [vmem:[%s2 + $0x290] sm:$0xff]
  %v4357 = vld [vmem:[%s2 + $0x298] sm:$0xff]
  %v4358 = vld [vmem:[%s2 + $0x2a0] sm:$0xff]
  %v4359 = vld [vmem:[%s2 + $0x2a8] sm:$0xff]
  %v4360 = vld [vmem:[%s2 + $0x2b0] sm:$0xff]
  %v4361 = vld [vmem:[%s2 + $0x2b8] sm:$0xff]
  %v4362 = vld [vmem:[%s2 + $0x2c0] sm:$0xff]
  %v4363 = vld [vmem:[%s2 + $0x2c8] sm:$0xff]
  %v4364 = vld [vmem:[%s2 + $0x2d0] sm:$0xff]
  %v4365 = vld [vmem:[%s2 + $0x2d8] sm:$0xff]
  %v4366 = vld [vmem:[%s2 + $0x2e0] sm:$0xff]
  %v4367 = vld [vmem:[%s2 + $0x2e8] sm:$0xff]
  %v4368 = vld [vmem:[%s2 + $0x2f0] sm:$0xff]
  %v4369 = vld [vmem:[%s2 + $0x2f8] sm:$0xff]
  %v4370 = vld [vmem:[%s2 + $0x300] sm:$0xff]
  %v4371 = vld [vmem:[%s2 + $0x308] sm:$0xff]
  %v4372 = vld [vmem:[%s2 + $0x310] sm:$0xff]
  %v4373 = vld [vmem:[%s2 + $0x318] sm:$0xff]
  %v4374 = vld [vmem:[%s2 + $0x320] sm:$0xff]
  %v4375 = vld [vmem:[%s2 + $0x328] sm:$0xff]
  %v4376 = vld [vmem:[%s2 + $0x330] sm:$0xff]
  %v4377 = vld [vmem:[%s2 + $0x338] sm:$0xff]
  %v4378 = vld [vmem:[%s2 + $0x340] sm:$0xff]
  %v4379 = vld [vmem:[%s2 + $0x348] sm:$0xff]
  %v4380 = vld [vmem:[%s2 + $0x350] sm:$0xff]
  %v4381 = vld [vmem:[%s2 + $0x358] sm:$0xff]
  %v4382 = vld [vmem:[%s2 + $0x360] sm:$0xff]
  %v4383 = vld [vmem:[%s2 + $0x368] sm:$0xff]
  %v4384 = vld [vmem:[%s2 + $0x370] sm:$0xff]
  %v4385 = vld [vmem:[%s2 + $0x378] sm:$0xff]
  %v4386 = vld [vmem:[%s2 + $0x380] sm:$0xff]
  %v4387 = vld [vmem:[%s2 + $0x388] sm:$0xff]
  %v4388 = vld [vmem:[%s2 + $0x390] sm:$0xff]
  %v4389 = vld [vmem:[%s2 + $0x398] sm:$0xff]
  %v4390 = vld [vmem:[%s2 + $0x3a0] sm:$0xff]
  %v4391 = vld [vmem:[%s2 + $0x3a8] sm:$0xff]
  %v4392 = vld [vmem:[%s2 + $0x3b0] sm:$0xff]
  %v4393 = vld [vmem:[%s2 + $0x3b8] sm:$0xff]
  %v4394 = vld [vmem:[%s2 + $0x3c0] sm:$0xff]
  %v4395 = vld [vmem:[%s2 + $0x3c8] sm:$0xff]
  %v4396 = vld [vmem:[%s2 + $0x3d0] sm:$0xff]
  %v4397 = vld [vmem:[%s2 + $0x3d8] sm:$0xff]
  %v4398 = vld [vmem:[%s2 + $0x3e0] sm:$0xff]
  %v4399 = vsel %vm64, %v4319, 0.0
  %v4400 = vsel %vm65, %v4320, 0.0
  %v4401 = vsel %vm66, %v4321, 0.0
  %v4402 = vsel %vm64, %v4322, 0.0
  %v4403 = vsel %vm65, %v4323, 0.0
  %v4404 = vsel %vm66, %v4324, 0.0
  %v4405 = vsel %vm64, %v4325, 0.0
  %v4406 = vsel %vm65, %v4326, 0.0
  %v4407 = vsel %vm66, %v4327, 0.0
  %v4408 = vsel %vm64, %v4328, 0.0
  %v4409 = vsel %vm65, %v4329, 0.0
  %v4410 = vsel %vm66, %v4330, 0.0
  %v4411 = vsel %vm64, %v4331, 0.0
  %v4412 = vsel %vm65, %v4332, 0.0
  %v4413 = vsel %vm66, %v4333, 0.0
  %v4414 = vsel %vm64, %v4334, 0.0
  %v4415 = vsel %vm65, %v4335, 0.0
  %v4416 = vsel %vm66, %v4336, 0.0
  %v4417 = vsel %vm64, %v4337, 0.0
  %v4418 = vsel %vm65, %v4338, 0.0
  %v4419 = vsel %vm66, %v4339, 0.0
  %v4420 = vsel %vm64, %v4340, 0.0
  %v4421 = vsel %vm65, %v4341, 0.0
  %v4422 = vsel %vm66, %v4342, 0.0
  %4423 = vst.msk [vmem:[#allocation2 + $0x8] sm:$0xff] %vm17, %v4399
  %4424 = vst.msk [vmem:[#allocation2 + $0x10] sm:$0xff] %vm17, %v4400
  %4425 = vst.msk [vmem:[#allocation2 + $0x18] sm:$0xff] %vm17, %v4401
  %4426 = vst.msk [vmem:[#allocation2 + $0x20] sm:$0xff] %vm17, %v4402
  %4427 = vst.msk [vmem:[#allocation2 + $0x28] sm:$0xff] %vm17, %v4403
  %4428 = vst.msk [vmem:[#allocation2 + $0x30] sm:$0xff] %vm17, %v4404
  %4429 = vst.msk [vmem:[#allocation2 + $0x38] sm:$0xff] %vm17, %v4405
  %4430 = vst.msk [vmem:[#allocation2 + $0x40] sm:$0xff] %vm17, %v4406
  %4431 = vst.msk [vmem:[#allocation2 + $0x48] sm:$0xff] %vm17, %v4407
  %4432 = vst.msk [vmem:[#allocation2 + $0x50] sm:$0xff] %vm17, %v4408
  %4433 = vst.msk [vmem:[#allocation2 + $0x58] sm:$0xff] %vm17, %v4409
  %4434 = vst.msk [vmem:[#allocation2 + $0x60] sm:$0xff] %vm17, %v4410
  %4435 = vst.msk [vmem:[#allocation2 + $0x68] sm:$0xff] %vm17, %v4411
  %4436 = vst.msk [vmem:[#allocation2 + $0x70] sm:$0xff] %vm17, %v4412
  %4437 = vst.msk [vmem:[#allocation2 + $0x78] sm:$0xff] %vm17, %v4413
  %4438 = vst.msk [vmem:[#allocation2 + $0x80] sm:$0xff] %vm17, %v4414
  %4439 = vst.msk [vmem:[#allocation2 + $0x88] sm:$0xff] %vm17, %v4415
  %4440 = vst.msk [vmem:[#allocation2 + $0x90] sm:$0xff] %vm17, %v4416
  %4441 = vst.msk [vmem:[#allocation2 + $0x98] sm:$0xff] %vm17, %v4417
  %4442 = vst.msk [vmem:[#allocation2 + $0xa0] sm:$0xff] %vm17, %v4418
  %4443 = vst.msk [vmem:[#allocation2 + $0xa8] sm:$0xff] %vm17, %v4419
  %4444 = vst.msk [vmem:[#allocation2 + $0xb0] sm:$0xff] %vm17, %v4420
  %4445 = vst.msk [vmem:[#allocation2 + $0xb8] sm:$0xff] %vm17, %v4421
  %4446 = vst.msk [vmem:[#allocation2 + $0xc0] sm:$0xff] %vm17, %v4422
  %v4447 = vld [vmem:[#allocation2 + $0x5] sm:$0xff]
  %v4448 = vld [vmem:[#allocation2 + $0xd] sm:$0xff]
  %v4449 = vld [vmem:[#allocation2 + $0x15] sm:$0xff]
  %v4450 = vld [vmem:[#allocation2 + $0x1d] sm:$0xff]
  %v4451 = vld [vmem:[#allocation2 + $0x25] sm:$0xff]
  %v4452 = vld [vmem:[#allocation2 + $0x2d] sm:$0xff]
  %v4453 = vld [vmem:[#allocation2 + $0x35] sm:$0xff]
  %v4454 = vld [vmem:[#allocation2 + $0x3d] sm:$0xff]
  %v4455 = vld [vmem:[#allocation2 + $0x45] sm:$0xff]
  %v4456 = vld [vmem:[#allocation2 + $0x4d] sm:$0xff]
  %v4457 = vld [vmem:[#allocation2 + $0x55] sm:$0xff]
  %v4458 = vld [vmem:[#allocation2 + $0x5d] sm:$0xff]
  %v4459 = vld [vmem:[#allocation2 + $0x65] sm:$0xff]
  %v4460 = vld [vmem:[#allocation2 + $0x6d] sm:$0xff]
  %v4461 = vld [vmem:[#allocation2 + $0x75] sm:$0xff]
  %v4462 = vld [vmem:[#allocation2 + $0x7d] sm:$0xff]
  %v4463 = vld [vmem:[#allocation2 + $0x85] sm:$0xff]
  %v4464 = vld [vmem:[#allocation2 + $0x8d] sm:$0xff]
  %v4465 = vld [vmem:[#allocation2 + $0x95] sm:$0xff]
  %v4466 = vld [vmem:[#allocation2 + $0x9d] sm:$0xff]
  %v4467 = vld [vmem:[#allocation2 + $0xa5] sm:$0xff]
  %v4468 = vld [vmem:[#allocation2 + $0xad] sm:$0xff]
  %v4469 = vld [vmem:[#allocation2 + $0xb5] sm:$0xff]
  %v4470 = vld [vmem:[#allocation2 + $0xbd] sm:$0xff]
  %v4471 = vld [vmem:[#allocation2 + $0x6] sm:$0xff]
  %v4472 = vld [vmem:[#allocation2 + $0xe] sm:$0xff]
  %v4473 = vld [vmem:[#allocation2 + $0x16] sm:$0xff]
  %v4474 = vld [vmem:[#allocation2 + $0x1e] sm:$0xff]
  %v4475 = vld [vmem:[#allocation2 + $0x26] sm:$0xff]
  %v4476 = vld [vmem:[#allocation2 + $0x2e] sm:$0xff]
  %v4477 = vld [vmem:[#allocation2 + $0x36] sm:$0xff]
  %v4478 = vld [vmem:[#allocation2 + $0x3e] sm:$0xff]
  %v4479 = vld [vmem:[#allocation2 + $0x46] sm:$0xff]
  %v4480 = vld [vmem:[#allocation2 + $0x4e] sm:$0xff]
  %v4481 = vld [vmem:[#allocation2 + $0x56] sm:$0xff]
  %v4482 = vld [vmem:[#allocation2 + $0x5e] sm:$0xff]
  %v4483 = vld [vmem:[#allocation2 + $0x66] sm:$0xff]
  %v4484 = vld [vmem:[#allocation2 + $0x6e] sm:$0xff]
  %v4485 = vld [vmem:[#allocation2 + $0x76] sm:$0xff]
  %v4486 = vld [vmem:[#allocation2 + $0x7e] sm:$0xff]
  %v4487 = vld [vmem:[#allocation2 + $0x86] sm:$0xff]
  %v4488 = vld [vmem:[#allocation2 + $0x8e] sm:$0xff]
  %v4489 = vld [vmem:[#allocation2 + $0x96] sm:$0xff]
  %v4490 = vld [vmem:[#allocation2 + $0x9e] sm:$0xff]
  %v4491 = vld [vmem:[#allocation2 + $0xa6] sm:$0xff]
  %v4492 = vld [vmem:[#allocation2 + $0xae] sm:$0xff]
  %v4493 = vld [vmem:[#allocation2 + $0xb6] sm:$0xff]
  %v4494 = vld [vmem:[#allocation2 + $0xbe] sm:$0xff]
  %v4495 = vld [vmem:[#allocation2 + $0x7] sm:$0xff]
  %v4496 = vld [vmem:[#allocation2 + $0xf] sm:$0xff]
  %v4497 = vld [vmem:[#allocation2 + $0x17] sm:$0xff]
  %v4498 = vld [vmem:[#allocation2 + $0x1f] sm:$0xff]
  %v4499 = vld [vmem:[#allocation2 + $0x27] sm:$0xff]
  %v4500 = vld [vmem:[#allocation2 + $0x2f] sm:$0xff]
  %v4501 = vld [vmem:[#allocation2 + $0x37] sm:$0xff]
  %v4502 = vld [vmem:[#allocation2 + $0x3f] sm:$0xff]
  %v4503 = vld [vmem:[#allocation2 + $0x47] sm:$0xff]
  %v4504 = vld [vmem:[#allocation2 + $0x4f] sm:$0xff]
  %v4505 = vld [vmem:[#allocation2 + $0x57] sm:$0xff]
  %v4506 = vld [vmem:[#allocation2 + $0x5f] sm:$0xff]
  %v4507 = vld [vmem:[#allocation2 + $0x67] sm:$0xff]
  %v4508 = vld [vmem:[#allocation2 + $0x6f] sm:$0xff]
  %v4509 = vld [vmem:[#allocation2 + $0x77] sm:$0xff]
  %v4510 = vld [vmem:[#allocation2 + $0x7f] sm:$0xff]
  %v4511 = vld [vmem:[#allocation2 + $0x87] sm:$0xff]
  %v4512 = vld [vmem:[#allocation2 + $0x8f] sm:$0xff]
  %v4513 = vld [vmem:[#allocation2 + $0x97] sm:$0xff]
  %v4514 = vld [vmem:[#allocation2 + $0x9f] sm:$0xff]
  %v4515 = vld [vmem:[#allocation2 + $0xa7] sm:$0xff]
  %v4516 = vld [vmem:[#allocation2 + $0xaf] sm:$0xff]
  %v4517 = vld [vmem:[#allocation2 + $0xb7] sm:$0xff]
  %v4518 = vld [vmem:[#allocation2 + $0xbf] sm:$0xff]
  %v4519 = vld [vmem:[#allocation2 + $0x8] sm:$0xff]
  %v4520 = vld [vmem:[#allocation2 + $0x10] sm:$0xff]
  %v4521 = vld [vmem:[#allocation2 + $0x18] sm:$0xff]
  %v4522 = vld [vmem:[#allocation2 + $0x20] sm:$0xff]
  %v4523 = vld [vmem:[#allocation2 + $0x28] sm:$0xff]
  %v4524 = vld [vmem:[#allocation2 + $0x30] sm:$0xff]
  %v4525 = vld [vmem:[#allocation2 + $0x38] sm:$0xff]
  %v4526 = vld [vmem:[#allocation2 + $0x40] sm:$0xff]
  %v4527 = vld [vmem:[#allocation2 + $0x48] sm:$0xff]
  %v4528 = vld [vmem:[#allocation2 + $0x50] sm:$0xff]
  %v4529 = vld [vmem:[#allocation2 + $0x58] sm:$0xff]
  %v4530 = vld [vmem:[#allocation2 + $0x60] sm:$0xff]
  %v4531 = vld [vmem:[#allocation2 + $0x68] sm:$0xff]
  %v4532 = vld [vmem:[#allocation2 + $0x70] sm:$0xff]
  %v4533 = vld [vmem:[#allocation2 + $0x78] sm:$0xff]
  %v4534 = vld [vmem:[#allocation2 + $0x80] sm:$0xff]
  %v4535 = vld [vmem:[#allocation2 + $0x88] sm:$0xff]
  %v4536 = vld [vmem:[#allocation2 + $0x90] sm:$0xff]
  %v4537 = vld [vmem:[#allocation2 + $0x98] sm:$0xff]
  %v4538 = vld [vmem:[#allocation2 + $0xa0] sm:$0xff]
  %v4539 = vld [vmem:[#allocation2 + $0xa8] sm:$0xff]
  %v4540 = vld [vmem:[#allocation2 + $0xb0] sm:$0xff]
  %v4541 = vld [vmem:[#allocation2 + $0xb8] sm:$0xff]
  %v4542 = vld [vmem:[#allocation2 + $0xc0] sm:$0xff]
  %v4543 = vld [vmem:[#allocation2 + $0x9] sm:$0xff]
  %v4544 = vld [vmem:[#allocation2 + $0x11] sm:$0xff]
  %v4545 = vld [vmem:[#allocation2 + $0x19] sm:$0xff]
  %v4546 = vld [vmem:[#allocation2 + $0x21] sm:$0xff]
  %v4547 = vld [vmem:[#allocation2 + $0x29] sm:$0xff]
  %v4548 = vld [vmem:[#allocation2 + $0x31] sm:$0xff]
  %v4549 = vld [vmem:[#allocation2 + $0x39] sm:$0xff]
  %v4550 = vld [vmem:[#allocation2 + $0x41] sm:$0xff]
  %v4551 = vld [vmem:[#allocation2 + $0x49] sm:$0xff]
  %v4552 = vld [vmem:[#allocation2 + $0x51] sm:$0xff]
  %v4553 = vld [vmem:[#allocation2 + $0x59] sm:$0xff]
  %v4554 = vld [vmem:[#allocation2 + $0x61] sm:$0xff]
  %v4555 = vld [vmem:[#allocation2 + $0x69] sm:$0xff]
  %v4556 = vld [vmem:[#allocation2 + $0x71] sm:$0xff]
  %v4557 = vld [vmem:[#allocation2 + $0x79] sm:$0xff]
  %v4558 = vld [vmem:[#allocation2 + $0x81] sm:$0xff]
  %v4559 = vld [vmem:[#allocation2 + $0x89] sm:$0xff]
  %v4560 = vld [vmem:[#allocation2 + $0x91] sm:$0xff]
  %v4561 = vld [vmem:[#allocation2 + $0x99] sm:$0xff]
  %v4562 = vld [vmem:[#allocation2 + $0xa1] sm:$0xff]
  %v4563 = vld [vmem:[#allocation2 + $0xa9] sm:$0xff]
  %v4564 = vld [vmem:[#allocation2 + $0xb1] sm:$0xff]
  %v4565 = vld [vmem:[#allocation2 + $0xb9] sm:$0xff]
  %v4566 = vld [vmem:[#allocation2 + $0xc1] sm:$0xff]
  %v4567 = vld [vmem:[#allocation2 + $0xa] sm:$0xff]
  %v4568 = vld [vmem:[#allocation2 + $0x12] sm:$0xff]
  %v4569 = vld [vmem:[#allocation2 + $0x1a] sm:$0xff]
  %v4570 = vld [vmem:[#allocation2 + $0x22] sm:$0xff]
  %v4571 = vld [vmem:[#allocation2 + $0x2a] sm:$0xff]
  %v4572 = vld [vmem:[#allocation2 + $0x32] sm:$0xff]
  %v4573 = vld [vmem:[#allocation2 + $0x3a] sm:$0xff]
  %v4574 = vld [vmem:[#allocation2 + $0x42] sm:$0xff]
  %v4575 = vld [vmem:[#allocation2 + $0x4a] sm:$0xff]
  %v4576 = vld [vmem:[#allocation2 + $0x52] sm:$0xff]
  %v4577 = vld [vmem:[#allocation2 + $0x5a] sm:$0xff]
  %v4578 = vld [vmem:[#allocation2 + $0x62] sm:$0xff]
  %v4579 = vld [vmem:[#allocation2 + $0x6a] sm:$0xff]
  %v4580 = vld [vmem:[#allocation2 + $0x72] sm:$0xff]
  %v4581 = vld [vmem:[#allocation2 + $0x7a] sm:$0xff]
  %v4582 = vld [vmem:[#allocation2 + $0x82] sm:$0xff]
  %v4583 = vld [vmem:[#allocation2 + $0x8a] sm:$0xff]
  %v4584 = vld [vmem:[#allocation2 + $0x92] sm:$0xff]
  %v4585 = vld [vmem:[#allocation2 + $0x9a] sm:$0xff]
  %v4586 = vld [vmem:[#allocation2 + $0xa2] sm:$0xff]
  %v4587 = vld [vmem:[#allocation2 + $0xaa] sm:$0xff]
  %v4588 = vld [vmem:[#allocation2 + $0xb2] sm:$0xff]
  %v4589 = vld [vmem:[#allocation2 + $0xba] sm:$0xff]
  %v4590 = vld [vmem:[#allocation2 + $0xc2] sm:$0xff]
  %v4591 = vld [vmem:[#allocation2 + $0xb] sm:$0xff]
  %v4592 = vld [vmem:[#allocation2 + $0x13] sm:$0xff]
  %v4593 = vld [vmem:[#allocation2 + $0x1b] sm:$0xff]
  %v4594 = vld [vmem:[#allocation2 + $0x23] sm:$0xff]
  %v4595 = vld [vmem:[#allocation2 + $0x2b] sm:$0xff]
  %v4596 = vld [vmem:[#allocation2 + $0x33] sm:$0xff]
  %v4597 = vld [vmem:[#allocation2 + $0x3b] sm:$0xff]
  %v4598 = vld [vmem:[#allocation2 + $0x43] sm:$0xff]
  %v4599 = vld [vmem:[#allocation2 + $0x4b] sm:$0xff]
  %v4600 = vld [vmem:[#allocation2 + $0x53] sm:$0xff]
  %v4601 = vld [vmem:[#allocation2 + $0x5b] sm:$0xff]
  %v4602 = vld [vmem:[#allocation2 + $0x63] sm:$0xff]
  %v4603 = vld [vmem:[#allocation2 + $0x6b] sm:$0xff]
  %v4604 = vld [vmem:[#allocation2 + $0x73] sm:$0xff]
  %v4605 = vld [vmem:[#allocation2 + $0x7b] sm:$0xff]
  %v4606 = vld [vmem:[#allocation2 + $0x83] sm:$0xff]
  %v4607 = vld [vmem:[#allocation2 + $0x8b] sm:$0xff]
  %v4608 = vld [vmem:[#allocation2 + $0x93] sm:$0xff]
  %v4609 = vld [vmem:[#allocation2 + $0x9b] sm:$0xff]
  %v4610 = vld [vmem:[#allocation2 + $0xa3] sm:$0xff]
  %v4611 = vld [vmem:[#allocation2 + $0xab] sm:$0xff]
  %v4612 = vld [vmem:[#allocation2 + $0xb3] sm:$0xff]
  %v4613 = vld [vmem:[#allocation2 + $0xbb] sm:$0xff]
  %v4614 = vld [vmem:[#allocation2 + $0xc3] sm:$0xff]
  %4639 = vrot.lane.b32.xlu0 %v4471, 64
  %v4640 = vpop.permute.xlu0 %4639
  %4641 = vrot.lane.b32.xlu0 %v4472, 64
  %v4642 = vpop.permute.xlu0 %4641
  %4643 = vrot.lane.b32.xlu0 %v4473, 64
  %v4644 = vpop.permute.xlu0 %4643
  %4645 = vrot.lane.b32.xlu0 %v4474, 64
  %v4646 = vpop.permute.xlu0 %4645
  %4647 = vrot.lane.b32.xlu0 %v4475, 64
  %v4648 = vpop.permute.xlu0 %4647
  %4649 = vrot.lane.b32.xlu0 %v4476, 64
  %v4650 = vpop.permute.xlu0 %4649
  %4651 = vrot.lane.b32.xlu0 %v4477, 64
  %v4652 = vpop.permute.xlu0 %4651
  %4653 = vrot.lane.b32.xlu0 %v4478, 64
  %v4654 = vpop.permute.xlu0 %4653
  %4655 = vrot.lane.b32.xlu0 %v4479, 64
  %v4656 = vpop.permute.xlu0 %4655
  %4657 = vrot.lane.b32.xlu0 %v4480, 64
  %v4658 = vpop.permute.xlu0 %4657
  %4659 = vrot.lane.b32.xlu0 %v4481, 64
  %v4660 = vpop.permute.xlu0 %4659
  %4661 = vrot.lane.b32.xlu0 %v4482, 64
  %v4662 = vpop.permute.xlu0 %4661
  %4663 = vrot.lane.b32.xlu0 %v4483, 64
  %v4664 = vpop.permute.xlu0 %4663
  %4665 = vrot.lane.b32.xlu0 %v4484, 64
  %v4666 = vpop.permute.xlu0 %4665
  %4667 = vrot.lane.b32.xlu0 %v4485, 64
  %v4668 = vpop.permute.xlu0 %4667
  %4669 = vrot.lane.b32.xlu0 %v4486, 64
  %v4670 = vpop.permute.xlu0 %4669
  %4671 = vrot.lane.b32.xlu0 %v4487, 64
  %v4672 = vpop.permute.xlu0 %4671
  %4673 = vrot.lane.b32.xlu0 %v4488, 64
  %v4674 = vpop.permute.xlu0 %4673
  %4675 = vrot.lane.b32.xlu0 %v4489, 64
  %v4676 = vpop.permute.xlu0 %4675
  %4677 = vrot.lane.b32.xlu0 %v4490, 64
  %v4678 = vpop.permute.xlu0 %4677
  %4679 = vrot.lane.b32.xlu0 %v4491, 64
  %v4680 = vpop.permute.xlu0 %4679
  %4681 = vrot.lane.b32.xlu0 %v4492, 64
  %v4682 = vpop.permute.xlu0 %4681
  %4683 = vrot.lane.b32.xlu0 %v4493, 64
  %v4684 = vpop.permute.xlu0 %4683
  %4685 = vrot.lane.b32.xlu0 %v4494, 64
  %v4686 = vpop.permute.xlu0 %4685
  %4735 = vrot.lane.b32.xlu0 %v4519, 64
  %v4736 = vpop.permute.xlu0 %4735
  %4737 = vrot.lane.b32.xlu0 %v4520, 64
  %v4738 = vpop.permute.xlu0 %4737
  %4739 = vrot.lane.b32.xlu0 %v4521, 64
  %v4740 = vpop.permute.xlu0 %4739
  %4741 = vrot.lane.b32.xlu0 %v4522, 64
  %v4742 = vpop.permute.xlu0 %4741
  %4743 = vrot.lane.b32.xlu0 %v4523, 64
  %v4744 = vpop.permute.xlu0 %4743
  %4745 = vrot.lane.b32.xlu0 %v4524, 64
  %v4746 = vpop.permute.xlu0 %4745
  %4747 = vrot.lane.b32.xlu0 %v4525, 64
  %v4748 = vpop.permute.xlu0 %4747
  %4749 = vrot.lane.b32.xlu0 %v4526, 64
  %v4750 = vpop.permute.xlu0 %4749
  %4751 = vrot.lane.b32.xlu0 %v4527, 64
  %v4752 = vpop.permute.xlu0 %4751
  %4753 = vrot.lane.b32.xlu0 %v4528, 64
  %v4754 = vpop.permute.xlu0 %4753
  %4755 = vrot.lane.b32.xlu0 %v4529, 64
  %v4756 = vpop.permute.xlu0 %4755
  %4757 = vrot.lane.b32.xlu0 %v4530, 64
  %v4758 = vpop.permute.xlu0 %4757
  %4759 = vrot.lane.b32.xlu0 %v4531, 64
  %v4760 = vpop.permute.xlu0 %4759
  %4761 = vrot.lane.b32.xlu0 %v4532, 64
  %v4762 = vpop.permute.xlu0 %4761
  %4763 = vrot.lane.b32.xlu0 %v4533, 64
  %v4764 = vpop.permute.xlu0 %4763
  %4765 = vrot.lane.b32.xlu0 %v4534, 64
  %v4766 = vpop.permute.xlu0 %4765
  %4767 = vrot.lane.b32.xlu0 %v4535, 64
  %v4768 = vpop.permute.xlu0 %4767
  %4769 = vrot.lane.b32.xlu0 %v4536, 64
  %v4770 = vpop.permute.xlu0 %4769
  %4771 = vrot.lane.b32.xlu0 %v4537, 64
  %v4772 = vpop.permute.xlu0 %4771
  %4773 = vrot.lane.b32.xlu0 %v4538, 64
  %v4774 = vpop.permute.xlu0 %4773
  %4775 = vrot.lane.b32.xlu0 %v4539, 64
  %v4776 = vpop.permute.xlu0 %4775
  %4777 = vrot.lane.b32.xlu0 %v4540, 64
  %v4778 = vpop.permute.xlu0 %4777
  %4779 = vrot.lane.b32.xlu0 %v4541, 64
  %v4780 = vpop.permute.xlu0 %4779
  %4781 = vrot.lane.b32.xlu0 %v4542, 64
  %v4782 = vpop.permute.xlu0 %4781
  %4831 = vrot.lane.b32.xlu0 %v4567, 64
  %v4832 = vpop.permute.xlu0 %4831
  %4833 = vrot.lane.b32.xlu0 %v4568, 64
  %v4834 = vpop.permute.xlu0 %4833
  %4835 = vrot.lane.b32.xlu0 %v4569, 64
  %v4836 = vpop.permute.xlu0 %4835
  %4837 = vrot.lane.b32.xlu0 %v4570, 64
  %v4838 = vpop.permute.xlu0 %4837
  %4839 = vrot.lane.b32.xlu0 %v4571, 64
  %v4840 = vpop.permute.xlu0 %4839
  %4841 = vrot.lane.b32.xlu0 %v4572, 64
  %v4842 = vpop.permute.xlu0 %4841
  %4843 = vrot.lane.b32.xlu0 %v4573, 64
  %v4844 = vpop.permute.xlu0 %4843
  %4845 = vrot.lane.b32.xlu0 %v4574, 64
  %v4846 = vpop.permute.xlu0 %4845
  %4847 = vrot.lane.b32.xlu0 %v4575, 64
  %v4848 = vpop.permute.xlu0 %4847
  %4849 = vrot.lane.b32.xlu0 %v4576, 64
  %v4850 = vpop.permute.xlu0 %4849
  %4851 = vrot.lane.b32.xlu0 %v4577, 64
  %v4852 = vpop.permute.xlu0 %4851
  %4853 = vrot.lane.b32.xlu0 %v4578, 64
  %v4854 = vpop.permute.xlu0 %4853
  %4855 = vrot.lane.b32.xlu0 %v4579, 64
  %v4856 = vpop.permute.xlu0 %4855
  %4857 = vrot.lane.b32.xlu0 %v4580, 64
  %v4858 = vpop.permute.xlu0 %4857
  %4859 = vrot.lane.b32.xlu0 %v4581, 64
  %v4860 = vpop.permute.xlu0 %4859
  %4861 = vrot.lane.b32.xlu0 %v4582, 64
  %v4862 = vpop.permute.xlu0 %4861
  %4863 = vrot.lane.b32.xlu0 %v4583, 64
  %v4864 = vpop.permute.xlu0 %4863
  %4865 = vrot.lane.b32.xlu0 %v4584, 64
  %v4866 = vpop.permute.xlu0 %4865
  %4867 = vrot.lane.b32.xlu0 %v4585, 64
  %v4868 = vpop.permute.xlu0 %4867
  %4869 = vrot.lane.b32.xlu0 %v4586, 64
  %v4870 = vpop.permute.xlu0 %4869
  %4871 = vrot.lane.b32.xlu0 %v4587, 64
  %v4872 = vpop.permute.xlu0 %4871
  %4873 = vrot.lane.b32.xlu0 %v4588, 64
  %v4874 = vpop.permute.xlu0 %4873
  %4875 = vrot.lane.b32.xlu0 %v4589, 64
  %v4876 = vpop.permute.xlu0 %4875
  %4877 = vrot.lane.b32.xlu0 %v4590, 64
  %v4878 = vpop.permute.xlu0 %4877
  %v4903 = vsel %vm17, %v4447, %v4640
  %v4904 = vsel %vm17, %v4448, %v4642
  %v4905 = vsel %vm17, %v4449, %v4644
  %v4906 = vsel %vm17, %v4450, %v4646
  %v4907 = vsel %vm17, %v4451, %v4648
  %v4908 = vsel %vm17, %v4452, %v4650
  %v4909 = vsel %vm17, %v4453, %v4652
  %v4910 = vsel %vm17, %v4454, %v4654
  %v4911 = vsel %vm17, %v4455, %v4656
  %v4912 = vsel %vm17, %v4456, %v4658
  %v4913 = vsel %vm17, %v4457, %v4660
  %v4914 = vsel %vm17, %v4458, %v4662
  %v4915 = vsel %vm17, %v4459, %v4664
  %v4916 = vsel %vm17, %v4460, %v4666
  %v4917 = vsel %vm17, %v4461, %v4668
  %v4918 = vsel %vm17, %v4462, %v4670
  %v4919 = vsel %vm17, %v4463, %v4672
  %v4920 = vsel %vm17, %v4464, %v4674
  %v4921 = vsel %vm17, %v4465, %v4676
  %v4922 = vsel %vm17, %v4466, %v4678
  %v4923 = vsel %vm17, %v4467, %v4680
  %v4924 = vsel %vm17, %v4468, %v4682
  %v4925 = vsel %vm17, %v4469, %v4684
  %v4926 = vsel %vm17, %v4470, %v4686
  %v4927 = vsel %vm17, %v4495, %v4736
  %v4928 = vsel %vm17, %v4496, %v4738
  %v4929 = vsel %vm17, %v4497, %v4740
  %v4930 = vsel %vm17, %v4498, %v4742
  %v4931 = vsel %vm17, %v4499, %v4744
  %v4932 = vsel %vm17, %v4500, %v4746
  %v4933 = vsel %vm17, %v4501, %v4748
  %v4934 = vsel %vm17, %v4502, %v4750
  %v4935 = vsel %vm17, %v4503, %v4752
  %v4936 = vsel %vm17, %v4504, %v4754
  %v4937 = vsel %vm17, %v4505, %v4756
  %v4938 = vsel %vm17, %v4506, %v4758
  %v4939 = vsel %vm17, %v4507, %v4760
  %v4940 = vsel %vm17, %v4508, %v4762
  %v4941 = vsel %vm17, %v4509, %v4764
  %v4942 = vsel %vm17, %v4510, %v4766
  %v4943 = vsel %vm17, %v4511, %v4768
  %v4944 = vsel %vm17, %v4512, %v4770
  %v4945 = vsel %vm17, %v4513, %v4772
  %v4946 = vsel %vm17, %v4514, %v4774
  %v4947 = vsel %vm17, %v4515, %v4776
  %v4948 = vsel %vm17, %v4516, %v4778
  %v4949 = vsel %vm17, %v4517, %v4780
  %v4950 = vsel %vm17, %v4518, %v4782
  %v4951 = vsel %vm17, %v4543, %v4832
  %v4952 = vsel %vm17, %v4544, %v4834
  %v4953 = vsel %vm17, %v4545, %v4836
  %v4954 = vsel %vm17, %v4546, %v4838
  %v4955 = vsel %vm17, %v4547, %v4840
  %v4956 = vsel %vm17, %v4548, %v4842
  %v4957 = vsel %vm17, %v4549, %v4844
  %v4958 = vsel %vm17, %v4550, %v4846
  %v4959 = vsel %vm17, %v4551, %v4848
  %v4960 = vsel %vm17, %v4552, %v4850
  %v4961 = vsel %vm17, %v4553, %v4852
  %v4962 = vsel %vm17, %v4554, %v4854
  %v4963 = vsel %vm17, %v4555, %v4856
  %v4964 = vsel %vm17, %v4556, %v4858
  %v4965 = vsel %vm17, %v4557, %v4860
  %v4966 = vsel %vm17, %v4558, %v4862
  %v4967 = vsel %vm17, %v4559, %v4864
  %v4968 = vsel %vm17, %v4560, %v4866
  %v4969 = vsel %vm17, %v4561, %v4868
  %v4970 = vsel %vm17, %v4562, %v4870
  %v4971 = vsel %vm17, %v4563, %v4872
  %v4972 = vsel %vm17, %v4564, %v4874
  %v4973 = vsel %vm17, %v4565, %v4876
  %v4974 = vsel %vm17, %v4566, %v4878
  %v4975 = vld [vmem:[%s3 + $0xc] sm:$0x1]
  %v4976 = vlaneseq
  %v4977 = vshrl.u32 %v4976, 7
  %v4978 = vsub.s32 0, %v4977
  %v4979 = vrot.slane %v4975, %v4978
  %v4981 = vsel %vm17, %v4591, 0
  %v4984 = vsel %vm17, %v4592, 0
  %v4987 = vsel %vm17, %v4593, 0
  %v4990 = vsel %vm17, %v4594, 0
  %v4993 = vsel %vm17, %v4595, 0
  %v4996 = vsel %vm17, %v4596, 0
  %v4999 = vsel %vm17, %v4597, 0
  %v5002 = vsel %vm17, %v4598, 0
  %v5005 = vsel %vm17, %v4599, 0
  %v5008 = vsel %vm17, %v4600, 0
  %v5011 = vsel %vm17, %v4601, 0
  %v5014 = vsel %vm17, %v4602, 0
  %v5017 = vsel %vm17, %v4603, 0
  %v5020 = vsel %vm17, %v4604, 0
  %v5023 = vsel %vm17, %v4605, 0
  %v5026 = vsel %vm17, %v4606, 0
  %v5029 = vsel %vm17, %v4607, 0
  %v5032 = vsel %vm17, %v4608, 0
  %v5035 = vsel %vm17, %v4609, 0
  %v5038 = vsel %vm17, %v4610, 0
  %v5041 = vsel %vm17, %v4611, 0
  %v5044 = vsel %vm17, %v4612, 0
  %v5047 = vsel %vm17, %v4613, 0
  %v5050 = vsel %vm17, %v4614, 0
  %5052 = vmatprep.subr.mxu0 0.0
  %5053 = vmatpush1.msra.mxu0 %v4343
  %5054 = vmatprep.subr.mxu0 0.0
  %5055 = vmatpush1.msra.mxu0 %v4344
  %5056 = vmatprep.subr.mxu0 0.0
  %5057 = vmatpush1.msra.mxu0 %v4345
  %5058 = vmatprep.subr.mxu0 0.0
  %5059 = vmatpush1.msra.mxu0 %v4346
  %5060 = vmatprep.subr.mxu0 0.0
  %5061 = vmatpush1.msra.mxu0 %v4347
  %5062 = vmatprep.subr.mxu0 0.0
  %5063 = vmatpush1.msra.mxu0 %v4348
  %5064 = vmatprep.subr.mxu0 0.0
  %5065 = vmatpush1.msra.mxu0 %v4349
  %5066 = vmatprep.subr.mxu0 0.0
  %5067 = vmatpush1.msra.mxu0 %v4350
  %5068 = vmatprep.subr.mxu0 0.0
  %5069 = vmatpush1.msra.mxu0 %v4351
  %5070 = vmatprep.subr.mxu0 0.0
  %5071 = vmatpush1.msra.mxu0 %v4352
  %5072 = vmatprep.subr.mxu0 0.0
  %5073 = vmatpush1.msra.mxu0 %v4353
  %5074 = vmatprep.subr.mxu0 0.0
  %5075 = vmatpush1.msra.mxu0 %v4354
  %5076 = vmatprep.subr.mxu0 0.0
  %5077 = vmatpush1.msra.mxu0 %v4355
  %5078 = vmatprep.subr.mxu0 0.0
  %5079 = vmatpush1.msra.mxu0 %v4356
  %5080 = vmatprep.subr.mxu0 0.0
  %5081 = vmatpush1.msra.mxu0 %v4357
  %5082 = vmatprep.subr.mxu0 0.0
  %5083 = vmatpush1.msra.mxu0 %v4358
  %5084 = vmatprep.subr.mxu0 0.0
  %5085 = vmatpush1.msra.mxu0 %v4359
  %5086 = vmatprep.subr.mxu0 0.0
  %5087 = vmatpush1.msra.mxu0 %v4360
  %5088 = vmatprep.subr.mxu0 0.0
  %5089 = vmatpush1.msra.mxu0 %v4361
  %5090 = vmatprep.subr.mxu0 0.0
  %5091 = vmatpush1.msra.mxu0 %v4362
  %5092 = vmatprep.subr.mxu0 0.0
  %5093 = vmatpush1.msra.mxu0 %v4363
  %5094 = vmatprep.subr.mxu0 0.0
  %5095 = vmatpush1.msra.mxu0 %v4364
  %5096 = vmatprep.subr.mxu0 0.0
  %5097 = vmatpush1.msra.mxu0 %v4365
  %5098 = vmatprep.subr.mxu0 0.0
  %5099 = vmatpush1.msra.mxu0 %v4366
  %5100 = vmatprep.subr.mxu0 0.0
  %5101 = vmatpush1.msra.mxu0 %v4367
  %5102 = vmatprep.subr.mxu0 0.0
  %5103 = vmatpush1.msra.mxu0 %v4368
  %5104 = vmatprep.subr.mxu0 0.0
  %5105 = vmatpush1.msra.mxu0 %v4369
  %5106 = vmatprep.subr.mxu0 0.0
  %5107 = vmatpush1.msra.mxu0 %v4370
  %5108 = vmatprep.subr.mxu0 0.0
  %5109 = vmatpush1.msra.mxu0 %v4371
  %5110 = vmatprep.subr.mxu0 0.0
  %5111 = vmatpush1.msra.mxu0 %v4372
  %5112 = vmatprep.subr.mxu0 0.0
  %5113 = vmatpush1.msra.mxu0 %v4373
  %5114 = vmatprep.subr.mxu0 0.0
  %5115 = vmatpush1.msra.mxu0 %v4374
  %5116 = vmatprep.mubr.f32.mxu0 %v4927
  %5117 = vmatmul.mubr.f32.gmra.mrb[0].mxu0 %v4903
  %v5118 = vpop.f32.mrb[0].mxu0
  %v5119 = vadd.f32 %v4979, %v5118
  %v5120 = vpop.f32.mrb[0].mxu0
  %5121 = vmatprep.mubr.f32.mxu0 %v4928
  %5122 = vmatmul.mubr.f32.gmra.mrb[0].mxu0 %v4904
  %v5123 = vpop.f32.mrb[0].mxu0
  %v5124 = vadd.f32 %v4979, %v5123
  %v5125 = vpop.f32.mrb[0].mxu0
  %5126 = vmatprep.mubr.f32.mxu0 %v4929
  %5127 = vmatmul.mubr.f32.gmra.mrb[0].mxu0 %v4905
  %v5128 = vpop.f32.mrb[0].mxu0
  %v5129 = vadd.f32 %v4979, %v5128
  %v5130 = vpop.f32.mrb[0].mxu0
  %5131 = vmatprep.mubr.f32.mxu0 %v4930
  %5132 = vmatmul.mubr.f32.gmra.mrb[0].mxu0 %v4906
  %v5133 = vpop.f32.mrb[0].mxu0
  %v5134 = vadd.f32 %v4979, %v5133
  %v5135 = vpop.f32.mrb[0].mxu0
  %5136 = vmatprep.mubr.f32.mxu0 %v4931
  %5137 = vmatmul.mubr.f32.gmra.mrb[0].mxu0 %v4907
  %v5138 = vpop.f32.mrb[0].mxu0
  %v5139 = vadd.f32 %v4979, %v5138
  %v5140 = vpop.f32.mrb[0].mxu0
  %5141 = vmatprep.mubr.f32.mxu0 %v4932
  %5142 = vmatmul.mubr.f32.gmra.mrb[0].mxu0 %v4908
  %v5143 = vpop.f32.mrb[0].mxu0
  %v5144 = vadd.f32 %v4979, %v5143
  %v5145 = vpop.f32.mrb[0].mxu0
  %5146 = vmatprep.mubr.f32.mxu0 %v4933
  %5147 = vmatmul.mubr.f32.gmra.mrb[0].mxu0 %v4909
  %v5148 = vpop.f32.mrb[0].mxu0
  %v5149 = vadd.f32 %v4979, %v5148
  %v5150 = vpop.f32.mrb[0].mxu0
  %5151 = vmatprep.mubr.f32.mxu0 %v4934
  %5152 = vmatmul.mubr.f32.gmra.mrb[0].mxu0 %v4910
  %v5153 = vpop.f32.mrb[0].mxu0
  %v5154 = vadd.f32 %v4979, %v5153
  %v5155 = vpop.f32.mrb[0].mxu0
  %5156 = vmatprep.mubr.f32.mxu0 %v4935
  %5157 = vmatmul.mubr.f32.gmra.mrb[0].mxu0 %v4911
  %v5158 = vpop.f32.mrb[0].mxu0
  %v5159 = vadd.f32 %v4979, %v5158
  %v5160 = vpop.f32.mrb[0].mxu0
  %5161 = vmatprep.mubr.f32.mxu0 %v4936
  %5162 = vmatmul.mubr.f32.gmra.mrb[0].mxu0 %v4912
  %v5163 = vpop.f32.mrb[0].mxu0
  %v5164 = vadd.f32 %v4979, %v5163
  %v5165 = vpop.f32.mrb[0].mxu0
  %5166 = vmatprep.mubr.f32.mxu0 %v4937
  %5167 = vmatmul.mubr.f32.gmra.mrb[0].mxu0 %v4913
  %v5168 = vpop.f32.mrb[0].mxu0
  %v5169 = vadd.f32 %v4979, %v5168
  %v5170 = vpop.f32.mrb[0].mxu0
  %5171 = vmatprep.mubr.f32.mxu0 %v4938
  %5172 = vmatmul.mubr.f32.gmra.mrb[0].mxu0 %v4914
  %v5173 = vpop.f32.mrb[0].mxu0
  %v5174 = vadd.f32 %v4979, %v5173
  %v5175 = vpop.f32.mrb[0].mxu0
  %5176 = vmatprep.mubr.f32.mxu0 %v4939
  %5177 = vmatmul.mubr.f32.gmra.mrb[0].mxu0 %v4915
  %v5178 = vpop.f32.mrb[0].mxu0
  %v5179 = vadd.f32 %v4979, %v5178
  %v5180 = vpop.f32.mrb[0].mxu0
  %5181 = vmatprep.mubr.f32.mxu0 %v4940
  %5182 = vmatmul.mubr.f32.gmra.mrb[0].mxu0 %v4916
  %v5183 = vpop.f32.mrb[0].mxu0
  %v5184 = vadd.f32 %v4979, %v5183
  %v5185 = vpop.f32.mrb[0].mxu0
  %5186 = vmatprep.mubr.f32.mxu0 %v4941
  %5187 = vmatmul.mubr.f32.gmra.mrb[0].mxu0 %v4917
  %v5188 = vpop.f32.mrb[0].mxu0
  %v5189 = vadd.f32 %v4979, %v5188
  %v5190 = vpop.f32.mrb[0].mxu0
  %5191 = vmatprep.mubr.f32.mxu0 %v4942
  %5192 = vmatmul.mubr.f32.gmra.mrb[0].mxu0 %v4918
  %v5193 = vpop.f32.mrb[0].mxu0
  %v5194 = vadd.f32 %v4979, %v5193
  %v5195 = vpop.f32.mrb[0].mxu0
  %5196 = vmatprep.mubr.f32.mxu0 %v4943
  %5197 = vmatmul.mubr.f32.gmra.mrb[0].mxu0 %v4919
  %v5198 = vpop.f32.mrb[0].mxu0
  %v5199 = vadd.f32 %v4979, %v5198
  %v5200 = vpop.f32.mrb[0].mxu0
  %5201 = vmatprep.mubr.f32.mxu0 %v4944
  %5202 = vmatmul.mubr.f32.gmra.mrb[0].mxu0 %v4920
  %v5203 = vpop.f32.mrb[0].mxu0
  %v5204 = vadd.f32 %v4979, %v5203
  %v5205 = vpop.f32.mrb[0].mxu0
  %5206 = vmatprep.mubr.f32.mxu0 %v4945
  %5207 = vmatmul.mubr.f32.gmra.mrb[0].mxu0 %v4921
  %v5208 = vpop.f32.mrb[0].mxu0
  %v5209 = vadd.f32 %v4979, %v5208
  %v5210 = vpop.f32.mrb[0].mxu0
  %5211 = vmatprep.mubr.f32.mxu0 %v4946
  %5212 = vmatmul.mubr.f32.gmra.mrb[0].mxu0 %v4922
  %v5213 = vpop.f32.mrb[0].mxu0
  %v5214 = vadd.f32 %v4979, %v5213
  %v5215 = vpop.f32.mrb[0].mxu0
  %5216 = vmatprep.mubr.f32.mxu0 %v4947
  %5217 = vmatmul.mubr.f32.gmra.mrb[0].mxu0 %v4923
  %v5218 = vpop.f32.mrb[0].mxu0
  %v5219 = vadd.f32 %v4979, %v5218
  %v5220 = vpop.f32.mrb[0].mxu0
  %5221 = vmatprep.mubr.f32.mxu0 %v4948
  %5222 = vmatmul.mubr.f32.gmra.mrb[0].mxu0 %v4924
  %v5223 = vpop.f32.mrb[0].mxu0
  %v5224 = vadd.f32 %v4979, %v5223
  %v5225 = vpop.f32.mrb[0].mxu0
  %5226 = vmatprep.mubr.f32.mxu0 %v4949
  %5227 = vmatmul.mubr.f32.gmra.mrb[0].mxu0 %v4925
  %v5228 = vpop.f32.mrb[0].mxu0
  %v5229 = vadd.f32 %v4979, %v5228
  %v5230 = vpop.f32.mrb[0].mxu0
  %5231 = vmatprep.mubr.f32.mxu0 %v4950
  %5232 = vmatmul.mubr.f32.gmra.mrb[0].mxu0 %v4926
  %v5233 = vpop.f32.mrb[0].mxu0
  %v5234 = vadd.f32 %v4979, %v5233
  %v5235 = vpop.f32.mrb[0].mxu0
  %5236 = vdwg.mxu0
  %5237 = vmatprep.subr.mxu0 0.0
  %5238 = vmatpush1.msra.mxu0 %v4375
  %5239 = vmatprep.subr.mxu0 0.0
  %5240 = vmatpush1.msra.mxu0 %v4376
  %5241 = vmatprep.subr.mxu0 0.0
  %5242 = vmatpush1.msra.mxu0 %v4377
  %5243 = vmatprep.subr.mxu0 0.0
  %5244 = vmatpush1.msra.mxu0 %v4378
  %5245 = vmatprep.subr.mxu0 0.0
  %5246 = vmatpush1.msra.mxu0 %v4379
  %5247 = vmatprep.subr.mxu0 0.0
  %5248 = vmatpush1.msra.mxu0 %v4380
  %5249 = vmatprep.subr.mxu0 0.0
  %5250 = vmatpush1.msra.mxu0 %v4381
  %5251 = vmatprep.subr.mxu0 0.0
  %5252 = vmatpush1.msra.mxu0 %v4382
  %5253 = vmatprep.subr.mxu0 0.0
  %5254 = vmatpush1.msra.mxu0 %v4383
  %5255 = vmatprep.subr.mxu0 0.0
  %5256 = vmatpush1.msra.mxu0 %v4384
  %5257 = vmatprep.subr.mxu0 0.0
  %5258 = vmatpush1.msra.mxu0 %v4385
  %5259 = vmatprep.subr.mxu0 0.0
  %5260 = vmatpush1.msra.mxu0 %v4386
  %5261 = vmatprep.subr.mxu0 0.0
  %5262 = vmatpush1.msra.mxu0 %v4387
  %5263 = vmatprep.subr.mxu0 0.0
  %5264 = vmatpush1.msra.mxu0 %v4388
  %5265 = vmatprep.subr.mxu0 0.0
  %5266 = vmatpush1.msra.mxu0 %v4389
  %5267 = vmatprep.subr.mxu0 0.0
  %5268 = vmatpush1.msra.mxu0 %v4390
  %5269 = vmatprep.subr.mxu0 0.0
  %5270 = vmatpush1.msra.mxu0 %v4391
  %5271 = vmatprep.subr.mxu0 0.0
  %5272 = vmatpush1.msra.mxu0 %v4392
  %5273 = vmatprep.subr.mxu0 0.0
  %5274 = vmatpush1.msra.mxu0 %v4393
  %5275 = vmatprep.subr.mxu0 0.0
  %5276 = vmatpush1.msra.mxu0 %v4394
  %5277 = vmatprep.subr.mxu0 0.0
  %5278 = vmatpush1.msra.mxu0 %v4395
  %5279 = vmatprep.subr.mxu0 0.0
  %5280 = vmatpush1.msra.mxu0 %v4396
  %5281 = vmatprep.subr.mxu0 0.0
  %5282 = vmatpush1.msra.mxu0 %v4397
  %5283 = vmatprep.subr.mxu0 0.0
  %5284 = vmatpush1.msra.mxu0 %v4398
  %5285 = vmatprep.subr.mxu0 0.0
  %5286 = vmatpush1.msra.mxu0 0.0
  %5287 = vmatprep.subr.mxu0 0.0
  %5288 = vmatpush1.msra.mxu0 0.0
  %5289 = vmatprep.subr.mxu0 0.0
  %5290 = vmatpush1.msra.mxu0 0.0
  %5291 = vmatprep.subr.mxu0 0.0
  %5292 = vmatpush1.msra.mxu0 0.0
  %5293 = vmatprep.subr.mxu0 0.0
  %5294 = vmatpush1.msra.mxu0 0.0
  %5295 = vmatprep.subr.mxu0 0.0
  %5296 = vmatpush1.msra.mxu0 0.0
  %5297 = vmatprep.subr.mxu0 0.0
  %5298 = vmatpush1.msra.mxu0 0.0
  %5299 = vmatprep.subr.mxu0 0.0
  %5300 = vmatpush1.msra.mxu0 0.0
  %5301 = vmatprep.mubr.f32.mxu0 %v4981
  %5302 = vmatmul.mubr.f32.gmra.mrb[0].mxu0 %v4951
  %v5303 = vpop.f32.mrb[0].mxu0
  %v5304 = vadd.f32 %v5119, %v5303
  %v5305 = vpop.f32.mrb[0].mxu0
  %5306 = vmatprep.mubr.f32.mxu0 %v4984
  %5307 = vmatmul.mubr.f32.gmra.mrb[0].mxu0 %v4952
  %v5308 = vpop.f32.mrb[0].mxu0
  %v5309 = vadd.f32 %v5124, %v5308
  %v5310 = vpop.f32.mrb[0].mxu0
  %5311 = vmatprep.mubr.f32.mxu0 %v4987
  %5312 = vmatmul.mubr.f32.gmra.mrb[0].mxu0 %v4953
  %v5313 = vpop.f32.mrb[0].mxu0
  %v5314 = vadd.f32 %v5129, %v5313
  %v5315 = vpop.f32.mrb[0].mxu0
  %5316 = vmatprep.mubr.f32.mxu0 %v4990
  %5317 = vmatmul.mubr.f32.gmra.mrb[0].mxu0 %v4954
  %v5318 = vpop.f32.mrb[0].mxu0
  %v5319 = vadd.f32 %v5134, %v5318
  %v5320 = vpop.f32.mrb[0].mxu0
  %5321 = vmatprep.mubr.f32.mxu0 %v4993
  %5322 = vmatmul.mubr.f32.gmra.mrb[0].mxu0 %v4955
  %v5323 = vpop.f32.mrb[0].mxu0
  %v5324 = vadd.f32 %v5139, %v5323
  %v5325 = vpop.f32.mrb[0].mxu0
  %5326 = vmatprep.mubr.f32.mxu0 %v4996
  %5327 = vmatmul.mubr.f32.gmra.mrb[0].mxu0 %v4956
  %v5328 = vpop.f32.mrb[0].mxu0
  %v5329 = vadd.f32 %v5144, %v5328
  %v5330 = vpop.f32.mrb[0].mxu0
  %5331 = vmatprep.mubr.f32.mxu0 %v4999
  %5332 = vmatmul.mubr.f32.gmra.mrb[0].mxu0 %v4957
  %v5333 = vpop.f32.mrb[0].mxu0
  %v5334 = vadd.f32 %v5149, %v5333
  %v5335 = vpop.f32.mrb[0].mxu0
  %5336 = vmatprep.mubr.f32.mxu0 %v5002
  %5337 = vmatmul.mubr.f32.gmra.mrb[0].mxu0 %v4958
  %v5338 = vpop.f32.mrb[0].mxu0
  %v5339 = vadd.f32 %v5154, %v5338
  %v5340 = vpop.f32.mrb[0].mxu0
  %5341 = vmatprep.mubr.f32.mxu0 %v5005
  %5342 = vmatmul.mubr.f32.gmra.mrb[0].mxu0 %v4959
  %v5343 = vpop.f32.mrb[0].mxu0
  %v5344 = vadd.f32 %v5159, %v5343
  %v5345 = vpop.f32.mrb[0].mxu0
  %5346 = vmatprep.mubr.f32.mxu0 %v5008
  %5347 = vmatmul.mubr.f32.gmra.mrb[0].mxu0 %v4960
  %v5348 = vpop.f32.mrb[0].mxu0
  %v5349 = vadd.f32 %v5164, %v5348
  %v5350 = vpop.f32.mrb[0].mxu0
  %5351 = vmatprep.mubr.f32.mxu0 %v5011
  %5352 = vmatmul.mubr.f32.gmra.mrb[0].mxu0 %v4961
  %v5353 = vpop.f32.mrb[0].mxu0
  %v5354 = vadd.f32 %v5169, %v5353
  %v5355 = vpop.f32.mrb[0].mxu0
  %5356 = vmatprep.mubr.f32.mxu0 %v5014
  %5357 = vmatmul.mubr.f32.gmra.mrb[0].mxu0 %v4962
  %v5358 = vpop.f32.mrb[0].mxu0
  %v5359 = vadd.f32 %v5174, %v5358
  %v5360 = vpop.f32.mrb[0].mxu0
  %5361 = vmatprep.mubr.f32.mxu0 %v5017
  %5362 = vmatmul.mubr.f32.gmra.mrb[0].mxu0 %v4963
  %v5363 = vpop.f32.mrb[0].mxu0
  %v5364 = vadd.f32 %v5179, %v5363
  %v5365 = vpop.f32.mrb[0].mxu0
  %5366 = vmatprep.mubr.f32.mxu0 %v5020
  %5367 = vmatmul.mubr.f32.gmra.mrb[0].mxu0 %v4964
  %v5368 = vpop.f32.mrb[0].mxu0
  %v5369 = vadd.f32 %v5184, %v5368
  %v5370 = vpop.f32.mrb[0].mxu0
  %5371 = vmatprep.mubr.f32.mxu0 %v5023
  %5372 = vmatmul.mubr.f32.gmra.mrb[0].mxu0 %v4965
  %v5373 = vpop.f32.mrb[0].mxu0
  %v5374 = vadd.f32 %v5189, %v5373
  %v5375 = vpop.f32.mrb[0].mxu0
  %5376 = vmatprep.mubr.f32.mxu0 %v5026
  %5377 = vmatmul.mubr.f32.gmra.mrb[0].mxu0 %v4966
  %v5378 = vpop.f32.mrb[0].mxu0
  %v5379 = vadd.f32 %v5194, %v5378
  %v5380 = vpop.f32.mrb[0].mxu0
  %5381 = vmatprep.mubr.f32.mxu0 %v5029
  %5382 = vmatmul.mubr.f32.gmra.mrb[0].mxu0 %v4967
  %v5383 = vpop.f32.mrb[0].mxu0
  %v5384 = vadd.f32 %v5199, %v5383
  %v5385 = vpop.f32.mrb[0].mxu0
  %5386 = vmatprep.mubr.f32.mxu0 %v5032
  %5387 = vmatmul.mubr.f32.gmra.mrb[0].mxu0 %v4968
  %v5388 = vpop.f32.mrb[0].mxu0
  %v5389 = vadd.f32 %v5204, %v5388
  %v5390 = vpop.f32.mrb[0].mxu0
  %5391 = vmatprep.mubr.f32.mxu0 %v5035
  %5392 = vmatmul.mubr.f32.gmra.mrb[0].mxu0 %v4969
  %v5393 = vpop.f32.mrb[0].mxu0
  %v5394 = vadd.f32 %v5209, %v5393
  %v5395 = vpop.f32.mrb[0].mxu0
  %5396 = vmatprep.mubr.f32.mxu0 %v5038
  %5397 = vmatmul.mubr.f32.gmra.mrb[0].mxu0 %v4970
  %v5398 = vpop.f32.mrb[0].mxu0
  %v5399 = vadd.f32 %v5214, %v5398
  %v5400 = vpop.f32.mrb[0].mxu0
  %5401 = vmatprep.mubr.f32.mxu0 %v5041
  %5402 = vmatmul.mubr.f32.gmra.mrb[0].mxu0 %v4971
  %v5403 = vpop.f32.mrb[0].mxu0
  %v5404 = vadd.f32 %v5219, %v5403
  %v5405 = vpop.f32.mrb[0].mxu0
  %5406 = vmatprep.mubr.f32.mxu0 %v5044
  %5407 = vmatmul.mubr.f32.gmra.mrb[0].mxu0 %v4972
  %v5408 = vpop.f32.mrb[0].mxu0
  %v5409 = vadd.f32 %v5224, %v5408
  %v5410 = vpop.f32.mrb[0].mxu0
  %5411 = vmatprep.mubr.f32.mxu0 %v5047
  %5412 = vmatmul.mubr.f32.gmra.mrb[0].mxu0 %v4973
  %v5413 = vpop.f32.mrb[0].mxu0
  %v5414 = vadd.f32 %v5229, %v5413
  %v5415 = vpop.f32.mrb[0].mxu0
  %5416 = vmatprep.mubr.f32.mxu0 %v5050
  %5417 = vmatmul.mubr.f32.gmra.mrb[0].mxu0 %v4974
  %v5418 = vpop.f32.mrb[0].mxu0
  %v5419 = vadd.f32 %v5234, %v5418
  %v5420 = vpop.f32.mrb[0].mxu0
  %5421 = vdwg.mxu0
  %v5422 = vsel %vm64, %v5304, 0.0
  %v5423 = vsel %vm65, %v5309, 0.0
  %v5424 = vsel %vm66, %v5314, 0.0
  %v5425 = vsel %vm64, %v5319, 0.0
  %v5426 = vsel %vm65, %v5324, 0.0
  %v5427 = vsel %vm66, %v5329, 0.0
  %v5428 = vsel %vm64, %v5334, 0.0
  %v5429 = vsel %vm65, %v5339, 0.0
  %v5430 = vsel %vm66, %v5344, 0.0
  %v5431 = vsel %vm64, %v5349, 0.0
  %v5432 = vsel %vm65, %v5354, 0.0
  %v5433 = vsel %vm66, %v5359, 0.0
  %v5434 = vsel %vm64, %v5364, 0.0
  %v5435 = vsel %vm65, %v5369, 0.0
  %v5436 = vsel %vm66, %v5374, 0.0
  %v5437 = vsel %vm64, %v5379, 0.0
  %v5438 = vsel %vm65, %v5384, 0.0
  %v5439 = vsel %vm66, %v5389, 0.0
  %v5440 = vsel %vm64, %v5394, 0.0
  %v5441 = vsel %vm65, %v5399, 0.0
  %v5442 = vsel %vm66, %v5404, 0.0
  %v5443 = vsel %vm64, %v5409, 0.0
  %v5444 = vsel %vm65, %v5414, 0.0
  %v5445 = vsel %vm66, %v5419, 0.0
  %v5446 = vmul.f32 %v5422, %v5422
  %v5447 = vmul.f32 %v5423, %v5423
  %v5448 = vmul.f32 %v5424, %v5424
  %v5449 = vmul.f32 %v5425, %v5425
  %v5450 = vmul.f32 %v5426, %v5426
  %v5451 = vmul.f32 %v5427, %v5427
  %v5452 = vmul.f32 %v5428, %v5428
  %v5453 = vmul.f32 %v5429, %v5429
  %v5454 = vmul.f32 %v5430, %v5430
  %v5455 = vmul.f32 %v5431, %v5431
  %v5456 = vmul.f32 %v5432, %v5432
  %v5457 = vmul.f32 %v5433, %v5433
  %v5458 = vmul.f32 %v5434, %v5434
  %v5459 = vmul.f32 %v5435, %v5435
  %v5460 = vmul.f32 %v5436, %v5436
  %v5461 = vmul.f32 %v5437, %v5437
  %v5462 = vmul.f32 %v5438, %v5438
  %v5463 = vmul.f32 %v5439, %v5439
  %v5464 = vmul.f32 %v5440, %v5440
  %v5465 = vmul.f32 %v5441, %v5441
  %v5466 = vmul.f32 %v5442, %v5442
  %v5467 = vmul.f32 %v5443, %v5443
  %v5468 = vmul.f32 %v5444, %v5444
  %v5469 = vmul.f32 %v5445, %v5445
  %5494 = vrot.lane.b32.xlu0 %v5446, 64
  %v5495 = vpop.permute.xlu0 %5494
  %5496 = vrot.lane.b32.xlu0 %v5447, 64
  %v5497 = vpop.permute.xlu0 %5496
  %5498 = vrot.lane.b32.xlu0 %v5448, 64
  %v5499 = vpop.permute.xlu0 %5498
  %5500 = vrot.lane.b32.xlu0 %v5449, 64
  %v5501 = vpop.permute.xlu0 %5500
  %5502 = vrot.lane.b32.xlu0 %v5450, 64
  %v5503 = vpop.permute.xlu0 %5502
  %5504 = vrot.lane.b32.xlu0 %v5451, 64
  %v5505 = vpop.permute.xlu0 %5504
  %5506 = vrot.lane.b32.xlu0 %v5452, 64
  %v5507 = vpop.permute.xlu0 %5506
  %5508 = vrot.lane.b32.xlu0 %v5453, 64
  %v5509 = vpop.permute.xlu0 %5508
  %5510 = vrot.lane.b32.xlu0 %v5454, 64
  %v5511 = vpop.permute.xlu0 %5510
  %5512 = vrot.lane.b32.xlu0 %v5455, 64
  %v5513 = vpop.permute.xlu0 %5512
  %5514 = vrot.lane.b32.xlu0 %v5456, 64
  %v5515 = vpop.permute.xlu0 %5514
  %5516 = vrot.lane.b32.xlu0 %v5457, 64
  %v5517 = vpop.permute.xlu0 %5516
  %5518 = vrot.lane.b32.xlu0 %v5458, 64
  %v5519 = vpop.permute.xlu0 %5518
  %5520 = vrot.lane.b32.xlu0 %v5459, 64
  %v5521 = vpop.permute.xlu0 %5520
  %5522 = vrot.lane.b32.xlu0 %v5460, 64
  %v5523 = vpop.permute.xlu0 %5522
  %5524 = vrot.lane.b32.xlu0 %v5461, 64
  %v5525 = vpop.permute.xlu0 %5524
  %5526 = vrot.lane.b32.xlu0 %v5462, 64
  %v5527 = vpop.permute.xlu0 %5526
  %5528 = vrot.lane.b32.xlu0 %v5463, 64
  %v5529 = vpop.permute.xlu0 %5528
  %5530 = vrot.lane.b32.xlu0 %v5464, 64
  %v5531 = vpop.permute.xlu0 %5530
  %5532 = vrot.lane.b32.xlu0 %v5465, 64
  %v5533 = vpop.permute.xlu0 %5532
  %5534 = vrot.lane.b32.xlu0 %v5466, 64
  %v5535 = vpop.permute.xlu0 %5534
  %5536 = vrot.lane.b32.xlu0 %v5467, 64
  %v5537 = vpop.permute.xlu0 %5536
  %5538 = vrot.lane.b32.xlu0 %v5468, 64
  %v5539 = vpop.permute.xlu0 %5538
  %5540 = vrot.lane.b32.xlu0 %v5469, 64
  %v5541 = vpop.permute.xlu0 %5540
  %v5566 = vsel %vm17, %v5422, %v5495
  %v5567 = vsel %vm17, %v5423, %v5497
  %v5568 = vsel %vm17, %v5424, %v5499
  %v5569 = vsel %vm17, %v5425, %v5501
  %v5570 = vsel %vm17, %v5426, %v5503
  %v5571 = vsel %vm17, %v5427, %v5505
  %v5572 = vsel %vm17, %v5428, %v5507
  %v5573 = vsel %vm17, %v5429, %v5509
  %v5574 = vsel %vm17, %v5430, %v5511
  %v5575 = vsel %vm17, %v5431, %v5513
  %v5576 = vsel %vm17, %v5432, %v5515
  %v5577 = vsel %vm17, %v5433, %v5517
  %v5578 = vsel %vm17, %v5434, %v5519
  %v5579 = vsel %vm17, %v5435, %v5521
  %v5580 = vsel %vm17, %v5436, %v5523
  %v5581 = vsel %vm17, %v5437, %v5525
  %v5582 = vsel %vm17, %v5438, %v5527
  %v5583 = vsel %vm17, %v5439, %v5529
  %v5584 = vsel %vm17, %v5440, %v5531
  %v5585 = vsel %vm17, %v5441, %v5533
  %v5586 = vsel %vm17, %v5442, %v5535
  %v5587 = vsel %vm17, %v5443, %v5537
  %v5588 = vsel %vm17, %v5444, %v5539
  %v5589 = vsel %vm17, %v5445, %v5541
  %v5590 = vadd.f32 %v5566, %v5567
  %v5591 = vadd.f32 %v5590, %v5568
  %v5592 = vadd.f32 %v5591, %v5569
  %v5593 = vadd.f32 %v5592, %v5570
  %v5594 = vadd.f32 %v5593, %v5571
  %v5595 = vadd.f32 %v5594, %v5572
  %v5596 = vadd.f32 %v5595, %v5573
  %v5597 = vadd.f32 %v5596, %v5574
  %v5598 = vadd.f32 %v5597, %v5575
  %v5599 = vadd.f32 %v5598, %v5576
  %v5600 = vadd.f32 %v5599, %v5577
  %v5601 = vadd.f32 %v5600, %v5578
  %v5602 = vadd.f32 %v5601, %v5579
  %v5603 = vadd.f32 %v5602, %v5580
  %v5604 = vadd.f32 %v5603, %v5581
  %v5605 = vadd.f32 %v5604, %v5582
  %v5606 = vadd.f32 %v5605, %v5583
  %v5607 = vadd.f32 %v5606, %v5584
  %v5608 = vadd.f32 %v5607, %v5585
  %v5609 = vadd.f32 %v5608, %v5586
  %v5610 = vadd.f32 %v5609, %v5587
  %v5611 = vadd.f32 %v5610, %v5588
  %v5612 = vadd.f32 %v5611, %v5589
  %v5613 = vrot.slane %v5612, 4
  %v5614 = vadd.f32 %v5612, %v5613
  %v5615 = vrot.slane %v5614, 2
  %v5616 = vadd.f32 %v5614, %v5615
  %v5617 = vrot.slane %v5616, 1
  %v5618 = vadd.f32 %v5616, %v5617
  %v5619 = vmul.f32 %v5618, 0.0078125
  %v5620 = vmul.f32 %v5619, %v5619
  %5622 = vrot.lane.b32.xlu0 %v5620, 64
  %v5623 = vpop.permute.xlu0 %5622
  %v5625 = vsub.f32 %v5619, %v5623
  %v5626 = vmax.f32 %v5625, 0.0
  %v5627 = vld [vmem:[%s3 + $0xf] sm:$0x1]
  %v5628 = vsub.f32 %v5304, %v5619
  %v5629 = vsub.f32 %v5309, %v5619
  %v5630 = vsub.f32 %v5314, %v5619
  %v5631 = vsub.f32 %v5319, %v5619
  %v5632 = vsub.f32 %v5324, %v5619
  %v5633 = vsub.f32 %v5329, %v5619
  %v5634 = vsub.f32 %v5334, %v5619
  %v5635 = vsub.f32 %v5339, %v5619
  %v5636 = vsub.f32 %v5344, %v5619
  %v5637 = vsub.f32 %v5349, %v5619
  %v5638 = vsub.f32 %v5354, %v5619
  %v5639 = vsub.f32 %v5359, %v5619
  %v5640 = vsub.f32 %v5364, %v5619
  %v5641 = vsub.f32 %v5369, %v5619
  %v5642 = vsub.f32 %v5374, %v5619
  %v5643 = vsub.f32 %v5379, %v5619
  %v5644 = vsub.f32 %v5384, %v5619
  %v5645 = vsub.f32 %v5389, %v5619
  %v5646 = vsub.f32 %v5394, %v5619
  %v5647 = vsub.f32 %v5399, %v5619
  %v5648 = vsub.f32 %v5404, %v5619
  %v5649 = vsub.f32 %v5409, %v5619
  %v5650 = vsub.f32 %v5414, %v5619
  %v5651 = vsub.f32 %v5419, %v5619
  %v5652 = vadd.f32 %v5626, 1e-05
  %v5653 = vrsqrt.pop %v5652
  %v5654 = vlaneseq
  %v5655 = vshrl.u32 %v5654, 7
  %v5656 = vsub.s32 0, %v5655
  %v5657 = vrot.slane %v5653, %v5656
  %5659 = vrot.lane.b32.xlu0 %v5657, 64
  %v5660 = vpop.permute.xlu0 %5659
  %v5662 = vmul.f32 %v5628, %v5660
  %v5663 = vmul.f32 %v5629, %v5660
  %v5664 = vmul.f32 %v5630, %v5660
  %v5665 = vmul.f32 %v5631, %v5660
  %v5666 = vmul.f32 %v5632, %v5660
  %v5667 = vmul.f32 %v5633, %v5660
  %v5668 = vmul.f32 %v5634, %v5660
  %v5669 = vmul.f32 %v5635, %v5660
  %v5670 = vmul.f32 %v5636, %v5660
  %v5671 = vmul.f32 %v5637, %v5660
  %v5672 = vmul.f32 %v5638, %v5660
  %v5673 = vmul.f32 %v5639, %v5660
  %v5674 = vmul.f32 %v5640, %v5660
  %v5675 = vmul.f32 %v5641, %v5660
  %v5676 = vmul.f32 %v5642, %v5660
  %v5677 = vmul.f32 %v5643, %v5660
  %v5678 = vmul.f32 %v5644, %v5660
  %v5679 = vmul.f32 %v5645, %v5660
  %v5680 = vmul.f32 %v5646, %v5660
  %v5681 = vmul.f32 %v5647, %v5660
  %v5682 = vmul.f32 %v5648, %v5660
  %v5683 = vmul.f32 %v5649, %v5660
  %v5684 = vmul.f32 %v5650, %v5660
  %v5685 = vmul.f32 %v5651, %v5660
  %v5686 = vlaneseq
  %v5687 = vshrl.u32 %v5686, 7
  %v5688 = vsub.s32 0, %v5687
  %v5689 = vrot.slane %v5627, %v5688
  %v5690 = vmul.f32 %v5689, %v5662
  %v5691 = vmul.f32 %v5689, %v5663
  %v5692 = vmul.f32 %v5689, %v5664
  %v5693 = vmul.f32 %v5689, %v5665
  %v5694 = vmul.f32 %v5689, %v5666
  %v5695 = vmul.f32 %v5689, %v5667
  %v5696 = vmul.f32 %v5689, %v5668
  %v5697 = vmul.f32 %v5689, %v5669
  %v5698 = vmul.f32 %v5689, %v5670
  %v5699 = vmul.f32 %v5689, %v5671
  %v5700 = vmul.f32 %v5689, %v5672
  %v5701 = vmul.f32 %v5689, %v5673
  %v5702 = vmul.f32 %v5689, %v5674
  %v5703 = vmul.f32 %v5689, %v5675
  %v5704 = vmul.f32 %v5689, %v5676
  %v5705 = vmul.f32 %v5689, %v5677
  %v5706 = vmul.f32 %v5689, %v5678
  %v5707 = vmul.f32 %v5689, %v5679
  %v5708 = vmul.f32 %v5689, %v5680
  %v5709 = vmul.f32 %v5689, %v5681
  %v5710 = vmul.f32 %v5689, %v5682
  %v5711 = vmul.f32 %v5689, %v5683
  %v5712 = vmul.f32 %v5689, %v5684
  %v5713 = vmul.f32 %v5689, %v5685
  %v5714 = vld [vmem:[%s3 + $0x10] sm:$0x1]
  %v5715 = vlaneseq
  %v5716 = vshrl.u32 %v5715, 7
  %v5717 = vsub.s32 0, %v5716
  %v5718 = vrot.slane %v5714, %v5717
  %v5719 = vadd.f32 %v5690, %v5718
  %v5720 = vadd.f32 %v5691, %v5718
  %v5721 = vadd.f32 %v5692, %v5718
  %v5722 = vadd.f32 %v5693, %v5718
  %v5723 = vadd.f32 %v5694, %v5718
  %v5724 = vadd.f32 %v5695, %v5718
  %v5725 = vadd.f32 %v5696, %v5718
  %v5726 = vadd.f32 %v5697, %v5718
  %v5727 = vadd.f32 %v5698, %v5718
  %v5728 = vadd.f32 %v5699, %v5718
  %v5729 = vadd.f32 %v5700, %v5718
  %v5730 = vadd.f32 %v5701, %v5718
  %v5731 = vadd.f32 %v5702, %v5718
  %v5732 = vadd.f32 %v5703, %v5718
  %v5733 = vadd.f32 %v5704, %v5718
  %v5734 = vadd.f32 %v5705, %v5718
  %v5735 = vadd.f32 %v5706, %v5718
  %v5736 = vadd.f32 %v5707, %v5718
  %v5737 = vadd.f32 %v5708, %v5718
  %v5738 = vadd.f32 %v5709, %v5718
  %v5739 = vadd.f32 %v5710, %v5718
  %v5740 = vadd.f32 %v5711, %v5718
  %v5741 = vadd.f32 %v5712, %v5718
  %v5742 = vadd.f32 %v5713, %v5718
  %v5743 = vmax.f32 %v5719, 0.0
  %v5744 = vmax.f32 %v5720, 0.0
  %v5745 = vmax.f32 %v5721, 0.0
  %v5746 = vmax.f32 %v5722, 0.0
  %v5747 = vmax.f32 %v5723, 0.0
  %v5748 = vmax.f32 %v5724, 0.0
  %v5749 = vmax.f32 %v5725, 0.0
  %v5750 = vmax.f32 %v5726, 0.0
  %v5751 = vmax.f32 %v5727, 0.0
  %v5752 = vmax.f32 %v5728, 0.0
  %v5753 = vmax.f32 %v5729, 0.0
  %v5754 = vmax.f32 %v5730, 0.0
  %v5755 = vmax.f32 %v5731, 0.0
  %v5756 = vmax.f32 %v5732, 0.0
  %v5757 = vmax.f32 %v5733, 0.0
  %v5758 = vmax.f32 %v5734, 0.0
  %v5759 = vmax.f32 %v5735, 0.0
  %v5760 = vmax.f32 %v5736, 0.0
  %v5761 = vmax.f32 %v5737, 0.0
  %v5762 = vmax.f32 %v5738, 0.0
  %v5763 = vmax.f32 %v5739, 0.0
  %v5764 = vmax.f32 %v5740, 0.0
  %v5765 = vmax.f32 %v5741, 0.0
  %v5766 = vmax.f32 %v5742, 0.0
  %v5767 = vld [vmem:[%s2 + $0x3e8] sm:$0xff]
  %v5768 = vld [vmem:[%s2 + $0x3f0] sm:$0xff]
  %v5769 = vld [vmem:[%s2 + $0x3f8] sm:$0xff]
  %v5770 = vld [vmem:[%s2 + $0x400] sm:$0xff]
  %v5771 = vld [vmem:[%s2 + $0x408] sm:$0xff]
  %v5772 = vld [vmem:[%s2 + $0x410] sm:$0xff]
  %v5773 = vld [vmem:[%s2 + $0x418] sm:$0xff]
  %v5774 = vld [vmem:[%s2 + $0x420] sm:$0xff]
  %v5775 = vld [vmem:[%s2 + $0x428] sm:$0xff]
  %v5776 = vld [vmem:[%s2 + $0x430] sm:$0xff]
  %v5777 = vld [vmem:[%s2 + $0x438] sm:$0xff]
  %v5778 = vld [vmem:[%s2 + $0x440] sm:$0xff]
  %v5779 = vld [vmem:[%s2 + $0x448] sm:$0xff]
  %v5780 = vld [vmem:[%s2 + $0x450] sm:$0xff]
  %v5781 = vld [vmem:[%s2 + $0x458] sm:$0xff]
  %v5782 = vld [vmem:[%s2 + $0x460] sm:$0xff]
  %v5783 = vld [vmem:[%s2 + $0x468] sm:$0xff]
  %v5784 = vld [vmem:[%s2 + $0x470] sm:$0xff]
  %v5785 = vld [vmem:[%s2 + $0x478] sm:$0xff]
  %v5786 = vld [vmem:[%s2 + $0x480] sm:$0xff]
  %v5787 = vld [vmem:[%s2 + $0x488] sm:$0xff]
  %v5788 = vld [vmem:[%s2 + $0x490] sm:$0xff]
  %v5789 = vld [vmem:[%s2 + $0x498] sm:$0xff]
  %v5790 = vld [vmem:[%s2 + $0x4a0] sm:$0xff]
  %v5791 = vld [vmem:[%s2 + $0x4a8] sm:$0xff]
  %v5792 = vld [vmem:[%s2 + $0x4b0] sm:$0xff]
  %v5793 = vld [vmem:[%s2 + $0x4b8] sm:$0xff]
  %v5794 = vld [vmem:[%s2 + $0x4c0] sm:$0xff]
  %v5795 = vld [vmem:[%s2 + $0x4c8] sm:$0xff]
  %v5796 = vld [vmem:[%s2 + $0x4d0] sm:$0xff]
  %v5797 = vld [vmem:[%s2 + $0x4d8] sm:$0xff]
  %v5798 = vld [vmem:[%s2 + $0x4e0] sm:$0xff]
  %v5799 = vld [vmem:[%s2 + $0x4e8] sm:$0xff]
  %v5800 = vld [vmem:[%s2 + $0x4f0] sm:$0xff]
  %v5801 = vld [vmem:[%s2 + $0x4f8] sm:$0xff]
  %v5802 = vld [vmem:[%s2 + $0x500] sm:$0xff]
  %v5803 = vld [vmem:[%s2 + $0x508] sm:$0xff]
  %v5804 = vld [vmem:[%s2 + $0x510] sm:$0xff]
  %v5805 = vld [vmem:[%s2 + $0x518] sm:$0xff]
  %v5806 = vld [vmem:[%s2 + $0x520] sm:$0xff]
  %v5807 = vsel %vm64, %v5743, 0.0
  %v5808 = vsel %vm65, %v5744, 0.0
  %v5809 = vsel %vm66, %v5745, 0.0
  %v5810 = vsel %vm64, %v5746, 0.0
  %v5811 = vsel %vm65, %v5747, 0.0
  %v5812 = vsel %vm66, %v5748, 0.0
  %v5813 = vsel %vm64, %v5749, 0.0
  %v5814 = vsel %vm65, %v5750, 0.0
  %v5815 = vsel %vm66, %v5751, 0.0
  %v5816 = vsel %vm64, %v5752, 0.0
  %v5817 = vsel %vm65, %v5753, 0.0
  %v5818 = vsel %vm66, %v5754, 0.0
  %v5819 = vsel %vm64, %v5755, 0.0
  %v5820 = vsel %vm65, %v5756, 0.0
  %v5821 = vsel %vm66, %v5757, 0.0
  %v5822 = vsel %vm64, %v5758, 0.0
  %v5823 = vsel %vm65, %v5759, 0.0
  %v5824 = vsel %vm66, %v5760, 0.0
  %v5825 = vsel %vm64, %v5761, 0.0
  %v5826 = vsel %vm65, %v5762, 0.0
  %v5827 = vsel %vm66, %v5763, 0.0
  %v5828 = vsel %vm64, %v5764, 0.0
  %v5829 = vsel %vm65, %v5765, 0.0
  %v5830 = vsel %vm66, %v5766, 0.0
  %5831 = vst.msk [vmem:[#allocation2 + $0x8] sm:$0xff] %vm17, %v5807
  %5832 = vst.msk [vmem:[#allocation2 + $0x10] sm:$0xff] %vm17, %v5808
  %5833 = vst.msk [vmem:[#allocation2 + $0x18] sm:$0xff] %vm17, %v5809
  %5834 = vst.msk [vmem:[#allocation2 + $0x20] sm:$0xff] %vm17, %v5810
  %5835 = vst.msk [vmem:[#allocation2 + $0x28] sm:$0xff] %vm17, %v5811
  %5836 = vst.msk [vmem:[#allocation2 + $0x30] sm:$0xff] %vm17, %v5812
  %5837 = vst.msk [vmem:[#allocation2 + $0x38] sm:$0xff] %vm17, %v5813
  %5838 = vst.msk [vmem:[#allocation2 + $0x40] sm:$0xff] %vm17, %v5814
  %5839 = vst.msk [vmem:[#allocation2 + $0x48] sm:$0xff] %vm17, %v5815
  %5840 = vst.msk [vmem:[#allocation2 + $0x50] sm:$0xff] %vm17, %v5816
  %5841 = vst.msk [vmem:[#allocation2 + $0x58] sm:$0xff] %vm17, %v5817
  %5842 = vst.msk [vmem:[#allocation2 + $0x60] sm:$0xff] %vm17, %v5818
  %5843 = vst.msk [vmem:[#allocation2 + $0x68] sm:$0xff] %vm17, %v5819
  %5844 = vst.msk [vmem:[#allocation2 + $0x70] sm:$0xff] %vm17, %v5820
  %5845 = vst.msk [vmem:[#allocation2 + $0x78] sm:$0xff] %vm17, %v5821
  %5846 = vst.msk [vmem:[#allocation2 + $0x80] sm:$0xff] %vm17, %v5822
  %5847 = vst.msk [vmem:[#allocation2 + $0x88] sm:$0xff] %vm17, %v5823
  %5848 = vst.msk [vmem:[#allocation2 + $0x90] sm:$0xff] %vm17, %v5824
  %5849 = vst.msk [vmem:[#allocation2 + $0x98] sm:$0xff] %vm17, %v5825
  %5850 = vst.msk [vmem:[#allocation2 + $0xa0] sm:$0xff] %vm17, %v5826
  %5851 = vst.msk [vmem:[#allocation2 + $0xa8] sm:$0xff] %vm17, %v5827
  %5852 = vst.msk [vmem:[#allocation2 + $0xb0] sm:$0xff] %vm17, %v5828
  %5853 = vst.msk [vmem:[#allocation2 + $0xb8] sm:$0xff] %vm17, %v5829
  %5854 = vst.msk [vmem:[#allocation2 + $0xc0] sm:$0xff] %vm17, %v5830
  %v5855 = vld [vmem:[#allocation2 + $0x6] sm:$0xff]
  %v5856 = vld [vmem:[#allocation2 + $0xe] sm:$0xff]
  %v5857 = vld [vmem:[#allocation2 + $0x16] sm:$0xff]
  %v5858 = vld [vmem:[#allocation2 + $0x1e] sm:$0xff]
  %v5859 = vld [vmem:[#allocation2 + $0x26] sm:$0xff]
  %v5860 = vld [vmem:[#allocation2 + $0x2e] sm:$0xff]
  %v5861 = vld [vmem:[#allocation2 + $0x36] sm:$0xff]
  %v5862 = vld [vmem:[#allocation2 + $0x3e] sm:$0xff]
  %v5863 = vld [vmem:[#allocation2 + $0x46] sm:$0xff]
  %v5864 = vld [vmem:[#allocation2 + $0x4e] sm:$0xff]
  %v5865 = vld [vmem:[#allocation2 + $0x56] sm:$0xff]
  %v5866 = vld [vmem:[#allocation2 + $0x5e] sm:$0xff]
  %v5867 = vld [vmem:[#allocation2 + $0x66] sm:$0xff]
  %v5868 = vld [vmem:[#allocation2 + $0x6e] sm:$0xff]
  %v5869 = vld [vmem:[#allocation2 + $0x76] sm:$0xff]
  %v5870 = vld [vmem:[#allocation2 + $0x7e] sm:$0xff]
  %v5871 = vld [vmem:[#allocation2 + $0x86] sm:$0xff]
  %v5872 = vld [vmem:[#allocation2 + $0x8e] sm:$0xff]
  %v5873 = vld [vmem:[#allocation2 + $0x96] sm:$0xff]
  %v5874 = vld [vmem:[#allocation2 + $0x9e] sm:$0xff]
  %v5875 = vld [vmem:[#allocation2 + $0xa6] sm:$0xff]
  %v5876 = vld [vmem:[#allocation2 + $0xae] sm:$0xff]
  %v5877 = vld [vmem:[#allocation2 + $0xb6] sm:$0xff]
  %v5878 = vld [vmem:[#allocation2 + $0xbe] sm:$0xff]
  %v5879 = vld [vmem:[#allocation2 + $0x7] sm:$0xff]
  %v5880 = vld [vmem:[#allocation2 + $0xf] sm:$0xff]
  %v5881 = vld [vmem:[#allocation2 + $0x17] sm:$0xff]
  %v5882 = vld [vmem:[#allocation2 + $0x1f] sm:$0xff]
  %v5883 = vld [vmem:[#allocation2 + $0x27] sm:$0xff]
  %v5884 = vld [vmem:[#allocation2 + $0x2f] sm:$0xff]
  %v5885 = vld [vmem:[#allocation2 + $0x37] sm:$0xff]
  %v5886 = vld [vmem:[#allocation2 + $0x3f] sm:$0xff]
  %v5887 = vld [vmem:[#allocation2 + $0x47] sm:$0xff]
  %v5888 = vld [vmem:[#allocation2 + $0x4f] sm:$0xff]
  %v5889 = vld [vmem:[#allocation2 + $0x57] sm:$0xff]
  %v5890 = vld [vmem:[#allocation2 + $0x5f] sm:$0xff]
  %v5891 = vld [vmem:[#allocation2 + $0x67] sm:$0xff]
  %v5892 = vld [vmem:[#allocation2 + $0x6f] sm:$0xff]
  %v5893 = vld [vmem:[#allocation2 + $0x77] sm:$0xff]
  %v5894 = vld [vmem:[#allocation2 + $0x7f] sm:$0xff]
  %v5895 = vld [vmem:[#allocation2 + $0x87] sm:$0xff]
  %v5896 = vld [vmem:[#allocation2 + $0x8f] sm:$0xff]
  %v5897 = vld [vmem:[#allocation2 + $0x97] sm:$0xff]
  %v5898 = vld [vmem:[#allocation2 + $0x9f] sm:$0xff]
  %v5899 = vld [vmem:[#allocation2 + $0xa7] sm:$0xff]
  %v5900 = vld [vmem:[#allocation2 + $0xaf] sm:$0xff]
  %v5901 = vld [vmem:[#allocation2 + $0xb7] sm:$0xff]
  %v5902 = vld [vmem:[#allocation2 + $0xbf] sm:$0xff]
  %v5903 = vld [vmem:[#allocation2 + $0x8] sm:$0xff]
  %v5904 = vld [vmem:[#allocation2 + $0x10] sm:$0xff]
  %v5905 = vld [vmem:[#allocation2 + $0x18] sm:$0xff]
  %v5906 = vld [vmem:[#allocation2 + $0x20] sm:$0xff]
  %v5907 = vld [vmem:[#allocation2 + $0x28] sm:$0xff]
  %v5908 = vld [vmem:[#allocation2 + $0x30] sm:$0xff]
  %v5909 = vld [vmem:[#allocation2 + $0x38] sm:$0xff]
  %v5910 = vld [vmem:[#allocation2 + $0x40] sm:$0xff]
  %v5911 = vld [vmem:[#allocation2 + $0x48] sm:$0xff]
  %v5912 = vld [vmem:[#allocation2 + $0x50] sm:$0xff]
  %v5913 = vld [vmem:[#allocation2 + $0x58] sm:$0xff]
  %v5914 = vld [vmem:[#allocation2 + $0x60] sm:$0xff]
  %v5915 = vld [vmem:[#allocation2 + $0x68] sm:$0xff]
  %v5916 = vld [vmem:[#allocation2 + $0x70] sm:$0xff]
  %v5917 = vld [vmem:[#allocation2 + $0x78] sm:$0xff]
  %v5918 = vld [vmem:[#allocation2 + $0x80] sm:$0xff]
  %v5919 = vld [vmem:[#allocation2 + $0x88] sm:$0xff]
  %v5920 = vld [vmem:[#allocation2 + $0x90] sm:$0xff]
  %v5921 = vld [vmem:[#allocation2 + $0x98] sm:$0xff]
  %v5922 = vld [vmem:[#allocation2 + $0xa0] sm:$0xff]
  %v5923 = vld [vmem:[#allocation2 + $0xa8] sm:$0xff]
  %v5924 = vld [vmem:[#allocation2 + $0xb0] sm:$0xff]
  %v5925 = vld [vmem:[#allocation2 + $0xb8] sm:$0xff]
  %v5926 = vld [vmem:[#allocation2 + $0xc0] sm:$0xff]
  %v5927 = vld [vmem:[#allocation2 + $0x9] sm:$0xff]
  %v5928 = vld [vmem:[#allocation2 + $0x11] sm:$0xff]
  %v5929 = vld [vmem:[#allocation2 + $0x19] sm:$0xff]
  %v5930 = vld [vmem:[#allocation2 + $0x21] sm:$0xff]
  %v5931 = vld [vmem:[#allocation2 + $0x29] sm:$0xff]
  %v5932 = vld [vmem:[#allocation2 + $0x31] sm:$0xff]
  %v5933 = vld [vmem:[#allocation2 + $0x39] sm:$0xff]
  %v5934 = vld [vmem:[#allocation2 + $0x41] sm:$0xff]
  %v5935 = vld [vmem:[#allocation2 + $0x49] sm:$0xff]
  %v5936 = vld [vmem:[#allocation2 + $0x51] sm:$0xff]
  %v5937 = vld [vmem:[#allocation2 + $0x59] sm:$0xff]
  %v5938 = vld [vmem:[#allocation2 + $0x61] sm:$0xff]
  %v5939 = vld [vmem:[#allocation2 + $0x69] sm:$0xff]
  %v5940 = vld [vmem:[#allocation2 + $0x71] sm:$0xff]
  %v5941 = vld [vmem:[#allocation2 + $0x79] sm:$0xff]
  %v5942 = vld [vmem:[#allocation2 + $0x81] sm:$0xff]
  %v5943 = vld [vmem:[#allocation2 + $0x89] sm:$0xff]
  %v5944 = vld [vmem:[#allocation2 + $0x91] sm:$0xff]
  %v5945 = vld [vmem:[#allocation2 + $0x99] sm:$0xff]
  %v5946 = vld [vmem:[#allocation2 + $0xa1] sm:$0xff]
  %v5947 = vld [vmem:[#allocation2 + $0xa9] sm:$0xff]
  %v5948 = vld [vmem:[#allocation2 + $0xb1] sm:$0xff]
  %v5949 = vld [vmem:[#allocation2 + $0xb9] sm:$0xff]
  %v5950 = vld [vmem:[#allocation2 + $0xc1] sm:$0xff]
  %v5951 = vld [vmem:[#allocation2 + $0xa] sm:$0xff]
  %v5952 = vld [vmem:[#allocation2 + $0x12] sm:$0xff]
  %v5953 = vld [vmem:[#allocation2 + $0x1a] sm:$0xff]
  %v5954 = vld [vmem:[#allocation2 + $0x22] sm:$0xff]
  %v5955 = vld [vmem:[#allocation2 + $0x2a] sm:$0xff]
  %v5956 = vld [vmem:[#allocation2 + $0x32] sm:$0xff]
  %v5957 = vld [vmem:[#allocation2 + $0x3a] sm:$0xff]
  %v5958 = vld [vmem:[#allocation2 + $0x42] sm:$0xff]
  %v5959 = vld [vmem:[#allocation2 + $0x4a] sm:$0xff]
  %v5960 = vld [vmem:[#allocation2 + $0x52] sm:$0xff]
  %v5961 = vld [vmem:[#allocation2 + $0x5a] sm:$0xff]
  %v5962 = vld [vmem:[#allocation2 + $0x62] sm:$0xff]
  %v5963 = vld [vmem:[#allocation2 + $0x6a] sm:$0xff]
  %v5964 = vld [vmem:[#allocation2 + $0x72] sm:$0xff]
  %v5965 = vld [vmem:[#allocation2 + $0x7a] sm:$0xff]
  %v5966 = vld [vmem:[#allocation2 + $0x82] sm:$0xff]
  %v5967 = vld [vmem:[#allocation2 + $0x8a] sm:$0xff]
  %v5968 = vld [vmem:[#allocation2 + $0x92] sm:$0xff]
  %v5969 = vld [vmem:[#allocation2 + $0x9a] sm:$0xff]
  %v5970 = vld [vmem:[#allocation2 + $0xa2] sm:$0xff]
  %v5971 = vld [vmem:[#allocation2 + $0xaa] sm:$0xff]
  %v5972 = vld [vmem:[#allocation2 + $0xb2] sm:$0xff]
  %v5973 = vld [vmem:[#allocation2 + $0xba] sm:$0xff]
  %v5974 = vld [vmem:[#allocation2 + $0xc2] sm:$0xff]
  %5999 = vrot.lane.b32.xlu0 %v5879, 64
  %v6000 = vpop.permute.xlu0 %5999
  %6001 = vrot.lane.b32.xlu0 %v5880, 64
  %v6002 = vpop.permute.xlu0 %6001
  %6003 = vrot.lane.b32.xlu0 %v5881, 64
  %v6004 = vpop.permute.xlu0 %6003
  %6005 = vrot.lane.b32.xlu0 %v5882, 64
  %v6006 = vpop.permute.xlu0 %6005
  %6007 = vrot.lane.b32.xlu0 %v5883, 64
  %v6008 = vpop.permute.xlu0 %6007
  %6009 = vrot.lane.b32.xlu0 %v5884, 64
  %v6010 = vpop.permute.xlu0 %6009
  %6011 = vrot.lane.b32.xlu0 %v5885, 64
  %v6012 = vpop.permute.xlu0 %6011
  %6013 = vrot.lane.b32.xlu0 %v5886, 64
  %v6014 = vpop.permute.xlu0 %6013
  %6015 = vrot.lane.b32.xlu0 %v5887, 64
  %v6016 = vpop.permute.xlu0 %6015
  %6017 = vrot.lane.b32.xlu0 %v5888, 64
  %v6018 = vpop.permute.xlu0 %6017
  %6019 = vrot.lane.b32.xlu0 %v5889, 64
  %v6020 = vpop.permute.xlu0 %6019
  %6021 = vrot.lane.b32.xlu0 %v5890, 64
  %v6022 = vpop.permute.xlu0 %6021
  %6023 = vrot.lane.b32.xlu0 %v5891, 64
  %v6024 = vpop.permute.xlu0 %6023
  %6025 = vrot.lane.b32.xlu0 %v5892, 64
  %v6026 = vpop.permute.xlu0 %6025
  %6027 = vrot.lane.b32.xlu0 %v5893, 64
  %v6028 = vpop.permute.xlu0 %6027
  %6029 = vrot.lane.b32.xlu0 %v5894, 64
  %v6030 = vpop.permute.xlu0 %6029
  %6031 = vrot.lane.b32.xlu0 %v5895, 64
  %v6032 = vpop.permute.xlu0 %6031
  %6033 = vrot.lane.b32.xlu0 %v5896, 64
  %v6034 = vpop.permute.xlu0 %6033
  %6035 = vrot.lane.b32.xlu0 %v5897, 64
  %v6036 = vpop.permute.xlu0 %6035
  %6037 = vrot.lane.b32.xlu0 %v5898, 64
  %v6038 = vpop.permute.xlu0 %6037
  %6039 = vrot.lane.b32.xlu0 %v5899, 64
  %v6040 = vpop.permute.xlu0 %6039
  %6041 = vrot.lane.b32.xlu0 %v5900, 64
  %v6042 = vpop.permute.xlu0 %6041
  %6043 = vrot.lane.b32.xlu0 %v5901, 64
  %v6044 = vpop.permute.xlu0 %6043
  %6045 = vrot.lane.b32.xlu0 %v5902, 64
  %v6046 = vpop.permute.xlu0 %6045
  %6095 = vrot.lane.b32.xlu0 %v5927, 64
  %v6096 = vpop.permute.xlu0 %6095
  %6097 = vrot.lane.b32.xlu0 %v5928, 64
  %v6098 = vpop.permute.xlu0 %6097
  %6099 = vrot.lane.b32.xlu0 %v5929, 64
  %v6100 = vpop.permute.xlu0 %6099
  %6101 = vrot.lane.b32.xlu0 %v5930, 64
  %v6102 = vpop.permute.xlu0 %6101
  %6103 = vrot.lane.b32.xlu0 %v5931, 64
  %v6104 = vpop.permute.xlu0 %6103
  %6105 = vrot.lane.b32.xlu0 %v5932, 64
  %v6106 = vpop.permute.xlu0 %6105
  %6107 = vrot.lane.b32.xlu0 %v5933, 64
  %v6108 = vpop.permute.xlu0 %6107
  %6109 = vrot.lane.b32.xlu0 %v5934, 64
  %v6110 = vpop.permute.xlu0 %6109
  %6111 = vrot.lane.b32.xlu0 %v5935, 64
  %v6112 = vpop.permute.xlu0 %6111
  %6113 = vrot.lane.b32.xlu0 %v5936, 64
  %v6114 = vpop.permute.xlu0 %6113
  %6115 = vrot.lane.b32.xlu0 %v5937, 64
  %v6116 = vpop.permute.xlu0 %6115
  %6117 = vrot.lane.b32.xlu0 %v5938, 64
  %v6118 = vpop.permute.xlu0 %6117
  %6119 = vrot.lane.b32.xlu0 %v5939, 64
  %v6120 = vpop.permute.xlu0 %6119
  %6121 = vrot.lane.b32.xlu0 %v5940, 64
  %v6122 = vpop.permute.xlu0 %6121
  %6123 = vrot.lane.b32.xlu0 %v5941, 64
  %v6124 = vpop.permute.xlu0 %6123
  %6125 = vrot.lane.b32.xlu0 %v5942, 64
  %v6126 = vpop.permute.xlu0 %6125
  %6127 = vrot.lane.b32.xlu0 %v5943, 64
  %v6128 = vpop.permute.xlu0 %6127
  %6129 = vrot.lane.b32.xlu0 %v5944, 64
  %v6130 = vpop.permute.xlu0 %6129
  %6131 = vrot.lane.b32.xlu0 %v5945, 64
  %v6132 = vpop.permute.xlu0 %6131
  %6133 = vrot.lane.b32.xlu0 %v5946, 64
  %v6134 = vpop.permute.xlu0 %6133
  %6135 = vrot.lane.b32.xlu0 %v5947, 64
  %v6136 = vpop.permute.xlu0 %6135
  %6137 = vrot.lane.b32.xlu0 %v5948, 64
  %v6138 = vpop.permute.xlu0 %6137
  %6139 = vrot.lane.b32.xlu0 %v5949, 64
  %v6140 = vpop.permute.xlu0 %6139
  %6141 = vrot.lane.b32.xlu0 %v5950, 64
  %v6142 = vpop.permute.xlu0 %6141
  %v6167 = vsel %vm17, %v5855, %v6000
  %v6168 = vsel %vm17, %v5856, %v6002
  %v6169 = vsel %vm17, %v5857, %v6004
  %v6170 = vsel %vm17, %v5858, %v6006
  %v6171 = vsel %vm17, %v5859, %v6008
  %v6172 = vsel %vm17, %v5860, %v6010
  %v6173 = vsel %vm17, %v5861, %v6012
  %v6174 = vsel %vm17, %v5862, %v6014
  %v6175 = vsel %vm17, %v5863, %v6016
  %v6176 = vsel %vm17, %v5864, %v6018
  %v6177 = vsel %vm17, %v5865, %v6020
  %v6178 = vsel %vm17, %v5866, %v6022
  %v6179 = vsel %vm17, %v5867, %v6024
  %v6180 = vsel %vm17, %v5868, %v6026
  %v6181 = vsel %vm17, %v5869, %v6028
  %v6182 = vsel %vm17, %v5870, %v6030
  %v6183 = vsel %vm17, %v5871, %v6032
  %v6184 = vsel %vm17, %v5872, %v6034
  %v6185 = vsel %vm17, %v5873, %v6036
  %v6186 = vsel %vm17, %v5874, %v6038
  %v6187 = vsel %vm17, %v5875, %v6040
  %v6188 = vsel %vm17, %v5876, %v6042
  %v6189 = vsel %vm17, %v5877, %v6044
  %v6190 = vsel %vm17, %v5878, %v6046
  %v6191 = vsel %vm17, %v5903, %v6096
  %v6192 = vsel %vm17, %v5904, %v6098
  %v6193 = vsel %vm17, %v5905, %v6100
  %v6194 = vsel %vm17, %v5906, %v6102
  %v6195 = vsel %vm17, %v5907, %v6104
  %v6196 = vsel %vm17, %v5908, %v6106
  %v6197 = vsel %vm17, %v5909, %v6108
  %v6198 = vsel %vm17, %v5910, %v6110
  %v6199 = vsel %vm17, %v5911, %v6112
  %v6200 = vsel %vm17, %v5912, %v6114
  %v6201 = vsel %vm17, %v5913, %v6116
  %v6202 = vsel %vm17, %v5914, %v6118
  %v6203 = vsel %vm17, %v5915, %v6120
  %v6204 = vsel %vm17, %v5916, %v6122
  %v6205 = vsel %vm17, %v5917, %v6124
  %v6206 = vsel %vm17, %v5918, %v6126
  %v6207 = vsel %vm17, %v5919, %v6128
  %v6208 = vsel %vm17, %v5920, %v6130
  %v6209 = vsel %vm17, %v5921, %v6132
  %v6210 = vsel %vm17, %v5922, %v6134
  %v6211 = vsel %vm17, %v5923, %v6136
  %v6212 = vsel %vm17, %v5924, %v6138
  %v6213 = vsel %vm17, %v5925, %v6140
  %v6214 = vsel %vm17, %v5926, %v6142
  %v6215 = vld [vmem:[%s3 + $0xd] sm:$0x1]
  %v6216 = vlaneseq
  %v6217 = vshrl.u32 %v6216, 7
  %v6218 = vsub.s32 0, %v6217
  %v6219 = vrot.slane %v6215, %v6218
  %v6221 = vsel %vm17, %v5951, 0
  %v6224 = vsel %vm17, %v5952, 0
  %v6227 = vsel %vm17, %v5953, 0
  %v6230 = vsel %vm17, %v5954, 0
  %v6233 = vsel %vm17, %v5955, 0
  %v6236 = vsel %vm17, %v5956, 0
  %v6239 = vsel %vm17, %v5957, 0
  %v6242 = vsel %vm17, %v5958, 0
  %v6245 = vsel %vm17, %v5959, 0
  %v6248 = vsel %vm17, %v5960, 0
  %v6251 = vsel %vm17, %v5961, 0
  %v6254 = vsel %vm17, %v5962, 0
  %v6257 = vsel %vm17, %v5963, 0
  %v6260 = vsel %vm17, %v5964, 0
  %v6263 = vsel %vm17, %v5965, 0
  %v6266 = vsel %vm17, %v5966, 0
  %v6269 = vsel %vm17, %v5967, 0
  %v6272 = vsel %vm17, %v5968, 0
  %v6275 = vsel %vm17, %v5969, 0
  %v6278 = vsel %vm17, %v5970, 0
  %v6281 = vsel %vm17, %v5971, 0
  %v6284 = vsel %vm17, %v5972, 0
  %v6287 = vsel %vm17, %v5973, 0
  %v6290 = vsel %vm17, %v5974, 0
  %6292 = vmatprep.subr.mxu0 0.0
  %6293 = vmatpush1.msra.mxu0 %v5767
  %6294 = vmatprep.subr.mxu0 0.0
  %6295 = vmatpush1.msra.mxu0 %v5768
  %6296 = vmatprep.subr.mxu0 0.0
  %6297 = vmatpush1.msra.mxu0 %v5769
  %6298 = vmatprep.subr.mxu0 0.0
  %6299 = vmatpush1.msra.mxu0 %v5770
  %6300 = vmatprep.subr.mxu0 0.0
  %6301 = vmatpush1.msra.mxu0 %v5771
  %6302 = vmatprep.subr.mxu0 0.0
  %6303 = vmatpush1.msra.mxu0 %v5772
  %6304 = vmatprep.subr.mxu0 0.0
  %6305 = vmatpush1.msra.mxu0 %v5773
  %6306 = vmatprep.subr.mxu0 0.0
  %6307 = vmatpush1.msra.mxu0 %v5774
  %6308 = vmatprep.subr.mxu0 0.0
  %6309 = vmatpush1.msra.mxu0 %v5775
  %6310 = vmatprep.subr.mxu0 0.0
  %6311 = vmatpush1.msra.mxu0 %v5776
  %6312 = vmatprep.subr.mxu0 0.0
  %6313 = vmatpush1.msra.mxu0 %v5777
  %6314 = vmatprep.subr.mxu0 0.0
  %6315 = vmatpush1.msra.mxu0 %v5778
  %6316 = vmatprep.subr.mxu0 0.0
  %6317 = vmatpush1.msra.mxu0 %v5779
  %6318 = vmatprep.subr.mxu0 0.0
  %6319 = vmatpush1.msra.mxu0 %v5780
  %6320 = vmatprep.subr.mxu0 0.0
  %6321 = vmatpush1.msra.mxu0 %v5781
  %6322 = vmatprep.subr.mxu0 0.0
  %6323 = vmatpush1.msra.mxu0 %v5782
  %6324 = vmatprep.subr.mxu0 0.0
  %6325 = vmatpush1.msra.mxu0 %v5783
  %6326 = vmatprep.subr.mxu0 0.0
  %6327 = vmatpush1.msra.mxu0 %v5784
  %6328 = vmatprep.subr.mxu0 0.0
  %6329 = vmatpush1.msra.mxu0 %v5785
  %6330 = vmatprep.subr.mxu0 0.0
  %6331 = vmatpush1.msra.mxu0 %v5786
  %6332 = vmatprep.subr.mxu0 0.0
  %6333 = vmatpush1.msra.mxu0 %v5787
  %6334 = vmatprep.subr.mxu0 0.0
  %6335 = vmatpush1.msra.mxu0 %v5788
  %6336 = vmatprep.subr.mxu0 0.0
  %6337 = vmatpush1.msra.mxu0 %v5789
  %6338 = vmatprep.subr.mxu0 0.0
  %6339 = vmatpush1.msra.mxu0 %v5790
  %6340 = vmatprep.subr.mxu0 0.0
  %6341 = vmatpush1.msra.mxu0 %v5791
  %6342 = vmatprep.subr.mxu0 0.0
  %6343 = vmatpush1.msra.mxu0 %v5792
  %6344 = vmatprep.subr.mxu0 0.0
  %6345 = vmatpush1.msra.mxu0 %v5793
  %6346 = vmatprep.subr.mxu0 0.0
  %6347 = vmatpush1.msra.mxu0 %v5794
  %6348 = vmatprep.subr.mxu0 0.0
  %6349 = vmatpush1.msra.mxu0 %v5795
  %6350 = vmatprep.subr.mxu0 0.0
  %6351 = vmatpush1.msra.mxu0 %v5796
  %6352 = vmatprep.subr.mxu0 0.0
  %6353 = vmatpush1.msra.mxu0 %v5797
  %6354 = vmatprep.subr.mxu0 0.0
  %6355 = vmatpush1.msra.mxu0 %v5798
  %6356 = vmatprep.mubr.f32.mxu0 %v6191
  %6357 = vmatmul.mubr.f32.gmra.mrb[0].mxu0 %v6167
  %v6358 = vpop.f32.mrb[0].mxu0
  %v6359 = vadd.f32 %v6219, %v6358
  %v6360 = vpop.f32.mrb[0].mxu0
  %6361 = vmatprep.mubr.f32.mxu0 %v6192
  %6362 = vmatmul.mubr.f32.gmra.mrb[0].mxu0 %v6168
  %v6363 = vpop.f32.mrb[0].mxu0
  %v6364 = vadd.f32 %v6219, %v6363
  %v6365 = vpop.f32.mrb[0].mxu0
  %6366 = vmatprep.mubr.f32.mxu0 %v6193
  %6367 = vmatmul.mubr.f32.gmra.mrb[0].mxu0 %v6169
  %v6368 = vpop.f32.mrb[0].mxu0
  %v6369 = vadd.f32 %v6219, %v6368
  %v6370 = vpop.f32.mrb[0].mxu0
  %6371 = vmatprep.mubr.f32.mxu0 %v6194
  %6372 = vmatmul.mubr.f32.gmra.mrb[0].mxu0 %v6170
  %v6373 = vpop.f32.mrb[0].mxu0
  %v6374 = vadd.f32 %v6219, %v6373
  %v6375 = vpop.f32.mrb[0].mxu0
  %6376 = vmatprep.mubr.f32.mxu0 %v6195
  %6377 = vmatmul.mubr.f32.gmra.mrb[0].mxu0 %v6171
  %v6378 = vpop.f32.mrb[0].mxu0
  %v6379 = vadd.f32 %v6219, %v6378
  %v6380 = vpop.f32.mrb[0].mxu0
  %6381 = vmatprep.mubr.f32.mxu0 %v6196
  %6382 = vmatmul.mubr.f32.gmra.mrb[0].mxu0 %v6172
  %v6383 = vpop.f32.mrb[0].mxu0
  %v6384 = vadd.f32 %v6219, %v6383
  %v6385 = vpop.f32.mrb[0].mxu0
  %6386 = vmatprep.mubr.f32.mxu0 %v6197
  %6387 = vmatmul.mubr.f32.gmra.mrb[0].mxu0 %v6173
  %v6388 = vpop.f32.mrb[0].mxu0
  %v6389 = vadd.f32 %v6219, %v6388
  %v6390 = vpop.f32.mrb[0].mxu0
  %6391 = vmatprep.mubr.f32.mxu0 %v6198
  %6392 = vmatmul.mubr.f32.gmra.mrb[0].mxu0 %v6174
  %v6393 = vpop.f32.mrb[0].mxu0
  %v6394 = vadd.f32 %v6219, %v6393
  %v6395 = vpop.f32.mrb[0].mxu0
  %6396 = vmatprep.mubr.f32.mxu0 %v6199
  %6397 = vmatmul.mubr.f32.gmra.mrb[0].mxu0 %v6175
  %v6398 = vpop.f32.mrb[0].mxu0
  %v6399 = vadd.f32 %v6219, %v6398
  %v6400 = vpop.f32.mrb[0].mxu0
  %6401 = vmatprep.mubr.f32.mxu0 %v6200
  %6402 = vmatmul.mubr.f32.gmra.mrb[0].mxu0 %v6176
  %v6403 = vpop.f32.mrb[0].mxu0
  %v6404 = vadd.f32 %v6219, %v6403
  %v6405 = vpop.f32.mrb[0].mxu0
  %6406 = vmatprep.mubr.f32.mxu0 %v6201
  %6407 = vmatmul.mubr.f32.gmra.mrb[0].mxu0 %v6177
  %v6408 = vpop.f32.mrb[0].mxu0
  %v6409 = vadd.f32 %v6219, %v6408
  %v6410 = vpop.f32.mrb[0].mxu0
  %6411 = vmatprep.mubr.f32.mxu0 %v6202
  %6412 = vmatmul.mubr.f32.gmra.mrb[0].mxu0 %v6178
  %v6413 = vpop.f32.mrb[0].mxu0
  %v6414 = vadd.f32 %v6219, %v6413
  %v6415 = vpop.f32.mrb[0].mxu0
  %6416 = vmatprep.mubr.f32.mxu0 %v6203
  %6417 = vmatmul.mubr.f32.gmra.mrb[0].mxu0 %v6179
  %v6418 = vpop.f32.mrb[0].mxu0
  %v6419 = vadd.f32 %v6219, %v6418
  %v6420 = vpop.f32.mrb[0].mxu0
  %6421 = vmatprep.mubr.f32.mxu0 %v6204
  %6422 = vmatmul.mubr.f32.gmra.mrb[0].mxu0 %v6180
  %v6423 = vpop.f32.mrb[0].mxu0
  %v6424 = vadd.f32 %v6219, %v6423
  %v6425 = vpop.f32.mrb[0].mxu0
  %6426 = vmatprep.mubr.f32.mxu0 %v6205
  %6427 = vmatmul.mubr.f32.gmra.mrb[0].mxu0 %v6181
  %v6428 = vpop.f32.mrb[0].mxu0
  %v6429 = vadd.f32 %v6219, %v6428
  %v6430 = vpop.f32.mrb[0].mxu0
  %6431 = vmatprep.mubr.f32.mxu0 %v6206
  %6432 = vmatmul.mubr.f32.gmra.mrb[0].mxu0 %v6182
  %v6433 = vpop.f32.mrb[0].mxu0
  %v6434 = vadd.f32 %v6219, %v6433
  %v6435 = vpop.f32.mrb[0].mxu0
  %6436 = vmatprep.mubr.f32.mxu0 %v6207
  %6437 = vmatmul.mubr.f32.gmra.mrb[0].mxu0 %v6183
  %v6438 = vpop.f32.mrb[0].mxu0
  %v6439 = vadd.f32 %v6219, %v6438
  %v6440 = vpop.f32.mrb[0].mxu0
  %6441 = vmatprep.mubr.f32.mxu0 %v6208
  %6442 = vmatmul.mubr.f32.gmra.mrb[0].mxu0 %v6184
  %v6443 = vpop.f32.mrb[0].mxu0
  %v6444 = vadd.f32 %v6219, %v6443
  %v6445 = vpop.f32.mrb[0].mxu0
  %6446 = vmatprep.mubr.f32.mxu0 %v6209
  %6447 = vmatmul.mubr.f32.gmra.mrb[0].mxu0 %v6185
  %v6448 = vpop.f32.mrb[0].mxu0
  %v6449 = vadd.f32 %v6219, %v6448
  %v6450 = vpop.f32.mrb[0].mxu0
  %6451 = vmatprep.mubr.f32.mxu0 %v6210
  %6452 = vmatmul.mubr.f32.gmra.mrb[0].mxu0 %v6186
  %v6453 = vpop.f32.mrb[0].mxu0
  %v6454 = vadd.f32 %v6219, %v6453
  %v6455 = vpop.f32.mrb[0].mxu0
  %6456 = vmatprep.mubr.f32.mxu0 %v6211
  %6457 = vmatmul.mubr.f32.gmra.mrb[0].mxu0 %v6187
  %v6458 = vpop.f32.mrb[0].mxu0
  %v6459 = vadd.f32 %v6219, %v6458
  %v6460 = vpop.f32.mrb[0].mxu0
  %6461 = vmatprep.mubr.f32.mxu0 %v6212
  %6462 = vmatmul.mubr.f32.gmra.mrb[0].mxu0 %v6188
  %v6463 = vpop.f32.mrb[0].mxu0
  %v6464 = vadd.f32 %v6219, %v6463
  %v6465 = vpop.f32.mrb[0].mxu0
  %6466 = vmatprep.mubr.f32.mxu0 %v6213
  %6467 = vmatmul.mubr.f32.gmra.mrb[0].mxu0 %v6189
  %v6468 = vpop.f32.mrb[0].mxu0
  %v6469 = vadd.f32 %v6219, %v6468
  %v6470 = vpop.f32.mrb[0].mxu0
  %6471 = vmatprep.mubr.f32.mxu0 %v6214
  %6472 = vmatmul.mubr.f32.gmra.mrb[0].mxu0 %v6190
  %v6473 = vpop.f32.mrb[0].mxu0
  %v6474 = vadd.f32 %v6219, %v6473
  %v6475 = vpop.f32.mrb[0].mxu0
  %6476 = vdwg.mxu0
  %6477 = vmatprep.subr.mxu0 0.0
  %6478 = vmatpush1.msra.mxu0 %v5799
  %6479 = vmatprep.subr.mxu0 0.0
  %6480 = vmatpush1.msra.mxu0 %v5800
  %6481 = vmatprep.subr.mxu0 0.0
  %6482 = vmatpush1.msra.mxu0 %v5801
  %6483 = vmatprep.subr.mxu0 0.0
  %6484 = vmatpush1.msra.mxu0 %v5802
  %6485 = vmatprep.subr.mxu0 0.0
  %6486 = vmatpush1.msra.mxu0 %v5803
  %6487 = vmatprep.subr.mxu0 0.0
  %6488 = vmatpush1.msra.mxu0 %v5804
  %6489 = vmatprep.subr.mxu0 0.0
  %6490 = vmatpush1.msra.mxu0 %v5805
  %6491 = vmatprep.subr.mxu0 0.0
  %6492 = vmatpush1.msra.mxu0 %v5806
  %6493 = vmatprep.subr.mxu0 0.0
  %6494 = vmatpush1.msra.mxu0 0.0
  %6495 = vmatprep.subr.mxu0 0.0
  %6496 = vmatpush1.msra.mxu0 0.0
  %6497 = vmatprep.subr.mxu0 0.0
  %6498 = vmatpush1.msra.mxu0 0.0
  %6499 = vmatprep.subr.mxu0 0.0
  %6500 = vmatpush1.msra.mxu0 0.0
  %6501 = vmatprep.subr.mxu0 0.0
  %6502 = vmatpush1.msra.mxu0 0.0
  %6503 = vmatprep.subr.mxu0 0.0
  %6504 = vmatpush1.msra.mxu0 0.0
  %6505 = vmatprep.subr.mxu0 0.0
  %6506 = vmatpush1.msra.mxu0 0.0
  %6507 = vmatprep.subr.mxu0 0.0
  %6508 = vmatpush1.msra.mxu0 0.0
  %6509 = vmatprep.subr.mxu0 0.0
  %6510 = vmatpush1.msra.mxu0 0.0
  %6511 = vmatprep.subr.mxu0 0.0
  %6512 = vmatpush1.msra.mxu0 0.0
  %6513 = vmatprep.subr.mxu0 0.0
  %6514 = vmatpush1.msra.mxu0 0.0
  %6515 = vmatprep.subr.mxu0 0.0
  %6516 = vmatpush1.msra.mxu0 0.0
  %6517 = vmatprep.subr.mxu0 0.0
  %6518 = vmatpush1.msra.mxu0 0.0
  %6519 = vmatprep.subr.mxu0 0.0
  %6520 = vmatpush1.msra.mxu0 0.0
  %6521 = vmatprep.subr.mxu0 0.0
  %6522 = vmatpush1.msra.mxu0 0.0
  %6523 = vmatprep.subr.mxu0 0.0
  %6524 = vmatpush1.msra.mxu0 0.0
  %6525 = vmatprep.subr.mxu0 0.0
  %6526 = vmatpush1.msra.mxu0 0.0
  %6527 = vmatprep.subr.mxu0 0.0
  %6528 = vmatpush1.msra.mxu0 0.0
  %6529 = vmatprep.subr.mxu0 0.0
  %6530 = vmatpush1.msra.mxu0 0.0
  %6531 = vmatprep.subr.mxu0 0.0
  %6532 = vmatpush1.msra.mxu0 0.0
  %6533 = vmatprep.subr.mxu0 0.0
  %6534 = vmatpush1.msra.mxu0 0.0
  %6535 = vmatprep.subr.mxu0 0.0
  %6536 = vmatpush1.msra.mxu0 0.0
  %6537 = vmatprep.subr.mxu0 0.0
  %6538 = vmatpush1.msra.mxu0 0.0
  %6539 = vmatprep.subr.mxu0 0.0
  %6540 = vmatpush1.msra.mxu0 0.0
  %6541 = vmatprep.mubr.f32.mxu0 0.0
  %6542 = vmatmul.mubr.f32.gmra.mrb[0].mxu0 %v6221
  %v6543 = vpop.f32.mrb[0].mxu0
  %v6544 = vadd.f32 %v6359, %v6543
  %v6545 = vpop.f32.mrb[0].mxu0
  %6546 = vmatprep.mubr.f32.mxu0 0.0
  %6547 = vmatmul.mubr.f32.gmra.mrb[0].mxu0 %v6224
  %v6548 = vpop.f32.mrb[0].mxu0
  %v6549 = vadd.f32 %v6364, %v6548
  %v6550 = vpop.f32.mrb[0].mxu0
  %6551 = vmatprep.mubr.f32.mxu0 0.0
  %6552 = vmatmul.mubr.f32.gmra.mrb[0].mxu0 %v6227
  %v6553 = vpop.f32.mrb[0].mxu0
  %v6554 = vadd.f32 %v6369, %v6553
  %v6555 = vpop.f32.mrb[0].mxu0
  %6556 = vmatprep.mubr.f32.mxu0 0.0
  %6557 = vmatmul.mubr.f32.gmra.mrb[0].mxu0 %v6230
  %v6558 = vpop.f32.mrb[0].mxu0
  %v6559 = vadd.f32 %v6374, %v6558
  %v6560 = vpop.f32.mrb[0].mxu0
  %6561 = vmatprep.mubr.f32.mxu0 0.0
  %6562 = vmatmul.mubr.f32.gmra.mrb[0].mxu0 %v6233
  %v6563 = vpop.f32.mrb[0].mxu0
  %v6564 = vadd.f32 %v6379, %v6563
  %v6565 = vpop.f32.mrb[0].mxu0
  %6566 = vmatprep.mubr.f32.mxu0 0.0
  %6567 = vmatmul.mubr.f32.gmra.mrb[0].mxu0 %v6236
  %v6568 = vpop.f32.mrb[0].mxu0
  %v6569 = vadd.f32 %v6384, %v6568
  %v6570 = vpop.f32.mrb[0].mxu0
  %6571 = vmatprep.mubr.f32.mxu0 0.0
  %6572 = vmatmul.mubr.f32.gmra.mrb[0].mxu0 %v6239
  %v6573 = vpop.f32.mrb[0].mxu0
  %v6574 = vadd.f32 %v6389, %v6573
  %v6575 = vpop.f32.mrb[0].mxu0
  %6576 = vmatprep.mubr.f32.mxu0 0.0
  %6577 = vmatmul.mubr.f32.gmra.mrb[0].mxu0 %v6242
  %v6578 = vpop.f32.mrb[0].mxu0
  %v6579 = vadd.f32 %v6394, %v6578
  %v6580 = vpop.f32.mrb[0].mxu0
  %6581 = vmatprep.mubr.f32.mxu0 0.0
  %6582 = vmatmul.mubr.f32.gmra.mrb[0].mxu0 %v6245
  %v6583 = vpop.f32.mrb[0].mxu0
  %v6584 = vadd.f32 %v6399, %v6583
  %v6585 = vpop.f32.mrb[0].mxu0
  %6586 = vmatprep.mubr.f32.mxu0 0.0
  %6587 = vmatmul.mubr.f32.gmra.mrb[0].mxu0 %v6248
  %v6588 = vpop.f32.mrb[0].mxu0
  %v6589 = vadd.f32 %v6404, %v6588
  %v6590 = vpop.f32.mrb[0].mxu0
  %6591 = vmatprep.mubr.f32.mxu0 0.0
  %6592 = vmatmul.mubr.f32.gmra.mrb[0].mxu0 %v6251
  %v6593 = vpop.f32.mrb[0].mxu0
  %v6594 = vadd.f32 %v6409, %v6593
  %v6595 = vpop.f32.mrb[0].mxu0
  %6596 = vmatprep.mubr.f32.mxu0 0.0
  %6597 = vmatmul.mubr.f32.gmra.mrb[0].mxu0 %v6254
  %v6598 = vpop.f32.mrb[0].mxu0
  %v6599 = vadd.f32 %v6414, %v6598
  %v6600 = vpop.f32.mrb[0].mxu0
  %6601 = vmatprep.mubr.f32.mxu0 0.0
  %6602 = vmatmul.mubr.f32.gmra.mrb[0].mxu0 %v6257
  %v6603 = vpop.f32.mrb[0].mxu0
  %v6604 = vadd.f32 %v6419, %v6603
  %v6605 = vpop.f32.mrb[0].mxu0
  %6606 = vmatprep.mubr.f32.mxu0 0.0
  %6607 = vmatmul.mubr.f32.gmra.mrb[0].mxu0 %v6260
  %v6608 = vpop.f32.mrb[0].mxu0
  %v6609 = vadd.f32 %v6424, %v6608
  %v6610 = vpop.f32.mrb[0].mxu0
  %6611 = vmatprep.mubr.f32.mxu0 0.0
  %6612 = vmatmul.mubr.f32.gmra.mrb[0].mxu0 %v6263
  %v6613 = vpop.f32.mrb[0].mxu0
  %v6614 = vadd.f32 %v6429, %v6613
  %v6615 = vpop.f32.mrb[0].mxu0
  %6616 = vmatprep.mubr.f32.mxu0 0.0
  %6617 = vmatmul.mubr.f32.gmra.mrb[0].mxu0 %v6266
  %v6618 = vpop.f32.mrb[0].mxu0
  %v6619 = vadd.f32 %v6434, %v6618
  %v6620 = vpop.f32.mrb[0].mxu0
  %6621 = vmatprep.mubr.f32.mxu0 0.0
  %6622 = vmatmul.mubr.f32.gmra.mrb[0].mxu0 %v6269
  %v6623 = vpop.f32.mrb[0].mxu0
  %v6624 = vadd.f32 %v6439, %v6623
  %v6625 = vpop.f32.mrb[0].mxu0
  %6626 = vmatprep.mubr.f32.mxu0 0.0
  %6627 = vmatmul.mubr.f32.gmra.mrb[0].mxu0 %v6272
  %v6628 = vpop.f32.mrb[0].mxu0
  %v6629 = vadd.f32 %v6444, %v6628
  %v6630 = vpop.f32.mrb[0].mxu0
  %6631 = vmatprep.mubr.f32.mxu0 0.0
  %6632 = vmatmul.mubr.f32.gmra.mrb[0].mxu0 %v6275
  %v6633 = vpop.f32.mrb[0].mxu0
  %v6634 = vadd.f32 %v6449, %v6633
  %v6635 = vpop.f32.mrb[0].mxu0
  %6636 = vmatprep.mubr.f32.mxu0 0.0
  %6637 = vmatmul.mubr.f32.gmra.mrb[0].mxu0 %v6278
  %v6638 = vpop.f32.mrb[0].mxu0
  %v6639 = vadd.f32 %v6454, %v6638
  %v6640 = vpop.f32.mrb[0].mxu0
  %6641 = vmatprep.mubr.f32.mxu0 0.0
  %6642 = vmatmul.mubr.f32.gmra.mrb[0].mxu0 %v6281
  %v6643 = vpop.f32.mrb[0].mxu0
  %v6644 = vadd.f32 %v6459, %v6643
  %v6645 = vpop.f32.mrb[0].mxu0
  %6646 = vmatprep.mubr.f32.mxu0 0.0
  %6647 = vmatmul.mubr.f32.gmra.mrb[0].mxu0 %v6284
  %v6648 = vpop.f32.mrb[0].mxu0
  %v6649 = vadd.f32 %v6464, %v6648
  %v6650 = vpop.f32.mrb[0].mxu0
  %6651 = vmatprep.mubr.f32.mxu0 0.0
  %6652 = vmatmul.mubr.f32.gmra.mrb[0].mxu0 %v6287
  %v6653 = vpop.f32.mrb[0].mxu0
  %v6654 = vadd.f32 %v6469, %v6653
  %v6655 = vpop.f32.mrb[0].mxu0
  %6656 = vmatprep.mubr.f32.mxu0 0.0
  %6657 = vmatmul.mubr.f32.gmra.mrb[0].mxu0 %v6290
  %v6658 = vpop.f32.mrb[0].mxu0
  %v6659 = vadd.f32 %v6474, %v6658
  %v6660 = vpop.f32.mrb[0].mxu0
  %6661 = vdwg.mxu0
  %v6662 = vsel %vm64, %v6544, 0.0
  %v6663 = vsel %vm65, %v6549, 0.0
  %v6664 = vsel %vm66, %v6554, 0.0
  %v6665 = vsel %vm64, %v6559, 0.0
  %v6666 = vsel %vm65, %v6564, 0.0
  %v6667 = vsel %vm66, %v6569, 0.0
  %v6668 = vsel %vm64, %v6574, 0.0
  %v6669 = vsel %vm65, %v6579, 0.0
  %v6670 = vsel %vm66, %v6584, 0.0
  %v6671 = vsel %vm64, %v6589, 0.0
  %v6672 = vsel %vm65, %v6594, 0.0
  %v6673 = vsel %vm66, %v6599, 0.0
  %v6674 = vsel %vm64, %v6604, 0.0
  %v6675 = vsel %vm65, %v6609, 0.0
  %v6676 = vsel %vm66, %v6614, 0.0
  %v6677 = vsel %vm64, %v6619, 0.0
  %v6678 = vsel %vm65, %v6624, 0.0
  %v6679 = vsel %vm66, %v6629, 0.0
  %v6680 = vsel %vm64, %v6634, 0.0
  %v6681 = vsel %vm65, %v6639, 0.0
  %v6682 = vsel %vm66, %v6644, 0.0
  %v6683 = vsel %vm64, %v6649, 0.0
  %v6684 = vsel %vm65, %v6654, 0.0
  %v6685 = vsel %vm66, %v6659, 0.0
  %v6686 = vmul.f32 %v6662, %v6662
  %v6687 = vmul.f32 %v6663, %v6663
  %v6688 = vmul.f32 %v6664, %v6664
  %v6689 = vmul.f32 %v6665, %v6665
  %v6690 = vmul.f32 %v6666, %v6666
  %v6691 = vmul.f32 %v6667, %v6667
  %v6692 = vmul.f32 %v6668, %v6668
  %v6693 = vmul.f32 %v6669, %v6669
  %v6694 = vmul.f32 %v6670, %v6670
  %v6695 = vmul.f32 %v6671, %v6671
  %v6696 = vmul.f32 %v6672, %v6672
  %v6697 = vmul.f32 %v6673, %v6673
  %v6698 = vmul.f32 %v6674, %v6674
  %v6699 = vmul.f32 %v6675, %v6675
  %v6700 = vmul.f32 %v6676, %v6676
  %v6701 = vmul.f32 %v6677, %v6677
  %v6702 = vmul.f32 %v6678, %v6678
  %v6703 = vmul.f32 %v6679, %v6679
  %v6704 = vmul.f32 %v6680, %v6680
  %v6705 = vmul.f32 %v6681, %v6681
  %v6706 = vmul.f32 %v6682, %v6682
  %v6707 = vmul.f32 %v6683, %v6683
  %v6708 = vmul.f32 %v6684, %v6684
  %v6709 = vmul.f32 %v6685, %v6685
  %6734 = vrot.lane.b32.xlu0 %v6686, 64
  %v6735 = vpop.permute.xlu0 %6734
  %6736 = vrot.lane.b32.xlu0 %v6687, 64
  %v6737 = vpop.permute.xlu0 %6736
  %6738 = vrot.lane.b32.xlu0 %v6688, 64
  %v6739 = vpop.permute.xlu0 %6738
  %6740 = vrot.lane.b32.xlu0 %v6689, 64
  %v6741 = vpop.permute.xlu0 %6740
  %6742 = vrot.lane.b32.xlu0 %v6690, 64
  %v6743 = vpop.permute.xlu0 %6742
  %6744 = vrot.lane.b32.xlu0 %v6691, 64
  %v6745 = vpop.permute.xlu0 %6744
  %6746 = vrot.lane.b32.xlu0 %v6692, 64
  %v6747 = vpop.permute.xlu0 %6746
  %6748 = vrot.lane.b32.xlu0 %v6693, 64
  %v6749 = vpop.permute.xlu0 %6748
  %6750 = vrot.lane.b32.xlu0 %v6694, 64
  %v6751 = vpop.permute.xlu0 %6750
  %6752 = vrot.lane.b32.xlu0 %v6695, 64
  %v6753 = vpop.permute.xlu0 %6752
  %6754 = vrot.lane.b32.xlu0 %v6696, 64
  %v6755 = vpop.permute.xlu0 %6754
  %6756 = vrot.lane.b32.xlu0 %v6697, 64
  %v6757 = vpop.permute.xlu0 %6756
  %6758 = vrot.lane.b32.xlu0 %v6698, 64
  %v6759 = vpop.permute.xlu0 %6758
  %6760 = vrot.lane.b32.xlu0 %v6699, 64
  %v6761 = vpop.permute.xlu0 %6760
  %6762 = vrot.lane.b32.xlu0 %v6700, 64
  %v6763 = vpop.permute.xlu0 %6762
  %6764 = vrot.lane.b32.xlu0 %v6701, 64
  %v6765 = vpop.permute.xlu0 %6764
  %6766 = vrot.lane.b32.xlu0 %v6702, 64
  %v6767 = vpop.permute.xlu0 %6766
  %6768 = vrot.lane.b32.xlu0 %v6703, 64
  %v6769 = vpop.permute.xlu0 %6768
  %6770 = vrot.lane.b32.xlu0 %v6704, 64
  %v6771 = vpop.permute.xlu0 %6770
  %6772 = vrot.lane.b32.xlu0 %v6705, 64
  %v6773 = vpop.permute.xlu0 %6772
  %6774 = vrot.lane.b32.xlu0 %v6706, 64
  %v6775 = vpop.permute.xlu0 %6774
  %6776 = vrot.lane.b32.xlu0 %v6707, 64
  %v6777 = vpop.permute.xlu0 %6776
  %6778 = vrot.lane.b32.xlu0 %v6708, 64
  %v6779 = vpop.permute.xlu0 %6778
  %6780 = vrot.lane.b32.xlu0 %v6709, 64
  %v6781 = vpop.permute.xlu0 %6780
  %v6806 = vsel %vm17, %v6662, %v6735
  %v6807 = vsel %vm17, %v6663, %v6737
  %v6808 = vsel %vm17, %v6664, %v6739
  %v6809 = vsel %vm17, %v6665, %v6741
  %v6810 = vsel %vm17, %v6666, %v6743
  %v6811 = vsel %vm17, %v6667, %v6745
  %v6812 = vsel %vm17, %v6668, %v6747
  %v6813 = vsel %vm17, %v6669, %v6749
  %v6814 = vsel %vm17, %v6670, %v6751
  %v6815 = vsel %vm17, %v6671, %v6753
  %v6816 = vsel %vm17, %v6672, %v6755
  %v6817 = vsel %vm17, %v6673, %v6757
  %v6818 = vsel %vm17, %v6674, %v6759
  %v6819 = vsel %vm17, %v6675, %v6761
  %v6820 = vsel %vm17, %v6676, %v6763
  %v6821 = vsel %vm17, %v6677, %v6765
  %v6822 = vsel %vm17, %v6678, %v6767
  %v6823 = vsel %vm17, %v6679, %v6769
  %v6824 = vsel %vm17, %v6680, %v6771
  %v6825 = vsel %vm17, %v6681, %v6773
  %v6826 = vsel %vm17, %v6682, %v6775
  %v6827 = vsel %vm17, %v6683, %v6777
  %v6828 = vsel %vm17, %v6684, %v6779
  %v6829 = vsel %vm17, %v6685, %v6781
  %v6830 = vadd.f32 %v6806, %v6807
  %v6831 = vadd.f32 %v6830, %v6808
  %v6832 = vadd.f32 %v6831, %v6809
  %v6833 = vadd.f32 %v6832, %v6810
  %v6834 = vadd.f32 %v6833, %v6811
  %v6835 = vadd.f32 %v6834, %v6812
  %v6836 = vadd.f32 %v6835, %v6813
  %v6837 = vadd.f32 %v6836, %v6814
  %v6838 = vadd.f32 %v6837, %v6815
  %v6839 = vadd.f32 %v6838, %v6816
  %v6840 = vadd.f32 %v6839, %v6817
  %v6841 = vadd.f32 %v6840, %v6818
  %v6842 = vadd.f32 %v6841, %v6819
  %v6843 = vadd.f32 %v6842, %v6820
  %v6844 = vadd.f32 %v6843, %v6821
  %v6845 = vadd.f32 %v6844, %v6822
  %v6846 = vadd.f32 %v6845, %v6823
  %v6847 = vadd.f32 %v6846, %v6824
  %v6848 = vadd.f32 %v6847, %v6825
  %v6849 = vadd.f32 %v6848, %v6826
  %v6850 = vadd.f32 %v6849, %v6827
  %v6851 = vadd.f32 %v6850, %v6828
  %v6852 = vadd.f32 %v6851, %v6829
  %v6853 = vrot.slane %v6852, 4
  %v6854 = vadd.f32 %v6852, %v6853
  %v6855 = vrot.slane %v6854, 2
  %v6856 = vadd.f32 %v6854, %v6855
  %v6857 = vrot.slane %v6856, 1
  %v6858 = vadd.f32 %v6856, %v6857
  %v6859 = vmul.f32 %v6858, 0.0078125
  %v6860 = vmul.f32 %v6859, %v6859
  %6862 = vrot.lane.b32.xlu0 %v6860, 64
  %v6863 = vpop.permute.xlu0 %6862
  %v6865 = vsub.f32 %v6859, %v6863
  %v6866 = vmax.f32 %v6865, 0.0
  %v6867 = vld [vmem:[%s3 + $0x11] sm:$0x1]
  %v6868 = vsub.f32 %v6544, %v6859
  %v6869 = vsub.f32 %v6549, %v6859
  %v6870 = vsub.f32 %v6554, %v6859
  %v6871 = vsub.f32 %v6559, %v6859
  %v6872 = vsub.f32 %v6564, %v6859
  %v6873 = vsub.f32 %v6569, %v6859
  %v6874 = vsub.f32 %v6574, %v6859
  %v6875 = vsub.f32 %v6579, %v6859
  %v6876 = vsub.f32 %v6584, %v6859
  %v6877 = vsub.f32 %v6589, %v6859
  %v6878 = vsub.f32 %v6594, %v6859
  %v6879 = vsub.f32 %v6599, %v6859
  %v6880 = vsub.f32 %v6604, %v6859
  %v6881 = vsub.f32 %v6609, %v6859
  %v6882 = vsub.f32 %v6614, %v6859
  %v6883 = vsub.f32 %v6619, %v6859
  %v6884 = vsub.f32 %v6624, %v6859
  %v6885 = vsub.f32 %v6629, %v6859
  %v6886 = vsub.f32 %v6634, %v6859
  %v6887 = vsub.f32 %v6639, %v6859
  %v6888 = vsub.f32 %v6644, %v6859
  %v6889 = vsub.f32 %v6649, %v6859
  %v6890 = vsub.f32 %v6654, %v6859
  %v6891 = vsub.f32 %v6659, %v6859
  %v6892 = vadd.f32 %v6866, 1e-05
  %v6893 = vrsqrt.pop %v6892
  %v6894 = vlaneseq
  %v6895 = vshrl.u32 %v6894, 7
  %v6896 = vsub.s32 0, %v6895
  %v6897 = vrot.slane %v6893, %v6896
  %6899 = vrot.lane.b32.xlu0 %v6897, 64
  %v6900 = vpop.permute.xlu0 %6899
  %v6902 = vmul.f32 %v6868, %v6900
  %v6903 = vmul.f32 %v6869, %v6900
  %v6904 = vmul.f32 %v6870, %v6900
  %v6905 = vmul.f32 %v6871, %v6900
  %v6906 = vmul.f32 %v6872, %v6900
  %v6907 = vmul.f32 %v6873, %v6900
  %v6908 = vmul.f32 %v6874, %v6900
  %v6909 = vmul.f32 %v6875, %v6900
  %v6910 = vmul.f32 %v6876, %v6900
  %v6911 = vmul.f32 %v6877, %v6900
  %v6912 = vmul.f32 %v6878, %v6900
  %v6913 = vmul.f32 %v6879, %v6900
  %v6914 = vmul.f32 %v6880, %v6900
  %v6915 = vmul.f32 %v6881, %v6900
  %v6916 = vmul.f32 %v6882, %v6900
  %v6917 = vmul.f32 %v6883, %v6900
  %v6918 = vmul.f32 %v6884, %v6900
  %v6919 = vmul.f32 %v6885, %v6900
  %v6920 = vmul.f32 %v6886, %v6900
  %v6921 = vmul.f32 %v6887, %v6900
  %v6922 = vmul.f32 %v6888, %v6900
  %v6923 = vmul.f32 %v6889, %v6900
  %v6924 = vmul.f32 %v6890, %v6900
  %v6925 = vmul.f32 %v6891, %v6900
  %v6926 = vlaneseq
  %v6927 = vshrl.u32 %v6926, 7
  %v6928 = vsub.s32 0, %v6927
  %v6929 = vrot.slane %v6867, %v6928
  %v6930 = vmul.f32 %v6929, %v6902
  %v6931 = vmul.f32 %v6929, %v6903
  %v6932 = vmul.f32 %v6929, %v6904
  %v6933 = vmul.f32 %v6929, %v6905
  %v6934 = vmul.f32 %v6929, %v6906
  %v6935 = vmul.f32 %v6929, %v6907
  %v6936 = vmul.f32 %v6929, %v6908
  %v6937 = vmul.f32 %v6929, %v6909
  %v6938 = vmul.f32 %v6929, %v6910
  %v6939 = vmul.f32 %v6929, %v6911
  %v6940 = vmul.f32 %v6929, %v6912
  %v6941 = vmul.f32 %v6929, %v6913
  %v6942 = vmul.f32 %v6929, %v6914
  %v6943 = vmul.f32 %v6929, %v6915
  %v6944 = vmul.f32 %v6929, %v6916
  %v6945 = vmul.f32 %v6929, %v6917
  %v6946 = vmul.f32 %v6929, %v6918
  %v6947 = vmul.f32 %v6929, %v6919
  %v6948 = vmul.f32 %v6929, %v6920
  %v6949 = vmul.f32 %v6929, %v6921
  %v6950 = vmul.f32 %v6929, %v6922
  %v6951 = vmul.f32 %v6929, %v6923
  %v6952 = vmul.f32 %v6929, %v6924
  %v6953 = vmul.f32 %v6929, %v6925
  %v6954 = vld [vmem:[%s3 + $0x12] sm:$0x1]
  %v6955 = vlaneseq
  %v6956 = vshrl.u32 %v6955, 7
  %v6957 = vsub.s32 0, %v6956
  %v6958 = vrot.slane %v6954, %v6957
  %v6959 = vadd.f32 %v6930, %v6958
  %v6960 = vadd.f32 %v6931, %v6958
  %v6961 = vadd.f32 %v6932, %v6958
  %v6962 = vadd.f32 %v6933, %v6958
  %v6963 = vadd.f32 %v6934, %v6958
  %v6964 = vadd.f32 %v6935, %v6958
  %v6965 = vadd.f32 %v6936, %v6958
  %v6966 = vadd.f32 %v6937, %v6958
  %v6967 = vadd.f32 %v6938, %v6958
  %v6968 = vadd.f32 %v6939, %v6958
  %v6969 = vadd.f32 %v6940, %v6958
  %v6970 = vadd.f32 %v6941, %v6958
  %v6971 = vadd.f32 %v6942, %v6958
  %v6972 = vadd.f32 %v6943, %v6958
  %v6973 = vadd.f32 %v6944, %v6958
  %v6974 = vadd.f32 %v6945, %v6958
  %v6975 = vadd.f32 %v6946, %v6958
  %v6976 = vadd.f32 %v6947, %v6958
  %v6977 = vadd.f32 %v6948, %v6958
  %v6978 = vadd.f32 %v6949, %v6958
  %v6979 = vadd.f32 %v6950, %v6958
  %v6980 = vadd.f32 %v6951, %v6958
  %v6981 = vadd.f32 %v6952, %v6958
  %v6982 = vadd.f32 %v6953, %v6958
  %v6983 = vmax.f32 %v6959, 0.0
  %v6984 = vmax.f32 %v6960, 0.0
  %v6985 = vmax.f32 %v6961, 0.0
  %v6986 = vmax.f32 %v6962, 0.0
  %v6987 = vmax.f32 %v6963, 0.0
  %v6988 = vmax.f32 %v6964, 0.0
  %v6989 = vmax.f32 %v6965, 0.0
  %v6990 = vmax.f32 %v6966, 0.0
  %v6991 = vmax.f32 %v6967, 0.0
  %v6992 = vmax.f32 %v6968, 0.0
  %v6993 = vmax.f32 %v6969, 0.0
  %v6994 = vmax.f32 %v6970, 0.0
  %v6995 = vmax.f32 %v6971, 0.0
  %v6996 = vmax.f32 %v6972, 0.0
  %v6997 = vmax.f32 %v6973, 0.0
  %v6998 = vmax.f32 %v6974, 0.0
  %v6999 = vmax.f32 %v6975, 0.0
  %v7000 = vmax.f32 %v6976, 0.0
  %v7001 = vmax.f32 %v6977, 0.0
  %v7002 = vmax.f32 %v6978, 0.0
  %v7003 = vmax.f32 %v6979, 0.0
  %v7004 = vmax.f32 %v6980, 0.0
  %v7005 = vmax.f32 %v6981, 0.0
  %v7006 = vmax.f32 %v6982, 0.0
  %v7007 = vld [vmem:[%s2 + $0x528] sm:$0xff]
  %v7008 = vld [vmem:[%s2 + $0x530] sm:$0xff]
  %v7009 = vld [vmem:[%s2 + $0x538] sm:$0xff]
  %v7010 = vld [vmem:[%s2 + $0x540] sm:$0xff]
  %v7011 = vld [vmem:[%s2 + $0x548] sm:$0xff]
  %v7012 = vld [vmem:[%s2 + $0x550] sm:$0xff]
  %v7013 = vld [vmem:[%s2 + $0x558] sm:$0xff]
  %v7014 = vld [vmem:[%s2 + $0x560] sm:$0xff]
  %v7015 = vld [vmem:[%s2 + $0x568] sm:$0xff]
  %v7016 = vld [vmem:[%s2 + $0x570] sm:$0xff]
  %v7017 = vld [vmem:[%s2 + $0x578] sm:$0xff]
  %v7018 = vld [vmem:[%s2 + $0x580] sm:$0xff]
  %v7019 = vld [vmem:[%s2 + $0x588] sm:$0xff]
  %v7020 = vld [vmem:[%s2 + $0x590] sm:$0xff]
  %v7021 = vld [vmem:[%s2 + $0x598] sm:$0xff]
  %v7022 = vld [vmem:[%s2 + $0x5a0] sm:$0xff]
  %v7023 = vld [vmem:[%s2 + $0x5a8] sm:$0xff]
  %v7024 = vld [vmem:[%s2 + $0x5b0] sm:$0xff]
  %v7025 = vld [vmem:[%s2 + $0x5b8] sm:$0xff]
  %v7026 = vld [vmem:[%s2 + $0x5c0] sm:$0xff]
  %v7027 = vld [vmem:[%s2 + $0x5c8] sm:$0xff]
  %v7028 = vld [vmem:[%s2 + $0x5d0] sm:$0xff]
  %v7029 = vld [vmem:[%s2 + $0x5d8] sm:$0xff]
  %v7030 = vld [vmem:[%s2 + $0x5e0] sm:$0xff]
  %v7031 = vsel %vm64, %v6983, 0.0
  %v7032 = vsel %vm65, %v6984, 0.0
  %v7033 = vsel %vm66, %v6985, 0.0
  %v7034 = vsel %vm64, %v6986, 0.0
  %v7035 = vsel %vm65, %v6987, 0.0
  %v7036 = vsel %vm66, %v6988, 0.0
  %v7037 = vsel %vm64, %v6989, 0.0
  %v7038 = vsel %vm65, %v6990, 0.0
  %v7039 = vsel %vm66, %v6991, 0.0
  %v7040 = vsel %vm64, %v6992, 0.0
  %v7041 = vsel %vm65, %v6993, 0.0
  %v7042 = vsel %vm66, %v6994, 0.0
  %v7043 = vsel %vm64, %v6995, 0.0
  %v7044 = vsel %vm65, %v6996, 0.0
  %v7045 = vsel %vm66, %v6997, 0.0
  %v7046 = vsel %vm64, %v6998, 0.0
  %v7047 = vsel %vm65, %v6999, 0.0
  %v7048 = vsel %vm66, %v7000, 0.0
  %v7049 = vsel %vm64, %v7001, 0.0
  %v7050 = vsel %vm65, %v7002, 0.0
  %v7051 = vsel %vm66, %v7003, 0.0
  %v7052 = vsel %vm64, %v7004, 0.0
  %v7053 = vsel %vm65, %v7005, 0.0
  %v7054 = vsel %vm66, %v7006, 0.0
  %7055 = vst.msk [vmem:[#allocation2 + $0x8] sm:$0xff] %vm17, %v7031
  %7056 = vst.msk [vmem:[#allocation2 + $0x10] sm:$0xff] %vm17, %v7032
  %7057 = vst.msk [vmem:[#allocation2 + $0x18] sm:$0xff] %vm17, %v7033
  %7058 = vst.msk [vmem:[#allocation2 + $0x20] sm:$0xff] %vm17, %v7034
  %7059 = vst.msk [vmem:[#allocation2 + $0x28] sm:$0xff] %vm17, %v7035
  %7060 = vst.msk [vmem:[#allocation2 + $0x30] sm:$0xff] %vm17, %v7036
  %7061 = vst.msk [vmem:[#allocation2 + $0x38] sm:$0xff] %vm17, %v7037
  %7062 = vst.msk [vmem:[#allocation2 + $0x40] sm:$0xff] %vm17, %v7038
  %7063 = vst.msk [vmem:[#allocation2 + $0x48] sm:$0xff] %vm17, %v7039
  %7064 = vst.msk [vmem:[#allocation2 + $0x50] sm:$0xff] %vm17, %v7040
  %7065 = vst.msk [vmem:[#allocation2 + $0x58] sm:$0xff] %vm17, %v7041
  %7066 = vst.msk [vmem:[#allocation2 + $0x60] sm:$0xff] %vm17, %v7042
  %7067 = vst.msk [vmem:[#allocation2 + $0x68] sm:$0xff] %vm17, %v7043
  %7068 = vst.msk [vmem:[#allocation2 + $0x70] sm:$0xff] %vm17, %v7044
  %7069 = vst.msk [vmem:[#allocation2 + $0x78] sm:$0xff] %vm17, %v7045
  %7070 = vst.msk [vmem:[#allocation2 + $0x80] sm:$0xff] %vm17, %v7046
  %7071 = vst.msk [vmem:[#allocation2 + $0x88] sm:$0xff] %vm17, %v7047
  %7072 = vst.msk [vmem:[#allocation2 + $0x90] sm:$0xff] %vm17, %v7048
  %7073 = vst.msk [vmem:[#allocation2 + $0x98] sm:$0xff] %vm17, %v7049
  %7074 = vst.msk [vmem:[#allocation2 + $0xa0] sm:$0xff] %vm17, %v7050
  %7075 = vst.msk [vmem:[#allocation2 + $0xa8] sm:$0xff] %vm17, %v7051
  %7076 = vst.msk [vmem:[#allocation2 + $0xb0] sm:$0xff] %vm17, %v7052
  %7077 = vst.msk [vmem:[#allocation2 + $0xb8] sm:$0xff] %vm17, %v7053
  %7078 = vst.msk [vmem:[#allocation2 + $0xc0] sm:$0xff] %vm17, %v7054
  %v7079 = vld [vmem:[#allocation2 + $0x7] sm:$0xff]
  %v7080 = vld [vmem:[#allocation2 + $0xf] sm:$0xff]
  %v7081 = vld [vmem:[#allocation2 + $0x17] sm:$0xff]
  %v7082 = vld [vmem:[#allocation2 + $0x1f] sm:$0xff]
  %v7083 = vld [vmem:[#allocation2 + $0x27] sm:$0xff]
  %v7084 = vld [vmem:[#allocation2 + $0x2f] sm:$0xff]
  %v7085 = vld [vmem:[#allocation2 + $0x37] sm:$0xff]
  %v7086 = vld [vmem:[#allocation2 + $0x3f] sm:$0xff]
  %v7087 = vld [vmem:[#allocation2 + $0x47] sm:$0xff]
  %v7088 = vld [vmem:[#allocation2 + $0x4f] sm:$0xff]
  %v7089 = vld [vmem:[#allocation2 + $0x57] sm:$0xff]
  %v7090 = vld [vmem:[#allocation2 + $0x5f] sm:$0xff]
  %v7091 = vld [vmem:[#allocation2 + $0x67] sm:$0xff]
  %v7092 = vld [vmem:[#allocation2 + $0x6f] sm:$0xff]
  %v7093 = vld [vmem:[#allocation2 + $0x77] sm:$0xff]
  %v7094 = vld [vmem:[#allocation2 + $0x7f] sm:$0xff]
  %v7095 = vld [vmem:[#allocation2 + $0x87] sm:$0xff]
  %v7096 = vld [vmem:[#allocation2 + $0x8f] sm:$0xff]
  %v7097 = vld [vmem:[#allocation2 + $0x97] sm:$0xff]
  %v7098 = vld [vmem:[#allocation2 + $0x9f] sm:$0xff]
  %v7099 = vld [vmem:[#allocation2 + $0xa7] sm:$0xff]
  %v7100 = vld [vmem:[#allocation2 + $0xaf] sm:$0xff]
  %v7101 = vld [vmem:[#allocation2 + $0xb7] sm:$0xff]
  %v7102 = vld [vmem:[#allocation2 + $0xbf] sm:$0xff]
  %v7103 = vld [vmem:[#allocation2 + $0x8] sm:$0xff]
  %v7104 = vld [vmem:[#allocation2 + $0x10] sm:$0xff]
  %v7105 = vld [vmem:[#allocation2 + $0x18] sm:$0xff]
  %v7106 = vld [vmem:[#allocation2 + $0x20] sm:$0xff]
  %v7107 = vld [vmem:[#allocation2 + $0x28] sm:$0xff]
  %v7108 = vld [vmem:[#allocation2 + $0x30] sm:$0xff]
  %v7109 = vld [vmem:[#allocation2 + $0x38] sm:$0xff]
  %v7110 = vld [vmem:[#allocation2 + $0x40] sm:$0xff]
  %v7111 = vld [vmem:[#allocation2 + $0x48] sm:$0xff]
  %v7112 = vld [vmem:[#allocation2 + $0x50] sm:$0xff]
  %v7113 = vld [vmem:[#allocation2 + $0x58] sm:$0xff]
  %v7114 = vld [vmem:[#allocation2 + $0x60] sm:$0xff]
  %v7115 = vld [vmem:[#allocation2 + $0x68] sm:$0xff]
  %v7116 = vld [vmem:[#allocation2 + $0x70] sm:$0xff]
  %v7117 = vld [vmem:[#allocation2 + $0x78] sm:$0xff]
  %v7118 = vld [vmem:[#allocation2 + $0x80] sm:$0xff]
  %v7119 = vld [vmem:[#allocation2 + $0x88] sm:$0xff]
  %v7120 = vld [vmem:[#allocation2 + $0x90] sm:$0xff]
  %v7121 = vld [vmem:[#allocation2 + $0x98] sm:$0xff]
  %v7122 = vld [vmem:[#allocation2 + $0xa0] sm:$0xff]
  %v7123 = vld [vmem:[#allocation2 + $0xa8] sm:$0xff]
  %v7124 = vld [vmem:[#allocation2 + $0xb0] sm:$0xff]
  %v7125 = vld [vmem:[#allocation2 + $0xb8] sm:$0xff]
  %v7126 = vld [vmem:[#allocation2 + $0xc0] sm:$0xff]
  %v7127 = vld [vmem:[#allocation2 + $0x9] sm:$0xff]
  %v7128 = vld [vmem:[#allocation2 + $0x11] sm:$0xff]
  %v7129 = vld [vmem:[#allocation2 + $0x19] sm:$0xff]
  %v7130 = vld [vmem:[#allocation2 + $0x21] sm:$0xff]
  %v7131 = vld [vmem:[#allocation2 + $0x29] sm:$0xff]
  %v7132 = vld [vmem:[#allocation2 + $0x31] sm:$0xff]
  %v7133 = vld [vmem:[#allocation2 + $0x39] sm:$0xff]
  %v7134 = vld [vmem:[#allocation2 + $0x41] sm:$0xff]
  %v7135 = vld [vmem:[#allocation2 + $0x49] sm:$0xff]
  %v7136 = vld [vmem:[#allocation2 + $0x51] sm:$0xff]
  %v7137 = vld [vmem:[#allocation2 + $0x59] sm:$0xff]
  %v7138 = vld [vmem:[#allocation2 + $0x61] sm:$0xff]
  %v7139 = vld [vmem:[#allocation2 + $0x69] sm:$0xff]
  %v7140 = vld [vmem:[#allocation2 + $0x71] sm:$0xff]
  %v7141 = vld [vmem:[#allocation2 + $0x79] sm:$0xff]
  %v7142 = vld [vmem:[#allocation2 + $0x81] sm:$0xff]
  %v7143 = vld [vmem:[#allocation2 + $0x89] sm:$0xff]
  %v7144 = vld [vmem:[#allocation2 + $0x91] sm:$0xff]
  %v7145 = vld [vmem:[#allocation2 + $0x99] sm:$0xff]
  %v7146 = vld [vmem:[#allocation2 + $0xa1] sm:$0xff]
  %v7147 = vld [vmem:[#allocation2 + $0xa9] sm:$0xff]
  %v7148 = vld [vmem:[#allocation2 + $0xb1] sm:$0xff]
  %v7149 = vld [vmem:[#allocation2 + $0xb9] sm:$0xff]
  %v7150 = vld [vmem:[#allocation2 + $0xc1] sm:$0xff]
  %7175 = vrot.lane.b32.xlu0 %v7103, 64
  %v7176 = vpop.permute.xlu0 %7175
  %7177 = vrot.lane.b32.xlu0 %v7104, 64
  %v7178 = vpop.permute.xlu0 %7177
  %7179 = vrot.lane.b32.xlu0 %v7105, 64
  %v7180 = vpop.permute.xlu0 %7179
  %7181 = vrot.lane.b32.xlu0 %v7106, 64
  %v7182 = vpop.permute.xlu0 %7181
  %7183 = vrot.lane.b32.xlu0 %v7107, 64
  %v7184 = vpop.permute.xlu0 %7183
  %7185 = vrot.lane.b32.xlu0 %v7108, 64
  %v7186 = vpop.permute.xlu0 %7185
  %7187 = vrot.lane.b32.xlu0 %v7109, 64
  %v7188 = vpop.permute.xlu0 %7187
  %7189 = vrot.lane.b32.xlu0 %v7110, 64
  %v7190 = vpop.permute.xlu0 %7189
  %7191 = vrot.lane.b32.xlu0 %v7111, 64
  %v7192 = vpop.permute.xlu0 %7191
  %7193 = vrot.lane.b32.xlu0 %v7112, 64
  %v7194 = vpop.permute.xlu0 %7193
  %7195 = vrot.lane.b32.xlu0 %v7113, 64
  %v7196 = vpop.permute.xlu0 %7195
  %7197 = vrot.lane.b32.xlu0 %v7114, 64
  %v7198 = vpop.permute.xlu0 %7197
  %7199 = vrot.lane.b32.xlu0 %v7115, 64
  %v7200 = vpop.permute.xlu0 %7199
  %7201 = vrot.lane.b32.xlu0 %v7116, 64
  %v7202 = vpop.permute.xlu0 %7201
  %7203 = vrot.lane.b32.xlu0 %v7117, 64
  %v7204 = vpop.permute.xlu0 %7203
  %7205 = vrot.lane.b32.xlu0 %v7118, 64
  %v7206 = vpop.permute.xlu0 %7205
  %7207 = vrot.lane.b32.xlu0 %v7119, 64
  %v7208 = vpop.permute.xlu0 %7207
  %7209 = vrot.lane.b32.xlu0 %v7120, 64
  %v7210 = vpop.permute.xlu0 %7209
  %7211 = vrot.lane.b32.xlu0 %v7121, 64
  %v7212 = vpop.permute.xlu0 %7211
  %7213 = vrot.lane.b32.xlu0 %v7122, 64
  %v7214 = vpop.permute.xlu0 %7213
  %7215 = vrot.lane.b32.xlu0 %v7123, 64
  %v7216 = vpop.permute.xlu0 %7215
  %7217 = vrot.lane.b32.xlu0 %v7124, 64
  %v7218 = vpop.permute.xlu0 %7217
  %7219 = vrot.lane.b32.xlu0 %v7125, 64
  %v7220 = vpop.permute.xlu0 %7219
  %7221 = vrot.lane.b32.xlu0 %v7126, 64
  %v7222 = vpop.permute.xlu0 %7221
  %v7247 = vsel %vm17, %v7079, %v7176
  %v7248 = vsel %vm17, %v7080, %v7178
  %v7249 = vsel %vm17, %v7081, %v7180
  %v7250 = vsel %vm17, %v7082, %v7182
  %v7251 = vsel %vm17, %v7083, %v7184
  %v7252 = vsel %vm17, %v7084, %v7186
  %v7253 = vsel %vm17, %v7085, %v7188
  %v7254 = vsel %vm17, %v7086, %v7190
  %v7255 = vsel %vm17, %v7087, %v7192
  %v7256 = vsel %vm17, %v7088, %v7194
  %v7257 = vsel %vm17, %v7089, %v7196
  %v7258 = vsel %vm17, %v7090, %v7198
  %v7259 = vsel %vm17, %v7091, %v7200
  %v7260 = vsel %vm17, %v7092, %v7202
  %v7261 = vsel %vm17, %v7093, %v7204
  %v7262 = vsel %vm17, %v7094, %v7206
  %v7263 = vsel %vm17, %v7095, %v7208
  %v7264 = vsel %vm17, %v7096, %v7210
  %v7265 = vsel %vm17, %v7097, %v7212
  %v7266 = vsel %vm17, %v7098, %v7214
  %v7267 = vsel %vm17, %v7099, %v7216
  %v7268 = vsel %vm17, %v7100, %v7218
  %v7269 = vsel %vm17, %v7101, %v7220
  %v7270 = vsel %vm17, %v7102, %v7222
  %v7271 = vld [vmem:[%s3 + $0xe] sm:$0x1]
  %v7272 = vlaneseq
  %v7273 = vshrl.u32 %v7272, 7
  %v7274 = vsub.s32 0, %v7273
  %v7275 = vrot.slane %v7271, %v7274
  %v7277 = vsel %vm17, %v7127, 0
  %v7280 = vsel %vm17, %v7128, 0
  %v7283 = vsel %vm17, %v7129, 0
  %v7286 = vsel %vm17, %v7130, 0
  %v7289 = vsel %vm17, %v7131, 0
  %v7292 = vsel %vm17, %v7132, 0
  %v7295 = vsel %vm17, %v7133, 0
  %v7298 = vsel %vm17, %v7134, 0
  %v7301 = vsel %vm17, %v7135, 0
  %v7304 = vsel %vm17, %v7136, 0
  %v7307 = vsel %vm17, %v7137, 0
  %v7310 = vsel %vm17, %v7138, 0
  %v7313 = vsel %vm17, %v7139, 0
  %v7316 = vsel %vm17, %v7140, 0
  %v7319 = vsel %vm17, %v7141, 0
  %v7322 = vsel %vm17, %v7142, 0
  %v7325 = vsel %vm17, %v7143, 0
  %v7328 = vsel %vm17, %v7144, 0
  %v7331 = vsel %vm17, %v7145, 0
  %v7334 = vsel %vm17, %v7146, 0
  %v7337 = vsel %vm17, %v7147, 0
  %v7340 = vsel %vm17, %v7148, 0
  %v7343 = vsel %vm17, %v7149, 0
  %v7346 = vsel %vm17, %v7150, 0
  %7348 = vmatprep.subr.mxu0 0.0
  %7349 = vmatpush1.msra.mxu0 %v7007
  %7350 = vmatprep.subr.mxu0 0.0
  %7351 = vmatpush1.msra.mxu0 %v7008
  %7352 = vmatprep.subr.mxu0 0.0
  %7353 = vmatpush1.msra.mxu0 %v7009
  %7354 = vmatprep.subr.mxu0 0.0
  %7355 = vmatpush1.msra.mxu0 %v7010
  %7356 = vmatprep.subr.mxu0 0.0
  %7357 = vmatpush1.msra.mxu0 %v7011
  %7358 = vmatprep.subr.mxu0 0.0
  %7359 = vmatpush1.msra.mxu0 %v7012
  %7360 = vmatprep.subr.mxu0 0.0
  %7361 = vmatpush1.msra.mxu0 %v7013
  %7362 = vmatprep.subr.mxu0 0.0
  %7363 = vmatpush1.msra.mxu0 %v7014
  %7364 = vmatprep.subr.mxu0 0.0
  %7365 = vmatpush1.msra.mxu0 %v7015
  %7366 = vmatprep.subr.mxu0 0.0
  %7367 = vmatpush1.msra.mxu0 %v7016
  %7368 = vmatprep.subr.mxu0 0.0
  %7369 = vmatpush1.msra.mxu0 %v7017
  %7370 = vmatprep.subr.mxu0 0.0
  %7371 = vmatpush1.msra.mxu0 %v7018
  %7372 = vmatprep.subr.mxu0 0.0
  %7373 = vmatpush1.msra.mxu0 %v7019
  %7374 = vmatprep.subr.mxu0 0.0
  %7375 = vmatpush1.msra.mxu0 %v7020
  %7376 = vmatprep.subr.mxu0 0.0
  %7377 = vmatpush1.msra.mxu0 %v7021
  %7378 = vmatprep.subr.mxu0 0.0
  %7379 = vmatpush1.msra.mxu0 %v7022
  %7380 = vmatprep.subr.mxu0 0.0
  %7381 = vmatpush1.msra.mxu0 %v7023
  %7382 = vmatprep.subr.mxu0 0.0
  %7383 = vmatpush1.msra.mxu0 %v7024
  %7384 = vmatprep.subr.mxu0 0.0
  %7385 = vmatpush1.msra.mxu0 %v7025
  %7386 = vmatprep.subr.mxu0 0.0
  %7387 = vmatpush1.msra.mxu0 %v7026
  %7388 = vmatprep.subr.mxu0 0.0
  %7389 = vmatpush1.msra.mxu0 %v7027
  %7390 = vmatprep.subr.mxu0 0.0
  %7391 = vmatpush1.msra.mxu0 %v7028
  %7392 = vmatprep.subr.mxu0 0.0
  %7393 = vmatpush1.msra.mxu0 %v7029
  %7394 = vmatprep.subr.mxu0 0.0
  %7395 = vmatpush1.msra.mxu0 %v7030
  %7396 = vmatprep.subr.mxu0 0.0
  %7397 = vmatpush1.msra.mxu0 0.0
  %7398 = vmatprep.subr.mxu0 0.0
  %7399 = vmatpush1.msra.mxu0 0.0
  %7400 = vmatprep.subr.mxu0 0.0
  %7401 = vmatpush1.msra.mxu0 0.0
  %7402 = vmatprep.subr.mxu0 0.0
  %7403 = vmatpush1.msra.mxu0 0.0
  %7404 = vmatprep.subr.mxu0 0.0
  %7405 = vmatpush1.msra.mxu0 0.0
  %7406 = vmatprep.subr.mxu0 0.0
  %7407 = vmatpush1.msra.mxu0 0.0
  %7408 = vmatprep.subr.mxu0 0.0
  %7409 = vmatpush1.msra.mxu0 0.0
  %7410 = vmatprep.subr.mxu0 0.0
  %7411 = vmatpush1.msra.mxu0 0.0
  %7412 = vmatprep.mubr.f32.mxu0 %v7277
  %7413 = vmatmul.mubr.f32.gmra.mrb[0].mxu0 %v7247
  %v7414 = vpop.f32.mrb[0].mxu0
  %v7415 = vadd.f32 %v7275, %v7414
  %v7416 = vpop.f32.mrb[0].mxu0
  %7417 = vmatprep.mubr.f32.mxu0 %v7280
  %7418 = vmatmul.mubr.f32.gmra.mrb[0].mxu0 %v7248
  %v7419 = vpop.f32.mrb[0].mxu0
  %v7420 = vadd.f32 %v7275, %v7419
  %v7421 = vpop.f32.mrb[0].mxu0
  %7422 = vmatprep.mubr.f32.mxu0 %v7283
  %7423 = vmatmul.mubr.f32.gmra.mrb[0].mxu0 %v7249
  %v7424 = vpop.f32.mrb[0].mxu0
  %v7425 = vadd.f32 %v7275, %v7424
  %v7426 = vpop.f32.mrb[0].mxu0
  %7427 = vmatprep.mubr.f32.mxu0 %v7286
  %7428 = vmatmul.mubr.f32.gmra.mrb[0].mxu0 %v7250
  %v7429 = vpop.f32.mrb[0].mxu0
  %v7430 = vadd.f32 %v7275, %v7429
  %v7431 = vpop.f32.mrb[0].mxu0
  %7432 = vmatprep.mubr.f32.mxu0 %v7289
  %7433 = vmatmul.mubr.f32.gmra.mrb[0].mxu0 %v7251
  %v7434 = vpop.f32.mrb[0].mxu0
  %v7435 = vadd.f32 %v7275, %v7434
  %v7436 = vpop.f32.mrb[0].mxu0
  %7437 = vmatprep.mubr.f32.mxu0 %v7292
  %7438 = vmatmul.mubr.f32.gmra.mrb[0].mxu0 %v7252
  %v7439 = vpop.f32.mrb[0].mxu0
  %v7440 = vadd.f32 %v7275, %v7439
  %v7441 = vpop.f32.mrb[0].mxu0
  %7442 = vmatprep.mubr.f32.mxu0 %v7295
  %7443 = vmatmul.mubr.f32.gmra.mrb[0].mxu0 %v7253
  %v7444 = vpop.f32.mrb[0].mxu0
  %v7445 = vadd.f32 %v7275, %v7444
  %v7446 = vpop.f32.mrb[0].mxu0
  %7447 = vmatprep.mubr.f32.mxu0 %v7298
  %7448 = vmatmul.mubr.f32.gmra.mrb[0].mxu0 %v7254
  %v7449 = vpop.f32.mrb[0].mxu0
  %v7450 = vadd.f32 %v7275, %v7449
  %v7451 = vpop.f32.mrb[0].mxu0
  %7452 = vmatprep.mubr.f32.mxu0 %v7301
  %7453 = vmatmul.mubr.f32.gmra.mrb[0].mxu0 %v7255
  %v7454 = vpop.f32.mrb[0].mxu0
  %v7455 = vadd.f32 %v7275, %v7454
  %v7456 = vpop.f32.mrb[0].mxu0
  %7457 = vmatprep.mubr.f32.mxu0 %v7304
  %7458 = vmatmul.mubr.f32.gmra.mrb[0].mxu0 %v7256
  %v7459 = vpop.f32.mrb[0].mxu0
  %v7460 = vadd.f32 %v7275, %v7459
  %v7461 = vpop.f32.mrb[0].mxu0
  %7462 = vmatprep.mubr.f32.mxu0 %v7307
  %7463 = vmatmul.mubr.f32.gmra.mrb[0].mxu0 %v7257
  %v7464 = vpop.f32.mrb[0].mxu0
  %v7465 = vadd.f32 %v7275, %v7464
  %v7466 = vpop.f32.mrb[0].mxu0
  %7467 = vmatprep.mubr.f32.mxu0 %v7310
  %7468 = vmatmul.mubr.f32.gmra.mrb[0].mxu0 %v7258
  %v7469 = vpop.f32.mrb[0].mxu0
  %v7470 = vadd.f32 %v7275, %v7469
  %v7471 = vpop.f32.mrb[0].mxu0
  %7472 = vmatprep.mubr.f32.mxu0 %v7313
  %7473 = vmatmul.mubr.f32.gmra.mrb[0].mxu0 %v7259
  %v7474 = vpop.f32.mrb[0].mxu0
  %v7475 = vadd.f32 %v7275, %v7474
  %v7476 = vpop.f32.mrb[0].mxu0
  %7477 = vmatprep.mubr.f32.mxu0 %v7316
  %7478 = vmatmul.mubr.f32.gmra.mrb[0].mxu0 %v7260
  %v7479 = vpop.f32.mrb[0].mxu0
  %v7480 = vadd.f32 %v7275, %v7479
  %v7481 = vpop.f32.mrb[0].mxu0
  %7482 = vmatprep.mubr.f32.mxu0 %v7319
  %7483 = vmatmul.mubr.f32.gmra.mrb[0].mxu0 %v7261
  %v7484 = vpop.f32.mrb[0].mxu0
  %v7485 = vadd.f32 %v7275, %v7484
  %v7486 = vpop.f32.mrb[0].mxu0
  %7487 = vmatprep.mubr.f32.mxu0 %v7322
  %7488 = vmatmul.mubr.f32.gmra.mrb[0].mxu0 %v7262
  %v7489 = vpop.f32.mrb[0].mxu0
  %v7490 = vadd.f32 %v7275, %v7489
  %v7491 = vpop.f32.mrb[0].mxu0
  %7492 = vmatprep.mubr.f32.mxu0 %v7325
  %7493 = vmatmul.mubr.f32.gmra.mrb[0].mxu0 %v7263
  %v7494 = vpop.f32.mrb[0].mxu0
  %v7495 = vadd.f32 %v7275, %v7494
  %v7496 = vpop.f32.mrb[0].mxu0
  %7497 = vmatprep.mubr.f32.mxu0 %v7328
  %7498 = vmatmul.mubr.f32.gmra.mrb[0].mxu0 %v7264
  %v7499 = vpop.f32.mrb[0].mxu0
  %v7500 = vadd.f32 %v7275, %v7499
  %v7501 = vpop.f32.mrb[0].mxu0
  %7502 = vmatprep.mubr.f32.mxu0 %v7331
  %7503 = vmatmul.mubr.f32.gmra.mrb[0].mxu0 %v7265
  %v7504 = vpop.f32.mrb[0].mxu0
  %v7505 = vadd.f32 %v7275, %v7504
  %v7506 = vpop.f32.mrb[0].mxu0
  %7507 = vmatprep.mubr.f32.mxu0 %v7334
  %7508 = vmatmul.mubr.f32.gmra.mrb[0].mxu0 %v7266
  %v7509 = vpop.f32.mrb[0].mxu0
  %v7510 = vadd.f32 %v7275, %v7509
  %v7511 = vpop.f32.mrb[0].mxu0
  %7512 = vmatprep.mubr.f32.mxu0 %v7337
  %7513 = vmatmul.mubr.f32.gmra.mrb[0].mxu0 %v7267
  %v7514 = vpop.f32.mrb[0].mxu0
  %v7515 = vadd.f32 %v7275, %v7514
  %v7516 = vpop.f32.mrb[0].mxu0
  %7517 = vmatprep.mubr.f32.mxu0 %v7340
  %7518 = vmatmul.mubr.f32.gmra.mrb[0].mxu0 %v7268
  %v7519 = vpop.f32.mrb[0].mxu0
  %v7520 = vadd.f32 %v7275, %v7519
  %v7521 = vpop.f32.mrb[0].mxu0
  %7522 = vmatprep.mubr.f32.mxu0 %v7343
  %7523 = vmatmul.mubr.f32.gmra.mrb[0].mxu0 %v7269
  %v7524 = vpop.f32.mrb[0].mxu0
  %v7525 = vadd.f32 %v7275, %v7524
  %v7526 = vpop.f32.mrb[0].mxu0
  %7527 = vmatprep.mubr.f32.mxu0 %v7346
  %7528 = vmatmul.mubr.f32.gmra.mrb[0].mxu0 %v7270
  %v7529 = vpop.f32.mrb[0].mxu0
  %v7530 = vadd.f32 %v7275, %v7529
  %v7531 = vpop.f32.mrb[0].mxu0
  %7532 = vdwg.mxu0
  %v7533 = vsel %vm64, %v7415, 0.0
  %v7534 = vsel %vm65, %v7420, 0.0
  %v7535 = vsel %vm66, %v7425, 0.0
  %v7536 = vsel %vm64, %v7430, 0.0
  %v7537 = vsel %vm65, %v7435, 0.0
  %v7538 = vsel %vm66, %v7440, 0.0
  %v7539 = vsel %vm64, %v7445, 0.0
  %v7540 = vsel %vm65, %v7450, 0.0
  %v7541 = vsel %vm66, %v7455, 0.0
  %v7542 = vsel %vm64, %v7460, 0.0
  %v7543 = vsel %vm65, %v7465, 0.0
  %v7544 = vsel %vm66, %v7470, 0.0
  %v7545 = vsel %vm64, %v7475, 0.0
  %v7546 = vsel %vm65, %v7480, 0.0
  %v7547 = vsel %vm66, %v7485, 0.0
  %v7548 = vsel %vm64, %v7490, 0.0
  %v7549 = vsel %vm65, %v7495, 0.0
  %v7550 = vsel %vm66, %v7500, 0.0
  %v7551 = vsel %vm64, %v7505, 0.0
  %v7552 = vsel %vm65, %v7510, 0.0
  %v7553 = vsel %vm66, %v7515, 0.0
  %v7554 = vsel %vm64, %v7520, 0.0
  %v7555 = vsel %vm65, %v7525, 0.0
  %v7556 = vsel %vm66, %v7530, 0.0
  %v7557 = vmul.f32 %v7533, %v7533
  %v7558 = vmul.f32 %v7534, %v7534
  %v7559 = vmul.f32 %v7535, %v7535
  %v7560 = vmul.f32 %v7536, %v7536
  %v7561 = vmul.f32 %v7537, %v7537
  %v7562 = vmul.f32 %v7538, %v7538
  %v7563 = vmul.f32 %v7539, %v7539
  %v7564 = vmul.f32 %v7540, %v7540
  %v7565 = vmul.f32 %v7541, %v7541
  %v7566 = vmul.f32 %v7542, %v7542
  %v7567 = vmul.f32 %v7543, %v7543
  %v7568 = vmul.f32 %v7544, %v7544
  %v7569 = vmul.f32 %v7545, %v7545
  %v7570 = vmul.f32 %v7546, %v7546
  %v7571 = vmul.f32 %v7547, %v7547
  %v7572 = vmul.f32 %v7548, %v7548
  %v7573 = vmul.f32 %v7549, %v7549
  %v7574 = vmul.f32 %v7550, %v7550
  %v7575 = vmul.f32 %v7551, %v7551
  %v7576 = vmul.f32 %v7552, %v7552
  %v7577 = vmul.f32 %v7553, %v7553
  %v7578 = vmul.f32 %v7554, %v7554
  %v7579 = vmul.f32 %v7555, %v7555
  %v7580 = vmul.f32 %v7556, %v7556
  %7605 = vrot.lane.b32.xlu0 %v7557, 64
  %v7606 = vpop.permute.xlu0 %7605
  %7607 = vrot.lane.b32.xlu0 %v7558, 64
  %v7608 = vpop.permute.xlu0 %7607
  %7609 = vrot.lane.b32.xlu0 %v7559, 64
  %v7610 = vpop.permute.xlu0 %7609
  %7611 = vrot.lane.b32.xlu0 %v7560, 64
  %v7612 = vpop.permute.xlu0 %7611
  %7613 = vrot.lane.b32.xlu0 %v7561, 64
  %v7614 = vpop.permute.xlu0 %7613
  %7615 = vrot.lane.b32.xlu0 %v7562, 64
  %v7616 = vpop.permute.xlu0 %7615
  %7617 = vrot.lane.b32.xlu0 %v7563, 64
  %v7618 = vpop.permute.xlu0 %7617
  %7619 = vrot.lane.b32.xlu0 %v7564, 64
  %v7620 = vpop.permute.xlu0 %7619
  %7621 = vrot.lane.b32.xlu0 %v7565, 64
  %v7622 = vpop.permute.xlu0 %7621
  %7623 = vrot.lane.b32.xlu0 %v7566, 64
  %v7624 = vpop.permute.xlu0 %7623
  %7625 = vrot.lane.b32.xlu0 %v7567, 64
  %v7626 = vpop.permute.xlu0 %7625
  %7627 = vrot.lane.b32.xlu0 %v7568, 64
  %v7628 = vpop.permute.xlu0 %7627
  %7629 = vrot.lane.b32.xlu0 %v7569, 64
  %v7630 = vpop.permute.xlu0 %7629
  %7631 = vrot.lane.b32.xlu0 %v7570, 64
  %v7632 = vpop.permute.xlu0 %7631
  %7633 = vrot.lane.b32.xlu0 %v7571, 64
  %v7634 = vpop.permute.xlu0 %7633
  %7635 = vrot.lane.b32.xlu0 %v7572, 64
  %v7636 = vpop.permute.xlu0 %7635
  %7637 = vrot.lane.b32.xlu0 %v7573, 64
  %v7638 = vpop.permute.xlu0 %7637
  %7639 = vrot.lane.b32.xlu0 %v7574, 64
  %v7640 = vpop.permute.xlu0 %7639
  %7641 = vrot.lane.b32.xlu0 %v7575, 64
  %v7642 = vpop.permute.xlu0 %7641
  %7643 = vrot.lane.b32.xlu0 %v7576, 64
  %v7644 = vpop.permute.xlu0 %7643
  %7645 = vrot.lane.b32.xlu0 %v7577, 64
  %v7646 = vpop.permute.xlu0 %7645
  %7647 = vrot.lane.b32.xlu0 %v7578, 64
  %v7648 = vpop.permute.xlu0 %7647
  %7649 = vrot.lane.b32.xlu0 %v7579, 64
  %v7650 = vpop.permute.xlu0 %7649
  %7651 = vrot.lane.b32.xlu0 %v7580, 64
  %v7652 = vpop.permute.xlu0 %7651
  %v7677 = vsel %vm17, %v7533, %v7606
  %v7678 = vsel %vm17, %v7534, %v7608
  %v7679 = vsel %vm17, %v7535, %v7610
  %v7680 = vsel %vm17, %v7536, %v7612
  %v7681 = vsel %vm17, %v7537, %v7614
  %v7682 = vsel %vm17, %v7538, %v7616
  %v7683 = vsel %vm17, %v7539, %v7618
  %v7684 = vsel %vm17, %v7540, %v7620
  %v7685 = vsel %vm17, %v7541, %v7622
  %v7686 = vsel %vm17, %v7542, %v7624
  %v7687 = vsel %vm17, %v7543, %v7626
  %v7688 = vsel %vm17, %v7544, %v7628
  %v7689 = vsel %vm17, %v7545, %v7630
  %v7690 = vsel %vm17, %v7546, %v7632
  %v7691 = vsel %vm17, %v7547, %v7634
  %v7692 = vsel %vm17, %v7548, %v7636
  %v7693 = vsel %vm17, %v7549, %v7638
  %v7694 = vsel %vm17, %v7550, %v7640
  %v7695 = vsel %vm17, %v7551, %v7642
  %v7696 = vsel %vm17, %v7552, %v7644
  %v7697 = vsel %vm17, %v7553, %v7646
  %v7698 = vsel %vm17, %v7554, %v7648
  %v7699 = vsel %vm17, %v7555, %v7650
  %v7700 = vsel %vm17, %v7556, %v7652
  %v7701 = vadd.f32 %v7677, %v7678
  %v7702 = vadd.f32 %v7701, %v7679
  %v7703 = vadd.f32 %v7702, %v7680
  %v7704 = vadd.f32 %v7703, %v7681
  %v7705 = vadd.f32 %v7704, %v7682
  %v7706 = vadd.f32 %v7705, %v7683
  %v7707 = vadd.f32 %v7706, %v7684
  %v7708 = vadd.f32 %v7707, %v7685
  %v7709 = vadd.f32 %v7708, %v7686
  %v7710 = vadd.f32 %v7709, %v7687
  %v7711 = vadd.f32 %v7710, %v7688
  %v7712 = vadd.f32 %v7711, %v7689
  %v7713 = vadd.f32 %v7712, %v7690
  %v7714 = vadd.f32 %v7713, %v7691
  %v7715 = vadd.f32 %v7714, %v7692
  %v7716 = vadd.f32 %v7715, %v7693
  %v7717 = vadd.f32 %v7716, %v7694
  %v7718 = vadd.f32 %v7717, %v7695
  %v7719 = vadd.f32 %v7718, %v7696
  %v7720 = vadd.f32 %v7719, %v7697
  %v7721 = vadd.f32 %v7720, %v7698
  %v7722 = vadd.f32 %v7721, %v7699
  %v7723 = vadd.f32 %v7722, %v7700
  %v7724 = vrot.slane %v7723, 4
  %v7725 = vadd.f32 %v7723, %v7724
  %v7726 = vrot.slane %v7725, 2
  %v7727 = vadd.f32 %v7725, %v7726
  %v7728 = vrot.slane %v7727, 1
  %v7729 = vadd.f32 %v7727, %v7728
  %v7730 = vmul.f32 %v7729, 0.0078125
  %v7731 = vmul.f32 %v7730, %v7730
  %7733 = vrot.lane.b32.xlu0 %v7731, 64
  %v7734 = vpop.permute.xlu0 %7733
  %v7736 = vsub.f32 %v7730, %v7734
  %v7737 = vmax.f32 %v7736, 0.0
  %v7738 = vld [vmem:[%s3 + $0x13] sm:$0x1]
  %v7739 = vsub.f32 %v7415, %v7730
  %v7740 = vsub.f32 %v7420, %v7730
  %v7741 = vsub.f32 %v7425, %v7730
  %v7742 = vsub.f32 %v7430, %v7730
  %v7743 = vsub.f32 %v7435, %v7730
  %v7744 = vsub.f32 %v7440, %v7730
  %v7745 = vsub.f32 %v7445, %v7730
  %v7746 = vsub.f32 %v7450, %v7730
  %v7747 = vsub.f32 %v7455, %v7730
  %v7748 = vsub.f32 %v7460, %v7730
  %v7749 = vsub.f32 %v7465, %v7730
  %v7750 = vsub.f32 %v7470, %v7730
  %v7751 = vsub.f32 %v7475, %v7730
  %v7752 = vsub.f32 %v7480, %v7730
  %v7753 = vsub.f32 %v7485, %v7730
  %v7754 = vsub.f32 %v7490, %v7730
  %v7755 = vsub.f32 %v7495, %v7730
  %v7756 = vsub.f32 %v7500, %v7730
  %v7757 = vsub.f32 %v7505, %v7730
  %v7758 = vsub.f32 %v7510, %v7730
  %v7759 = vsub.f32 %v7515, %v7730
  %v7760 = vsub.f32 %v7520, %v7730
  %v7761 = vsub.f32 %v7525, %v7730
  %v7762 = vsub.f32 %v7530, %v7730
  %v7763 = vadd.f32 %v7737, 1e-05
  %v7764 = vrsqrt.pop %v7763
  %v7765 = vlaneseq
  %v7766 = vshrl.u32 %v7765, 7
  %v7767 = vsub.s32 0, %v7766
  %v7768 = vrot.slane %v7764, %v7767
  %7770 = vrot.lane.b32.xlu0 %v7768, 64
  %v7771 = vpop.permute.xlu0 %7770
  %v7773 = vmul.f32 %v7739, %v7771
  %v7774 = vmul.f32 %v7740, %v7771
  %v7775 = vmul.f32 %v7741, %v7771
  %v7776 = vmul.f32 %v7742, %v7771
  %v7777 = vmul.f32 %v7743, %v7771
  %v7778 = vmul.f32 %v7744, %v7771
  %v7779 = vmul.f32 %v7745, %v7771
  %v7780 = vmul.f32 %v7746, %v7771
  %v7781 = vmul.f32 %v7747, %v7771
  %v7782 = vmul.f32 %v7748, %v7771
  %v7783 = vmul.f32 %v7749, %v7771
  %v7784 = vmul.f32 %v7750, %v7771
  %v7785 = vmul.f32 %v7751, %v7771
  %v7786 = vmul.f32 %v7752, %v7771
  %v7787 = vmul.f32 %v7753, %v7771
  %v7788 = vmul.f32 %v7754, %v7771
  %v7789 = vmul.f32 %v7755, %v7771
  %v7790 = vmul.f32 %v7756, %v7771
  %v7791 = vmul.f32 %v7757, %v7771
  %v7792 = vmul.f32 %v7758, %v7771
  %v7793 = vmul.f32 %v7759, %v7771
  %v7794 = vmul.f32 %v7760, %v7771
  %v7795 = vmul.f32 %v7761, %v7771
  %v7796 = vmul.f32 %v7762, %v7771
  %v7797 = vlaneseq
  %v7798 = vshrl.u32 %v7797, 7
  %v7799 = vsub.s32 0, %v7798
  %v7800 = vrot.slane %v7738, %v7799
  %v7801 = vmul.f32 %v7800, %v7773
  %v7802 = vmul.f32 %v7800, %v7774
  %v7803 = vmul.f32 %v7800, %v7775
  %v7804 = vmul.f32 %v7800, %v7776
  %v7805 = vmul.f32 %v7800, %v7777
  %v7806 = vmul.f32 %v7800, %v7778
  %v7807 = vmul.f32 %v7800, %v7779
  %v7808 = vmul.f32 %v7800, %v7780
  %v7809 = vmul.f32 %v7800, %v7781
  %v7810 = vmul.f32 %v7800, %v7782
  %v7811 = vmul.f32 %v7800, %v7783
  %v7812 = vmul.f32 %v7800, %v7784
  %v7813 = vmul.f32 %v7800, %v7785
  %v7814 = vmul.f32 %v7800, %v7786
  %v7815 = vmul.f32 %v7800, %v7787
  %v7816 = vmul.f32 %v7800, %v7788
  %v7817 = vmul.f32 %v7800, %v7789
  %v7818 = vmul.f32 %v7800, %v7790
  %v7819 = vmul.f32 %v7800, %v7791
  %v7820 = vmul.f32 %v7800, %v7792
  %v7821 = vmul.f32 %v7800, %v7793
  %v7822 = vmul.f32 %v7800, %v7794
  %v7823 = vmul.f32 %v7800, %v7795
  %v7824 = vmul.f32 %v7800, %v7796
  %v7825 = vld [vmem:[%s3 + $0x14] sm:$0x1]
  %v7826 = vlaneseq
  %v7827 = vshrl.u32 %v7826, 7
  %v7828 = vsub.s32 0, %v7827
  %v7829 = vrot.slane %v7825, %v7828
  %v7830 = vadd.f32 %v7801, %v7829
  %v7831 = vadd.f32 %v7802, %v7829
  %v7832 = vadd.f32 %v7803, %v7829
  %v7833 = vadd.f32 %v7804, %v7829
  %v7834 = vadd.f32 %v7805, %v7829
  %v7835 = vadd.f32 %v7806, %v7829
  %v7836 = vadd.f32 %v7807, %v7829
  %v7837 = vadd.f32 %v7808, %v7829
  %v7838 = vadd.f32 %v7809, %v7829
  %v7839 = vadd.f32 %v7810, %v7829
  %v7840 = vadd.f32 %v7811, %v7829
  %v7841 = vadd.f32 %v7812, %v7829
  %v7842 = vadd.f32 %v7813, %v7829
  %v7843 = vadd.f32 %v7814, %v7829
  %v7844 = vadd.f32 %v7815, %v7829
  %v7845 = vadd.f32 %v7816, %v7829
  %v7846 = vadd.f32 %v7817, %v7829
  %v7847 = vadd.f32 %v7818, %v7829
  %v7848 = vadd.f32 %v7819, %v7829
  %v7849 = vadd.f32 %v7820, %v7829
  %v7850 = vadd.f32 %v7821, %v7829
  %v7851 = vadd.f32 %v7822, %v7829
  %v7852 = vadd.f32 %v7823, %v7829
  %v7853 = vadd.f32 %v7824, %v7829
  %v7854 = vmul.f32 %v4399, %v4399
  %v7855 = vmul.f32 %v4400, %v4400
  %v7856 = vmul.f32 %v4401, %v4401
  %v7857 = vmul.f32 %v4402, %v4402
  %v7858 = vmul.f32 %v4403, %v4403
  %v7859 = vmul.f32 %v4404, %v4404
  %v7860 = vmul.f32 %v4405, %v4405
  %v7861 = vmul.f32 %v4406, %v4406
  %v7862 = vmul.f32 %v4407, %v4407
  %v7863 = vmul.f32 %v4408, %v4408
  %v7864 = vmul.f32 %v4409, %v4409
  %v7865 = vmul.f32 %v4410, %v4410
  %v7866 = vmul.f32 %v4411, %v4411
  %v7867 = vmul.f32 %v4412, %v4412
  %v7868 = vmul.f32 %v4413, %v4413
  %v7869 = vmul.f32 %v4414, %v4414
  %v7870 = vmul.f32 %v4415, %v4415
  %v7871 = vmul.f32 %v4416, %v4416
  %v7872 = vmul.f32 %v4417, %v4417
  %v7873 = vmul.f32 %v4418, %v4418
  %v7874 = vmul.f32 %v4419, %v4419
  %v7875 = vmul.f32 %v4420, %v4420
  %v7876 = vmul.f32 %v4421, %v4421
  %v7877 = vmul.f32 %v4422, %v4422
  %7902 = vrot.lane.b32.xlu0 %v7854, 64
  %v7903 = vpop.permute.xlu0 %7902
  %7904 = vrot.lane.b32.xlu0 %v7855, 64
  %v7905 = vpop.permute.xlu0 %7904
  %7906 = vrot.lane.b32.xlu0 %v7856, 64
  %v7907 = vpop.permute.xlu0 %7906
  %7908 = vrot.lane.b32.xlu0 %v7857, 64
  %v7909 = vpop.permute.xlu0 %7908
  %7910 = vrot.lane.b32.xlu0 %v7858, 64
  %v7911 = vpop.permute.xlu0 %7910
  %7912 = vrot.lane.b32.xlu0 %v7859, 64
  %v7913 = vpop.permute.xlu0 %7912
  %7914 = vrot.lane.b32.xlu0 %v7860, 64
  %v7915 = vpop.permute.xlu0 %7914
  %7916 = vrot.lane.b32.xlu0 %v7861, 64
  %v7917 = vpop.permute.xlu0 %7916
  %7918 = vrot.lane.b32.xlu0 %v7862, 64
  %v7919 = vpop.permute.xlu0 %7918
  %7920 = vrot.lane.b32.xlu0 %v7863, 64
  %v7921 = vpop.permute.xlu0 %7920
  %7922 = vrot.lane.b32.xlu0 %v7864, 64
  %v7923 = vpop.permute.xlu0 %7922
  %7924 = vrot.lane.b32.xlu0 %v7865, 64
  %v7925 = vpop.permute.xlu0 %7924
  %7926 = vrot.lane.b32.xlu0 %v7866, 64
  %v7927 = vpop.permute.xlu0 %7926
  %7928 = vrot.lane.b32.xlu0 %v7867, 64
  %v7929 = vpop.permute.xlu0 %7928
  %7930 = vrot.lane.b32.xlu0 %v7868, 64
  %v7931 = vpop.permute.xlu0 %7930
  %7932 = vrot.lane.b32.xlu0 %v7869, 64
  %v7933 = vpop.permute.xlu0 %7932
  %7934 = vrot.lane.b32.xlu0 %v7870, 64
  %v7935 = vpop.permute.xlu0 %7934
  %7936 = vrot.lane.b32.xlu0 %v7871, 64
  %v7937 = vpop.permute.xlu0 %7936
  %7938 = vrot.lane.b32.xlu0 %v7872, 64
  %v7939 = vpop.permute.xlu0 %7938
  %7940 = vrot.lane.b32.xlu0 %v7873, 64
  %v7941 = vpop.permute.xlu0 %7940
  %7942 = vrot.lane.b32.xlu0 %v7874, 64
  %v7943 = vpop.permute.xlu0 %7942
  %7944 = vrot.lane.b32.xlu0 %v7875, 64
  %v7945 = vpop.permute.xlu0 %7944
  %7946 = vrot.lane.b32.xlu0 %v7876, 64
  %v7947 = vpop.permute.xlu0 %7946
  %7948 = vrot.lane.b32.xlu0 %v7877, 64
  %v7949 = vpop.permute.xlu0 %7948
  %v7974 = vsel %vm17, %v4399, %v7903
  %v7975 = vsel %vm17, %v4400, %v7905
  %v7976 = vsel %vm17, %v4401, %v7907
  %v7977 = vsel %vm17, %v4402, %v7909
  %v7978 = vsel %vm17, %v4403, %v7911
  %v7979 = vsel %vm17, %v4404, %v7913
  %v7980 = vsel %vm17, %v4405, %v7915
  %v7981 = vsel %vm17, %v4406, %v7917
  %v7982 = vsel %vm17, %v4407, %v7919
  %v7983 = vsel %vm17, %v4408, %v7921
  %v7984 = vsel %vm17, %v4409, %v7923
  %v7985 = vsel %vm17, %v4410, %v7925
  %v7986 = vsel %vm17, %v4411, %v7927
  %v7987 = vsel %vm17, %v4412, %v7929
  %v7988 = vsel %vm17, %v4413, %v7931
  %v7989 = vsel %vm17, %v4414, %v7933
  %v7990 = vsel %vm17, %v4415, %v7935
  %v7991 = vsel %vm17, %v4416, %v7937
  %v7992 = vsel %vm17, %v4417, %v7939
  %v7993 = vsel %vm17, %v4418, %v7941
  %v7994 = vsel %vm17, %v4419, %v7943
  %v7995 = vsel %vm17, %v4420, %v7945
  %v7996 = vsel %vm17, %v4421, %v7947
  %v7997 = vsel %vm17, %v4422, %v7949
  %v7998 = vadd.f32 %v7974, %v7975
  %v7999 = vadd.f32 %v7998, %v7976
  %v8000 = vadd.f32 %v7999, %v7977
  %v8001 = vadd.f32 %v8000, %v7978
  %v8002 = vadd.f32 %v8001, %v7979
  %v8003 = vadd.f32 %v8002, %v7980
  %v8004 = vadd.f32 %v8003, %v7981
  %v8005 = vadd.f32 %v8004, %v7982
  %v8006 = vadd.f32 %v8005, %v7983
  %v8007 = vadd.f32 %v8006, %v7984
  %v8008 = vadd.f32 %v8007, %v7985
  %v8009 = vadd.f32 %v8008, %v7986
  %v8010 = vadd.f32 %v8009, %v7987
  %v8011 = vadd.f32 %v8010, %v7988
  %v8012 = vadd.f32 %v8011, %v7989
  %v8013 = vadd.f32 %v8012, %v7990
  %v8014 = vadd.f32 %v8013, %v7991
  %v8015 = vadd.f32 %v8014, %v7992
  %v8016 = vadd.f32 %v8015, %v7993
  %v8017 = vadd.f32 %v8016, %v7994
  %v8018 = vadd.f32 %v8017, %v7995
  %v8019 = vadd.f32 %v8018, %v7996
  %v8020 = vadd.f32 %v8019, %v7997
  %v8021 = vrot.slane %v8020, 4
  %v8022 = vadd.f32 %v8020, %v8021
  %v8023 = vrot.slane %v8022, 2
  %v8024 = vadd.f32 %v8022, %v8023
  %v8025 = vrot.slane %v8024, 1
  %v8026 = vadd.f32 %v8024, %v8025
  %v8027 = vmul.f32 %v8026, 0.0078125
  %v8028 = vmul.f32 %v8027, %v8027
  %8030 = vrot.lane.b32.xlu0 %v8028, 64
  %v8031 = vpop.permute.xlu0 %8030
  %v8033 = vsub.f32 %v8027, %v8031
  %v8034 = vmax.f32 %v8033, 0.0
  %v8035 = vld [vmem:[%s3 + $0x15] sm:$0x1]
  %v8036 = vsub.f32 %v4319, %v8027
  %v8037 = vsub.f32 %v4320, %v8027
  %v8038 = vsub.f32 %v4321, %v8027
  %v8039 = vsub.f32 %v4322, %v8027
  %v8040 = vsub.f32 %v4323, %v8027
  %v8041 = vsub.f32 %v4324, %v8027
  %v8042 = vsub.f32 %v4325, %v8027
  %v8043 = vsub.f32 %v4326, %v8027
  %v8044 = vsub.f32 %v4327, %v8027
  %v8045 = vsub.f32 %v4328, %v8027
  %v8046 = vsub.f32 %v4329, %v8027
  %v8047 = vsub.f32 %v4330, %v8027
  %v8048 = vsub.f32 %v4331, %v8027
  %v8049 = vsub.f32 %v4332, %v8027
  %v8050 = vsub.f32 %v4333, %v8027
  %v8051 = vsub.f32 %v4334, %v8027
  %v8052 = vsub.f32 %v4335, %v8027
  %v8053 = vsub.f32 %v4336, %v8027
  %v8054 = vsub.f32 %v4337, %v8027
  %v8055 = vsub.f32 %v4338, %v8027
  %v8056 = vsub.f32 %v4339, %v8027
  %v8057 = vsub.f32 %v4340, %v8027
  %v8058 = vsub.f32 %v4341, %v8027
  %v8059 = vsub.f32 %v4342, %v8027
  %v8060 = vadd.f32 %v8034, 1e-05
  %v8061 = vrsqrt.pop %v8060
  %v8062 = vlaneseq
  %v8063 = vshrl.u32 %v8062, 7
  %v8064 = vsub.s32 0, %v8063
  %v8065 = vrot.slane %v8061, %v8064
  %8067 = vrot.lane.b32.xlu0 %v8065, 64
  %v8068 = vpop.permute.xlu0 %8067
  %v8070 = vmul.f32 %v8036, %v8068
  %v8071 = vmul.f32 %v8037, %v8068
  %v8072 = vmul.f32 %v8038, %v8068
  %v8073 = vmul.f32 %v8039, %v8068
  %v8074 = vmul.f32 %v8040, %v8068
  %v8075 = vmul.f32 %v8041, %v8068
  %v8076 = vmul.f32 %v8042, %v8068
  %v8077 = vmul.f32 %v8043, %v8068
  %v8078 = vmul.f32 %v8044, %v8068
  %v8079 = vmul.f32 %v8045, %v8068
  %v8080 = vmul.f32 %v8046, %v8068
  %v8081 = vmul.f32 %v8047, %v8068
  %v8082 = vmul.f32 %v8048, %v8068
  %v8083 = vmul.f32 %v8049, %v8068
  %v8084 = vmul.f32 %v8050, %v8068
  %v8085 = vmul.f32 %v8051, %v8068
  %v8086 = vmul.f32 %v8052, %v8068
  %v8087 = vmul.f32 %v8053, %v8068
  %v8088 = vmul.f32 %v8054, %v8068
  %v8089 = vmul.f32 %v8055, %v8068
  %v8090 = vmul.f32 %v8056, %v8068
  %v8091 = vmul.f32 %v8057, %v8068
  %v8092 = vmul.f32 %v8058, %v8068
  %v8093 = vmul.f32 %v8059, %v8068
  %v8094 = vlaneseq
  %v8095 = vshrl.u32 %v8094, 7
  %v8096 = vsub.s32 0, %v8095
  %v8097 = vrot.slane %v8035, %v8096
  %v8098 = vmul.f32 %v8097, %v8070
  %v8099 = vmul.f32 %v8097, %v8071
  %v8100 = vmul.f32 %v8097, %v8072
  %v8101 = vmul.f32 %v8097, %v8073
  %v8102 = vmul.f32 %v8097, %v8074
  %v8103 = vmul.f32 %v8097, %v8075
  %v8104 = vmul.f32 %v8097, %v8076
  %v8105 = vmul.f32 %v8097, %v8077
  %v8106 = vmul.f32 %v8097, %v8078
  %v8107 = vmul.f32 %v8097, %v8079
  %v8108 = vmul.f32 %v8097, %v8080
  %v8109 = vmul.f32 %v8097, %v8081
  %v8110 = vmul.f32 %v8097, %v8082
  %v8111 = vmul.f32 %v8097, %v8083
  %v8112 = vmul.f32 %v8097, %v8084
  %v8113 = vmul.f32 %v8097, %v8085
  %v8114 = vmul.f32 %v8097, %v8086
  %v8115 = vmul.f32 %v8097, %v8087
  %v8116 = vmul.f32 %v8097, %v8088
  %v8117 = vmul.f32 %v8097, %v8089
  %v8118 = vmul.f32 %v8097, %v8090
  %v8119 = vmul.f32 %v8097, %v8091
  %v8120 = vmul.f32 %v8097, %v8092
  %v8121 = vmul.f32 %v8097, %v8093
  %v8122 = vld [vmem:[%s3 + $0x16] sm:$0x1]
  %v8123 = vlaneseq
  %v8124 = vshrl.u32 %v8123, 7
  %v8125 = vsub.s32 0, %v8124
  %v8126 = vrot.slane %v8122, %v8125
  %v8127 = vadd.f32 %v8098, %v8126
  %v8128 = vadd.f32 %v8099, %v8126
  %v8129 = vadd.f32 %v8100, %v8126
  %v8130 = vadd.f32 %v8101, %v8126
  %v8131 = vadd.f32 %v8102, %v8126
  %v8132 = vadd.f32 %v8103, %v8126
  %v8133 = vadd.f32 %v8104, %v8126
  %v8134 = vadd.f32 %v8105, %v8126
  %v8135 = vadd.f32 %v8106, %v8126
  %v8136 = vadd.f32 %v8107, %v8126
  %v8137 = vadd.f32 %v8108, %v8126
  %v8138 = vadd.f32 %v8109, %v8126
  %v8139 = vadd.f32 %v8110, %v8126
  %v8140 = vadd.f32 %v8111, %v8126
  %v8141 = vadd.f32 %v8112, %v8126
  %v8142 = vadd.f32 %v8113, %v8126
  %v8143 = vadd.f32 %v8114, %v8126
  %v8144 = vadd.f32 %v8115, %v8126
  %v8145 = vadd.f32 %v8116, %v8126
  %v8146 = vadd.f32 %v8117, %v8126
  %v8147 = vadd.f32 %v8118, %v8126
  %v8148 = vadd.f32 %v8119, %v8126
  %v8149 = vadd.f32 %v8120, %v8126
  %v8150 = vadd.f32 %v8121, %v8126
  %v8151 = vadd.f32 %v7830, %v8127
  %v8152 = vadd.f32 %v7831, %v8128
  %v8153 = vadd.f32 %v7832, %v8129
  %v8154 = vadd.f32 %v7833, %v8130
  %v8155 = vadd.f32 %v7834, %v8131
  %v8156 = vadd.f32 %v7835, %v8132
  %v8157 = vadd.f32 %v7836, %v8133
  %v8158 = vadd.f32 %v7837, %v8134
  %v8159 = vadd.f32 %v7838, %v8135
  %v8160 = vadd.f32 %v7839, %v8136
  %v8161 = vadd.f32 %v7840, %v8137
  %v8162 = vadd.f32 %v7841, %v8138
  %v8163 = vadd.f32 %v7842, %v8139
  %v8164 = vadd.f32 %v7843, %v8140
  %v8165 = vadd.f32 %v7844, %v8141
  %v8166 = vadd.f32 %v7845, %v8142
  %v8167 = vadd.f32 %v7846, %v8143
  %v8168 = vadd.f32 %v7847, %v8144
  %v8169 = vadd.f32 %v7848, %v8145
  %v8170 = vadd.f32 %v7849, %v8146
  %v8171 = vadd.f32 %v7850, %v8147
  %v8172 = vadd.f32 %v7851, %v8148
  %v8173 = vadd.f32 %v7852, %v8149
  %v8174 = vadd.f32 %v7853, %v8150
  %v8175 = vmax.f32 %v8151, 0.0
  %v8176 = vmax.f32 %v8152, 0.0
  %v8177 = vmax.f32 %v8153, 0.0
  %v8178 = vmax.f32 %v8154, 0.0
  %v8179 = vmax.f32 %v8155, 0.0
  %v8180 = vmax.f32 %v8156, 0.0
  %v8181 = vmax.f32 %v8157, 0.0
  %v8182 = vmax.f32 %v8158, 0.0
  %v8183 = vmax.f32 %v8159, 0.0
  %v8184 = vmax.f32 %v8160, 0.0
  %v8185 = vmax.f32 %v8161, 0.0
  %v8186 = vmax.f32 %v8162, 0.0
  %v8187 = vmax.f32 %v8163, 0.0
  %v8188 = vmax.f32 %v8164, 0.0
  %v8189 = vmax.f32 %v8165, 0.0
  %v8190 = vmax.f32 %v8166, 0.0
  %v8191 = vmax.f32 %v8167, 0.0
  %v8192 = vmax.f32 %v8168, 0.0
  %v8193 = vmax.f32 %v8169, 0.0
  %v8194 = vmax.f32 %v8170, 0.0
  %v8195 = vmax.f32 %v8171, 0.0
  %v8196 = vmax.f32 %v8172, 0.0
  %v8197 = vmax.f32 %v8173, 0.0
  %v8198 = vmax.f32 %v8174, 0.0
  %v8199 = vld [vmem:[%s2 + $0x5e8] sm:$0xff]
  %v8200 = vld [vmem:[%s2 + $0x5f0] sm:$0xff]
  %v8201 = vld [vmem:[%s2 + $0x5f8] sm:$0xff]
  %v8202 = vld [vmem:[%s2 + $0x600] sm:$0xff]
  %v8203 = vld [vmem:[%s2 + $0x608] sm:$0xff]
  %v8204 = vld [vmem:[%s2 + $0x610] sm:$0xff]
  %v8205 = vld [vmem:[%s2 + $0x618] sm:$0xff]
  %v8206 = vld [vmem:[%s2 + $0x620] sm:$0xff]
  %v8207 = vld [vmem:[%s2 + $0x628] sm:$0xff]
  %v8208 = vld [vmem:[%s2 + $0x630] sm:$0xff]
  %v8209 = vld [vmem:[%s2 + $0x638] sm:$0xff]
  %v8210 = vld [vmem:[%s2 + $0x640] sm:$0xff]
  %v8211 = vld [vmem:[%s2 + $0x648] sm:$0xff]
  %v8212 = vld [vmem:[%s2 + $0x650] sm:$0xff]
  %v8213 = vld [vmem:[%s2 + $0x658] sm:$0xff]
  %v8214 = vld [vmem:[%s2 + $0x660] sm:$0xff]
  %v8215 = vld [vmem:[%s2 + $0x668] sm:$0xff]
  %v8216 = vld [vmem:[%s2 + $0x670] sm:$0xff]
  %v8217 = vld [vmem:[%s2 + $0x678] sm:$0xff]
  %v8218 = vld [vmem:[%s2 + $0x680] sm:$0xff]
  %v8219 = vld [vmem:[%s2 + $0x688] sm:$0xff]
  %v8220 = vld [vmem:[%s2 + $0x690] sm:$0xff]
  %v8221 = vld [vmem:[%s2 + $0x698] sm:$0xff]
  %v8222 = vld [vmem:[%s2 + $0x6a0] sm:$0xff]
  %v8223 = vld [vmem:[%s2 + $0x6a8] sm:$0xff]
  %v8224 = vld [vmem:[%s2 + $0x6b0] sm:$0xff]
  %v8225 = vld [vmem:[%s2 + $0x6b8] sm:$0xff]
  %v8226 = vld [vmem:[%s2 + $0x6c0] sm:$0xff]
  %v8227 = vld [vmem:[%s2 + $0x6c8] sm:$0xff]
  %v8228 = vld [vmem:[%s2 + $0x6d0] sm:$0xff]
  %v8229 = vld [vmem:[%s2 + $0x6d8] sm:$0xff]
  %v8230 = vld [vmem:[%s2 + $0x6e0] sm:$0xff]
  %v8231 = vld [vmem:[%s2 + $0x6e8] sm:$0xff]
  %v8232 = vld [vmem:[%s2 + $0x6f0] sm:$0xff]
  %v8233 = vld [vmem:[%s2 + $0x6f8] sm:$0xff]
  %v8234 = vld [vmem:[%s2 + $0x700] sm:$0xff]
  %v8235 = vld [vmem:[%s2 + $0x708] sm:$0xff]
  %v8236 = vld [vmem:[%s2 + $0x710] sm:$0xff]
  %v8237 = vld [vmem:[%s2 + $0x718] sm:$0xff]
  %v8238 = vld [vmem:[%s2 + $0x720] sm:$0xff]
  %v8239 = vld [vmem:[%s2 + $0x728] sm:$0xff]
  %v8240 = vld [vmem:[%s2 + $0x730] sm:$0xff]
  %v8241 = vld [vmem:[%s2 + $0x738] sm:$0xff]
  %v8242 = vld [vmem:[%s2 + $0x740] sm:$0xff]
  %v8243 = vld [vmem:[%s2 + $0x748] sm:$0xff]
  %v8244 = vld [vmem:[%s2 + $0x750] sm:$0xff]
  %v8245 = vld [vmem:[%s2 + $0x758] sm:$0xff]
  %v8246 = vld [vmem:[%s2 + $0x760] sm:$0xff]
  %v8247 = vld [vmem:[%s2 + $0x768] sm:$0xff]
  %v8248 = vld [vmem:[%s2 + $0x770] sm:$0xff]
  %v8249 = vld [vmem:[%s2 + $0x778] sm:$0xff]
  %v8250 = vld [vmem:[%s2 + $0x780] sm:$0xff]
  %v8251 = vld [vmem:[%s2 + $0x788] sm:$0xff]
  %v8252 = vld [vmem:[%s2 + $0x790] sm:$0xff]
  %v8253 = vld [vmem:[%s2 + $0x798] sm:$0xff]
  %v8254 = vld [vmem:[%s2 + $0x7a0] sm:$0xff]
  %v8255 = vsel %vm64, %v8175, 0.0
  %v8256 = vsel %vm65, %v8176, 0.0
  %v8257 = vsel %vm66, %v8177, 0.0
  %v8258 = vsel %vm64, %v8178, 0.0
  %v8259 = vsel %vm65, %v8179, 0.0
  %v8260 = vsel %vm66, %v8180, 0.0
  %v8261 = vsel %vm64, %v8181, 0.0
  %v8262 = vsel %vm65, %v8182, 0.0
  %v8263 = vsel %vm66, %v8183, 0.0
  %v8264 = vsel %vm64, %v8184, 0.0
  %v8265 = vsel %vm65, %v8185, 0.0
  %v8266 = vsel %vm66, %v8186, 0.0
  %v8267 = vsel %vm64, %v8187, 0.0
  %v8268 = vsel %vm65, %v8188, 0.0
  %v8269 = vsel %vm66, %v8189, 0.0
  %v8270 = vsel %vm64, %v8190, 0.0
  %v8271 = vsel %vm65, %v8191, 0.0
  %v8272 = vsel %vm66, %v8192, 0.0
  %v8273 = vsel %vm64, %v8193, 0.0
  %v8274 = vsel %vm65, %v8194, 0.0
  %v8275 = vsel %vm66, %v8195, 0.0
  %v8276 = vsel %vm64, %v8196, 0.0
  %v8277 = vsel %vm65, %v8197, 0.0
  %v8278 = vsel %vm66, %v8198, 0.0
  %8279 = vst.msk [vmem:[#allocation2 + $0x8] sm:$0xff] %vm17, %v8255
  %8280 = vst.msk [vmem:[#allocation2 + $0x10] sm:$0xff] %vm17, %v8256
  %8281 = vst.msk [vmem:[#allocation2 + $0x18] sm:$0xff] %vm17, %v8257
  %8282 = vst.msk [vmem:[#allocation2 + $0x20] sm:$0xff] %vm17, %v8258
  %8283 = vst.msk [vmem:[#allocation2 + $0x28] sm:$0xff] %vm17, %v8259
  %8284 = vst.msk [vmem:[#allocation2 + $0x30] sm:$0xff] %vm17, %v8260
  %8285 = vst.msk [vmem:[#allocation2 + $0x38] sm:$0xff] %vm17, %v8261
  %8286 = vst.msk [vmem:[#allocation2 + $0x40] sm:$0xff] %vm17, %v8262
  %8287 = vst.msk [vmem:[#allocation2 + $0x48] sm:$0xff] %vm17, %v8263
  %8288 = vst.msk [vmem:[#allocation2 + $0x50] sm:$0xff] %vm17, %v8264
  %8289 = vst.msk [vmem:[#allocation2 + $0x58] sm:$0xff] %vm17, %v8265
  %8290 = vst.msk [vmem:[#allocation2 + $0x60] sm:$0xff] %vm17, %v8266
  %8291 = vst.msk [vmem:[#allocation2 + $0x68] sm:$0xff] %vm17, %v8267
  %8292 = vst.msk [vmem:[#allocation2 + $0x70] sm:$0xff] %vm17, %v8268
  %8293 = vst.msk [vmem:[#allocation2 + $0x78] sm:$0xff] %vm17, %v8269
  %8294 = vst.msk [vmem:[#allocation2 + $0x80] sm:$0xff] %vm17, %v8270
  %8295 = vst.msk [vmem:[#allocation2 + $0x88] sm:$0xff] %vm17, %v8271
  %8296 = vst.msk [vmem:[#allocation2 + $0x90] sm:$0xff] %vm17, %v8272
  %8297 = vst.msk [vmem:[#allocation2 + $0x98] sm:$0xff] %vm17, %v8273
  %8298 = vst.msk [vmem:[#allocation2 + $0xa0] sm:$0xff] %vm17, %v8274
  %8299 = vst.msk [vmem:[#allocation2 + $0xa8] sm:$0xff] %vm17, %v8275
  %8300 = vst.msk [vmem:[#allocation2 + $0xb0] sm:$0xff] %vm17, %v8276
  %8301 = vst.msk [vmem:[#allocation2 + $0xb8] sm:$0xff] %vm17, %v8277
  %8302 = vst.msk [vmem:[#allocation2 + $0xc0] sm:$0xff] %vm17, %v8278
  %v8303 = vld [vmem:[#allocation2 + $0x5] sm:$0xff]
  %v8304 = vld [vmem:[#allocation2 + $0xd] sm:$0xff]
  %v8305 = vld [vmem:[#allocation2 + $0x15] sm:$0xff]
  %v8306 = vld [vmem:[#allocation2 + $0x1d] sm:$0xff]
  %v8307 = vld [vmem:[#allocation2 + $0x25] sm:$0xff]
  %v8308 = vld [vmem:[#allocation2 + $0x2d] sm:$0xff]
  %v8309 = vld [vmem:[#allocation2 + $0x35] sm:$0xff]
  %v8310 = vld [vmem:[#allocation2 + $0x3d] sm:$0xff]
  %v8311 = vld [vmem:[#allocation2 + $0x45] sm:$0xff]
  %v8312 = vld [vmem:[#allocation2 + $0x4d] sm:$0xff]
  %v8313 = vld [vmem:[#allocation2 + $0x55] sm:$0xff]
  %v8314 = vld [vmem:[#allocation2 + $0x5d] sm:$0xff]
  %v8315 = vld [vmem:[#allocation2 + $0x65] sm:$0xff]
  %v8316 = vld [vmem:[#allocation2 + $0x6d] sm:$0xff]
  %v8317 = vld [vmem:[#allocation2 + $0x75] sm:$0xff]
  %v8318 = vld [vmem:[#allocation2 + $0x7d] sm:$0xff]
  %v8319 = vld [vmem:[#allocation2 + $0x85] sm:$0xff]
  %v8320 = vld [vmem:[#allocation2 + $0x8d] sm:$0xff]
  %v8321 = vld [vmem:[#allocation2 + $0x95] sm:$0xff]
  %v8322 = vld [vmem:[#allocation2 + $0x9d] sm:$0xff]
  %v8323 = vld [vmem:[#allocation2 + $0xa5] sm:$0xff]
  %v8324 = vld [vmem:[#allocation2 + $0xad] sm:$0xff]
  %v8325 = vld [vmem:[#allocation2 + $0xb5] sm:$0xff]
  %v8326 = vld [vmem:[#allocation2 + $0xbd] sm:$0xff]
  %v8327 = vld [vmem:[#allocation2 + $0x6] sm:$0xff]
  %v8328 = vld [vmem:[#allocation2 + $0xe] sm:$0xff]
  %v8329 = vld [vmem:[#allocation2 + $0x16] sm:$0xff]
  %v8330 = vld [vmem:[#allocation2 + $0x1e] sm:$0xff]
  %v8331 = vld [vmem:[#allocation2 + $0x26] sm:$0xff]
  %v8332 = vld [vmem:[#allocation2 + $0x2e] sm:$0xff]
  %v8333 = vld [vmem:[#allocation2 + $0x36] sm:$0xff]
  %v8334 = vld [vmem:[#allocation2 + $0x3e] sm:$0xff]
  %v8335 = vld [vmem:[#allocation2 + $0x46] sm:$0xff]
  %v8336 = vld [vmem:[#allocation2 + $0x4e] sm:$0xff]
  %v8337 = vld [vmem:[#allocation2 + $0x56] sm:$0xff]
  %v8338 = vld [vmem:[#allocation2 + $0x5e] sm:$0xff]
  %v8339 = vld [vmem:[#allocation2 + $0x66] sm:$0xff]
  %v8340 = vld [vmem:[#allocation2 + $0x6e] sm:$0xff]
  %v8341 = vld [vmem:[#allocation2 + $0x76] sm:$0xff]
  %v8342 = vld [vmem:[#allocation2 + $0x7e] sm:$0xff]
  %v8343 = vld [vmem:[#allocation2 + $0x86] sm:$0xff]
  %v8344 = vld [vmem:[#allocation2 + $0x8e] sm:$0xff]
  %v8345 = vld [vmem:[#allocation2 + $0x96] sm:$0xff]
  %v8346 = vld [vmem:[#allocation2 + $0x9e] sm:$0xff]
  %v8347 = vld [vmem:[#allocation2 + $0xa6] sm:$0xff]
  %v8348 = vld [vmem:[#allocation2 + $0xae] sm:$0xff]
  %v8349 = vld [vmem:[#allocation2 + $0xb6] sm:$0xff]
  %v8350 = vld [vmem:[#allocation2 + $0xbe] sm:$0xff]
  %v8351 = vld [vmem:[#allocation2 + $0x7] sm:$0xff]
  %v8352 = vld [vmem:[#allocation2 + $0xf] sm:$0xff]
  %v8353 = vld [vmem:[#allocation2 + $0x17] sm:$0xff]
  %v8354 = vld [vmem:[#allocation2 + $0x1f] sm:$0xff]
  %v8355 = vld [vmem:[#allocation2 + $0x27] sm:$0xff]
  %v8356 = vld [vmem:[#allocation2 + $0x2f] sm:$0xff]
  %v8357 = vld [vmem:[#allocation2 + $0x37] sm:$0xff]
  %v8358 = vld [vmem:[#allocation2 + $0x3f] sm:$0xff]
  %v8359 = vld [vmem:[#allocation2 + $0x47] sm:$0xff]
  %v8360 = vld [vmem:[#allocation2 + $0x4f] sm:$0xff]
  %v8361 = vld [vmem:[#allocation2 + $0x57] sm:$0xff]
  %v8362 = vld [vmem:[#allocation2 + $0x5f] sm:$0xff]
  %v8363 = vld [vmem:[#allocation2 + $0x67] sm:$0xff]
  %v8364 = vld [vmem:[#allocation2 + $0x6f] sm:$0xff]
  %v8365 = vld [vmem:[#allocation2 + $0x77] sm:$0xff]
  %v8366 = vld [vmem:[#allocation2 + $0x7f] sm:$0xff]
  %v8367 = vld [vmem:[#allocation2 + $0x87] sm:$0xff]
  %v8368 = vld [vmem:[#allocation2 + $0x8f] sm:$0xff]
  %v8369 = vld [vmem:[#allocation2 + $0x97] sm:$0xff]
  %v8370 = vld [vmem:[#allocation2 + $0x9f] sm:$0xff]
  %v8371 = vld [vmem:[#allocation2 + $0xa7] sm:$0xff]
  %v8372 = vld [vmem:[#allocation2 + $0xaf] sm:$0xff]
  %v8373 = vld [vmem:[#allocation2 + $0xb7] sm:$0xff]
  %v8374 = vld [vmem:[#allocation2 + $0xbf] sm:$0xff]
  %v8375 = vld [vmem:[#allocation2 + $0x8] sm:$0xff]
  %v8376 = vld [vmem:[#allocation2 + $0x10] sm:$0xff]
  %v8377 = vld [vmem:[#allocation2 + $0x18] sm:$0xff]
  %v8378 = vld [vmem:[#allocation2 + $0x20] sm:$0xff]
  %v8379 = vld [vmem:[#allocation2 + $0x28] sm:$0xff]
  %v8380 = vld [vmem:[#allocation2 + $0x30] sm:$0xff]
  %v8381 = vld [vmem:[#allocation2 + $0x38] sm:$0xff]
  %v8382 = vld [vmem:[#allocation2 + $0x40] sm:$0xff]
  %v8383 = vld [vmem:[#allocation2 + $0x48] sm:$0xff]
  %v8384 = vld [vmem:[#allocation2 + $0x50] sm:$0xff]
  %v8385 = vld [vmem:[#allocation2 + $0x58] sm:$0xff]
  %v8386 = vld [vmem:[#allocation2 + $0x60] sm:$0xff]
  %v8387 = vld [vmem:[#allocation2 + $0x68] sm:$0xff]
  %v8388 = vld [vmem:[#allocation2 + $0x70] sm:$0xff]
  %v8389 = vld [vmem:[#allocation2 + $0x78] sm:$0xff]
  %v8390 = vld [vmem:[#allocation2 + $0x80] sm:$0xff]
  %v8391 = vld [vmem:[#allocation2 + $0x88] sm:$0xff]
  %v8392 = vld [vmem:[#allocation2 + $0x90] sm:$0xff]
  %v8393 = vld [vmem:[#allocation2 + $0x98] sm:$0xff]
  %v8394 = vld [vmem:[#allocation2 + $0xa0] sm:$0xff]
  %v8395 = vld [vmem:[#allocation2 + $0xa8] sm:$0xff]
  %v8396 = vld [vmem:[#allocation2 + $0xb0] sm:$0xff]
  %v8397 = vld [vmem:[#allocation2 + $0xb8] sm:$0xff]
  %v8398 = vld [vmem:[#allocation2 + $0xc0] sm:$0xff]
  %v8399 = vld [vmem:[#allocation2 + $0x9] sm:$0xff]
  %v8400 = vld [vmem:[#allocation2 + $0x11] sm:$0xff]
  %v8401 = vld [vmem:[#allocation2 + $0x19] sm:$0xff]
  %v8402 = vld [vmem:[#allocation2 + $0x21] sm:$0xff]
  %v8403 = vld [vmem:[#allocation2 + $0x29] sm:$0xff]
  %v8404 = vld [vmem:[#allocation2 + $0x31] sm:$0xff]
  %v8405 = vld [vmem:[#allocation2 + $0x39] sm:$0xff]
  %v8406 = vld [vmem:[#allocation2 + $0x41] sm:$0xff]
  %v8407 = vld [vmem:[#allocation2 + $0x49] sm:$0xff]
  %v8408 = vld [vmem:[#allocation2 + $0x51] sm:$0xff]
  %v8409 = vld [vmem:[#allocation2 + $0x59] sm:$0xff]
  %v8410 = vld [vmem:[#allocation2 + $0x61] sm:$0xff]
  %v8411 = vld [vmem:[#allocation2 + $0x69] sm:$0xff]
  %v8412 = vld [vmem:[#allocation2 + $0x71] sm:$0xff]
  %v8413 = vld [vmem:[#allocation2 + $0x79] sm:$0xff]
  %v8414 = vld [vmem:[#allocation2 + $0x81] sm:$0xff]
  %v8415 = vld [vmem:[#allocation2 + $0x89] sm:$0xff]
  %v8416 = vld [vmem:[#allocation2 + $0x91] sm:$0xff]
  %v8417 = vld [vmem:[#allocation2 + $0x99] sm:$0xff]
  %v8418 = vld [vmem:[#allocation2 + $0xa1] sm:$0xff]
  %v8419 = vld [vmem:[#allocation2 + $0xa9] sm:$0xff]
  %v8420 = vld [vmem:[#allocation2 + $0xb1] sm:$0xff]
  %v8421 = vld [vmem:[#allocation2 + $0xb9] sm:$0xff]
  %v8422 = vld [vmem:[#allocation2 + $0xc1] sm:$0xff]
  %v8423 = vld [vmem:[#allocation2 + $0xa] sm:$0xff]
  %v8424 = vld [vmem:[#allocation2 + $0x12] sm:$0xff]
  %v8425 = vld [vmem:[#allocation2 + $0x1a] sm:$0xff]
  %v8426 = vld [vmem:[#allocation2 + $0x22] sm:$0xff]
  %v8427 = vld [vmem:[#allocation2 + $0x2a] sm:$0xff]
  %v8428 = vld [vmem:[#allocation2 + $0x32] sm:$0xff]
  %v8429 = vld [vmem:[#allocation2 + $0x3a] sm:$0xff]
  %v8430 = vld [vmem:[#allocation2 + $0x42] sm:$0xff]
  %v8431 = vld [vmem:[#allocation2 + $0x4a] sm:$0xff]
  %v8432 = vld [vmem:[#allocation2 + $0x52] sm:$0xff]
  %v8433 = vld [vmem:[#allocation2 + $0x5a] sm:$0xff]
  %v8434 = vld [vmem:[#allocation2 + $0x62] sm:$0xff]
  %v8435 = vld [vmem:[#allocation2 + $0x6a] sm:$0xff]
  %v8436 = vld [vmem:[#allocation2 + $0x72] sm:$0xff]
  %v8437 = vld [vmem:[#allocation2 + $0x7a] sm:$0xff]
  %v8438 = vld [vmem:[#allocation2 + $0x82] sm:$0xff]
  %v8439 = vld [vmem:[#allocation2 + $0x8a] sm:$0xff]
  %v8440 = vld [vmem:[#allocation2 + $0x92] sm:$0xff]
  %v8441 = vld [vmem:[#allocation2 + $0x9a] sm:$0xff]
  %v8442 = vld [vmem:[#allocation2 + $0xa2] sm:$0xff]
  %v8443 = vld [vmem:[#allocation2 + $0xaa] sm:$0xff]
  %v8444 = vld [vmem:[#allocation2 + $0xb2] sm:$0xff]
  %v8445 = vld [vmem:[#allocation2 + $0xba] sm:$0xff]
  %v8446 = vld [vmem:[#allocation2 + $0xc2] sm:$0xff]
  %v8447 = vld [vmem:[#allocation2 + $0xb] sm:$0xff]
  %v8448 = vld [vmem:[#allocation2 + $0x13] sm:$0xff]
  %v8449 = vld [vmem:[#allocation2 + $0x1b] sm:$0xff]
  %v8450 = vld [vmem:[#allocation2 + $0x23] sm:$0xff]
  %v8451 = vld [vmem:[#allocation2 + $0x2b] sm:$0xff]
  %v8452 = vld [vmem:[#allocation2 + $0x33] sm:$0xff]
  %v8453 = vld [vmem:[#allocation2 + $0x3b] sm:$0xff]
  %v8454 = vld [vmem:[#allocation2 + $0x43] sm:$0xff]
  %v8455 = vld [vmem:[#allocation2 + $0x4b] sm:$0xff]
  %v8456 = vld [vmem:[#allocation2 + $0x53] sm:$0xff]
  %v8457 = vld [vmem:[#allocation2 + $0x5b] sm:$0xff]
  %v8458 = vld [vmem:[#allocation2 + $0x63] sm:$0xff]
  %v8459 = vld [vmem:[#allocation2 + $0x6b] sm:$0xff]
  %v8460 = vld [vmem:[#allocation2 + $0x73] sm:$0xff]
  %v8461 = vld [vmem:[#allocation2 + $0x7b] sm:$0xff]
  %v8462 = vld [vmem:[#allocation2 + $0x83] sm:$0xff]
  %v8463 = vld [vmem:[#allocation2 + $0x8b] sm:$0xff]
  %v8464 = vld [vmem:[#allocation2 + $0x93] sm:$0xff]
  %v8465 = vld [vmem:[#allocation2 + $0x9b] sm:$0xff]
  %v8466 = vld [vmem:[#allocation2 + $0xa3] sm:$0xff]
  %v8467 = vld [vmem:[#allocation2 + $0xab] sm:$0xff]
  %v8468 = vld [vmem:[#allocation2 + $0xb3] sm:$0xff]
  %v8469 = vld [vmem:[#allocation2 + $0xbb] sm:$0xff]
  %v8470 = vld [vmem:[#allocation2 + $0xc3] sm:$0xff]
  %8495 = vrot.lane.b32.xlu0 %v8327, 64
  %v8496 = vpop.permute.xlu0 %8495
  %8497 = vrot.lane.b32.xlu0 %v8328, 64
  %v8498 = vpop.permute.xlu0 %8497
  %8499 = vrot.lane.b32.xlu0 %v8329, 64
  %v8500 = vpop.permute.xlu0 %8499
  %8501 = vrot.lane.b32.xlu0 %v8330, 64
  %v8502 = vpop.permute.xlu0 %8501
  %8503 = vrot.lane.b32.xlu0 %v8331, 64
  %v8504 = vpop.permute.xlu0 %8503
  %8505 = vrot.lane.b32.xlu0 %v8332, 64
  %v8506 = vpop.permute.xlu0 %8505
  %8507 = vrot.lane.b32.xlu0 %v8333, 64
  %v8508 = vpop.permute.xlu0 %8507
  %8509 = vrot.lane.b32.xlu0 %v8334, 64
  %v8510 = vpop.permute.xlu0 %8509
  %8511 = vrot.lane.b32.xlu0 %v8335, 64
  %v8512 = vpop.permute.xlu0 %8511
  %8513 = vrot.lane.b32.xlu0 %v8336, 64
  %v8514 = vpop.permute.xlu0 %8513
  %8515 = vrot.lane.b32.xlu0 %v8337, 64
  %v8516 = vpop.permute.xlu0 %8515
  %8517 = vrot.lane.b32.xlu0 %v8338, 64
  %v8518 = vpop.permute.xlu0 %8517
  %8519 = vrot.lane.b32.xlu0 %v8339, 64
  %v8520 = vpop.permute.xlu0 %8519
  %8521 = vrot.lane.b32.xlu0 %v8340, 64
  %v8522 = vpop.permute.xlu0 %8521
  %8523 = vrot.lane.b32.xlu0 %v8341, 64
  %v8524 = vpop.permute.xlu0 %8523
  %8525 = vrot.lane.b32.xlu0 %v8342, 64
  %v8526 = vpop.permute.xlu0 %8525
  %8527 = vrot.lane.b32.xlu0 %v8343, 64
  %v8528 = vpop.permute.xlu0 %8527
  %8529 = vrot.lane.b32.xlu0 %v8344, 64
  %v8530 = vpop.permute.xlu0 %8529
  %8531 = vrot.lane.b32.xlu0 %v8345, 64
  %v8532 = vpop.permute.xlu0 %8531
  %8533 = vrot.lane.b32.xlu0 %v8346, 64
  %v8534 = vpop.permute.xlu0 %8533
  %8535 = vrot.lane.b32.xlu0 %v8347, 64
  %v8536 = vpop.permute.xlu0 %8535
  %8537 = vrot.lane.b32.xlu0 %v8348, 64
  %v8538 = vpop.permute.xlu0 %8537
  %8539 = vrot.lane.b32.xlu0 %v8349, 64
  %v8540 = vpop.permute.xlu0 %8539
  %8541 = vrot.lane.b32.xlu0 %v8350, 64
  %v8542 = vpop.permute.xlu0 %8541
  %8591 = vrot.lane.b32.xlu0 %v8375, 64
  %v8592 = vpop.permute.xlu0 %8591
  %8593 = vrot.lane.b32.xlu0 %v8376, 64
  %v8594 = vpop.permute.xlu0 %8593
  %8595 = vrot.lane.b32.xlu0 %v8377, 64
  %v8596 = vpop.permute.xlu0 %8595
  %8597 = vrot.lane.b32.xlu0 %v8378, 64
  %v8598 = vpop.permute.xlu0 %8597
  %8599 = vrot.lane.b32.xlu0 %v8379, 64
  %v8600 = vpop.permute.xlu0 %8599
  %8601 = vrot.lane.b32.xlu0 %v8380, 64
  %v8602 = vpop.permute.xlu0 %8601
  %8603 = vrot.lane.b32.xlu0 %v8381, 64
  %v8604 = vpop.permute.xlu0 %8603
  %8605 = vrot.lane.b32.xlu0 %v8382, 64
  %v8606 = vpop.permute.xlu0 %8605
  %8607 = vrot.lane.b32.xlu0 %v8383, 64
  %v8608 = vpop.permute.xlu0 %8607
  %8609 = vrot.lane.b32.xlu0 %v8384, 64
  %v8610 = vpop.permute.xlu0 %8609
  %8611 = vrot.lane.b32.xlu0 %v8385, 64
  %v8612 = vpop.permute.xlu0 %8611
  %8613 = vrot.lane.b32.xlu0 %v8386, 64
  %v8614 = vpop.permute.xlu0 %8613
  %8615 = vrot.lane.b32.xlu0 %v8387, 64
  %v8616 = vpop.permute.xlu0 %8615
  %8617 = vrot.lane.b32.xlu0 %v8388, 64
  %v8618 = vpop.permute.xlu0 %8617
  %8619 = vrot.lane.b32.xlu0 %v8389, 64
  %v8620 = vpop.permute.xlu0 %8619
  %8621 = vrot.lane.b32.xlu0 %v8390, 64
  %v8622 = vpop.permute.xlu0 %8621
  %8623 = vrot.lane.b32.xlu0 %v8391, 64
  %v8624 = vpop.permute.xlu0 %8623
  %8625 = vrot.lane.b32.xlu0 %v8392, 64
  %v8626 = vpop.permute.xlu0 %8625
  %8627 = vrot.lane.b32.xlu0 %v8393, 64
  %v8628 = vpop.permute.xlu0 %8627
  %8629 = vrot.lane.b32.xlu0 %v8394, 64
  %v8630 = vpop.permute.xlu0 %8629
  %8631 = vrot.lane.b32.xlu0 %v8395, 64
  %v8632 = vpop.permute.xlu0 %8631
  %8633 = vrot.lane.b32.xlu0 %v8396, 64
  %v8634 = vpop.permute.xlu0 %8633
  %8635 = vrot.lane.b32.xlu0 %v8397, 64
  %v8636 = vpop.permute.xlu0 %8635
  %8637 = vrot.lane.b32.xlu0 %v8398, 64
  %v8638 = vpop.permute.xlu0 %8637
  %8687 = vrot.lane.b32.xlu0 %v8423, 64
  %v8688 = vpop.permute.xlu0 %8687
  %8689 = vrot.lane.b32.xlu0 %v8424, 64
  %v8690 = vpop.permute.xlu0 %8689
  %8691 = vrot.lane.b32.xlu0 %v8425, 64
  %v8692 = vpop.permute.xlu0 %8691
  %8693 = vrot.lane.b32.xlu0 %v8426, 64
  %v8694 = vpop.permute.xlu0 %8693
  %8695 = vrot.lane.b32.xlu0 %v8427, 64
  %v8696 = vpop.permute.xlu0 %8695
  %8697 = vrot.lane.b32.xlu0 %v8428, 64
  %v8698 = vpop.permute.xlu0 %8697
  %8699 = vrot.lane.b32.xlu0 %v8429, 64
  %v8700 = vpop.permute.xlu0 %8699
  %8701 = vrot.lane.b32.xlu0 %v8430, 64
  %v8702 = vpop.permute.xlu0 %8701
  %8703 = vrot.lane.b32.xlu0 %v8431, 64
  %v8704 = vpop.permute.xlu0 %8703
  %8705 = vrot.lane.b32.xlu0 %v8432, 64
  %v8706 = vpop.permute.xlu0 %8705
  %8707 = vrot.lane.b32.xlu0 %v8433, 64
  %v8708 = vpop.permute.xlu0 %8707
  %8709 = vrot.lane.b32.xlu0 %v8434, 64
  %v8710 = vpop.permute.xlu0 %8709
  %8711 = vrot.lane.b32.xlu0 %v8435, 64
  %v8712 = vpop.permute.xlu0 %8711
  %8713 = vrot.lane.b32.xlu0 %v8436, 64
  %v8714 = vpop.permute.xlu0 %8713
  %8715 = vrot.lane.b32.xlu0 %v8437, 64
  %v8716 = vpop.permute.xlu0 %8715
  %8717 = vrot.lane.b32.xlu0 %v8438, 64
  %v8718 = vpop.permute.xlu0 %8717
  %8719 = vrot.lane.b32.xlu0 %v8439, 64
  %v8720 = vpop.permute.xlu0 %8719
  %8721 = vrot.lane.b32.xlu0 %v8440, 64
  %v8722 = vpop.permute.xlu0 %8721
  %8723 = vrot.lane.b32.xlu0 %v8441, 64
  %v8724 = vpop.permute.xlu0 %8723
  %8725 = vrot.lane.b32.xlu0 %v8442, 64
  %v8726 = vpop.permute.xlu0 %8725
  %8727 = vrot.lane.b32.xlu0 %v8443, 64
  %v8728 = vpop.permute.xlu0 %8727
  %8729 = vrot.lane.b32.xlu0 %v8444, 64
  %v8730 = vpop.permute.xlu0 %8729
  %8731 = vrot.lane.b32.xlu0 %v8445, 64
  %v8732 = vpop.permute.xlu0 %8731
  %8733 = vrot.lane.b32.xlu0 %v8446, 64
  %v8734 = vpop.permute.xlu0 %8733
  %v8759 = vsel %vm17, %v8303, %v8496
  %v8760 = vsel %vm17, %v8304, %v8498
  %v8761 = vsel %vm17, %v8305, %v8500
  %v8762 = vsel %vm17, %v8306, %v8502
  %v8763 = vsel %vm17, %v8307, %v8504
  %v8764 = vsel %vm17, %v8308, %v8506
  %v8765 = vsel %vm17, %v8309, %v8508
  %v8766 = vsel %vm17, %v8310, %v8510
  %v8767 = vsel %vm17, %v8311, %v8512
  %v8768 = vsel %vm17, %v8312, %v8514
  %v8769 = vsel %vm17, %v8313, %v8516
  %v8770 = vsel %vm17, %v8314, %v8518
  %v8771 = vsel %vm17, %v8315, %v8520
  %v8772 = vsel %vm17, %v8316, %v8522
  %v8773 = vsel %vm17, %v8317, %v8524
  %v8774 = vsel %vm17, %v8318, %v8526
  %v8775 = vsel %vm17, %v8319, %v8528
  %v8776 = vsel %vm17, %v8320, %v8530
  %v8777 = vsel %vm17, %v8321, %v8532
  %v8778 = vsel %vm17, %v8322, %v8534
  %v8779 = vsel %vm17, %v8323, %v8536
  %v8780 = vsel %vm17, %v8324, %v8538
  %v8781 = vsel %vm17, %v8325, %v8540
  %v8782 = vsel %vm17, %v8326, %v8542
  %v8783 = vsel %vm17, %v8351, %v8592
  %v8784 = vsel %vm17, %v8352, %v8594
  %v8785 = vsel %vm17, %v8353, %v8596
  %v8786 = vsel %vm17, %v8354, %v8598
  %v8787 = vsel %vm17, %v8355, %v8600
  %v8788 = vsel %vm17, %v8356, %v8602
  %v8789 = vsel %vm17, %v8357, %v8604
  %v8790 = vsel %vm17, %v8358, %v8606
  %v8791 = vsel %vm17, %v8359, %v8608
  %v8792 = vsel %vm17, %v8360, %v8610
  %v8793 = vsel %vm17, %v8361, %v8612
  %v8794 = vsel %vm17, %v8362, %v8614
  %v8795 = vsel %vm17, %v8363, %v8616
  %v8796 = vsel %vm17, %v8364, %v8618
  %v8797 = vsel %vm17, %v8365, %v8620
  %v8798 = vsel %vm17, %v8366, %v8622
  %v8799 = vsel %vm17, %v8367, %v8624
  %v8800 = vsel %vm17, %v8368, %v8626
  %v8801 = vsel %vm17, %v8369, %v8628
  %v8802 = vsel %vm17, %v8370, %v8630
  %v8803 = vsel %vm17, %v8371, %v8632
  %v8804 = vsel %vm17, %v8372, %v8634
  %v8805 = vsel %vm17, %v8373, %v8636
  %v8806 = vsel %vm17, %v8374, %v8638
  %v8807 = vsel %vm17, %v8399, %v8688
  %v8808 = vsel %vm17, %v8400, %v8690
  %v8809 = vsel %vm17, %v8401, %v8692
  %v8810 = vsel %vm17, %v8402, %v8694
  %v8811 = vsel %vm17, %v8403, %v8696
  %v8812 = vsel %vm17, %v8404, %v8698
  %v8813 = vsel %vm17, %v8405, %v8700
  %v8814 = vsel %vm17, %v8406, %v8702
  %v8815 = vsel %vm17, %v8407, %v8704
  %v8816 = vsel %vm17, %v8408, %v8706
  %v8817 = vsel %vm17, %v8409, %v8708
  %v8818 = vsel %vm17, %v8410, %v8710
  %v8819 = vsel %vm17, %v8411, %v8712
  %v8820 = vsel %vm17, %v8412, %v8714
  %v8821 = vsel %vm17, %v8413, %v8716
  %v8822 = vsel %vm17, %v8414, %v8718
  %v8823 = vsel %vm17, %v8415, %v8720
  %v8824 = vsel %vm17, %v8416, %v8722
  %v8825 = vsel %vm17, %v8417, %v8724
  %v8826 = vsel %vm17, %v8418, %v8726
  %v8827 = vsel %vm17, %v8419, %v8728
  %v8828 = vsel %vm17, %v8420, %v8730
  %v8829 = vsel %vm17, %v8421, %v8732
  %v8830 = vsel %vm17, %v8422, %v8734
  %v8831 = vld [vmem:[%s3 + $0x17] sm:$0x1]
  %v8832 = vlaneseq
  %v8833 = vshrl.u32 %v8832, 7
  %v8834 = vsub.s32 0, %v8833
  %v8835 = vrot.slane %v8831, %v8834
  %v8837 = vsel %vm17, %v8447, 0
  %v8840 = vsel %vm17, %v8448, 0
  %v8843 = vsel %vm17, %v8449, 0
  %v8846 = vsel %vm17, %v8450, 0
  %v8849 = vsel %vm17, %v8451, 0
  %v8852 = vsel %vm17, %v8452, 0
  %v8855 = vsel %vm17, %v8453, 0
  %v8858 = vsel %vm17, %v8454, 0
  %v8861 = vsel %vm17, %v8455, 0
  %v8864 = vsel %vm17, %v8456, 0
  %v8867 = vsel %vm17, %v8457, 0
  %v8870 = vsel %vm17, %v8458, 0
  %v8873 = vsel %vm17, %v8459, 0
  %v8876 = vsel %vm17, %v8460, 0
  %v8879 = vsel %vm17, %v8461, 0
  %v8882 = vsel %vm17, %v8462, 0
  %v8885 = vsel %vm17, %v8463, 0
  %v8888 = vsel %vm17, %v8464, 0
  %v8891 = vsel %vm17, %v8465, 0
  %v8894 = vsel %vm17, %v8466, 0
  %v8897 = vsel %vm17, %v8467, 0
  %v8900 = vsel %vm17, %v8468, 0
  %v8903 = vsel %vm17, %v8469, 0
  %v8906 = vsel %vm17, %v8470, 0
  %8908 = vmatprep.subr.mxu0 0.0
  %8909 = vmatpush1.msra.mxu0 %v8199
  %8910 = vmatprep.subr.mxu0 0.0
  %8911 = vmatpush1.msra.mxu0 %v8200
  %8912 = vmatprep.subr.mxu0 0.0
  %8913 = vmatpush1.msra.mxu0 %v8201
  %8914 = vmatprep.subr.mxu0 0.0
  %8915 = vmatpush1.msra.mxu0 %v8202
  %8916 = vmatprep.subr.mxu0 0.0
  %8917 = vmatpush1.msra.mxu0 %v8203
  %8918 = vmatprep.subr.mxu0 0.0
  %8919 = vmatpush1.msra.mxu0 %v8204
  %8920 = vmatprep.subr.mxu0 0.0
  %8921 = vmatpush1.msra.mxu0 %v8205
  %8922 = vmatprep.subr.mxu0 0.0
  %8923 = vmatpush1.msra.mxu0 %v8206
  %8924 = vmatprep.subr.mxu0 0.0
  %8925 = vmatpush1.msra.mxu0 %v8207
  %8926 = vmatprep.subr.mxu0 0.0
  %8927 = vmatpush1.msra.mxu0 %v8208
  %8928 = vmatprep.subr.mxu0 0.0
  %8929 = vmatpush1.msra.mxu0 %v8209
  %8930 = vmatprep.subr.mxu0 0.0
  %8931 = vmatpush1.msra.mxu0 %v8210
  %8932 = vmatprep.subr.mxu0 0.0
  %8933 = vmatpush1.msra.mxu0 %v8211
  %8934 = vmatprep.subr.mxu0 0.0
  %8935 = vmatpush1.msra.mxu0 %v8212
  %8936 = vmatprep.subr.mxu0 0.0
  %8937 = vmatpush1.msra.mxu0 %v8213
  %8938 = vmatprep.subr.mxu0 0.0
  %8939 = vmatpush1.msra.mxu0 %v8214
  %8940 = vmatprep.subr.mxu0 0.0
  %8941 = vmatpush1.msra.mxu0 %v8215
  %8942 = vmatprep.subr.mxu0 0.0
  %8943 = vmatpush1.msra.mxu0 %v8216
  %8944 = vmatprep.subr.mxu0 0.0
  %8945 = vmatpush1.msra.mxu0 %v8217
  %8946 = vmatprep.subr.mxu0 0.0
  %8947 = vmatpush1.msra.mxu0 %v8218
  %8948 = vmatprep.subr.mxu0 0.0
  %8949 = vmatpush1.msra.mxu0 %v8219
  %8950 = vmatprep.subr.mxu0 0.0
  %8951 = vmatpush1.msra.mxu0 %v8220
  %8952 = vmatprep.subr.mxu0 0.0
  %8953 = vmatpush1.msra.mxu0 %v8221
  %8954 = vmatprep.subr.mxu0 0.0
  %8955 = vmatpush1.msra.mxu0 %v8222
  %8956 = vmatprep.subr.mxu0 0.0
  %8957 = vmatpush1.msra.mxu0 %v8223
  %8958 = vmatprep.subr.mxu0 0.0
  %8959 = vmatpush1.msra.mxu0 %v8224
  %8960 = vmatprep.subr.mxu0 0.0
  %8961 = vmatpush1.msra.mxu0 %v8225
  %8962 = vmatprep.subr.mxu0 0.0
  %8963 = vmatpush1.msra.mxu0 %v8226
  %8964 = vmatprep.subr.mxu0 0.0
  %8965 = vmatpush1.msra.mxu0 %v8227
  %8966 = vmatprep.subr.mxu0 0.0
  %8967 = vmatpush1.msra.mxu0 %v8228
  %8968 = vmatprep.subr.mxu0 0.0
  %8969 = vmatpush1.msra.mxu0 %v8229
  %8970 = vmatprep.subr.mxu0 0.0
  %8971 = vmatpush1.msra.mxu0 %v8230
  %8972 = vmatprep.mubr.f32.mxu0 %v8783
  %8973 = vmatmul.mubr.f32.gmra.mrb[0].mxu0 %v8759
  %v8974 = vpop.f32.mrb[0].mxu0
  %v8975 = vadd.f32 %v8835, %v8974
  %v8976 = vpop.f32.mrb[0].mxu0
  %8977 = vmatprep.mubr.f32.mxu0 %v8784
  %8978 = vmatmul.mubr.f32.gmra.mrb[0].mxu0 %v8760
  %v8979 = vpop.f32.mrb[0].mxu0
  %v8980 = vadd.f32 %v8835, %v8979
  %v8981 = vpop.f32.mrb[0].mxu0
  %8982 = vmatprep.mubr.f32.mxu0 %v8785
  %8983 = vmatmul.mubr.f32.gmra.mrb[0].mxu0 %v8761
  %v8984 = vpop.f32.mrb[0].mxu0
  %v8985 = vadd.f32 %v8835, %v8984
  %v8986 = vpop.f32.mrb[0].mxu0
  %8987 = vmatprep.mubr.f32.mxu0 %v8786
  %8988 = vmatmul.mubr.f32.gmra.mrb[0].mxu0 %v8762
  %v8989 = vpop.f32.mrb[0].mxu0
  %v8990 = vadd.f32 %v8835, %v8989
  %v8991 = vpop.f32.mrb[0].mxu0
  %8992 = vmatprep.mubr.f32.mxu0 %v8787
  %8993 = vmatmul.mubr.f32.gmra.mrb[0].mxu0 %v8763
  %v8994 = vpop.f32.mrb[0].mxu0
  %v8995 = vadd.f32 %v8835, %v8994
  %v8996 = vpop.f32.mrb[0].mxu0
  %8997 = vmatprep.mubr.f32.mxu0 %v8788
  %8998 = vmatmul.mubr.f32.gmra.mrb[0].mxu0 %v8764
  %v8999 = vpop.f32.mrb[0].mxu0
  %v9000 = vadd.f32 %v8835, %v8999
  %v9001 = vpop.f32.mrb[0].mxu0
  %9002 = vmatprep.mubr.f32.mxu0 %v8789
  %9003 = vmatmul.mubr.f32.gmra.mrb[0].mxu0 %v8765
  %v9004 = vpop.f32.mrb[0].mxu0
  %v9005 = vadd.f32 %v8835, %v9004
  %v9006 = vpop.f32.mrb[0].mxu0
  %9007 = vmatprep.mubr.f32.mxu0 %v8790
  %9008 = vmatmul.mubr.f32.gmra.mrb[0].mxu0 %v8766
  %v9009 = vpop.f32.mrb[0].mxu0
  %v9010 = vadd.f32 %v8835, %v9009
  %v9011 = vpop.f32.mrb[0].mxu0
  %9012 = vmatprep.mubr.f32.mxu0 %v8791
  %9013 = vmatmul.mubr.f32.gmra.mrb[0].mxu0 %v8767
  %v9014 = vpop.f32.mrb[0].mxu0
  %v9015 = vadd.f32 %v8835, %v9014
  %v9016 = vpop.f32.mrb[0].mxu0
  %9017 = vmatprep.mubr.f32.mxu0 %v8792
  %9018 = vmatmul.mubr.f32.gmra.mrb[0].mxu0 %v8768
  %v9019 = vpop.f32.mrb[0].mxu0
  %v9020 = vadd.f32 %v8835, %v9019
  %v9021 = vpop.f32.mrb[0].mxu0
  %9022 = vmatprep.mubr.f32.mxu0 %v8793
  %9023 = vmatmul.mubr.f32.gmra.mrb[0].mxu0 %v8769
  %v9024 = vpop.f32.mrb[0].mxu0
  %v9025 = vadd.f32 %v8835, %v9024
  %v9026 = vpop.f32.mrb[0].mxu0
  %9027 = vmatprep.mubr.f32.mxu0 %v8794
  %9028 = vmatmul.mubr.f32.gmra.mrb[0].mxu0 %v8770
  %v9029 = vpop.f32.mrb[0].mxu0
  %v9030 = vadd.f32 %v8835, %v9029
  %v9031 = vpop.f32.mrb[0].mxu0
  %9032 = vmatprep.mubr.f32.mxu0 %v8795
  %9033 = vmatmul.mubr.f32.gmra.mrb[0].mxu0 %v8771
  %v9034 = vpop.f32.mrb[0].mxu0
  %v9035 = vadd.f32 %v8835, %v9034
  %v9036 = vpop.f32.mrb[0].mxu0
  %9037 = vmatprep.mubr.f32.mxu0 %v8796
  %9038 = vmatmul.mubr.f32.gmra.mrb[0].mxu0 %v8772
  %v9039 = vpop.f32.mrb[0].mxu0
  %v9040 = vadd.f32 %v8835, %v9039
  %v9041 = vpop.f32.mrb[0].mxu0
  %9042 = vmatprep.mubr.f32.mxu0 %v8797
  %9043 = vmatmul.mubr.f32.gmra.mrb[0].mxu0 %v8773
  %v9044 = vpop.f32.mrb[0].mxu0
  %v9045 = vadd.f32 %v8835, %v9044
  %v9046 = vpop.f32.mrb[0].mxu0
  %9047 = vmatprep.mubr.f32.mxu0 %v8798
  %9048 = vmatmul.mubr.f32.gmra.mrb[0].mxu0 %v8774
  %v9049 = vpop.f32.mrb[0].mxu0
  %v9050 = vadd.f32 %v8835, %v9049
  %v9051 = vpop.f32.mrb[0].mxu0
  %9052 = vmatprep.mubr.f32.mxu0 %v8799
  %9053 = vmatmul.mubr.f32.gmra.mrb[0].mxu0 %v8775
  %v9054 = vpop.f32.mrb[0].mxu0
  %v9055 = vadd.f32 %v8835, %v9054
  %v9056 = vpop.f32.mrb[0].mxu0
  %9057 = vmatprep.mubr.f32.mxu0 %v8800
  %9058 = vmatmul.mubr.f32.gmra.mrb[0].mxu0 %v8776
  %v9059 = vpop.f32.mrb[0].mxu0
  %v9060 = vadd.f32 %v8835, %v9059
  %v9061 = vpop.f32.mrb[0].mxu0
  %9062 = vmatprep.mubr.f32.mxu0 %v8801
  %9063 = vmatmul.mubr.f32.gmra.mrb[0].mxu0 %v8777
  %v9064 = vpop.f32.mrb[0].mxu0
  %v9065 = vadd.f32 %v8835, %v9064
  %v9066 = vpop.f32.mrb[0].mxu0
  %9067 = vmatprep.mubr.f32.mxu0 %v8802
  %9068 = vmatmul.mubr.f32.gmra.mrb[0].mxu0 %v8778
  %v9069 = vpop.f32.mrb[0].mxu0
  %v9070 = vadd.f32 %v8835, %v9069
  %v9071 = vpop.f32.mrb[0].mxu0
  %9072 = vmatprep.mubr.f32.mxu0 %v8803
  %9073 = vmatmul.mubr.f32.gmra.mrb[0].mxu0 %v8779
  %v9074 = vpop.f32.mrb[0].mxu0
  %v9075 = vadd.f32 %v8835, %v9074
  %v9076 = vpop.f32.mrb[0].mxu0
  %9077 = vmatprep.mubr.f32.mxu0 %v8804
  %9078 = vmatmul.mubr.f32.gmra.mrb[0].mxu0 %v8780
  %v9079 = vpop.f32.mrb[0].mxu0
  %v9080 = vadd.f32 %v8835, %v9079
  %v9081 = vpop.f32.mrb[0].mxu0
  %9082 = vmatprep.mubr.f32.mxu0 %v8805
  %9083 = vmatmul.mubr.f32.gmra.mrb[0].mxu0 %v8781
  %v9084 = vpop.f32.mrb[0].mxu0
  %v9085 = vadd.f32 %v8835, %v9084
  %v9086 = vpop.f32.mrb[0].mxu0
  %9087 = vmatprep.mubr.f32.mxu0 %v8806
  %9088 = vmatmul.mubr.f32.gmra.mrb[0].mxu0 %v8782
  %v9089 = vpop.f32.mrb[0].mxu0
  %v9090 = vadd.f32 %v8835, %v9089
  %v9091 = vpop.f32.mrb[0].mxu0
  %9092 = vdwg.mxu0
  %9093 = vmatprep.subr.mxu0 0.0
  %9094 = vmatpush1.msra.mxu0 %v8231
  %9095 = vmatprep.subr.mxu0 0.0
  %9096 = vmatpush1.msra.mxu0 %v8232
  %9097 = vmatprep.subr.mxu0 0.0
  %9098 = vmatpush1.msra.mxu0 %v8233
  %9099 = vmatprep.subr.mxu0 0.0
  %9100 = vmatpush1.msra.mxu0 %v8234
  %9101 = vmatprep.subr.mxu0 0.0
  %9102 = vmatpush1.msra.mxu0 %v8235
  %9103 = vmatprep.subr.mxu0 0.0
  %9104 = vmatpush1.msra.mxu0 %v8236
  %9105 = vmatprep.subr.mxu0 0.0
  %9106 = vmatpush1.msra.mxu0 %v8237
  %9107 = vmatprep.subr.mxu0 0.0
  %9108 = vmatpush1.msra.mxu0 %v8238
  %9109 = vmatprep.subr.mxu0 0.0
  %9110 = vmatpush1.msra.mxu0 %v8239
  %9111 = vmatprep.subr.mxu0 0.0
  %9112 = vmatpush1.msra.mxu0 %v8240
  %9113 = vmatprep.subr.mxu0 0.0
  %9114 = vmatpush1.msra.mxu0 %v8241
  %9115 = vmatprep.subr.mxu0 0.0
  %9116 = vmatpush1.msra.mxu0 %v8242
  %9117 = vmatprep.subr.mxu0 0.0
  %9118 = vmatpush1.msra.mxu0 %v8243
  %9119 = vmatprep.subr.mxu0 0.0
  %9120 = vmatpush1.msra.mxu0 %v8244
  %9121 = vmatprep.subr.mxu0 0.0
  %9122 = vmatpush1.msra.mxu0 %v8245
  %9123 = vmatprep.subr.mxu0 0.0
  %9124 = vmatpush1.msra.mxu0 %v8246
  %9125 = vmatprep.subr.mxu0 0.0
  %9126 = vmatpush1.msra.mxu0 %v8247
  %9127 = vmatprep.subr.mxu0 0.0
  %9128 = vmatpush1.msra.mxu0 %v8248
  %9129 = vmatprep.subr.mxu0 0.0
  %9130 = vmatpush1.msra.mxu0 %v8249
  %9131 = vmatprep.subr.mxu0 0.0
  %9132 = vmatpush1.msra.mxu0 %v8250
  %9133 = vmatprep.subr.mxu0 0.0
  %9134 = vmatpush1.msra.mxu0 %v8251
  %9135 = vmatprep.subr.mxu0 0.0
  %9136 = vmatpush1.msra.mxu0 %v8252
  %9137 = vmatprep.subr.mxu0 0.0
  %9138 = vmatpush1.msra.mxu0 %v8253
  %9139 = vmatprep.subr.mxu0 0.0
  %9140 = vmatpush1.msra.mxu0 %v8254
  %9141 = vmatprep.subr.mxu0 0.0
  %9142 = vmatpush1.msra.mxu0 0.0
  %9143 = vmatprep.subr.mxu0 0.0
  %9144 = vmatpush1.msra.mxu0 0.0
  %9145 = vmatprep.subr.mxu0 0.0
  %9146 = vmatpush1.msra.mxu0 0.0
  %9147 = vmatprep.subr.mxu0 0.0
  %9148 = vmatpush1.msra.mxu0 0.0
  %9149 = vmatprep.subr.mxu0 0.0
  %9150 = vmatpush1.msra.mxu0 0.0
  %9151 = vmatprep.subr.mxu0 0.0
  %9152 = vmatpush1.msra.mxu0 0.0
  %9153 = vmatprep.subr.mxu0 0.0
  %9154 = vmatpush1.msra.mxu0 0.0
  %9155 = vmatprep.subr.mxu0 0.0
  %9156 = vmatpush1.msra.mxu0 0.0
  %9157 = vmatprep.mubr.f32.mxu0 %v8837
  %9158 = vmatmul.mubr.f32.gmra.mrb[0].mxu0 %v8807
  %v9159 = vpop.f32.mrb[0].mxu0
  %v9160 = vadd.f32 %v8975, %v9159
  %v9161 = vpop.f32.mrb[0].mxu0
  %9162 = vmatprep.mubr.f32.mxu0 %v8840
  %9163 = vmatmul.mubr.f32.gmra.mrb[0].mxu0 %v8808
  %v9164 = vpop.f32.mrb[0].mxu0
  %v9165 = vadd.f32 %v8980, %v9164
  %v9166 = vpop.f32.mrb[0].mxu0
  %9167 = vmatprep.mubr.f32.mxu0 %v8843
  %9168 = vmatmul.mubr.f32.gmra.mrb[0].mxu0 %v8809
  %v9169 = vpop.f32.mrb[0].mxu0
  %v9170 = vadd.f32 %v8985, %v9169
  %v9171 = vpop.f32.mrb[0].mxu0
  %9172 = vmatprep.mubr.f32.mxu0 %v8846
  %9173 = vmatmul.mubr.f32.gmra.mrb[0].mxu0 %v8810
  %v9174 = vpop.f32.mrb[0].mxu0
  %v9175 = vadd.f32 %v8990, %v9174
  %v9176 = vpop.f32.mrb[0].mxu0
  %9177 = vmatprep.mubr.f32.mxu0 %v8849
  %9178 = vmatmul.mubr.f32.gmra.mrb[0].mxu0 %v8811
  %v9179 = vpop.f32.mrb[0].mxu0
  %v9180 = vadd.f32 %v8995, %v9179
  %v9181 = vpop.f32.mrb[0].mxu0
  %9182 = vmatprep.mubr.f32.mxu0 %v8852
  %9183 = vmatmul.mubr.f32.gmra.mrb[0].mxu0 %v8812
  %v9184 = vpop.f32.mrb[0].mxu0
  %v9185 = vadd.f32 %v9000, %v9184
  %v9186 = vpop.f32.mrb[0].mxu0
  %9187 = vmatprep.mubr.f32.mxu0 %v8855
  %9188 = vmatmul.mubr.f32.gmra.mrb[0].mxu0 %v8813
  %v9189 = vpop.f32.mrb[0].mxu0
  %v9190 = vadd.f32 %v9005, %v9189
  %v9191 = vpop.f32.mrb[0].mxu0
  %9192 = vmatprep.mubr.f32.mxu0 %v8858
  %9193 = vmatmul.mubr.f32.gmra.mrb[0].mxu0 %v8814
  %v9194 = vpop.f32.mrb[0].mxu0
  %v9195 = vadd.f32 %v9010, %v9194
  %v9196 = vpop.f32.mrb[0].mxu0
  %9197 = vmatprep.mubr.f32.mxu0 %v8861
  %9198 = vmatmul.mubr.f32.gmra.mrb[0].mxu0 %v8815
  %v9199 = vpop.f32.mrb[0].mxu0
  %v9200 = vadd.f32 %v9015, %v9199
  %v9201 = vpop.f32.mrb[0].mxu0
  %9202 = vmatprep.mubr.f32.mxu0 %v8864
  %9203 = vmatmul.mubr.f32.gmra.mrb[0].mxu0 %v8816
  %v9204 = vpop.f32.mrb[0].mxu0
  %v9205 = vadd.f32 %v9020, %v9204
  %v9206 = vpop.f32.mrb[0].mxu0
  %9207 = vmatprep.mubr.f32.mxu0 %v8867
  %9208 = vmatmul.mubr.f32.gmra.mrb[0].mxu0 %v8817
  %v9209 = vpop.f32.mrb[0].mxu0
  %v9210 = vadd.f32 %v9025, %v9209
  %v9211 = vpop.f32.mrb[0].mxu0
  %9212 = vmatprep.mubr.f32.mxu0 %v8870
  %9213 = vmatmul.mubr.f32.gmra.mrb[0].mxu0 %v8818
  %v9214 = vpop.f32.mrb[0].mxu0
  %v9215 = vadd.f32 %v9030, %v9214
  %v9216 = vpop.f32.mrb[0].mxu0
  %9217 = vmatprep.mubr.f32.mxu0 %v8873
  %9218 = vmatmul.mubr.f32.gmra.mrb[0].mxu0 %v8819
  %v9219 = vpop.f32.mrb[0].mxu0
  %v9220 = vadd.f32 %v9035, %v9219
  %v9221 = vpop.f32.mrb[0].mxu0
  %9222 = vmatprep.mubr.f32.mxu0 %v8876
  %9223 = vmatmul.mubr.f32.gmra.mrb[0].mxu0 %v8820
  %v9224 = vpop.f32.mrb[0].mxu0
  %v9225 = vadd.f32 %v9040, %v9224
  %v9226 = vpop.f32.mrb[0].mxu0
  %9227 = vmatprep.mubr.f32.mxu0 %v8879
  %9228 = vmatmul.mubr.f32.gmra.mrb[0].mxu0 %v8821
  %v9229 = vpop.f32.mrb[0].mxu0
  %v9230 = vadd.f32 %v9045, %v9229
  %v9231 = vpop.f32.mrb[0].mxu0
  %9232 = vmatprep.mubr.f32.mxu0 %v8882
  %9233 = vmatmul.mubr.f32.gmra.mrb[0].mxu0 %v8822
  %v9234 = vpop.f32.mrb[0].mxu0
  %v9235 = vadd.f32 %v9050, %v9234
  %v9236 = vpop.f32.mrb[0].mxu0
  %9237 = vmatprep.mubr.f32.mxu0 %v8885
  %9238 = vmatmul.mubr.f32.gmra.mrb[0].mxu0 %v8823
  %v9239 = vpop.f32.mrb[0].mxu0
  %v9240 = vadd.f32 %v9055, %v9239
  %v9241 = vpop.f32.mrb[0].mxu0
  %9242 = vmatprep.mubr.f32.mxu0 %v8888
  %9243 = vmatmul.mubr.f32.gmra.mrb[0].mxu0 %v8824
  %v9244 = vpop.f32.mrb[0].mxu0
  %v9245 = vadd.f32 %v9060, %v9244
  %v9246 = vpop.f32.mrb[0].mxu0
  %9247 = vmatprep.mubr.f32.mxu0 %v8891
  %9248 = vmatmul.mubr.f32.gmra.mrb[0].mxu0 %v8825
  %v9249 = vpop.f32.mrb[0].mxu0
  %v9250 = vadd.f32 %v9065, %v9249
  %v9251 = vpop.f32.mrb[0].mxu0
  %9252 = vmatprep.mubr.f32.mxu0 %v8894
  %9253 = vmatmul.mubr.f32.gmra.mrb[0].mxu0 %v8826
  %v9254 = vpop.f32.mrb[0].mxu0
  %v9255 = vadd.f32 %v9070, %v9254
  %v9256 = vpop.f32.mrb[0].mxu0
  %9257 = vmatprep.mubr.f32.mxu0 %v8897
  %9258 = vmatmul.mubr.f32.gmra.mrb[0].mxu0 %v8827
  %v9259 = vpop.f32.mrb[0].mxu0
  %v9260 = vadd.f32 %v9075, %v9259
  %v9261 = vpop.f32.mrb[0].mxu0
  %9262 = vmatprep.mubr.f32.mxu0 %v8900
  %9263 = vmatmul.mubr.f32.gmra.mrb[0].mxu0 %v8828
  %v9264 = vpop.f32.mrb[0].mxu0
  %v9265 = vadd.f32 %v9080, %v9264
  %v9266 = vpop.f32.mrb[0].mxu0
  %9267 = vmatprep.mubr.f32.mxu0 %v8903
  %9268 = vmatmul.mubr.f32.gmra.mrb[0].mxu0 %v8829
  %v9269 = vpop.f32.mrb[0].mxu0
  %v9270 = vadd.f32 %v9085, %v9269
  %v9271 = vpop.f32.mrb[0].mxu0
  %9272 = vmatprep.mubr.f32.mxu0 %v8906
  %9273 = vmatmul.mubr.f32.gmra.mrb[0].mxu0 %v8830
  %v9274 = vpop.f32.mrb[0].mxu0
  %v9275 = vadd.f32 %v9090, %v9274
  %v9276 = vpop.f32.mrb[0].mxu0
  %9277 = vdwg.mxu0
  %v9278 = vsel %vm64, %v9160, 0.0
  %v9279 = vsel %vm65, %v9165, 0.0
  %v9280 = vsel %vm66, %v9170, 0.0
  %v9281 = vsel %vm64, %v9175, 0.0
  %v9282 = vsel %vm65, %v9180, 0.0
  %v9283 = vsel %vm66, %v9185, 0.0
  %v9284 = vsel %vm64, %v9190, 0.0
  %v9285 = vsel %vm65, %v9195, 0.0
  %v9286 = vsel %vm66, %v9200, 0.0
  %v9287 = vsel %vm64, %v9205, 0.0
  %v9288 = vsel %vm65, %v9210, 0.0
  %v9289 = vsel %vm66, %v9215, 0.0
  %v9290 = vsel %vm64, %v9220, 0.0
  %v9291 = vsel %vm65, %v9225, 0.0
  %v9292 = vsel %vm66, %v9230, 0.0
  %v9293 = vsel %vm64, %v9235, 0.0
  %v9294 = vsel %vm65, %v9240, 0.0
  %v9295 = vsel %vm66, %v9245, 0.0
  %v9296 = vsel %vm64, %v9250, 0.0
  %v9297 = vsel %vm65, %v9255, 0.0
  %v9298 = vsel %vm66, %v9260, 0.0
  %v9299 = vsel %vm64, %v9265, 0.0
  %v9300 = vsel %vm65, %v9270, 0.0
  %v9301 = vsel %vm66, %v9275, 0.0
  %v9302 = vmul.f32 %v9278, %v9278
  %v9303 = vmul.f32 %v9279, %v9279
  %v9304 = vmul.f32 %v9280, %v9280
  %v9305 = vmul.f32 %v9281, %v9281
  %v9306 = vmul.f32 %v9282, %v9282
  %v9307 = vmul.f32 %v9283, %v9283
  %v9308 = vmul.f32 %v9284, %v9284
  %v9309 = vmul.f32 %v9285, %v9285
  %v9310 = vmul.f32 %v9286, %v9286
  %v9311 = vmul.f32 %v9287, %v9287
  %v9312 = vmul.f32 %v9288, %v9288
  %v9313 = vmul.f32 %v9289, %v9289
  %v9314 = vmul.f32 %v9290, %v9290
  %v9315 = vmul.f32 %v9291, %v9291
  %v9316 = vmul.f32 %v9292, %v9292
  %v9317 = vmul.f32 %v9293, %v9293
  %v9318 = vmul.f32 %v9294, %v9294
  %v9319 = vmul.f32 %v9295, %v9295
  %v9320 = vmul.f32 %v9296, %v9296
  %v9321 = vmul.f32 %v9297, %v9297
  %v9322 = vmul.f32 %v9298, %v9298
  %v9323 = vmul.f32 %v9299, %v9299
  %v9324 = vmul.f32 %v9300, %v9300
  %v9325 = vmul.f32 %v9301, %v9301
  %9350 = vrot.lane.b32.xlu0 %v9302, 64
  %v9351 = vpop.permute.xlu0 %9350
  %9352 = vrot.lane.b32.xlu0 %v9303, 64
  %v9353 = vpop.permute.xlu0 %9352
  %9354 = vrot.lane.b32.xlu0 %v9304, 64
  %v9355 = vpop.permute.xlu0 %9354
  %9356 = vrot.lane.b32.xlu0 %v9305, 64
  %v9357 = vpop.permute.xlu0 %9356
  %9358 = vrot.lane.b32.xlu0 %v9306, 64
  %v9359 = vpop.permute.xlu0 %9358
  %9360 = vrot.lane.b32.xlu0 %v9307, 64
  %v9361 = vpop.permute.xlu0 %9360
  %9362 = vrot.lane.b32.xlu0 %v9308, 64
  %v9363 = vpop.permute.xlu0 %9362
  %9364 = vrot.lane.b32.xlu0 %v9309, 64
  %v9365 = vpop.permute.xlu0 %9364
  %9366 = vrot.lane.b32.xlu0 %v9310, 64
  %v9367 = vpop.permute.xlu0 %9366
  %9368 = vrot.lane.b32.xlu0 %v9311, 64
  %v9369 = vpop.permute.xlu0 %9368
  %9370 = vrot.lane.b32.xlu0 %v9312, 64
  %v9371 = vpop.permute.xlu0 %9370
  %9372 = vrot.lane.b32.xlu0 %v9313, 64
  %v9373 = vpop.permute.xlu0 %9372
  %9374 = vrot.lane.b32.xlu0 %v9314, 64
  %v9375 = vpop.permute.xlu0 %9374
  %9376 = vrot.lane.b32.xlu0 %v9315, 64
  %v9377 = vpop.permute.xlu0 %9376
  %9378 = vrot.lane.b32.xlu0 %v9316, 64
  %v9379 = vpop.permute.xlu0 %9378
  %9380 = vrot.lane.b32.xlu0 %v9317, 64
  %v9381 = vpop.permute.xlu0 %9380
  %9382 = vrot.lane.b32.xlu0 %v9318, 64
  %v9383 = vpop.permute.xlu0 %9382
  %9384 = vrot.lane.b32.xlu0 %v9319, 64
  %v9385 = vpop.permute.xlu0 %9384
  %9386 = vrot.lane.b32.xlu0 %v9320, 64
  %v9387 = vpop.permute.xlu0 %9386
  %9388 = vrot.lane.b32.xlu0 %v9321, 64
  %v9389 = vpop.permute.xlu0 %9388
  %9390 = vrot.lane.b32.xlu0 %v9322, 64
  %v9391 = vpop.permute.xlu0 %9390
  %9392 = vrot.lane.b32.xlu0 %v9323, 64
  %v9393 = vpop.permute.xlu0 %9392
  %9394 = vrot.lane.b32.xlu0 %v9324, 64
  %v9395 = vpop.permute.xlu0 %9394
  %9396 = vrot.lane.b32.xlu0 %v9325, 64
  %v9397 = vpop.permute.xlu0 %9396
  %v9422 = vsel %vm17, %v9278, %v9351
  %v9423 = vsel %vm17, %v9279, %v9353
  %v9424 = vsel %vm17, %v9280, %v9355
  %v9425 = vsel %vm17, %v9281, %v9357
  %v9426 = vsel %vm17, %v9282, %v9359
  %v9427 = vsel %vm17, %v9283, %v9361
  %v9428 = vsel %vm17, %v9284, %v9363
  %v9429 = vsel %vm17, %v9285, %v9365
  %v9430 = vsel %vm17, %v9286, %v9367
  %v9431 = vsel %vm17, %v9287, %v9369
  %v9432 = vsel %vm17, %v9288, %v9371
  %v9433 = vsel %vm17, %v9289, %v9373
  %v9434 = vsel %vm17, %v9290, %v9375
  %v9435 = vsel %vm17, %v9291, %v9377
  %v9436 = vsel %vm17, %v9292, %v9379
  %v9437 = vsel %vm17, %v9293, %v9381
  %v9438 = vsel %vm17, %v9294, %v9383
  %v9439 = vsel %vm17, %v9295, %v9385
  %v9440 = vsel %vm17, %v9296, %v9387
  %v9441 = vsel %vm17, %v9297, %v9389
  %v9442 = vsel %vm17, %v9298, %v9391
  %v9443 = vsel %vm17, %v9299, %v9393
  %v9444 = vsel %vm17, %v9300, %v9395
  %v9445 = vsel %vm17, %v9301, %v9397
  %v9446 = vadd.f32 %v9422, %v9423
  %v9447 = vadd.f32 %v9446, %v9424
  %v9448 = vadd.f32 %v9447, %v9425
  %v9449 = vadd.f32 %v9448, %v9426
  %v9450 = vadd.f32 %v9449, %v9427
  %v9451 = vadd.f32 %v9450, %v9428
  %v9452 = vadd.f32 %v9451, %v9429
  %v9453 = vadd.f32 %v9452, %v9430
  %v9454 = vadd.f32 %v9453, %v9431
  %v9455 = vadd.f32 %v9454, %v9432
  %v9456 = vadd.f32 %v9455, %v9433
  %v9457 = vadd.f32 %v9456, %v9434
  %v9458 = vadd.f32 %v9457, %v9435
  %v9459 = vadd.f32 %v9458, %v9436
  %v9460 = vadd.f32 %v9459, %v9437
  %v9461 = vadd.f32 %v9460, %v9438
  %v9462 = vadd.f32 %v9461, %v9439
  %v9463 = vadd.f32 %v9462, %v9440
  %v9464 = vadd.f32 %v9463, %v9441
  %v9465 = vadd.f32 %v9464, %v9442
  %v9466 = vadd.f32 %v9465, %v9443
  %v9467 = vadd.f32 %v9466, %v9444
  %v9468 = vadd.f32 %v9467, %v9445
  %v9469 = vrot.slane %v9468, 4
  %v9470 = vadd.f32 %v9468, %v9469
  %v9471 = vrot.slane %v9470, 2
  %v9472 = vadd.f32 %v9470, %v9471
  %v9473 = vrot.slane %v9472, 1
  %v9474 = vadd.f32 %v9472, %v9473
  %v9475 = vmul.f32 %v9474, 0.0078125
  %v9476 = vmul.f32 %v9475, %v9475
  %9478 = vrot.lane.b32.xlu0 %v9476, 64
  %v9479 = vpop.permute.xlu0 %9478
  %v9481 = vsub.f32 %v9475, %v9479
  %v9482 = vmax.f32 %v9481, 0.0
  %v9483 = vld [vmem:[%s3 + $0x1a] sm:$0x1]
  %v9484 = vsub.f32 %v9160, %v9475
  %v9485 = vsub.f32 %v9165, %v9475
  %v9486 = vsub.f32 %v9170, %v9475
  %v9487 = vsub.f32 %v9175, %v9475
  %v9488 = vsub.f32 %v9180, %v9475
  %v9489 = vsub.f32 %v9185, %v9475
  %v9490 = vsub.f32 %v9190, %v9475
  %v9491 = vsub.f32 %v9195, %v9475
  %v9492 = vsub.f32 %v9200, %v9475
  %v9493 = vsub.f32 %v9205, %v9475
  %v9494 = vsub.f32 %v9210, %v9475
  %v9495 = vsub.f32 %v9215, %v9475
  %v9496 = vsub.f32 %v9220, %v9475
  %v9497 = vsub.f32 %v9225, %v9475
  %v9498 = vsub.f32 %v9230, %v9475
  %v9499 = vsub.f32 %v9235, %v9475
  %v9500 = vsub.f32 %v9240, %v9475
  %v9501 = vsub.f32 %v9245, %v9475
  %v9502 = vsub.f32 %v9250, %v9475
  %v9503 = vsub.f32 %v9255, %v9475
  %v9504 = vsub.f32 %v9260, %v9475
  %v9505 = vsub.f32 %v9265, %v9475
  %v9506 = vsub.f32 %v9270, %v9475
  %v9507 = vsub.f32 %v9275, %v9475
  %v9508 = vadd.f32 %v9482, 1e-05
  %v9509 = vrsqrt.pop %v9508
  %v9510 = vlaneseq
  %v9511 = vshrl.u32 %v9510, 7
  %v9512 = vsub.s32 0, %v9511
  %v9513 = vrot.slane %v9509, %v9512
  %9515 = vrot.lane.b32.xlu0 %v9513, 64
  %v9516 = vpop.permute.xlu0 %9515
  %v9518 = vmul.f32 %v9484, %v9516
  %v9519 = vmul.f32 %v9485, %v9516
  %v9520 = vmul.f32 %v9486, %v9516
  %v9521 = vmul.f32 %v9487, %v9516
  %v9522 = vmul.f32 %v9488, %v9516
  %v9523 = vmul.f32 %v9489, %v9516
  %v9524 = vmul.f32 %v9490, %v9516
  %v9525 = vmul.f32 %v9491, %v9516
  %v9526 = vmul.f32 %v9492, %v9516
  %v9527 = vmul.f32 %v9493, %v9516
  %v9528 = vmul.f32 %v9494, %v9516
  %v9529 = vmul.f32 %v9495, %v9516
  %v9530 = vmul.f32 %v9496, %v9516
  %v9531 = vmul.f32 %v9497, %v9516
  %v9532 = vmul.f32 %v9498, %v9516
  %v9533 = vmul.f32 %v9499, %v9516
  %v9534 = vmul.f32 %v9500, %v9516
  %v9535 = vmul.f32 %v9501, %v9516
  %v9536 = vmul.f32 %v9502, %v9516
  %v9537 = vmul.f32 %v9503, %v9516
  %v9538 = vmul.f32 %v9504, %v9516
  %v9539 = vmul.f32 %v9505, %v9516
  %v9540 = vmul.f32 %v9506, %v9516
  %v9541 = vmul.f32 %v9507, %v9516
  %v9542 = vlaneseq
  %v9543 = vshrl.u32 %v9542, 7
  %v9544 = vsub.s32 0, %v9543
  %v9545 = vrot.slane %v9483, %v9544
  %v9546 = vmul.f32 %v9545, %v9518
  %v9547 = vmul.f32 %v9545, %v9519
  %v9548 = vmul.f32 %v9545, %v9520
  %v9549 = vmul.f32 %v9545, %v9521
  %v9550 = vmul.f32 %v9545, %v9522
  %v9551 = vmul.f32 %v9545, %v9523
  %v9552 = vmul.f32 %v9545, %v9524
  %v9553 = vmul.f32 %v9545, %v9525
  %v9554 = vmul.f32 %v9545, %v9526
  %v9555 = vmul.f32 %v9545, %v9527
  %v9556 = vmul.f32 %v9545, %v9528
  %v9557 = vmul.f32 %v9545, %v9529
  %v9558 = vmul.f32 %v9545, %v9530
  %v9559 = vmul.f32 %v9545, %v9531
  %v9560 = vmul.f32 %v9545, %v9532
  %v9561 = vmul.f32 %v9545, %v9533
  %v9562 = vmul.f32 %v9545, %v9534
  %v9563 = vmul.f32 %v9545, %v9535
  %v9564 = vmul.f32 %v9545, %v9536
  %v9565 = vmul.f32 %v9545, %v9537
  %v9566 = vmul.f32 %v9545, %v9538
  %v9567 = vmul.f32 %v9545, %v9539
  %v9568 = vmul.f32 %v9545, %v9540
  %v9569 = vmul.f32 %v9545, %v9541
  %v9570 = vld [vmem:[%s3 + $0x1b] sm:$0x1]
  %v9571 = vlaneseq
  %v9572 = vshrl.u32 %v9571, 7
  %v9573 = vsub.s32 0, %v9572
  %v9574 = vrot.slane %v9570, %v9573
  %v9575 = vadd.f32 %v9546, %v9574
  %v9576 = vadd.f32 %v9547, %v9574
  %v9577 = vadd.f32 %v9548, %v9574
  %v9578 = vadd.f32 %v9549, %v9574
  %v9579 = vadd.f32 %v9550, %v9574
  %v9580 = vadd.f32 %v9551, %v9574
  %v9581 = vadd.f32 %v9552, %v9574
  %v9582 = vadd.f32 %v9553, %v9574
  %v9583 = vadd.f32 %v9554, %v9574
  %v9584 = vadd.f32 %v9555, %v9574
  %v9585 = vadd.f32 %v9556, %v9574
  %v9586 = vadd.f32 %v9557, %v9574
  %v9587 = vadd.f32 %v9558, %v9574
  %v9588 = vadd.f32 %v9559, %v9574
  %v9589 = vadd.f32 %v9560, %v9574
  %v9590 = vadd.f32 %v9561, %v9574
  %v9591 = vadd.f32 %v9562, %v9574
  %v9592 = vadd.f32 %v9563, %v9574
  %v9593 = vadd.f32 %v9564, %v9574
  %v9594 = vadd.f32 %v9565, %v9574
  %v9595 = vadd.f32 %v9566, %v9574
  %v9596 = vadd.f32 %v9567, %v9574
  %v9597 = vadd.f32 %v9568, %v9574
  %v9598 = vadd.f32 %v9569, %v9574
  %v9599 = vmax.f32 %v9575, 0.0
  %v9600 = vmax.f32 %v9576, 0.0
  %v9601 = vmax.f32 %v9577, 0.0
  %v9602 = vmax.f32 %v9578, 0.0
  %v9603 = vmax.f32 %v9579, 0.0
  %v9604 = vmax.f32 %v9580, 0.0
  %v9605 = vmax.f32 %v9581, 0.0
  %v9606 = vmax.f32 %v9582, 0.0
  %v9607 = vmax.f32 %v9583, 0.0
  %v9608 = vmax.f32 %v9584, 0.0
  %v9609 = vmax.f32 %v9585, 0.0
  %v9610 = vmax.f32 %v9586, 0.0
  %v9611 = vmax.f32 %v9587, 0.0
  %v9612 = vmax.f32 %v9588, 0.0
  %v9613 = vmax.f32 %v9589, 0.0
  %v9614 = vmax.f32 %v9590, 0.0
  %v9615 = vmax.f32 %v9591, 0.0
  %v9616 = vmax.f32 %v9592, 0.0
  %v9617 = vmax.f32 %v9593, 0.0
  %v9618 = vmax.f32 %v9594, 0.0
  %v9619 = vmax.f32 %v9595, 0.0
  %v9620 = vmax.f32 %v9596, 0.0
  %v9621 = vmax.f32 %v9597, 0.0
  %v9622 = vmax.f32 %v9598, 0.0
  %v9623 = vld [vmem:[%s2 + $0x7a8] sm:$0xff]
  %v9624 = vld [vmem:[%s2 + $0x7b0] sm:$0xff]
  %v9625 = vld [vmem:[%s2 + $0x7b8] sm:$0xff]
  %v9626 = vld [vmem:[%s2 + $0x7c0] sm:$0xff]
  %v9627 = vld [vmem:[%s2 + $0x7c8] sm:$0xff]
  %v9628 = vld [vmem:[%s2 + $0x7d0] sm:$0xff]
  %v9629 = vld [vmem:[%s2 + $0x7d8] sm:$0xff]
  %v9630 = vld [vmem:[%s2 + $0x7e0] sm:$0xff]
  %v9631 = vld [vmem:[%s2 + $0x7e8] sm:$0xff]
  %v9632 = vld [vmem:[%s2 + $0x7f0] sm:$0xff]
  %v9633 = vld [vmem:[%s2 + $0x7f8] sm:$0xff]
  %v9634 = vld [vmem:[%s2 + $0x800] sm:$0xff]
  %v9635 = vld [vmem:[%s2 + $0x808] sm:$0xff]
  %v9636 = vld [vmem:[%s2 + $0x810] sm:$0xff]
  %v9637 = vld [vmem:[%s2 + $0x818] sm:$0xff]
  %v9638 = vld [vmem:[%s2 + $0x820] sm:$0xff]
  %v9639 = vld [vmem:[%s2 + $0x828] sm:$0xff]
  %v9640 = vld [vmem:[%s2 + $0x830] sm:$0xff]
  %v9641 = vld [vmem:[%s2 + $0x838] sm:$0xff]
  %v9642 = vld [vmem:[%s2 + $0x840] sm:$0xff]
  %v9643 = vld [vmem:[%s2 + $0x848] sm:$0xff]
  %v9644 = vld [vmem:[%s2 + $0x850] sm:$0xff]
  %v9645 = vld [vmem:[%s2 + $0x858] sm:$0xff]
  %v9646 = vld [vmem:[%s2 + $0x860] sm:$0xff]
  %v9647 = vld [vmem:[%s2 + $0x868] sm:$0xff]
  %v9648 = vld [vmem:[%s2 + $0x870] sm:$0xff]
  %v9649 = vld [vmem:[%s2 + $0x878] sm:$0xff]
  %v9650 = vld [vmem:[%s2 + $0x880] sm:$0xff]
  %v9651 = vld [vmem:[%s2 + $0x888] sm:$0xff]
  %v9652 = vld [vmem:[%s2 + $0x890] sm:$0xff]
  %v9653 = vld [vmem:[%s2 + $0x898] sm:$0xff]
  %v9654 = vld [vmem:[%s2 + $0x8a0] sm:$0xff]
  %v9655 = vld [vmem:[%s2 + $0x8a8] sm:$0xff]
  %v9656 = vld [vmem:[%s2 + $0x8b0] sm:$0xff]
  %v9657 = vld [vmem:[%s2 + $0x8b8] sm:$0xff]
  %v9658 = vld [vmem:[%s2 + $0x8c0] sm:$0xff]
  %v9659 = vld [vmem:[%s2 + $0x8c8] sm:$0xff]
  %v9660 = vld [vmem:[%s2 + $0x8d0] sm:$0xff]
  %v9661 = vld [vmem:[%s2 + $0x8d8] sm:$0xff]
  %v9662 = vld [vmem:[%s2 + $0x8e0] sm:$0xff]
  %v9663 = vsel %vm64, %v9599, 0.0
  %v9664 = vsel %vm65, %v9600, 0.0
  %v9665 = vsel %vm66, %v9601, 0.0
  %v9666 = vsel %vm64, %v9602, 0.0
  %v9667 = vsel %vm65, %v9603, 0.0
  %v9668 = vsel %vm66, %v9604, 0.0
  %v9669 = vsel %vm64, %v9605, 0.0
  %v9670 = vsel %vm65, %v9606, 0.0
  %v9671 = vsel %vm66, %v9607, 0.0
  %v9672 = vsel %vm64, %v9608, 0.0
  %v9673 = vsel %vm65, %v9609, 0.0
  %v9674 = vsel %vm66, %v9610, 0.0
  %v9675 = vsel %vm64, %v9611, 0.0
  %v9676 = vsel %vm65, %v9612, 0.0
  %v9677 = vsel %vm66, %v9613, 0.0
  %v9678 = vsel %vm64, %v9614, 0.0
  %v9679 = vsel %vm65, %v9615, 0.0
  %v9680 = vsel %vm66, %v9616, 0.0
  %v9681 = vsel %vm64, %v9617, 0.0
  %v9682 = vsel %vm65, %v9618, 0.0
  %v9683 = vsel %vm66, %v9619, 0.0
  %v9684 = vsel %vm64, %v9620, 0.0
  %v9685 = vsel %vm65, %v9621, 0.0
  %v9686 = vsel %vm66, %v9622, 0.0
  %9687 = vst.msk [vmem:[#allocation2 + $0x8] sm:$0xff] %vm17, %v9663
  %9688 = vst.msk [vmem:[#allocation2 + $0x10] sm:$0xff] %vm17, %v9664
  %9689 = vst.msk [vmem:[#allocation2 + $0x18] sm:$0xff] %vm17, %v9665
  %9690 = vst.msk [vmem:[#allocation2 + $0x20] sm:$0xff] %vm17, %v9666
  %9691 = vst.msk [vmem:[#allocation2 + $0x28] sm:$0xff] %vm17, %v9667
  %9692 = vst.msk [vmem:[#allocation2 + $0x30] sm:$0xff] %vm17, %v9668
  %9693 = vst.msk [vmem:[#allocation2 + $0x38] sm:$0xff] %vm17, %v9669
  %9694 = vst.msk [vmem:[#allocation2 + $0x40] sm:$0xff] %vm17, %v9670
  %9695 = vst.msk [vmem:[#allocation2 + $0x48] sm:$0xff] %vm17, %v9671
  %9696 = vst.msk [vmem:[#allocation2 + $0x50] sm:$0xff] %vm17, %v9672
  %9697 = vst.msk [vmem:[#allocation2 + $0x58] sm:$0xff] %vm17, %v9673
  %9698 = vst.msk [vmem:[#allocation2 + $0x60] sm:$0xff] %vm17, %v9674
  %9699 = vst.msk [vmem:[#allocation2 + $0x68] sm:$0xff] %vm17, %v9675
  %9700 = vst.msk [vmem:[#allocation2 + $0x70] sm:$0xff] %vm17, %v9676
  %9701 = vst.msk [vmem:[#allocation2 + $0x78] sm:$0xff] %vm17, %v9677
  %9702 = vst.msk [vmem:[#allocation2 + $0x80] sm:$0xff] %vm17, %v9678
  %9703 = vst.msk [vmem:[#allocation2 + $0x88] sm:$0xff] %vm17, %v9679
  %9704 = vst.msk [vmem:[#allocation2 + $0x90] sm:$0xff] %vm17, %v9680
  %9705 = vst.msk [vmem:[#allocation2 + $0x98] sm:$0xff] %vm17, %v9681
  %9706 = vst.msk [vmem:[#allocation2 + $0xa0] sm:$0xff] %vm17, %v9682
  %9707 = vst.msk [vmem:[#allocation2 + $0xa8] sm:$0xff] %vm17, %v9683
  %9708 = vst.msk [vmem:[#allocation2 + $0xb0] sm:$0xff] %vm17, %v9684
  %9709 = vst.msk [vmem:[#allocation2 + $0xb8] sm:$0xff] %vm17, %v9685
  %9710 = vst.msk [vmem:[#allocation2 + $0xc0] sm:$0xff] %vm17, %v9686
  %v9711 = vld [vmem:[#allocation2 + $0x6] sm:$0xff]
  %v9712 = vld [vmem:[#allocation2 + $0xe] sm:$0xff]
  %v9713 = vld [vmem:[#allocation2 + $0x16] sm:$0xff]
  %v9714 = vld [vmem:[#allocation2 + $0x1e] sm:$0xff]
  %v9715 = vld [vmem:[#allocation2 + $0x26] sm:$0xff]
  %v9716 = vld [vmem:[#allocation2 + $0x2e] sm:$0xff]
  %v9717 = vld [vmem:[#allocation2 + $0x36] sm:$0xff]
  %v9718 = vld [vmem:[#allocation2 + $0x3e] sm:$0xff]
  %v9719 = vld [vmem:[#allocation2 + $0x46] sm:$0xff]
  %v9720 = vld [vmem:[#allocation2 + $0x4e] sm:$0xff]
  %v9721 = vld [vmem:[#allocation2 + $0x56] sm:$0xff]
  %v9722 = vld [vmem:[#allocation2 + $0x5e] sm:$0xff]
  %v9723 = vld [vmem:[#allocation2 + $0x66] sm:$0xff]
  %v9724 = vld [vmem:[#allocation2 + $0x6e] sm:$0xff]
  %v9725 = vld [vmem:[#allocation2 + $0x76] sm:$0xff]
  %v9726 = vld [vmem:[#allocation2 + $0x7e] sm:$0xff]
  %v9727 = vld [vmem:[#allocation2 + $0x86] sm:$0xff]
  %v9728 = vld [vmem:[#allocation2 + $0x8e] sm:$0xff]
  %v9729 = vld [vmem:[#allocation2 + $0x96] sm:$0xff]
  %v9730 = vld [vmem:[#allocation2 + $0x9e] sm:$0xff]
  %v9731 = vld [vmem:[#allocation2 + $0xa6] sm:$0xff]
  %v9732 = vld [vmem:[#allocation2 + $0xae] sm:$0xff]
  %v9733 = vld [vmem:[#allocation2 + $0xb6] sm:$0xff]
  %v9734 = vld [vmem:[#allocation2 + $0xbe] sm:$0xff]
  %v9735 = vld [vmem:[#allocation2 + $0x7] sm:$0xff]
  %v9736 = vld [vmem:[#allocation2 + $0xf] sm:$0xff]
  %v9737 = vld [vmem:[#allocation2 + $0x17] sm:$0xff]
  %v9738 = vld [vmem:[#allocation2 + $0x1f] sm:$0xff]
  %v9739 = vld [vmem:[#allocation2 + $0x27] sm:$0xff]
  %v9740 = vld [vmem:[#allocation2 + $0x2f] sm:$0xff]
  %v9741 = vld [vmem:[#allocation2 + $0x37] sm:$0xff]
  %v9742 = vld [vmem:[#allocation2 + $0x3f] sm:$0xff]
  %v9743 = vld [vmem:[#allocation2 + $0x47] sm:$0xff]
  %v9744 = vld [vmem:[#allocation2 + $0x4f] sm:$0xff]
  %v9745 = vld [vmem:[#allocation2 + $0x57] sm:$0xff]
  %v9746 = vld [vmem:[#allocation2 + $0x5f] sm:$0xff]
  %v9747 = vld [vmem:[#allocation2 + $0x67] sm:$0xff]
  %v9748 = vld [vmem:[#allocation2 + $0x6f] sm:$0xff]
  %v9749 = vld [vmem:[#allocation2 + $0x77] sm:$0xff]
  %v9750 = vld [vmem:[#allocation2 + $0x7f] sm:$0xff]
  %v9751 = vld [vmem:[#allocation2 + $0x87] sm:$0xff]
  %v9752 = vld [vmem:[#allocation2 + $0x8f] sm:$0xff]
  %v9753 = vld [vmem:[#allocation2 + $0x97] sm:$0xff]
  %v9754 = vld [vmem:[#allocation2 + $0x9f] sm:$0xff]
  %v9755 = vld [vmem:[#allocation2 + $0xa7] sm:$0xff]
  %v9756 = vld [vmem:[#allocation2 + $0xaf] sm:$0xff]
  %v9757 = vld [vmem:[#allocation2 + $0xb7] sm:$0xff]
  %v9758 = vld [vmem:[#allocation2 + $0xbf] sm:$0xff]
  %v9759 = vld [vmem:[#allocation2 + $0x8] sm:$0xff]
  %v9760 = vld [vmem:[#allocation2 + $0x10] sm:$0xff]
  %v9761 = vld [vmem:[#allocation2 + $0x18] sm:$0xff]
  %v9762 = vld [vmem:[#allocation2 + $0x20] sm:$0xff]
  %v9763 = vld [vmem:[#allocation2 + $0x28] sm:$0xff]
  %v9764 = vld [vmem:[#allocation2 + $0x30] sm:$0xff]
  %v9765 = vld [vmem:[#allocation2 + $0x38] sm:$0xff]
  %v9766 = vld [vmem:[#allocation2 + $0x40] sm:$0xff]
  %v9767 = vld [vmem:[#allocation2 + $0x48] sm:$0xff]
  %v9768 = vld [vmem:[#allocation2 + $0x50] sm:$0xff]
  %v9769 = vld [vmem:[#allocation2 + $0x58] sm:$0xff]
  %v9770 = vld [vmem:[#allocation2 + $0x60] sm:$0xff]
  %v9771 = vld [vmem:[#allocation2 + $0x68] sm:$0xff]
  %v9772 = vld [vmem:[#allocation2 + $0x70] sm:$0xff]
  %v9773 = vld [vmem:[#allocation2 + $0x78] sm:$0xff]
  %v9774 = vld [vmem:[#allocation2 + $0x80] sm:$0xff]
  %v9775 = vld [vmem:[#allocation2 + $0x88] sm:$0xff]
  %v9776 = vld [vmem:[#allocation2 + $0x90] sm:$0xff]
  %v9777 = vld [vmem:[#allocation2 + $0x98] sm:$0xff]
  %v9778 = vld [vmem:[#allocation2 + $0xa0] sm:$0xff]
  %v9779 = vld [vmem:[#allocation2 + $0xa8] sm:$0xff]
  %v9780 = vld [vmem:[#allocation2 + $0xb0] sm:$0xff]
  %v9781 = vld [vmem:[#allocation2 + $0xb8] sm:$0xff]
  %v9782 = vld [vmem:[#allocation2 + $0xc0] sm:$0xff]
  %v9783 = vld [vmem:[#allocation2 + $0x9] sm:$0xff]
  %v9784 = vld [vmem:[#allocation2 + $0x11] sm:$0xff]
  %v9785 = vld [vmem:[#allocation2 + $0x19] sm:$0xff]
  %v9786 = vld [vmem:[#allocation2 + $0x21] sm:$0xff]
  %v9787 = vld [vmem:[#allocation2 + $0x29] sm:$0xff]
  %v9788 = vld [vmem:[#allocation2 + $0x31] sm:$0xff]
  %v9789 = vld [vmem:[#allocation2 + $0x39] sm:$0xff]
  %v9790 = vld [vmem:[#allocation2 + $0x41] sm:$0xff]
  %v9791 = vld [vmem:[#allocation2 + $0x49] sm:$0xff]
  %v9792 = vld [vmem:[#allocation2 + $0x51] sm:$0xff]
  %v9793 = vld [vmem:[#allocation2 + $0x59] sm:$0xff]
  %v9794 = vld [vmem:[#allocation2 + $0x61] sm:$0xff]
  %v9795 = vld [vmem:[#allocation2 + $0x69] sm:$0xff]
  %v9796 = vld [vmem:[#allocation2 + $0x71] sm:$0xff]
  %v9797 = vld [vmem:[#allocation2 + $0x79] sm:$0xff]
  %v9798 = vld [vmem:[#allocation2 + $0x81] sm:$0xff]
  %v9799 = vld [vmem:[#allocation2 + $0x89] sm:$0xff]
  %v9800 = vld [vmem:[#allocation2 + $0x91] sm:$0xff]
  %v9801 = vld [vmem:[#allocation2 + $0x99] sm:$0xff]
  %v9802 = vld [vmem:[#allocation2 + $0xa1] sm:$0xff]
  %v9803 = vld [vmem:[#allocation2 + $0xa9] sm:$0xff]
  %v9804 = vld [vmem:[#allocation2 + $0xb1] sm:$0xff]
  %v9805 = vld [vmem:[#allocation2 + $0xb9] sm:$0xff]
  %v9806 = vld [vmem:[#allocation2 + $0xc1] sm:$0xff]
  %v9807 = vld [vmem:[#allocation2 + $0xa] sm:$0xff]
  %v9808 = vld [vmem:[#allocation2 + $0x12] sm:$0xff]
  %v9809 = vld [vmem:[#allocation2 + $0x1a] sm:$0xff]
  %v9810 = vld [vmem:[#allocation2 + $0x22] sm:$0xff]
  %v9811 = vld [vmem:[#allocation2 + $0x2a] sm:$0xff]
  %v9812 = vld [vmem:[#allocation2 + $0x32] sm:$0xff]
  %v9813 = vld [vmem:[#allocation2 + $0x3a] sm:$0xff]
  %v9814 = vld [vmem:[#allocation2 + $0x42] sm:$0xff]
  %v9815 = vld [vmem:[#allocation2 + $0x4a] sm:$0xff]
  %v9816 = vld [vmem:[#allocation2 + $0x52] sm:$0xff]
  %v9817 = vld [vmem:[#allocation2 + $0x5a] sm:$0xff]
  %v9818 = vld [vmem:[#allocation2 + $0x62] sm:$0xff]
  %v9819 = vld [vmem:[#allocation2 + $0x6a] sm:$0xff]
  %v9820 = vld [vmem:[#allocation2 + $0x72] sm:$0xff]
  %v9821 = vld [vmem:[#allocation2 + $0x7a] sm:$0xff]
  %v9822 = vld [vmem:[#allocation2 + $0x82] sm:$0xff]
  %v9823 = vld [vmem:[#allocation2 + $0x8a] sm:$0xff]
  %v9824 = vld [vmem:[#allocation2 + $0x92] sm:$0xff]
  %v9825 = vld [vmem:[#allocation2 + $0x9a] sm:$0xff]
  %v9826 = vld [vmem:[#allocation2 + $0xa2] sm:$0xff]
  %v9827 = vld [vmem:[#allocation2 + $0xaa] sm:$0xff]
  %v9828 = vld [vmem:[#allocation2 + $0xb2] sm:$0xff]
  %v9829 = vld [vmem:[#allocation2 + $0xba] sm:$0xff]
  %v9830 = vld [vmem:[#allocation2 + $0xc2] sm:$0xff]
  %9855 = vrot.lane.b32.xlu0 %v9735, 64
  %v9856 = vpop.permute.xlu0 %9855
  %9857 = vrot.lane.b32.xlu0 %v9736, 64
  %v9858 = vpop.permute.xlu0 %9857
  %9859 = vrot.lane.b32.xlu0 %v9737, 64
  %v9860 = vpop.permute.xlu0 %9859
  %9861 = vrot.lane.b32.xlu0 %v9738, 64
  %v9862 = vpop.permute.xlu0 %9861
  %9863 = vrot.lane.b32.xlu0 %v9739, 64
  %v9864 = vpop.permute.xlu0 %9863
  %9865 = vrot.lane.b32.xlu0 %v9740, 64
  %v9866 = vpop.permute.xlu0 %9865
  %9867 = vrot.lane.b32.xlu0 %v9741, 64
  %v9868 = vpop.permute.xlu0 %9867
  %9869 = vrot.lane.b32.xlu0 %v9742, 64
  %v9870 = vpop.permute.xlu0 %9869
  %9871 = vrot.lane.b32.xlu0 %v9743, 64
  %v9872 = vpop.permute.xlu0 %9871
  %9873 = vrot.lane.b32.xlu0 %v9744, 64
  %v9874 = vpop.permute.xlu0 %9873
  %9875 = vrot.lane.b32.xlu0 %v9745, 64
  %v9876 = vpop.permute.xlu0 %9875
  %9877 = vrot.lane.b32.xlu0 %v9746, 64
  %v9878 = vpop.permute.xlu0 %9877
  %9879 = vrot.lane.b32.xlu0 %v9747, 64
  %v9880 = vpop.permute.xlu0 %9879
  %9881 = vrot.lane.b32.xlu0 %v9748, 64
  %v9882 = vpop.permute.xlu0 %9881
  %9883 = vrot.lane.b32.xlu0 %v9749, 64
  %v9884 = vpop.permute.xlu0 %9883
  %9885 = vrot.lane.b32.xlu0 %v9750, 64
  %v9886 = vpop.permute.xlu0 %9885
  %9887 = vrot.lane.b32.xlu0 %v9751, 64
  %v9888 = vpop.permute.xlu0 %9887
  %9889 = vrot.lane.b32.xlu0 %v9752, 64
  %v9890 = vpop.permute.xlu0 %9889
  %9891 = vrot.lane.b32.xlu0 %v9753, 64
  %v9892 = vpop.permute.xlu0 %9891
  %9893 = vrot.lane.b32.xlu0 %v9754, 64
  %v9894 = vpop.permute.xlu0 %9893
  %9895 = vrot.lane.b32.xlu0 %v9755, 64
  %v9896 = vpop.permute.xlu0 %9895
  %9897 = vrot.lane.b32.xlu0 %v9756, 64
  %v9898 = vpop.permute.xlu0 %9897
  %9899 = vrot.lane.b32.xlu0 %v9757, 64
  %v9900 = vpop.permute.xlu0 %9899
  %9901 = vrot.lane.b32.xlu0 %v9758, 64
  %v9902 = vpop.permute.xlu0 %9901
  %9951 = vrot.lane.b32.xlu0 %v9783, 64
  %v9952 = vpop.permute.xlu0 %9951
  %9953 = vrot.lane.b32.xlu0 %v9784, 64
  %v9954 = vpop.permute.xlu0 %9953
  %9955 = vrot.lane.b32.xlu0 %v9785, 64
  %v9956 = vpop.permute.xlu0 %9955
  %9957 = vrot.lane.b32.xlu0 %v9786, 64
  %v9958 = vpop.permute.xlu0 %9957
  %9959 = vrot.lane.b32.xlu0 %v9787, 64
  %v9960 = vpop.permute.xlu0 %9959
  %9961 = vrot.lane.b32.xlu0 %v9788, 64
  %v9962 = vpop.permute.xlu0 %9961
  %9963 = vrot.lane.b32.xlu0 %v9789, 64
  %v9964 = vpop.permute.xlu0 %9963
  %9965 = vrot.lane.b32.xlu0 %v9790, 64
  %v9966 = vpop.permute.xlu0 %9965
  %9967 = vrot.lane.b32.xlu0 %v9791, 64
  %v9968 = vpop.permute.xlu0 %9967
  %9969 = vrot.lane.b32.xlu0 %v9792, 64
  %v9970 = vpop.permute.xlu0 %9969
  %9971 = vrot.lane.b32.xlu0 %v9793, 64
  %v9972 = vpop.permute.xlu0 %9971
  %9973 = vrot.lane.b32.xlu0 %v9794, 64
  %v9974 = vpop.permute.xlu0 %9973
  %9975 = vrot.lane.b32.xlu0 %v9795, 64
  %v9976 = vpop.permute.xlu0 %9975
  %9977 = vrot.lane.b32.xlu0 %v9796, 64
  %v9978 = vpop.permute.xlu0 %9977
  %9979 = vrot.lane.b32.xlu0 %v9797, 64
  %v9980 = vpop.permute.xlu0 %9979
  %9981 = vrot.lane.b32.xlu0 %v9798, 64
  %v9982 = vpop.permute.xlu0 %9981
  %9983 = vrot.lane.b32.xlu0 %v9799, 64
  %v9984 = vpop.permute.xlu0 %9983
  %9985 = vrot.lane.b32.xlu0 %v9800, 64
  %v9986 = vpop.permute.xlu0 %9985
  %9987 = vrot.lane.b32.xlu0 %v9801, 64
  %v9988 = vpop.permute.xlu0 %9987
  %9989 = vrot.lane.b32.xlu0 %v9802, 64
  %v9990 = vpop.permute.xlu0 %9989
  %9991 = vrot.lane.b32.xlu0 %v9803, 64
  %v9992 = vpop.permute.xlu0 %9991
  %9993 = vrot.lane.b32.xlu0 %v9804, 64
  %v9994 = vpop.permute.xlu0 %9993
  %9995 = vrot.lane.b32.xlu0 %v9805, 64
  %v9996 = vpop.permute.xlu0 %9995
  %9997 = vrot.lane.b32.xlu0 %v9806, 64
  %v9998 = vpop.permute.xlu0 %9997
  %v10023 = vsel %vm17, %v9711, %v9856
  %v10024 = vsel %vm17, %v9712, %v9858
  %v10025 = vsel %vm17, %v9713, %v9860
  %v10026 = vsel %vm17, %v9714, %v9862
  %v10027 = vsel %vm17, %v9715, %v9864
  %v10028 = vsel %vm17, %v9716, %v9866
  %v10029 = vsel %vm17, %v9717, %v9868
  %v10030 = vsel %vm17, %v9718, %v9870
  %v10031 = vsel %vm17, %v9719, %v9872
  %v10032 = vsel %vm17, %v9720, %v9874
  %v10033 = vsel %vm17, %v9721, %v9876
  %v10034 = vsel %vm17, %v9722, %v9878
  %v10035 = vsel %vm17, %v9723, %v9880
  %v10036 = vsel %vm17, %v9724, %v9882
  %v10037 = vsel %vm17, %v9725, %v9884
  %v10038 = vsel %vm17, %v9726, %v9886
  %v10039 = vsel %vm17, %v9727, %v9888
  %v10040 = vsel %vm17, %v9728, %v9890
  %v10041 = vsel %vm17, %v9729, %v9892
  %v10042 = vsel %vm17, %v9730, %v9894
  %v10043 = vsel %vm17, %v9731, %v9896
  %v10044 = vsel %vm17, %v9732, %v9898
  %v10045 = vsel %vm17, %v9733, %v9900
  %v10046 = vsel %vm17, %v9734, %v9902
  %v10047 = vsel %vm17, %v9759, %v9952
  %v10048 = vsel %vm17, %v9760, %v9954
  %v10049 = vsel %vm17, %v9761, %v9956
  %v10050 = vsel %vm17, %v9762, %v9958
  %v10051 = vsel %vm17, %v9763, %v9960
  %v10052 = vsel %vm17, %v9764, %v9962
  %v10053 = vsel %vm17, %v9765, %v9964
  %v10054 = vsel %vm17, %v9766, %v9966
  %v10055 = vsel %vm17, %v9767, %v9968
  %v10056 = vsel %vm17, %v9768, %v9970
  %v10057 = vsel %vm17, %v9769, %v9972
  %v10058 = vsel %vm17, %v9770, %v9974
  %v10059 = vsel %vm17, %v9771, %v9976
  %v10060 = vsel %vm17, %v9772, %v9978
  %v10061 = vsel %vm17, %v9773, %v9980
  %v10062 = vsel %vm17, %v9774, %v9982
  %v10063 = vsel %vm17, %v9775, %v9984
  %v10064 = vsel %vm17, %v9776, %v9986
  %v10065 = vsel %vm17, %v9777, %v9988
  %v10066 = vsel %vm17, %v9778, %v9990
  %v10067 = vsel %vm17, %v9779, %v9992
  %v10068 = vsel %vm17, %v9780, %v9994
  %v10069 = vsel %vm17, %v9781, %v9996
  %v10070 = vsel %vm17, %v9782, %v9998
  %v10071 = vld [vmem:[%s3 + $0x18] sm:$0x1]
  %v10072 = vlaneseq
  %v10073 = vshrl.u32 %v10072, 7
  %v10074 = vsub.s32 0, %v10073
  %v10075 = vrot.slane %v10071, %v10074
  %v10077 = vsel %vm17, %v9807, 0
  %v10080 = vsel %vm17, %v9808, 0
  %v10083 = vsel %vm17, %v9809, 0
  %v10086 = vsel %vm17, %v9810, 0
  %v10089 = vsel %vm17, %v9811, 0
  %v10092 = vsel %vm17, %v9812, 0
  %v10095 = vsel %vm17, %v9813, 0
  %v10098 = vsel %vm17, %v9814, 0
  %v10101 = vsel %vm17, %v9815, 0
  %v10104 = vsel %vm17, %v9816, 0
  %v10107 = vsel %vm17, %v9817, 0
  %v10110 = vsel %vm17, %v9818, 0
  %v10113 = vsel %vm17, %v9819, 0
  %v10116 = vsel %vm17, %v9820, 0
  %v10119 = vsel %vm17, %v9821, 0
  %v10122 = vsel %vm17, %v9822, 0
  %v10125 = vsel %vm17, %v9823, 0
  %v10128 = vsel %vm17, %v9824, 0
  %v10131 = vsel %vm17, %v9825, 0
  %v10134 = vsel %vm17, %v9826, 0
  %v10137 = vsel %vm17, %v9827, 0
  %v10140 = vsel %vm17, %v9828, 0
  %v10143 = vsel %vm17, %v9829, 0
  %v10146 = vsel %vm17, %v9830, 0
  %10148 = vmatprep.subr.mxu0 0.0
  %10149 = vmatpush1.msra.mxu0 %v9623
  %10150 = vmatprep.subr.mxu0 0.0
  %10151 = vmatpush1.msra.mxu0 %v9624
  %10152 = vmatprep.subr.mxu0 0.0
  %10153 = vmatpush1.msra.mxu0 %v9625
  %10154 = vmatprep.subr.mxu0 0.0
  %10155 = vmatpush1.msra.mxu0 %v9626
  %10156 = vmatprep.subr.mxu0 0.0
  %10157 = vmatpush1.msra.mxu0 %v9627
  %10158 = vmatprep.subr.mxu0 0.0
  %10159 = vmatpush1.msra.mxu0 %v9628
  %10160 = vmatprep.subr.mxu0 0.0
  %10161 = vmatpush1.msra.mxu0 %v9629
  %10162 = vmatprep.subr.mxu0 0.0
  %10163 = vmatpush1.msra.mxu0 %v9630
  %10164 = vmatprep.subr.mxu0 0.0
  %10165 = vmatpush1.msra.mxu0 %v9631
  %10166 = vmatprep.subr.mxu0 0.0
  %10167 = vmatpush1.msra.mxu0 %v9632
  %10168 = vmatprep.subr.mxu0 0.0
  %10169 = vmatpush1.msra.mxu0 %v9633
  %10170 = vmatprep.subr.mxu0 0.0
  %10171 = vmatpush1.msra.mxu0 %v9634
  %10172 = vmatprep.subr.mxu0 0.0
  %10173 = vmatpush1.msra.mxu0 %v9635
  %10174 = vmatprep.subr.mxu0 0.0
  %10175 = vmatpush1.msra.mxu0 %v9636
  %10176 = vmatprep.subr.mxu0 0.0
  %10177 = vmatpush1.msra.mxu0 %v9637
  %10178 = vmatprep.subr.mxu0 0.0
  %10179 = vmatpush1.msra.mxu0 %v9638
  %10180 = vmatprep.subr.mxu0 0.0
  %10181 = vmatpush1.msra.mxu0 %v9639
  %10182 = vmatprep.subr.mxu0 0.0
  %10183 = vmatpush1.msra.mxu0 %v9640
  %10184 = vmatprep.subr.mxu0 0.0
  %10185 = vmatpush1.msra.mxu0 %v9641
  %10186 = vmatprep.subr.mxu0 0.0
  %10187 = vmatpush1.msra.mxu0 %v9642
  %10188 = vmatprep.subr.mxu0 0.0
  %10189 = vmatpush1.msra.mxu0 %v9643
  %10190 = vmatprep.subr.mxu0 0.0
  %10191 = vmatpush1.msra.mxu0 %v9644
  %10192 = vmatprep.subr.mxu0 0.0
  %10193 = vmatpush1.msra.mxu0 %v9645
  %10194 = vmatprep.subr.mxu0 0.0
  %10195 = vmatpush1.msra.mxu0 %v9646
  %10196 = vmatprep.subr.mxu0 0.0
  %10197 = vmatpush1.msra.mxu0 %v9647
  %10198 = vmatprep.subr.mxu0 0.0
  %10199 = vmatpush1.msra.mxu0 %v9648
  %10200 = vmatprep.subr.mxu0 0.0
  %10201 = vmatpush1.msra.mxu0 %v9649
  %10202 = vmatprep.subr.mxu0 0.0
  %10203 = vmatpush1.msra.mxu0 %v9650
  %10204 = vmatprep.subr.mxu0 0.0
  %10205 = vmatpush1.msra.mxu0 %v9651
  %10206 = vmatprep.subr.mxu0 0.0
  %10207 = vmatpush1.msra.mxu0 %v9652
  %10208 = vmatprep.subr.mxu0 0.0
  %10209 = vmatpush1.msra.mxu0 %v9653
  %10210 = vmatprep.subr.mxu0 0.0
  %10211 = vmatpush1.msra.mxu0 %v9654
  %10212 = vmatprep.mubr.f32.mxu0 %v10047
  %10213 = vmatmul.mubr.f32.gmra.mrb[0].mxu0 %v10023
  %v10214 = vpop.f32.mrb[0].mxu0
  %v10215 = vadd.f32 %v10075, %v10214
  %v10216 = vpop.f32.mrb[0].mxu0
  %10217 = vmatprep.mubr.f32.mxu0 %v10048
  %10218 = vmatmul.mubr.f32.gmra.mrb[0].mxu0 %v10024
  %v10219 = vpop.f32.mrb[0].mxu0
  %v10220 = vadd.f32 %v10075, %v10219
  %v10221 = vpop.f32.mrb[0].mxu0
  %10222 = vmatprep.mubr.f32.mxu0 %v10049
  %10223 = vmatmul.mubr.f32.gmra.mrb[0].mxu0 %v10025
  %v10224 = vpop.f32.mrb[0].mxu0
  %v10225 = vadd.f32 %v10075, %v10224
  %v10226 = vpop.f32.mrb[0].mxu0
  %10227 = vmatprep.mubr.f32.mxu0 %v10050
  %10228 = vmatmul.mubr.f32.gmra.mrb[0].mxu0 %v10026
  %v10229 = vpop.f32.mrb[0].mxu0
  %v10230 = vadd.f32 %v10075, %v10229
  %v10231 = vpop.f32.mrb[0].mxu0
  %10232 = vmatprep.mubr.f32.mxu0 %v10051
  %10233 = vmatmul.mubr.f32.gmra.mrb[0].mxu0 %v10027
  %v10234 = vpop.f32.mrb[0].mxu0
  %v10235 = vadd.f32 %v10075, %v10234
  %v10236 = vpop.f32.mrb[0].mxu0
  %10237 = vmatprep.mubr.f32.mxu0 %v10052
  %10238 = vmatmul.mubr.f32.gmra.mrb[0].mxu0 %v10028
  %v10239 = vpop.f32.mrb[0].mxu0
  %v10240 = vadd.f32 %v10075, %v10239
  %v10241 = vpop.f32.mrb[0].mxu0
  %10242 = vmatprep.mubr.f32.mxu0 %v10053
  %10243 = vmatmul.mubr.f32.gmra.mrb[0].mxu0 %v10029
  %v10244 = vpop.f32.mrb[0].mxu0
  %v10245 = vadd.f32 %v10075, %v10244
  %v10246 = vpop.f32.mrb[0].mxu0
  %10247 = vmatprep.mubr.f32.mxu0 %v10054
  %10248 = vmatmul.mubr.f32.gmra.mrb[0].mxu0 %v10030
  %v10249 = vpop.f32.mrb[0].mxu0
  %v10250 = vadd.f32 %v10075, %v10249
  %v10251 = vpop.f32.mrb[0].mxu0
  %10252 = vmatprep.mubr.f32.mxu0 %v10055
  %10253 = vmatmul.mubr.f32.gmra.mrb[0].mxu0 %v10031
  %v10254 = vpop.f32.mrb[0].mxu0
  %v10255 = vadd.f32 %v10075, %v10254
  %v10256 = vpop.f32.mrb[0].mxu0
  %10257 = vmatprep.mubr.f32.mxu0 %v10056
  %10258 = vmatmul.mubr.f32.gmra.mrb[0].mxu0 %v10032
  %v10259 = vpop.f32.mrb[0].mxu0
  %v10260 = vadd.f32 %v10075, %v10259
  %v10261 = vpop.f32.mrb[0].mxu0
  %10262 = vmatprep.mubr.f32.mxu0 %v10057
  %10263 = vmatmul.mubr.f32.gmra.mrb[0].mxu0 %v10033
  %v10264 = vpop.f32.mrb[0].mxu0
  %v10265 = vadd.f32 %v10075, %v10264
  %v10266 = vpop.f32.mrb[0].mxu0
  %10267 = vmatprep.mubr.f32.mxu0 %v10058
  %10268 = vmatmul.mubr.f32.gmra.mrb[0].mxu0 %v10034
  %v10269 = vpop.f32.mrb[0].mxu0
  %v10270 = vadd.f32 %v10075, %v10269
  %v10271 = vpop.f32.mrb[0].mxu0
  %10272 = vmatprep.mubr.f32.mxu0 %v10059
  %10273 = vmatmul.mubr.f32.gmra.mrb[0].mxu0 %v10035
  %v10274 = vpop.f32.mrb[0].mxu0
  %v10275 = vadd.f32 %v10075, %v10274
  %v10276 = vpop.f32.mrb[0].mxu0
  %10277 = vmatprep.mubr.f32.mxu0 %v10060
  %10278 = vmatmul.mubr.f32.gmra.mrb[0].mxu0 %v10036
  %v10279 = vpop.f32.mrb[0].mxu0
  %v10280 = vadd.f32 %v10075, %v10279
  %v10281 = vpop.f32.mrb[0].mxu0
  %10282 = vmatprep.mubr.f32.mxu0 %v10061
  %10283 = vmatmul.mubr.f32.gmra.mrb[0].mxu0 %v10037
  %v10284 = vpop.f32.mrb[0].mxu0
  %v10285 = vadd.f32 %v10075, %v10284
  %v10286 = vpop.f32.mrb[0].mxu0
  %10287 = vmatprep.mubr.f32.mxu0 %v10062
  %10288 = vmatmul.mubr.f32.gmra.mrb[0].mxu0 %v10038
  %v10289 = vpop.f32.mrb[0].mxu0
  %v10290 = vadd.f32 %v10075, %v10289
  %v10291 = vpop.f32.mrb[0].mxu0
  %10292 = vmatprep.mubr.f32.mxu0 %v10063
  %10293 = vmatmul.mubr.f32.gmra.mrb[0].mxu0 %v10039
  %v10294 = vpop.f32.mrb[0].mxu0
  %v10295 = vadd.f32 %v10075, %v10294
  %v10296 = vpop.f32.mrb[0].mxu0
  %10297 = vmatprep.mubr.f32.mxu0 %v10064
  %10298 = vmatmul.mubr.f32.gmra.mrb[0].mxu0 %v10040
  %v10299 = vpop.f32.mrb[0].mxu0
  %v10300 = vadd.f32 %v10075, %v10299
  %v10301 = vpop.f32.mrb[0].mxu0
  %10302 = vmatprep.mubr.f32.mxu0 %v10065
  %10303 = vmatmul.mubr.f32.gmra.mrb[0].mxu0 %v10041
  %v10304 = vpop.f32.mrb[0].mxu0
  %v10305 = vadd.f32 %v10075, %v10304
  %v10306 = vpop.f32.mrb[0].mxu0
  %10307 = vmatprep.mubr.f32.mxu0 %v10066
  %10308 = vmatmul.mubr.f32.gmra.mrb[0].mxu0 %v10042
  %v10309 = vpop.f32.mrb[0].mxu0
  %v10310 = vadd.f32 %v10075, %v10309
  %v10311 = vpop.f32.mrb[0].mxu0
  %10312 = vmatprep.mubr.f32.mxu0 %v10067
  %10313 = vmatmul.mubr.f32.gmra.mrb[0].mxu0 %v10043
  %v10314 = vpop.f32.mrb[0].mxu0
  %v10315 = vadd.f32 %v10075, %v10314
  %v10316 = vpop.f32.mrb[0].mxu0
  %10317 = vmatprep.mubr.f32.mxu0 %v10068
  %10318 = vmatmul.mubr.f32.gmra.mrb[0].mxu0 %v10044
  %v10319 = vpop.f32.mrb[0].mxu0
  %v10320 = vadd.f32 %v10075, %v10319
  %v10321 = vpop.f32.mrb[0].mxu0
  %10322 = vmatprep.mubr.f32.mxu0 %v10069
  %10323 = vmatmul.mubr.f32.gmra.mrb[0].mxu0 %v10045
  %v10324 = vpop.f32.mrb[0].mxu0
  %v10325 = vadd.f32 %v10075, %v10324
  %v10326 = vpop.f32.mrb[0].mxu0
  %10327 = vmatprep.mubr.f32.mxu0 %v10070
  %10328 = vmatmul.mubr.f32.gmra.mrb[0].mxu0 %v10046
  %v10329 = vpop.f32.mrb[0].mxu0
  %v10330 = vadd.f32 %v10075, %v10329
  %v10331 = vpop.f32.mrb[0].mxu0
  %10332 = vdwg.mxu0
  %10333 = vmatprep.subr.mxu0 0.0
  %10334 = vmatpush1.msra.mxu0 %v9655
  %10335 = vmatprep.subr.mxu0 0.0
  %10336 = vmatpush1.msra.mxu0 %v9656
  %10337 = vmatprep.subr.mxu0 0.0
  %10338 = vmatpush1.msra.mxu0 %v9657
  %10339 = vmatprep.subr.mxu0 0.0
  %10340 = vmatpush1.msra.mxu0 %v9658
  %10341 = vmatprep.subr.mxu0 0.0
  %10342 = vmatpush1.msra.mxu0 %v9659
  %10343 = vmatprep.subr.mxu0 0.0
  %10344 = vmatpush1.msra.mxu0 %v9660
  %10345 = vmatprep.subr.mxu0 0.0
  %10346 = vmatpush1.msra.mxu0 %v9661
  %10347 = vmatprep.subr.mxu0 0.0
  %10348 = vmatpush1.msra.mxu0 %v9662
  %10349 = vmatprep.subr.mxu0 0.0
  %10350 = vmatpush1.msra.mxu0 0.0
  %10351 = vmatprep.subr.mxu0 0.0
  %10352 = vmatpush1.msra.mxu0 0.0
  %10353 = vmatprep.subr.mxu0 0.0
  %10354 = vmatpush1.msra.mxu0 0.0
  %10355 = vmatprep.subr.mxu0 0.0
  %10356 = vmatpush1.msra.mxu0 0.0
  %10357 = vmatprep.subr.mxu0 0.0
  %10358 = vmatpush1.msra.mxu0 0.0
  %10359 = vmatprep.subr.mxu0 0.0
  %10360 = vmatpush1.msra.mxu0 0.0
  %10361 = vmatprep.subr.mxu0 0.0
  %10362 = vmatpush1.msra.mxu0 0.0
  %10363 = vmatprep.subr.mxu0 0.0
  %10364 = vmatpush1.msra.mxu0 0.0
  %10365 = vmatprep.subr.mxu0 0.0
  %10366 = vmatpush1.msra.mxu0 0.0
  %10367 = vmatprep.subr.mxu0 0.0
  %10368 = vmatpush1.msra.mxu0 0.0
  %10369 = vmatprep.subr.mxu0 0.0
  %10370 = vmatpush1.msra.mxu0 0.0
  %10371 = vmatprep.subr.mxu0 0.0
  %10372 = vmatpush1.msra.mxu0 0.0
  %10373 = vmatprep.subr.mxu0 0.0
  %10374 = vmatpush1.msra.mxu0 0.0
  %10375 = vmatprep.subr.mxu0 0.0
  %10376 = vmatpush1.msra.mxu0 0.0
  %10377 = vmatprep.subr.mxu0 0.0
  %10378 = vmatpush1.msra.mxu0 0.0
  %10379 = vmatprep.subr.mxu0 0.0
  %10380 = vmatpush1.msra.mxu0 0.0
  %10381 = vmatprep.subr.mxu0 0.0
  %10382 = vmatpush1.msra.mxu0 0.0
  %10383 = vmatprep.subr.mxu0 0.0
  %10384 = vmatpush1.msra.mxu0 0.0
  %10385 = vmatprep.subr.mxu0 0.0
  %10386 = vmatpush1.msra.mxu0 0.0
  %10387 = vmatprep.subr.mxu0 0.0
  %10388 = vmatpush1.msra.mxu0 0.0
  %10389 = vmatprep.subr.mxu0 0.0
  %10390 = vmatpush1.msra.mxu0 0.0
  %10391 = vmatprep.subr.mxu0 0.0
  %10392 = vmatpush1.msra.mxu0 0.0
  %10393 = vmatprep.subr.mxu0 0.0
  %10394 = vmatpush1.msra.mxu0 0.0
  %10395 = vmatprep.subr.mxu0 0.0
  %10396 = vmatpush1.msra.mxu0 0.0
  %10397 = vmatprep.mubr.f32.mxu0 0.0
  %10398 = vmatmul.mubr.f32.gmra.mrb[0].mxu0 %v10077
  %v10399 = vpop.f32.mrb[0].mxu0
  %v10400 = vadd.f32 %v10215, %v10399
  %v10401 = vpop.f32.mrb[0].mxu0
  %10402 = vmatprep.mubr.f32.mxu0 0.0
  %10403 = vmatmul.mubr.f32.gmra.mrb[0].mxu0 %v10080
  %v10404 = vpop.f32.mrb[0].mxu0
  %v10405 = vadd.f32 %v10220, %v10404
  %v10406 = vpop.f32.mrb[0].mxu0
  %10407 = vmatprep.mubr.f32.mxu0 0.0
  %10408 = vmatmul.mubr.f32.gmra.mrb[0].mxu0 %v10083
  %v10409 = vpop.f32.mrb[0].mxu0
  %v10410 = vadd.f32 %v10225, %v10409
  %v10411 = vpop.f32.mrb[0].mxu0
  %10412 = vmatprep.mubr.f32.mxu0 0.0
  %10413 = vmatmul.mubr.f32.gmra.mrb[0].mxu0 %v10086
  %v10414 = vpop.f32.mrb[0].mxu0
  %v10415 = vadd.f32 %v10230, %v10414
  %v10416 = vpop.f32.mrb[0].mxu0
  %10417 = vmatprep.mubr.f32.mxu0 0.0
  %10418 = vmatmul.mubr.f32.gmra.mrb[0].mxu0 %v10089
  %v10419 = vpop.f32.mrb[0].mxu0
  %v10420 = vadd.f32 %v10235, %v10419
  %v10421 = vpop.f32.mrb[0].mxu0
  %10422 = vmatprep.mubr.f32.mxu0 0.0
  %10423 = vmatmul.mubr.f32.gmra.mrb[0].mxu0 %v10092
  %v10424 = vpop.f32.mrb[0].mxu0
  %v10425 = vadd.f32 %v10240, %v10424
  %v10426 = vpop.f32.mrb[0].mxu0
  %10427 = vmatprep.mubr.f32.mxu0 0.0
  %10428 = vmatmul.mubr.f32.gmra.mrb[0].mxu0 %v10095
  %v10429 = vpop.f32.mrb[0].mxu0
  %v10430 = vadd.f32 %v10245, %v10429
  %v10431 = vpop.f32.mrb[0].mxu0
  %10432 = vmatprep.mubr.f32.mxu0 0.0
  %10433 = vmatmul.mubr.f32.gmra.mrb[0].mxu0 %v10098
  %v10434 = vpop.f32.mrb[0].mxu0
  %v10435 = vadd.f32 %v10250, %v10434
  %v10436 = vpop.f32.mrb[0].mxu0
  %10437 = vmatprep.mubr.f32.mxu0 0.0
  %10438 = vmatmul.mubr.f32.gmra.mrb[0].mxu0 %v10101
  %v10439 = vpop.f32.mrb[0].mxu0
  %v10440 = vadd.f32 %v10255, %v10439
  %v10441 = vpop.f32.mrb[0].mxu0
  %10442 = vmatprep.mubr.f32.mxu0 0.0
  %10443 = vmatmul.mubr.f32.gmra.mrb[0].mxu0 %v10104
  %v10444 = vpop.f32.mrb[0].mxu0
  %v10445 = vadd.f32 %v10260, %v10444
  %v10446 = vpop.f32.mrb[0].mxu0
  %10447 = vmatprep.mubr.f32.mxu0 0.0
  %10448 = vmatmul.mubr.f32.gmra.mrb[0].mxu0 %v10107
  %v10449 = vpop.f32.mrb[0].mxu0
  %v10450 = vadd.f32 %v10265, %v10449
  %v10451 = vpop.f32.mrb[0].mxu0
  %10452 = vmatprep.mubr.f32.mxu0 0.0
  %10453 = vmatmul.mubr.f32.gmra.mrb[0].mxu0 %v10110
  %v10454 = vpop.f32.mrb[0].mxu0
  %v10455 = vadd.f32 %v10270, %v10454
  %v10456 = vpop.f32.mrb[0].mxu0
  %10457 = vmatprep.mubr.f32.mxu0 0.0
  %10458 = vmatmul.mubr.f32.gmra.mrb[0].mxu0 %v10113
  %v10459 = vpop.f32.mrb[0].mxu0
  %v10460 = vadd.f32 %v10275, %v10459
  %v10461 = vpop.f32.mrb[0].mxu0
  %10462 = vmatprep.mubr.f32.mxu0 0.0
  %10463 = vmatmul.mubr.f32.gmra.mrb[0].mxu0 %v10116
  %v10464 = vpop.f32.mrb[0].mxu0
  %v10465 = vadd.f32 %v10280, %v10464
  %v10466 = vpop.f32.mrb[0].mxu0
  %10467 = vmatprep.mubr.f32.mxu0 0.0
  %10468 = vmatmul.mubr.f32.gmra.mrb[0].mxu0 %v10119
  %v10469 = vpop.f32.mrb[0].mxu0
  %v10470 = vadd.f32 %v10285, %v10469
  %v10471 = vpop.f32.mrb[0].mxu0
  %10472 = vmatprep.mubr.f32.mxu0 0.0
  %10473 = vmatmul.mubr.f32.gmra.mrb[0].mxu0 %v10122
  %v10474 = vpop.f32.mrb[0].mxu0
  %v10475 = vadd.f32 %v10290, %v10474
  %v10476 = vpop.f32.mrb[0].mxu0
  %10477 = vmatprep.mubr.f32.mxu0 0.0
  %10478 = vmatmul.mubr.f32.gmra.mrb[0].mxu0 %v10125
  %v10479 = vpop.f32.mrb[0].mxu0
  %v10480 = vadd.f32 %v10295, %v10479
  %v10481 = vpop.f32.mrb[0].mxu0
  %10482 = vmatprep.mubr.f32.mxu0 0.0
  %10483 = vmatmul.mubr.f32.gmra.mrb[0].mxu0 %v10128
  %v10484 = vpop.f32.mrb[0].mxu0
  %v10485 = vadd.f32 %v10300, %v10484
  %v10486 = vpop.f32.mrb[0].mxu0
  %10487 = vmatprep.mubr.f32.mxu0 0.0
  %10488 = vmatmul.mubr.f32.gmra.mrb[0].mxu0 %v10131
  %v10489 = vpop.f32.mrb[0].mxu0
  %v10490 = vadd.f32 %v10305, %v10489
  %v10491 = vpop.f32.mrb[0].mxu0
  %10492 = vmatprep.mubr.f32.mxu0 0.0
  %10493 = vmatmul.mubr.f32.gmra.mrb[0].mxu0 %v10134
  %v10494 = vpop.f32.mrb[0].mxu0
  %v10495 = vadd.f32 %v10310, %v10494
  %v10496 = vpop.f32.mrb[0].mxu0
  %10497 = vmatprep.mubr.f32.mxu0 0.0
  %10498 = vmatmul.mubr.f32.gmra.mrb[0].mxu0 %v10137
  %v10499 = vpop.f32.mrb[0].mxu0
  %v10500 = vadd.f32 %v10315, %v10499
  %v10501 = vpop.f32.mrb[0].mxu0
  %10502 = vmatprep.mubr.f32.mxu0 0.0
  %10503 = vmatmul.mubr.f32.gmra.mrb[0].mxu0 %v10140
  %v10504 = vpop.f32.mrb[0].mxu0
  %v10505 = vadd.f32 %v10320, %v10504
  %v10506 = vpop.f32.mrb[0].mxu0
  %10507 = vmatprep.mubr.f32.mxu0 0.0
  %10508 = vmatmul.mubr.f32.gmra.mrb[0].mxu0 %v10143
  %v10509 = vpop.f32.mrb[0].mxu0
  %v10510 = vadd.f32 %v10325, %v10509
  %v10511 = vpop.f32.mrb[0].mxu0
  %10512 = vmatprep.mubr.f32.mxu0 0.0
  %10513 = vmatmul.mubr.f32.gmra.mrb[0].mxu0 %v10146
  %v10514 = vpop.f32.mrb[0].mxu0
  %v10515 = vadd.f32 %v10330, %v10514
  %v10516 = vpop.f32.mrb[0].mxu0
  %10517 = vdwg.mxu0
  %v10518 = vsel %vm64, %v10400, 0.0
  %v10519 = vsel %vm65, %v10405, 0.0
  %v10520 = vsel %vm66, %v10410, 0.0
  %v10521 = vsel %vm64, %v10415, 0.0
  %v10522 = vsel %vm65, %v10420, 0.0
  %v10523 = vsel %vm66, %v10425, 0.0
  %v10524 = vsel %vm64, %v10430, 0.0
  %v10525 = vsel %vm65, %v10435, 0.0
  %v10526 = vsel %vm66, %v10440, 0.0
  %v10527 = vsel %vm64, %v10445, 0.0
  %v10528 = vsel %vm65, %v10450, 0.0
  %v10529 = vsel %vm66, %v10455, 0.0
  %v10530 = vsel %vm64, %v10460, 0.0
  %v10531 = vsel %vm65, %v10465, 0.0
  %v10532 = vsel %vm66, %v10470, 0.0
  %v10533 = vsel %vm64, %v10475, 0.0
  %v10534 = vsel %vm65, %v10480, 0.0
  %v10535 = vsel %vm66, %v10485, 0.0
  %v10536 = vsel %vm64, %v10490, 0.0
  %v10537 = vsel %vm65, %v10495, 0.0
  %v10538 = vsel %vm66, %v10500, 0.0
  %v10539 = vsel %vm64, %v10505, 0.0
  %v10540 = vsel %vm65, %v10510, 0.0
  %v10541 = vsel %vm66, %v10515, 0.0
  %v10542 = vmul.f32 %v10518, %v10518
  %v10543 = vmul.f32 %v10519, %v10519
  %v10544 = vmul.f32 %v10520, %v10520
  %v10545 = vmul.f32 %v10521, %v10521
  %v10546 = vmul.f32 %v10522, %v10522
  %v10547 = vmul.f32 %v10523, %v10523
  %v10548 = vmul.f32 %v10524, %v10524
  %v10549 = vmul.f32 %v10525, %v10525
  %v10550 = vmul.f32 %v10526, %v10526
  %v10551 = vmul.f32 %v10527, %v10527
  %v10552 = vmul.f32 %v10528, %v10528
  %v10553 = vmul.f32 %v10529, %v10529
  %v10554 = vmul.f32 %v10530, %v10530
  %v10555 = vmul.f32 %v10531, %v10531
  %v10556 = vmul.f32 %v10532, %v10532
  %v10557 = vmul.f32 %v10533, %v10533
  %v10558 = vmul.f32 %v10534, %v10534
  %v10559 = vmul.f32 %v10535, %v10535
  %v10560 = vmul.f32 %v10536, %v10536
  %v10561 = vmul.f32 %v10537, %v10537
  %v10562 = vmul.f32 %v10538, %v10538
  %v10563 = vmul.f32 %v10539, %v10539
  %v10564 = vmul.f32 %v10540, %v10540
  %v10565 = vmul.f32 %v10541, %v10541
  %10590 = vrot.lane.b32.xlu0 %v10542, 64
  %v10591 = vpop.permute.xlu0 %10590
  %10592 = vrot.lane.b32.xlu0 %v10543, 64
  %v10593 = vpop.permute.xlu0 %10592
  %10594 = vrot.lane.b32.xlu0 %v10544, 64
  %v10595 = vpop.permute.xlu0 %10594
  %10596 = vrot.lane.b32.xlu0 %v10545, 64
  %v10597 = vpop.permute.xlu0 %10596
  %10598 = vrot.lane.b32.xlu0 %v10546, 64
  %v10599 = vpop.permute.xlu0 %10598
  %10600 = vrot.lane.b32.xlu0 %v10547, 64
  %v10601 = vpop.permute.xlu0 %10600
  %10602 = vrot.lane.b32.xlu0 %v10548, 64
  %v10603 = vpop.permute.xlu0 %10602
  %10604 = vrot.lane.b32.xlu0 %v10549, 64
  %v10605 = vpop.permute.xlu0 %10604
  %10606 = vrot.lane.b32.xlu0 %v10550, 64
  %v10607 = vpop.permute.xlu0 %10606
  %10608 = vrot.lane.b32.xlu0 %v10551, 64
  %v10609 = vpop.permute.xlu0 %10608
  %10610 = vrot.lane.b32.xlu0 %v10552, 64
  %v10611 = vpop.permute.xlu0 %10610
  %10612 = vrot.lane.b32.xlu0 %v10553, 64
  %v10613 = vpop.permute.xlu0 %10612
  %10614 = vrot.lane.b32.xlu0 %v10554, 64
  %v10615 = vpop.permute.xlu0 %10614
  %10616 = vrot.lane.b32.xlu0 %v10555, 64
  %v10617 = vpop.permute.xlu0 %10616
  %10618 = vrot.lane.b32.xlu0 %v10556, 64
  %v10619 = vpop.permute.xlu0 %10618
  %10620 = vrot.lane.b32.xlu0 %v10557, 64
  %v10621 = vpop.permute.xlu0 %10620
  %10622 = vrot.lane.b32.xlu0 %v10558, 64
  %v10623 = vpop.permute.xlu0 %10622
  %10624 = vrot.lane.b32.xlu0 %v10559, 64
  %v10625 = vpop.permute.xlu0 %10624
  %10626 = vrot.lane.b32.xlu0 %v10560, 64
  %v10627 = vpop.permute.xlu0 %10626
  %10628 = vrot.lane.b32.xlu0 %v10561, 64
  %v10629 = vpop.permute.xlu0 %10628
  %10630 = vrot.lane.b32.xlu0 %v10562, 64
  %v10631 = vpop.permute.xlu0 %10630
  %10632 = vrot.lane.b32.xlu0 %v10563, 64
  %v10633 = vpop.permute.xlu0 %10632
  %10634 = vrot.lane.b32.xlu0 %v10564, 64
  %v10635 = vpop.permute.xlu0 %10634
  %10636 = vrot.lane.b32.xlu0 %v10565, 64
  %v10637 = vpop.permute.xlu0 %10636
  %v10662 = vsel %vm17, %v10518, %v10591
  %v10663 = vsel %vm17, %v10519, %v10593
  %v10664 = vsel %vm17, %v10520, %v10595
  %v10665 = vsel %vm17, %v10521, %v10597
  %v10666 = vsel %vm17, %v10522, %v10599
  %v10667 = vsel %vm17, %v10523, %v10601
  %v10668 = vsel %vm17, %v10524, %v10603
  %v10669 = vsel %vm17, %v10525, %v10605
  %v10670 = vsel %vm17, %v10526, %v10607
  %v10671 = vsel %vm17, %v10527, %v10609
  %v10672 = vsel %vm17, %v10528, %v10611
  %v10673 = vsel %vm17, %v10529, %v10613
  %v10674 = vsel %vm17, %v10530, %v10615
  %v10675 = vsel %vm17, %v10531, %v10617
  %v10676 = vsel %vm17, %v10532, %v10619
  %v10677 = vsel %vm17, %v10533, %v10621
  %v10678 = vsel %vm17, %v10534, %v10623
  %v10679 = vsel %vm17, %v10535, %v10625
  %v10680 = vsel %vm17, %v10536, %v10627
  %v10681 = vsel %vm17, %v10537, %v10629
  %v10682 = vsel %vm17, %v10538, %v10631
  %v10683 = vsel %vm17, %v10539, %v10633
  %v10684 = vsel %vm17, %v10540, %v10635
  %v10685 = vsel %vm17, %v10541, %v10637
  %v10686 = vadd.f32 %v10662, %v10663
  %v10687 = vadd.f32 %v10686, %v10664
  %v10688 = vadd.f32 %v10687, %v10665
  %v10689 = vadd.f32 %v10688, %v10666
  %v10690 = vadd.f32 %v10689, %v10667
  %v10691 = vadd.f32 %v10690, %v10668
  %v10692 = vadd.f32 %v10691, %v10669
  %v10693 = vadd.f32 %v10692, %v10670
  %v10694 = vadd.f32 %v10693, %v10671
  %v10695 = vadd.f32 %v10694, %v10672
  %v10696 = vadd.f32 %v10695, %v10673
  %v10697 = vadd.f32 %v10696, %v10674
  %v10698 = vadd.f32 %v10697, %v10675
  %v10699 = vadd.f32 %v10698, %v10676
  %v10700 = vadd.f32 %v10699, %v10677
  %v10701 = vadd.f32 %v10700, %v10678
  %v10702 = vadd.f32 %v10701, %v10679
  %v10703 = vadd.f32 %v10702, %v10680
  %v10704 = vadd.f32 %v10703, %v10681
  %v10705 = vadd.f32 %v10704, %v10682
  %v10706 = vadd.f32 %v10705, %v10683
  %v10707 = vadd.f32 %v10706, %v10684
  %v10708 = vadd.f32 %v10707, %v10685
  %v10709 = vrot.slane %v10708, 4
  %v10710 = vadd.f32 %v10708, %v10709
  %v10711 = vrot.slane %v10710, 2
  %v10712 = vadd.f32 %v10710, %v10711
  %v10713 = vrot.slane %v10712, 1
  %v10714 = vadd.f32 %v10712, %v10713
  %v10715 = vmul.f32 %v10714, 0.0078125
  %v10716 = vmul.f32 %v10715, %v10715
  %10718 = vrot.lane.b32.xlu0 %v10716, 64
  %v10719 = vpop.permute.xlu0 %10718
  %v10721 = vsub.f32 %v10715, %v10719
  %v10722 = vmax.f32 %v10721, 0.0
  %v10723 = vld [vmem:[%s3 + $0x1c] sm:$0x1]
  %v10724 = vsub.f32 %v10400, %v10715
  %v10725 = vsub.f32 %v10405, %v10715
  %v10726 = vsub.f32 %v10410, %v10715
  %v10727 = vsub.f32 %v10415, %v10715
  %v10728 = vsub.f32 %v10420, %v10715
  %v10729 = vsub.f32 %v10425, %v10715
  %v10730 = vsub.f32 %v10430, %v10715
  %v10731 = vsub.f32 %v10435, %v10715
  %v10732 = vsub.f32 %v10440, %v10715
  %v10733 = vsub.f32 %v10445, %v10715
  %v10734 = vsub.f32 %v10450, %v10715
  %v10735 = vsub.f32 %v10455, %v10715
  %v10736 = vsub.f32 %v10460, %v10715
  %v10737 = vsub.f32 %v10465, %v10715
  %v10738 = vsub.f32 %v10470, %v10715
  %v10739 = vsub.f32 %v10475, %v10715
  %v10740 = vsub.f32 %v10480, %v10715
  %v10741 = vsub.f32 %v10485, %v10715
  %v10742 = vsub.f32 %v10490, %v10715
  %v10743 = vsub.f32 %v10495, %v10715
  %v10744 = vsub.f32 %v10500, %v10715
  %v10745 = vsub.f32 %v10505, %v10715
  %v10746 = vsub.f32 %v10510, %v10715
  %v10747 = vsub.f32 %v10515, %v10715
  %v10748 = vadd.f32 %v10722, 1e-05
  %v10749 = vrsqrt.pop %v10748
  %v10750 = vlaneseq
  %v10751 = vshrl.u32 %v10750, 7
  %v10752 = vsub.s32 0, %v10751
  %v10753 = vrot.slane %v10749, %v10752
  %10755 = vrot.lane.b32.xlu0 %v10753, 64
  %v10756 = vpop.permute.xlu0 %10755
  %v10758 = vmul.f32 %v10724, %v10756
  %v10759 = vmul.f32 %v10725, %v10756
  %v10760 = vmul.f32 %v10726, %v10756
  %v10761 = vmul.f32 %v10727, %v10756
  %v10762 = vmul.f32 %v10728, %v10756
  %v10763 = vmul.f32 %v10729, %v10756
  %v10764 = vmul.f32 %v10730, %v10756
  %v10765 = vmul.f32 %v10731, %v10756
  %v10766 = vmul.f32 %v10732, %v10756
  %v10767 = vmul.f32 %v10733, %v10756
  %v10768 = vmul.f32 %v10734, %v10756
  %v10769 = vmul.f32 %v10735, %v10756
  %v10770 = vmul.f32 %v10736, %v10756
  %v10771 = vmul.f32 %v10737, %v10756
  %v10772 = vmul.f32 %v10738, %v10756
  %v10773 = vmul.f32 %v10739, %v10756
  %v10774 = vmul.f32 %v10740, %v10756
  %v10775 = vmul.f32 %v10741, %v10756
  %v10776 = vmul.f32 %v10742, %v10756
  %v10777 = vmul.f32 %v10743, %v10756
  %v10778 = vmul.f32 %v10744, %v10756
  %v10779 = vmul.f32 %v10745, %v10756
  %v10780 = vmul.f32 %v10746, %v10756
  %v10781 = vmul.f32 %v10747, %v10756
  %v10782 = vlaneseq
  %v10783 = vshrl.u32 %v10782, 7
  %v10784 = vsub.s32 0, %v10783
  %v10785 = vrot.slane %v10723, %v10784
  %v10786 = vmul.f32 %v10785, %v10758
  %v10787 = vmul.f32 %v10785, %v10759
  %v10788 = vmul.f32 %v10785, %v10760
  %v10789 = vmul.f32 %v10785, %v10761
  %v10790 = vmul.f32 %v10785, %v10762
  %v10791 = vmul.f32 %v10785, %v10763
  %v10792 = vmul.f32 %v10785, %v10764
  %v10793 = vmul.f32 %v10785, %v10765
  %v10794 = vmul.f32 %v10785, %v10766
  %v10795 = vmul.f32 %v10785, %v10767
  %v10796 = vmul.f32 %v10785, %v10768
  %v10797 = vmul.f32 %v10785, %v10769
  %v10798 = vmul.f32 %v10785, %v10770
  %v10799 = vmul.f32 %v10785, %v10771
  %v10800 = vmul.f32 %v10785, %v10772
  %v10801 = vmul.f32 %v10785, %v10773
  %v10802 = vmul.f32 %v10785, %v10774
  %v10803 = vmul.f32 %v10785, %v10775
  %v10804 = vmul.f32 %v10785, %v10776
  %v10805 = vmul.f32 %v10785, %v10777
  %v10806 = vmul.f32 %v10785, %v10778
  %v10807 = vmul.f32 %v10785, %v10779
  %v10808 = vmul.f32 %v10785, %v10780
  %v10809 = vmul.f32 %v10785, %v10781
  %v10810 = vld [vmem:[%s3 + $0x1d] sm:$0x1]
  %v10811 = vlaneseq
  %v10812 = vshrl.u32 %v10811, 7
  %v10813 = vsub.s32 0, %v10812
  %v10814 = vrot.slane %v10810, %v10813
  %v10815 = vadd.f32 %v10786, %v10814
  %v10816 = vadd.f32 %v10787, %v10814
  %v10817 = vadd.f32 %v10788, %v10814
  %v10818 = vadd.f32 %v10789, %v10814
  %v10819 = vadd.f32 %v10790, %v10814
  %v10820 = vadd.f32 %v10791, %v10814
  %v10821 = vadd.f32 %v10792, %v10814
  %v10822 = vadd.f32 %v10793, %v10814
  %v10823 = vadd.f32 %v10794, %v10814
  %v10824 = vadd.f32 %v10795, %v10814
  %v10825 = vadd.f32 %v10796, %v10814
  %v10826 = vadd.f32 %v10797, %v10814
  %v10827 = vadd.f32 %v10798, %v10814
  %v10828 = vadd.f32 %v10799, %v10814
  %v10829 = vadd.f32 %v10800, %v10814
  %v10830 = vadd.f32 %v10801, %v10814
  %v10831 = vadd.f32 %v10802, %v10814
  %v10832 = vadd.f32 %v10803, %v10814
  %v10833 = vadd.f32 %v10804, %v10814
  %v10834 = vadd.f32 %v10805, %v10814
  %v10835 = vadd.f32 %v10806, %v10814
  %v10836 = vadd.f32 %v10807, %v10814
  %v10837 = vadd.f32 %v10808, %v10814
  %v10838 = vadd.f32 %v10809, %v10814
  %v10839 = vmax.f32 %v10815, 0.0
  %v10840 = vmax.f32 %v10816, 0.0
  %v10841 = vmax.f32 %v10817, 0.0
  %v10842 = vmax.f32 %v10818, 0.0
  %v10843 = vmax.f32 %v10819, 0.0
  %v10844 = vmax.f32 %v10820, 0.0
  %v10845 = vmax.f32 %v10821, 0.0
  %v10846 = vmax.f32 %v10822, 0.0
  %v10847 = vmax.f32 %v10823, 0.0
  %v10848 = vmax.f32 %v10824, 0.0
  %v10849 = vmax.f32 %v10825, 0.0
  %v10850 = vmax.f32 %v10826, 0.0
  %v10851 = vmax.f32 %v10827, 0.0
  %v10852 = vmax.f32 %v10828, 0.0
  %v10853 = vmax.f32 %v10829, 0.0
  %v10854 = vmax.f32 %v10830, 0.0
  %v10855 = vmax.f32 %v10831, 0.0
  %v10856 = vmax.f32 %v10832, 0.0
  %v10857 = vmax.f32 %v10833, 0.0
  %v10858 = vmax.f32 %v10834, 0.0
  %v10859 = vmax.f32 %v10835, 0.0
  %v10860 = vmax.f32 %v10836, 0.0
  %v10861 = vmax.f32 %v10837, 0.0
  %v10862 = vmax.f32 %v10838, 0.0
  %v10863 = vld [vmem:[%s2 + $0x8e8] sm:$0xff]
  %v10864 = vld [vmem:[%s2 + $0x8f0] sm:$0xff]
  %v10865 = vld [vmem:[%s2 + $0x8f8] sm:$0xff]
  %v10866 = vld [vmem:[%s2 + $0x900] sm:$0xff]
  %v10867 = vld [vmem:[%s2 + $0x908] sm:$0xff]
  %v10868 = vld [vmem:[%s2 + $0x910] sm:$0xff]
  %v10869 = vld [vmem:[%s2 + $0x918] sm:$0xff]
  %v10870 = vld [vmem:[%s2 + $0x920] sm:$0xff]
  %v10871 = vld [vmem:[%s2 + $0x928] sm:$0xff]
  %v10872 = vld [vmem:[%s2 + $0x930] sm:$0xff]
  %v10873 = vld [vmem:[%s2 + $0x938] sm:$0xff]
  %v10874 = vld [vmem:[%s2 + $0x940] sm:$0xff]
  %v10875 = vld [vmem:[%s2 + $0x948] sm:$0xff]
  %v10876 = vld [vmem:[%s2 + $0x950] sm:$0xff]
  %v10877 = vld [vmem:[%s2 + $0x958] sm:$0xff]
  %v10878 = vld [vmem:[%s2 + $0x960] sm:$0xff]
  %v10879 = vld [vmem:[%s2 + $0x968] sm:$0xff]
  %v10880 = vld [vmem:[%s2 + $0x970] sm:$0xff]
  %v10881 = vld [vmem:[%s2 + $0x978] sm:$0xff]
  %v10882 = vld [vmem:[%s2 + $0x980] sm:$0xff]
  %v10883 = vld [vmem:[%s2 + $0x988] sm:$0xff]
  %v10884 = vld [vmem:[%s2 + $0x990] sm:$0xff]
  %v10885 = vld [vmem:[%s2 + $0x998] sm:$0xff]
  %v10886 = vld [vmem:[%s2 + $0x9a0] sm:$0xff]
  %v10887 = vsel %vm64, %v10839, 0.0
  %v10888 = vsel %vm65, %v10840, 0.0
  %v10889 = vsel %vm66, %v10841, 0.0
  %v10890 = vsel %vm64, %v10842, 0.0
  %v10891 = vsel %vm65, %v10843, 0.0
  %v10892 = vsel %vm66, %v10844, 0.0
  %v10893 = vsel %vm64, %v10845, 0.0
  %v10894 = vsel %vm65, %v10846, 0.0
  %v10895 = vsel %vm66, %v10847, 0.0
  %v10896 = vsel %vm64, %v10848, 0.0
  %v10897 = vsel %vm65, %v10849, 0.0
  %v10898 = vsel %vm66, %v10850, 0.0
  %v10899 = vsel %vm64, %v10851, 0.0
  %v10900 = vsel %vm65, %v10852, 0.0
  %v10901 = vsel %vm66, %v10853, 0.0
  %v10902 = vsel %vm64, %v10854, 0.0
  %v10903 = vsel %vm65, %v10855, 0.0
  %v10904 = vsel %vm66, %v10856, 0.0
  %v10905 = vsel %vm64, %v10857, 0.0
  %v10906 = vsel %vm65, %v10858, 0.0
  %v10907 = vsel %vm66, %v10859, 0.0
  %v10908 = vsel %vm64, %v10860, 0.0
  %v10909 = vsel %vm65, %v10861, 0.0
  %v10910 = vsel %vm66, %v10862, 0.0
  %10911 = vst.msk [vmem:[#allocation2 + $0x8] sm:$0xff] %vm17, %v10887
  %10912 = vst.msk [vmem:[#allocation2 + $0x10] sm:$0xff] %vm17, %v10888
  %10913 = vst.msk [vmem:[#allocation2 + $0x18] sm:$0xff] %vm17, %v10889
  %10914 = vst.msk [vmem:[#allocation2 + $0x20] sm:$0xff] %vm17, %v10890
  %10915 = vst.msk [vmem:[#allocation2 + $0x28] sm:$0xff] %vm17, %v10891
  %10916 = vst.msk [vmem:[#allocation2 + $0x30] sm:$0xff] %vm17, %v10892
  %10917 = vst.msk [vmem:[#allocation2 + $0x38] sm:$0xff] %vm17, %v10893
  %10918 = vst.msk [vmem:[#allocation2 + $0x40] sm:$0xff] %vm17, %v10894
  %10919 = vst.msk [vmem:[#allocation2 + $0x48] sm:$0xff] %vm17, %v10895
  %10920 = vst.msk [vmem:[#allocation2 + $0x50] sm:$0xff] %vm17, %v10896
  %10921 = vst.msk [vmem:[#allocation2 + $0x58] sm:$0xff] %vm17, %v10897
  %10922 = vst.msk [vmem:[#allocation2 + $0x60] sm:$0xff] %vm17, %v10898
  %10923 = vst.msk [vmem:[#allocation2 + $0x68] sm:$0xff] %vm17, %v10899
  %10924 = vst.msk [vmem:[#allocation2 + $0x70] sm:$0xff] %vm17, %v10900
  %10925 = vst.msk [vmem:[#allocation2 + $0x78] sm:$0xff] %vm17, %v10901
  %10926 = vst.msk [vmem:[#allocation2 + $0x80] sm:$0xff] %vm17, %v10902
  %10927 = vst.msk [vmem:[#allocation2 + $0x88] sm:$0xff] %vm17, %v10903
  %10928 = vst.msk [vmem:[#allocation2 + $0x90] sm:$0xff] %vm17, %v10904
  %10929 = vst.msk [vmem:[#allocation2 + $0x98] sm:$0xff] %vm17, %v10905
  %10930 = vst.msk [vmem:[#allocation2 + $0xa0] sm:$0xff] %vm17, %v10906
  %10931 = vst.msk [vmem:[#allocation2 + $0xa8] sm:$0xff] %vm17, %v10907
  %10932 = vst.msk [vmem:[#allocation2 + $0xb0] sm:$0xff] %vm17, %v10908
  %10933 = vst.msk [vmem:[#allocation2 + $0xb8] sm:$0xff] %vm17, %v10909
  %10934 = vst.msk [vmem:[#allocation2 + $0xc0] sm:$0xff] %vm17, %v10910
  %v10935 = vld [vmem:[#allocation2 + $0x7] sm:$0xff]
  %v10936 = vld [vmem:[#allocation2 + $0xf] sm:$0xff]
  %v10937 = vld [vmem:[#allocation2 + $0x17] sm:$0xff]
  %v10938 = vld [vmem:[#allocation2 + $0x1f] sm:$0xff]
  %v10939 = vld [vmem:[#allocation2 + $0x27] sm:$0xff]
  %v10940 = vld [vmem:[#allocation2 + $0x2f] sm:$0xff]
  %v10941 = vld [vmem:[#allocation2 + $0x37] sm:$0xff]
  %v10942 = vld [vmem:[#allocation2 + $0x3f] sm:$0xff]
  %v10943 = vld [vmem:[#allocation2 + $0x47] sm:$0xff]
  %v10944 = vld [vmem:[#allocation2 + $0x4f] sm:$0xff]
  %v10945 = vld [vmem:[#allocation2 + $0x57] sm:$0xff]
  %v10946 = vld [vmem:[#allocation2 + $0x5f] sm:$0xff]
  %v10947 = vld [vmem:[#allocation2 + $0x67] sm:$0xff]
  %v10948 = vld [vmem:[#allocation2 + $0x6f] sm:$0xff]
  %v10949 = vld [vmem:[#allocation2 + $0x77] sm:$0xff]
  %v10950 = vld [vmem:[#allocation2 + $0x7f] sm:$0xff]
  %v10951 = vld [vmem:[#allocation2 + $0x87] sm:$0xff]
  %v10952 = vld [vmem:[#allocation2 + $0x8f] sm:$0xff]
  %v10953 = vld [vmem:[#allocation2 + $0x97] sm:$0xff]
  %v10954 = vld [vmem:[#allocation2 + $0x9f] sm:$0xff]
  %v10955 = vld [vmem:[#allocation2 + $0xa7] sm:$0xff]
  %v10956 = vld [vmem:[#allocation2 + $0xaf] sm:$0xff]
  %v10957 = vld [vmem:[#allocation2 + $0xb7] sm:$0xff]
  %v10958 = vld [vmem:[#allocation2 + $0xbf] sm:$0xff]
  %v10959 = vld [vmem:[#allocation2 + $0x8] sm:$0xff]
  %v10960 = vld [vmem:[#allocation2 + $0x10] sm:$0xff]
  %v10961 = vld [vmem:[#allocation2 + $0x18] sm:$0xff]
  %v10962 = vld [vmem:[#allocation2 + $0x20] sm:$0xff]
  %v10963 = vld [vmem:[#allocation2 + $0x28] sm:$0xff]
  %v10964 = vld [vmem:[#allocation2 + $0x30] sm:$0xff]
  %v10965 = vld [vmem:[#allocation2 + $0x38] sm:$0xff]
  %v10966 = vld [vmem:[#allocation2 + $0x40] sm:$0xff]
  %v10967 = vld [vmem:[#allocation2 + $0x48] sm:$0xff]
  %v10968 = vld [vmem:[#allocation2 + $0x50] sm:$0xff]
  %v10969 = vld [vmem:[#allocation2 + $0x58] sm:$0xff]
  %v10970 = vld [vmem:[#allocation2 + $0x60] sm:$0xff]
  %v10971 = vld [vmem:[#allocation2 + $0x68] sm:$0xff]
  %v10972 = vld [vmem:[#allocation2 + $0x70] sm:$0xff]
  %v10973 = vld [vmem:[#allocation2 + $0x78] sm:$0xff]
  %v10974 = vld [vmem:[#allocation2 + $0x80] sm:$0xff]
  %v10975 = vld [vmem:[#allocation2 + $0x88] sm:$0xff]
  %v10976 = vld [vmem:[#allocation2 + $0x90] sm:$0xff]
  %v10977 = vld [vmem:[#allocation2 + $0x98] sm:$0xff]
  %v10978 = vld [vmem:[#allocation2 + $0xa0] sm:$0xff]
  %v10979 = vld [vmem:[#allocation2 + $0xa8] sm:$0xff]
  %v10980 = vld [vmem:[#allocation2 + $0xb0] sm:$0xff]
  %v10981 = vld [vmem:[#allocation2 + $0xb8] sm:$0xff]
  %v10982 = vld [vmem:[#allocation2 + $0xc0] sm:$0xff]
  %v10983 = vld [vmem:[#allocation2 + $0x9] sm:$0xff]
  %v10984 = vld [vmem:[#allocation2 + $0x11] sm:$0xff]
  %v10985 = vld [vmem:[#allocation2 + $0x19] sm:$0xff]
  %v10986 = vld [vmem:[#allocation2 + $0x21] sm:$0xff]
  %v10987 = vld [vmem:[#allocation2 + $0x29] sm:$0xff]
  %v10988 = vld [vmem:[#allocation2 + $0x31] sm:$0xff]
  %v10989 = vld [vmem:[#allocation2 + $0x39] sm:$0xff]
  %v10990 = vld [vmem:[#allocation2 + $0x41] sm:$0xff]
  %v10991 = vld [vmem:[#allocation2 + $0x49] sm:$0xff]
  %v10992 = vld [vmem:[#allocation2 + $0x51] sm:$0xff]
  %v10993 = vld [vmem:[#allocation2 + $0x59] sm:$0xff]
  %v10994 = vld [vmem:[#allocation2 + $0x61] sm:$0xff]
  %v10995 = vld [vmem:[#allocation2 + $0x69] sm:$0xff]
  %v10996 = vld [vmem:[#allocation2 + $0x71] sm:$0xff]
  %v10997 = vld [vmem:[#allocation2 + $0x79] sm:$0xff]
  %v10998 = vld [vmem:[#allocation2 + $0x81] sm:$0xff]
  %v10999 = vld [vmem:[#allocation2 + $0x89] sm:$0xff]
  %v11000 = vld [vmem:[#allocation2 + $0x91] sm:$0xff]
  %v11001 = vld [vmem:[#allocation2 + $0x99] sm:$0xff]
  %v11002 = vld [vmem:[#allocation2 + $0xa1] sm:$0xff]
  %v11003 = vld [vmem:[#allocation2 + $0xa9] sm:$0xff]
  %v11004 = vld [vmem:[#allocation2 + $0xb1] sm:$0xff]
  %v11005 = vld [vmem:[#allocation2 + $0xb9] sm:$0xff]
  %v11006 = vld [vmem:[#allocation2 + $0xc1] sm:$0xff]
  %11031 = vrot.lane.b32.xlu0 %v10959, 64
  %v11032 = vpop.permute.xlu0 %11031
  %11033 = vrot.lane.b32.xlu0 %v10960, 64
  %v11034 = vpop.permute.xlu0 %11033
  %11035 = vrot.lane.b32.xlu0 %v10961, 64
  %v11036 = vpop.permute.xlu0 %11035
  %11037 = vrot.lane.b32.xlu0 %v10962, 64
  %v11038 = vpop.permute.xlu0 %11037
  %11039 = vrot.lane.b32.xlu0 %v10963, 64
  %v11040 = vpop.permute.xlu0 %11039
  %11041 = vrot.lane.b32.xlu0 %v10964, 64
  %v11042 = vpop.permute.xlu0 %11041
  %11043 = vrot.lane.b32.xlu0 %v10965, 64
  %v11044 = vpop.permute.xlu0 %11043
  %11045 = vrot.lane.b32.xlu0 %v10966, 64
  %v11046 = vpop.permute.xlu0 %11045
  %11047 = vrot.lane.b32.xlu0 %v10967, 64
  %v11048 = vpop.permute.xlu0 %11047
  %11049 = vrot.lane.b32.xlu0 %v10968, 64
  %v11050 = vpop.permute.xlu0 %11049
  %11051 = vrot.lane.b32.xlu0 %v10969, 64
  %v11052 = vpop.permute.xlu0 %11051
  %11053 = vrot.lane.b32.xlu0 %v10970, 64
  %v11054 = vpop.permute.xlu0 %11053
  %11055 = vrot.lane.b32.xlu0 %v10971, 64
  %v11056 = vpop.permute.xlu0 %11055
  %11057 = vrot.lane.b32.xlu0 %v10972, 64
  %v11058 = vpop.permute.xlu0 %11057
  %11059 = vrot.lane.b32.xlu0 %v10973, 64
  %v11060 = vpop.permute.xlu0 %11059
  %11061 = vrot.lane.b32.xlu0 %v10974, 64
  %v11062 = vpop.permute.xlu0 %11061
  %11063 = vrot.lane.b32.xlu0 %v10975, 64
  %v11064 = vpop.permute.xlu0 %11063
  %11065 = vrot.lane.b32.xlu0 %v10976, 64
  %v11066 = vpop.permute.xlu0 %11065
  %11067 = vrot.lane.b32.xlu0 %v10977, 64
  %v11068 = vpop.permute.xlu0 %11067
  %11069 = vrot.lane.b32.xlu0 %v10978, 64
  %v11070 = vpop.permute.xlu0 %11069
  %11071 = vrot.lane.b32.xlu0 %v10979, 64
  %v11072 = vpop.permute.xlu0 %11071
  %11073 = vrot.lane.b32.xlu0 %v10980, 64
  %v11074 = vpop.permute.xlu0 %11073
  %11075 = vrot.lane.b32.xlu0 %v10981, 64
  %v11076 = vpop.permute.xlu0 %11075
  %11077 = vrot.lane.b32.xlu0 %v10982, 64
  %v11078 = vpop.permute.xlu0 %11077
  %v11103 = vsel %vm17, %v10935, %v11032
  %v11104 = vsel %vm17, %v10936, %v11034
  %v11105 = vsel %vm17, %v10937, %v11036
  %v11106 = vsel %vm17, %v10938, %v11038
  %v11107 = vsel %vm17, %v10939, %v11040
  %v11108 = vsel %vm17, %v10940, %v11042
  %v11109 = vsel %vm17, %v10941, %v11044
  %v11110 = vsel %vm17, %v10942, %v11046
  %v11111 = vsel %vm17, %v10943, %v11048
  %v11112 = vsel %vm17, %v10944, %v11050
  %v11113 = vsel %vm17, %v10945, %v11052
  %v11114 = vsel %vm17, %v10946, %v11054
  %v11115 = vsel %vm17, %v10947, %v11056
  %v11116 = vsel %vm17, %v10948, %v11058
  %v11117 = vsel %vm17, %v10949, %v11060
  %v11118 = vsel %vm17, %v10950, %v11062
  %v11119 = vsel %vm17, %v10951, %v11064
  %v11120 = vsel %vm17, %v10952, %v11066
  %v11121 = vsel %vm17, %v10953, %v11068
  %v11122 = vsel %vm17, %v10954, %v11070
  %v11123 = vsel %vm17, %v10955, %v11072
  %v11124 = vsel %vm17, %v10956, %v11074
  %v11125 = vsel %vm17, %v10957, %v11076
  %v11126 = vsel %vm17, %v10958, %v11078
  %v11127 = vld [vmem:[%s3 + $0x19] sm:$0x1]
  %v11128 = vlaneseq
  %v11129 = vshrl.u32 %v11128, 7
  %v11130 = vsub.s32 0, %v11129
  %v11131 = vrot.slane %v11127, %v11130
  %v11133 = vsel %vm17, %v10983, 0
  %v11136 = vsel %vm17, %v10984, 0
  %v11139 = vsel %vm17, %v10985, 0
  %v11142 = vsel %vm17, %v10986, 0
  %v11145 = vsel %vm17, %v10987, 0
  %v11148 = vsel %vm17, %v10988, 0
  %v11151 = vsel %vm17, %v10989, 0
  %v11154 = vsel %vm17, %v10990, 0
  %v11157 = vsel %vm17, %v10991, 0
  %v11160 = vsel %vm17, %v10992, 0
  %v11163 = vsel %vm17, %v10993, 0
  %v11166 = vsel %vm17, %v10994, 0
  %v11169 = vsel %vm17, %v10995, 0
  %v11172 = vsel %vm17, %v10996, 0
  %v11175 = vsel %vm17, %v10997, 0
  %v11178 = vsel %vm17, %v10998, 0
  %v11181 = vsel %vm17, %v10999, 0
  %v11184 = vsel %vm17, %v11000, 0
  %v11187 = vsel %vm17, %v11001, 0
  %v11190 = vsel %vm17, %v11002, 0
  %v11193 = vsel %vm17, %v11003, 0
  %v11196 = vsel %vm17, %v11004, 0
  %v11199 = vsel %vm17, %v11005, 0
  %v11202 = vsel %vm17, %v11006, 0
  %11204 = vmatprep.subr.mxu0 0.0
  %11205 = vmatpush1.msra.mxu0 %v10863
  %11206 = vmatprep.subr.mxu0 0.0
  %11207 = vmatpush1.msra.mxu0 %v10864
  %11208 = vmatprep.subr.mxu0 0.0
  %11209 = vmatpush1.msra.mxu0 %v10865
  %11210 = vmatprep.subr.mxu0 0.0
  %11211 = vmatpush1.msra.mxu0 %v10866
  %11212 = vmatprep.subr.mxu0 0.0
  %11213 = vmatpush1.msra.mxu0 %v10867
  %11214 = vmatprep.subr.mxu0 0.0
  %11215 = vmatpush1.msra.mxu0 %v10868
  %11216 = vmatprep.subr.mxu0 0.0
  %11217 = vmatpush1.msra.mxu0 %v10869
  %11218 = vmatprep.subr.mxu0 0.0
  %11219 = vmatpush1.msra.mxu0 %v10870
  %11220 = vmatprep.subr.mxu0 0.0
  %11221 = vmatpush1.msra.mxu0 %v10871
  %11222 = vmatprep.subr.mxu0 0.0
  %11223 = vmatpush1.msra.mxu0 %v10872
  %11224 = vmatprep.subr.mxu0 0.0
  %11225 = vmatpush1.msra.mxu0 %v10873
  %11226 = vmatprep.subr.mxu0 0.0
  %11227 = vmatpush1.msra.mxu0 %v10874
  %11228 = vmatprep.subr.mxu0 0.0
  %11229 = vmatpush1.msra.mxu0 %v10875
  %11230 = vmatprep.subr.mxu0 0.0
  %11231 = vmatpush1.msra.mxu0 %v10876
  %11232 = vmatprep.subr.mxu0 0.0
  %11233 = vmatpush1.msra.mxu0 %v10877
  %11234 = vmatprep.subr.mxu0 0.0
  %11235 = vmatpush1.msra.mxu0 %v10878
  %11236 = vmatprep.subr.mxu0 0.0
  %11237 = vmatpush1.msra.mxu0 %v10879
  %11238 = vmatprep.subr.mxu0 0.0
  %11239 = vmatpush1.msra.mxu0 %v10880
  %11240 = vmatprep.subr.mxu0 0.0
  %11241 = vmatpush1.msra.mxu0 %v10881
  %11242 = vmatprep.subr.mxu0 0.0
  %11243 = vmatpush1.msra.mxu0 %v10882
  %11244 = vmatprep.subr.mxu0 0.0
  %11245 = vmatpush1.msra.mxu0 %v10883
  %11246 = vmatprep.subr.mxu0 0.0
  %11247 = vmatpush1.msra.mxu0 %v10884
  %11248 = vmatprep.subr.mxu0 0.0
  %11249 = vmatpush1.msra.mxu0 %v10885
  %11250 = vmatprep.subr.mxu0 0.0
  %11251 = vmatpush1.msra.mxu0 %v10886
  %11252 = vmatprep.subr.mxu0 0.0
  %11253 = vmatpush1.msra.mxu0 0.0
  %11254 = vmatprep.subr.mxu0 0.0
  %11255 = vmatpush1.msra.mxu0 0.0
  %11256 = vmatprep.subr.mxu0 0.0
  %11257 = vmatpush1.msra.mxu0 0.0
  %11258 = vmatprep.subr.mxu0 0.0
  %11259 = vmatpush1.msra.mxu0 0.0
  %11260 = vmatprep.subr.mxu0 0.0
  %11261 = vmatpush1.msra.mxu0 0.0
  %11262 = vmatprep.subr.mxu0 0.0
  %11263 = vmatpush1.msra.mxu0 0.0
  %11264 = vmatprep.subr.mxu0 0.0
  %11265 = vmatpush1.msra.mxu0 0.0
  %11266 = vmatprep.subr.mxu0 0.0
  %11267 = vmatpush1.msra.mxu0 0.0
  %11268 = vmatprep.mubr.f32.mxu0 %v11133
  %11269 = vmatmul.mubr.f32.gmra.mrb[0].mxu0 %v11103
  %v11270 = vpop.f32.mrb[0].mxu0
  %v11271 = vadd.f32 %v11131, %v11270
  %v11272 = vpop.f32.mrb[0].mxu0
  %11273 = vmatprep.mubr.f32.mxu0 %v11136
  %11274 = vmatmul.mubr.f32.gmra.mrb[0].mxu0 %v11104
  %v11275 = vpop.f32.mrb[0].mxu0
  %v11276 = vadd.f32 %v11131, %v11275
  %v11277 = vpop.f32.mrb[0].mxu0
  %11278 = vmatprep.mubr.f32.mxu0 %v11139
  %11279 = vmatmul.mubr.f32.gmra.mrb[0].mxu0 %v11105
  %v11280 = vpop.f32.mrb[0].mxu0
  %v11281 = vadd.f32 %v11131, %v11280
  %v11282 = vpop.f32.mrb[0].mxu0
  %11283 = vmatprep.mubr.f32.mxu0 %v11142
  %11284 = vmatmul.mubr.f32.gmra.mrb[0].mxu0 %v11106
  %v11285 = vpop.f32.mrb[0].mxu0
  %v11286 = vadd.f32 %v11131, %v11285
  %v11287 = vpop.f32.mrb[0].mxu0
  %11288 = vmatprep.mubr.f32.mxu0 %v11145
  %11289 = vmatmul.mubr.f32.gmra.mrb[0].mxu0 %v11107
  %v11290 = vpop.f32.mrb[0].mxu0
  %v11291 = vadd.f32 %v11131, %v11290
  %v11292 = vpop.f32.mrb[0].mxu0
  %11293 = vmatprep.mubr.f32.mxu0 %v11148
  %11294 = vmatmul.mubr.f32.gmra.mrb[0].mxu0 %v11108
  %v11295 = vpop.f32.mrb[0].mxu0
  %v11296 = vadd.f32 %v11131, %v11295
  %v11297 = vpop.f32.mrb[0].mxu0
  %11298 = vmatprep.mubr.f32.mxu0 %v11151
  %11299 = vmatmul.mubr.f32.gmra.mrb[0].mxu0 %v11109
  %v11300 = vpop.f32.mrb[0].mxu0
  %v11301 = vadd.f32 %v11131, %v11300
  %v11302 = vpop.f32.mrb[0].mxu0
  %11303 = vmatprep.mubr.f32.mxu0 %v11154
  %11304 = vmatmul.mubr.f32.gmra.mrb[0].mxu0 %v11110
  %v11305 = vpop.f32.mrb[0].mxu0
  %v11306 = vadd.f32 %v11131, %v11305
  %v11307 = vpop.f32.mrb[0].mxu0
  %11308 = vmatprep.mubr.f32.mxu0 %v11157
  %11309 = vmatmul.mubr.f32.gmra.mrb[0].mxu0 %v11111
  %v11310 = vpop.f32.mrb[0].mxu0
  %v11311 = vadd.f32 %v11131, %v11310
  %v11312 = vpop.f32.mrb[0].mxu0
  %11313 = vmatprep.mubr.f32.mxu0 %v11160
  %11314 = vmatmul.mubr.f32.gmra.mrb[0].mxu0 %v11112
  %v11315 = vpop.f32.mrb[0].mxu0
  %v11316 = vadd.f32 %v11131, %v11315
  %v11317 = vpop.f32.mrb[0].mxu0
  %11318 = vmatprep.mubr.f32.mxu0 %v11163
  %11319 = vmatmul.mubr.f32.gmra.mrb[0].mxu0 %v11113
  %v11320 = vpop.f32.mrb[0].mxu0
  %v11321 = vadd.f32 %v11131, %v11320
  %v11322 = vpop.f32.mrb[0].mxu0
  %11323 = vmatprep.mubr.f32.mxu0 %v11166
  %11324 = vmatmul.mubr.f32.gmra.mrb[0].mxu0 %v11114
  %v11325 = vpop.f32.mrb[0].mxu0
  %v11326 = vadd.f32 %v11131, %v11325
  %v11327 = vpop.f32.mrb[0].mxu0
  %11328 = vmatprep.mubr.f32.mxu0 %v11169
  %11329 = vmatmul.mubr.f32.gmra.mrb[0].mxu0 %v11115
  %v11330 = vpop.f32.mrb[0].mxu0
  %v11331 = vadd.f32 %v11131, %v11330
  %v11332 = vpop.f32.mrb[0].mxu0
  %11333 = vmatprep.mubr.f32.mxu0 %v11172
  %11334 = vmatmul.mubr.f32.gmra.mrb[0].mxu0 %v11116
  %v11335 = vpop.f32.mrb[0].mxu0
  %v11336 = vadd.f32 %v11131, %v11335
  %v11337 = vpop.f32.mrb[0].mxu0
  %11338 = vmatprep.mubr.f32.mxu0 %v11175
  %11339 = vmatmul.mubr.f32.gmra.mrb[0].mxu0 %v11117
  %v11340 = vpop.f32.mrb[0].mxu0
  %v11341 = vadd.f32 %v11131, %v11340
  %v11342 = vpop.f32.mrb[0].mxu0
  %11343 = vmatprep.mubr.f32.mxu0 %v11178
  %11344 = vmatmul.mubr.f32.gmra.mrb[0].mxu0 %v11118
  %v11345 = vpop.f32.mrb[0].mxu0
  %v11346 = vadd.f32 %v11131, %v11345
  %v11347 = vpop.f32.mrb[0].mxu0
  %11348 = vmatprep.mubr.f32.mxu0 %v11181
  %11349 = vmatmul.mubr.f32.gmra.mrb[0].mxu0 %v11119
  %v11350 = vpop.f32.mrb[0].mxu0
  %v11351 = vadd.f32 %v11131, %v11350
  %v11352 = vpop.f32.mrb[0].mxu0
  %11353 = vmatprep.mubr.f32.mxu0 %v11184
  %11354 = vmatmul.mubr.f32.gmra.mrb[0].mxu0 %v11120
  %v11355 = vpop.f32.mrb[0].mxu0
  %v11356 = vadd.f32 %v11131, %v11355
  %v11357 = vpop.f32.mrb[0].mxu0
  %11358 = vmatprep.mubr.f32.mxu0 %v11187
  %11359 = vmatmul.mubr.f32.gmra.mrb[0].mxu0 %v11121
  %v11360 = vpop.f32.mrb[0].mxu0
  %v11361 = vadd.f32 %v11131, %v11360
  %v11362 = vpop.f32.mrb[0].mxu0
  %11363 = vmatprep.mubr.f32.mxu0 %v11190
  %11364 = vmatmul.mubr.f32.gmra.mrb[0].mxu0 %v11122
  %v11365 = vpop.f32.mrb[0].mxu0
  %v11366 = vadd.f32 %v11131, %v11365
  %v11367 = vpop.f32.mrb[0].mxu0
  %11368 = vmatprep.mubr.f32.mxu0 %v11193
  %11369 = vmatmul.mubr.f32.gmra.mrb[0].mxu0 %v11123
  %v11370 = vpop.f32.mrb[0].mxu0
  %v11371 = vadd.f32 %v11131, %v11370
  %v11372 = vpop.f32.mrb[0].mxu0
  %11373 = vmatprep.mubr.f32.mxu0 %v11196
  %11374 = vmatmul.mubr.f32.gmra.mrb[0].mxu0 %v11124
  %v11375 = vpop.f32.mrb[0].mxu0
  %v11376 = vadd.f32 %v11131, %v11375
  %v11377 = vpop.f32.mrb[0].mxu0
  %11378 = vmatprep.mubr.f32.mxu0 %v11199
  %11379 = vmatmul.mubr.f32.gmra.mrb[0].mxu0 %v11125
  %v11380 = vpop.f32.mrb[0].mxu0
  %v11381 = vadd.f32 %v11131, %v11380
  %v11382 = vpop.f32.mrb[0].mxu0
  %11383 = vmatprep.mubr.f32.mxu0 %v11202
  %11384 = vmatmul.mubr.f32.gmra.mrb[0].mxu0 %v11126
  %v11385 = vpop.f32.mrb[0].mxu0
  %v11386 = vadd.f32 %v11131, %v11385
  %v11387 = vpop.f32.mrb[0].mxu0
  %11388 = vdwg.mxu0
  %v11389 = vsel %vm64, %v11271, 0.0
  %v11390 = vsel %vm65, %v11276, 0.0
  %v11391 = vsel %vm66, %v11281, 0.0
  %v11392 = vsel %vm64, %v11286, 0.0
  %v11393 = vsel %vm65, %v11291, 0.0
  %v11394 = vsel %vm66, %v11296, 0.0
  %v11395 = vsel %vm64, %v11301, 0.0
  %v11396 = vsel %vm65, %v11306, 0.0
  %v11397 = vsel %vm66, %v11311, 0.0
  %v11398 = vsel %vm64, %v11316, 0.0
  %v11399 = vsel %vm65, %v11321, 0.0
  %v11400 = vsel %vm66, %v11326, 0.0
  %v11401 = vsel %vm64, %v11331, 0.0
  %v11402 = vsel %vm65, %v11336, 0.0
  %v11403 = vsel %vm66, %v11341, 0.0
  %v11404 = vsel %vm64, %v11346, 0.0
  %v11405 = vsel %vm65, %v11351, 0.0
  %v11406 = vsel %vm66, %v11356, 0.0
  %v11407 = vsel %vm64, %v11361, 0.0
  %v11408 = vsel %vm65, %v11366, 0.0
  %v11409 = vsel %vm66, %v11371, 0.0
  %v11410 = vsel %vm64, %v11376, 0.0
  %v11411 = vsel %vm65, %v11381, 0.0
  %v11412 = vsel %vm66, %v11386, 0.0
  %v11413 = vmul.f32 %v11389, %v11389
  %v11414 = vmul.f32 %v11390, %v11390
  %v11415 = vmul.f32 %v11391, %v11391
  %v11416 = vmul.f32 %v11392, %v11392
  %v11417 = vmul.f32 %v11393, %v11393
  %v11418 = vmul.f32 %v11394, %v11394
  %v11419 = vmul.f32 %v11395, %v11395
  %v11420 = vmul.f32 %v11396, %v11396
  %v11421 = vmul.f32 %v11397, %v11397
  %v11422 = vmul.f32 %v11398, %v11398
  %v11423 = vmul.f32 %v11399, %v11399
  %v11424 = vmul.f32 %v11400, %v11400
  %v11425 = vmul.f32 %v11401, %v11401
  %v11426 = vmul.f32 %v11402, %v11402
  %v11427 = vmul.f32 %v11403, %v11403
  %v11428 = vmul.f32 %v11404, %v11404
  %v11429 = vmul.f32 %v11405, %v11405
  %v11430 = vmul.f32 %v11406, %v11406
  %v11431 = vmul.f32 %v11407, %v11407
  %v11432 = vmul.f32 %v11408, %v11408
  %v11433 = vmul.f32 %v11409, %v11409
  %v11434 = vmul.f32 %v11410, %v11410
  %v11435 = vmul.f32 %v11411, %v11411
  %v11436 = vmul.f32 %v11412, %v11412
  %11461 = vrot.lane.b32.xlu0 %v11413, 64
  %v11462 = vpop.permute.xlu0 %11461
  %11463 = vrot.lane.b32.xlu0 %v11414, 64
  %v11464 = vpop.permute.xlu0 %11463
  %11465 = vrot.lane.b32.xlu0 %v11415, 64
  %v11466 = vpop.permute.xlu0 %11465
  %11467 = vrot.lane.b32.xlu0 %v11416, 64
  %v11468 = vpop.permute.xlu0 %11467
  %11469 = vrot.lane.b32.xlu0 %v11417, 64
  %v11470 = vpop.permute.xlu0 %11469
  %11471 = vrot.lane.b32.xlu0 %v11418, 64
  %v11472 = vpop.permute.xlu0 %11471
  %11473 = vrot.lane.b32.xlu0 %v11419, 64
  %v11474 = vpop.permute.xlu0 %11473
  %11475 = vrot.lane.b32.xlu0 %v11420, 64
  %v11476 = vpop.permute.xlu0 %11475
  %11477 = vrot.lane.b32.xlu0 %v11421, 64
  %v11478 = vpop.permute.xlu0 %11477
  %11479 = vrot.lane.b32.xlu0 %v11422, 64
  %v11480 = vpop.permute.xlu0 %11479
  %11481 = vrot.lane.b32.xlu0 %v11423, 64
  %v11482 = vpop.permute.xlu0 %11481
  %11483 = vrot.lane.b32.xlu0 %v11424, 64
  %v11484 = vpop.permute.xlu0 %11483
  %11485 = vrot.lane.b32.xlu0 %v11425, 64
  %v11486 = vpop.permute.xlu0 %11485
  %11487 = vrot.lane.b32.xlu0 %v11426, 64
  %v11488 = vpop.permute.xlu0 %11487
  %11489 = vrot.lane.b32.xlu0 %v11427, 64
  %v11490 = vpop.permute.xlu0 %11489
  %11491 = vrot.lane.b32.xlu0 %v11428, 64
  %v11492 = vpop.permute.xlu0 %11491
  %11493 = vrot.lane.b32.xlu0 %v11429, 64
  %v11494 = vpop.permute.xlu0 %11493
  %11495 = vrot.lane.b32.xlu0 %v11430, 64
  %v11496 = vpop.permute.xlu0 %11495
  %11497 = vrot.lane.b32.xlu0 %v11431, 64
  %v11498 = vpop.permute.xlu0 %11497
  %11499 = vrot.lane.b32.xlu0 %v11432, 64
  %v11500 = vpop.permute.xlu0 %11499
  %11501 = vrot.lane.b32.xlu0 %v11433, 64
  %v11502 = vpop.permute.xlu0 %11501
  %11503 = vrot.lane.b32.xlu0 %v11434, 64
  %v11504 = vpop.permute.xlu0 %11503
  %11505 = vrot.lane.b32.xlu0 %v11435, 64
  %v11506 = vpop.permute.xlu0 %11505
  %11507 = vrot.lane.b32.xlu0 %v11436, 64
  %v11508 = vpop.permute.xlu0 %11507
  %v11533 = vsel %vm17, %v11389, %v11462
  %v11534 = vsel %vm17, %v11390, %v11464
  %v11535 = vsel %vm17, %v11391, %v11466
  %v11536 = vsel %vm17, %v11392, %v11468
  %v11537 = vsel %vm17, %v11393, %v11470
  %v11538 = vsel %vm17, %v11394, %v11472
  %v11539 = vsel %vm17, %v11395, %v11474
  %v11540 = vsel %vm17, %v11396, %v11476
  %v11541 = vsel %vm17, %v11397, %v11478
  %v11542 = vsel %vm17, %v11398, %v11480
  %v11543 = vsel %vm17, %v11399, %v11482
  %v11544 = vsel %vm17, %v11400, %v11484
  %v11545 = vsel %vm17, %v11401, %v11486
  %v11546 = vsel %vm17, %v11402, %v11488
  %v11547 = vsel %vm17, %v11403, %v11490
  %v11548 = vsel %vm17, %v11404, %v11492
  %v11549 = vsel %vm17, %v11405, %v11494
  %v11550 = vsel %vm17, %v11406, %v11496
  %v11551 = vsel %vm17, %v11407, %v11498
  %v11552 = vsel %vm17, %v11408, %v11500
  %v11553 = vsel %vm17, %v11409, %v11502
  %v11554 = vsel %vm17, %v11410, %v11504
  %v11555 = vsel %vm17, %v11411, %v11506
  %v11556 = vsel %vm17, %v11412, %v11508
  %v11557 = vadd.f32 %v11533, %v11534
  %v11558 = vadd.f32 %v11557, %v11535
  %v11559 = vadd.f32 %v11558, %v11536
  %v11560 = vadd.f32 %v11559, %v11537
  %v11561 = vadd.f32 %v11560, %v11538
  %v11562 = vadd.f32 %v11561, %v11539
  %v11563 = vadd.f32 %v11562, %v11540
  %v11564 = vadd.f32 %v11563, %v11541
  %v11565 = vadd.f32 %v11564, %v11542
  %v11566 = vadd.f32 %v11565, %v11543
  %v11567 = vadd.f32 %v11566, %v11544
  %v11568 = vadd.f32 %v11567, %v11545
  %v11569 = vadd.f32 %v11568, %v11546
  %v11570 = vadd.f32 %v11569, %v11547
  %v11571 = vadd.f32 %v11570, %v11548
  %v11572 = vadd.f32 %v11571, %v11549
  %v11573 = vadd.f32 %v11572, %v11550
  %v11574 = vadd.f32 %v11573, %v11551
  %v11575 = vadd.f32 %v11574, %v11552
  %v11576 = vadd.f32 %v11575, %v11553
  %v11577 = vadd.f32 %v11576, %v11554
  %v11578 = vadd.f32 %v11577, %v11555
  %v11579 = vadd.f32 %v11578, %v11556
  %v11580 = vrot.slane %v11579, 4
  %v11581 = vadd.f32 %v11579, %v11580
  %v11582 = vrot.slane %v11581, 2
  %v11583 = vadd.f32 %v11581, %v11582
  %v11584 = vrot.slane %v11583, 1
  %v11585 = vadd.f32 %v11583, %v11584
  %v11586 = vmul.f32 %v11585, 0.0078125
  %v11587 = vmul.f32 %v11586, %v11586
  %11589 = vrot.lane.b32.xlu0 %v11587, 64
  %v11590 = vpop.permute.xlu0 %11589
  %v11592 = vsub.f32 %v11586, %v11590
  %v11593 = vmax.f32 %v11592, 0.0
  %v11594 = vld [vmem:[%s3 + $0x1e] sm:$0x1]
  %v11595 = vsub.f32 %v11271, %v11586
  %v11596 = vsub.f32 %v11276, %v11586
  %v11597 = vsub.f32 %v11281, %v11586
  %v11598 = vsub.f32 %v11286, %v11586
  %v11599 = vsub.f32 %v11291, %v11586
  %v11600 = vsub.f32 %v11296, %v11586
  %v11601 = vsub.f32 %v11301, %v11586
  %v11602 = vsub.f32 %v11306, %v11586
  %v11603 = vsub.f32 %v11311, %v11586
  %v11604 = vsub.f32 %v11316, %v11586
  %v11605 = vsub.f32 %v11321, %v11586
  %v11606 = vsub.f32 %v11326, %v11586
  %v11607 = vsub.f32 %v11331, %v11586
  %v11608 = vsub.f32 %v11336, %v11586
  %v11609 = vsub.f32 %v11341, %v11586
  %v11610 = vsub.f32 %v11346, %v11586
  %v11611 = vsub.f32 %v11351, %v11586
  %v11612 = vsub.f32 %v11356, %v11586
  %v11613 = vsub.f32 %v11361, %v11586
  %v11614 = vsub.f32 %v11366, %v11586
  %v11615 = vsub.f32 %v11371, %v11586
  %v11616 = vsub.f32 %v11376, %v11586
  %v11617 = vsub.f32 %v11381, %v11586
  %v11618 = vsub.f32 %v11386, %v11586
  %v11619 = vadd.f32 %v11593, 1e-05
  %v11620 = vrsqrt.pop %v11619
  %v11621 = vlaneseq
  %v11622 = vshrl.u32 %v11621, 7
  %v11623 = vsub.s32 0, %v11622
  %v11624 = vrot.slane %v11620, %v11623
  %11626 = vrot.lane.b32.xlu0 %v11624, 64
  %v11627 = vpop.permute.xlu0 %11626
  %v11629 = vmul.f32 %v11595, %v11627
  %v11630 = vmul.f32 %v11596, %v11627
  %v11631 = vmul.f32 %v11597, %v11627
  %v11632 = vmul.f32 %v11598, %v11627
  %v11633 = vmul.f32 %v11599, %v11627
  %v11634 = vmul.f32 %v11600, %v11627
  %v11635 = vmul.f32 %v11601, %v11627
  %v11636 = vmul.f32 %v11602, %v11627
  %v11637 = vmul.f32 %v11603, %v11627
  %v11638 = vmul.f32 %v11604, %v11627
  %v11639 = vmul.f32 %v11605, %v11627
  %v11640 = vmul.f32 %v11606, %v11627
  %v11641 = vmul.f32 %v11607, %v11627
  %v11642 = vmul.f32 %v11608, %v11627
  %v11643 = vmul.f32 %v11609, %v11627
  %v11644 = vmul.f32 %v11610, %v11627
  %v11645 = vmul.f32 %v11611, %v11627
  %v11646 = vmul.f32 %v11612, %v11627
  %v11647 = vmul.f32 %v11613, %v11627
  %v11648 = vmul.f32 %v11614, %v11627
  %v11649 = vmul.f32 %v11615, %v11627
  %v11650 = vmul.f32 %v11616, %v11627
  %v11651 = vmul.f32 %v11617, %v11627
  %v11652 = vmul.f32 %v11618, %v11627
  %v11653 = vlaneseq
  %v11654 = vshrl.u32 %v11653, 7
  %v11655 = vsub.s32 0, %v11654
  %v11656 = vrot.slane %v11594, %v11655
  %v11657 = vmul.f32 %v11656, %v11629
  %v11658 = vmul.f32 %v11656, %v11630
  %v11659 = vmul.f32 %v11656, %v11631
  %v11660 = vmul.f32 %v11656, %v11632
  %v11661 = vmul.f32 %v11656, %v11633
  %v11662 = vmul.f32 %v11656, %v11634
  %v11663 = vmul.f32 %v11656, %v11635
  %v11664 = vmul.f32 %v11656, %v11636
  %v11665 = vmul.f32 %v11656, %v11637
  %v11666 = vmul.f32 %v11656, %v11638
  %v11667 = vmul.f32 %v11656, %v11639
  %v11668 = vmul.f32 %v11656, %v11640
  %v11669 = vmul.f32 %v11656, %v11641
  %v11670 = vmul.f32 %v11656, %v11642
  %v11671 = vmul.f32 %v11656, %v11643
  %v11672 = vmul.f32 %v11656, %v11644
  %v11673 = vmul.f32 %v11656, %v11645
  %v11674 = vmul.f32 %v11656, %v11646
  %v11675 = vmul.f32 %v11656, %v11647
  %v11676 = vmul.f32 %v11656, %v11648
  %v11677 = vmul.f32 %v11656, %v11649
  %v11678 = vmul.f32 %v11656, %v11650
  %v11679 = vmul.f32 %v11656, %v11651
  %v11680 = vmul.f32 %v11656, %v11652
  %v11681 = vld [vmem:[%s3 + $0x1f] sm:$0x1]
  %v11682 = vlaneseq
  %v11683 = vshrl.u32 %v11682, 7
  %v11684 = vsub.s32 0, %v11683
  %v11685 = vrot.slane %v11681, %v11684
  %v11686 = vadd.f32 %v11657, %v11685
  %v11687 = vadd.f32 %v11658, %v11685
  %v11688 = vadd.f32 %v11659, %v11685
  %v11689 = vadd.f32 %v11660, %v11685
  %v11690 = vadd.f32 %v11661, %v11685
  %v11691 = vadd.f32 %v11662, %v11685
  %v11692 = vadd.f32 %v11663, %v11685
  %v11693 = vadd.f32 %v11664, %v11685
  %v11694 = vadd.f32 %v11665, %v11685
  %v11695 = vadd.f32 %v11666, %v11685
  %v11696 = vadd.f32 %v11667, %v11685
  %v11697 = vadd.f32 %v11668, %v11685
  %v11698 = vadd.f32 %v11669, %v11685
  %v11699 = vadd.f32 %v11670, %v11685
  %v11700 = vadd.f32 %v11671, %v11685
  %v11701 = vadd.f32 %v11672, %v11685
  %v11702 = vadd.f32 %v11673, %v11685
  %v11703 = vadd.f32 %v11674, %v11685
  %v11704 = vadd.f32 %v11675, %v11685
  %v11705 = vadd.f32 %v11676, %v11685
  %v11706 = vadd.f32 %v11677, %v11685
  %v11707 = vadd.f32 %v11678, %v11685
  %v11708 = vadd.f32 %v11679, %v11685
  %v11709 = vadd.f32 %v11680, %v11685
  %v11710 = vmul.f32 %v8255, %v8255
  %v11711 = vmul.f32 %v8256, %v8256
  %v11712 = vmul.f32 %v8257, %v8257
  %v11713 = vmul.f32 %v8258, %v8258
  %v11714 = vmul.f32 %v8259, %v8259
  %v11715 = vmul.f32 %v8260, %v8260
  %v11716 = vmul.f32 %v8261, %v8261
  %v11717 = vmul.f32 %v8262, %v8262
  %v11718 = vmul.f32 %v8263, %v8263
  %v11719 = vmul.f32 %v8264, %v8264
  %v11720 = vmul.f32 %v8265, %v8265
  %v11721 = vmul.f32 %v8266, %v8266
  %v11722 = vmul.f32 %v8267, %v8267
  %v11723 = vmul.f32 %v8268, %v8268
  %v11724 = vmul.f32 %v8269, %v8269
  %v11725 = vmul.f32 %v8270, %v8270
  %v11726 = vmul.f32 %v8271, %v8271
  %v11727 = vmul.f32 %v8272, %v8272
  %v11728 = vmul.f32 %v8273, %v8273
  %v11729 = vmul.f32 %v8274, %v8274
  %v11730 = vmul.f32 %v8275, %v8275
  %v11731 = vmul.f32 %v8276, %v8276
  %v11732 = vmul.f32 %v8277, %v8277
  %v11733 = vmul.f32 %v8278, %v8278
  %11758 = vrot.lane.b32.xlu0 %v11710, 64
  %v11759 = vpop.permute.xlu0 %11758
  %11760 = vrot.lane.b32.xlu0 %v11711, 64
  %v11761 = vpop.permute.xlu0 %11760
  %11762 = vrot.lane.b32.xlu0 %v11712, 64
  %v11763 = vpop.permute.xlu0 %11762
  %11764 = vrot.lane.b32.xlu0 %v11713, 64
  %v11765 = vpop.permute.xlu0 %11764
  %11766 = vrot.lane.b32.xlu0 %v11714, 64
  %v11767 = vpop.permute.xlu0 %11766
  %11768 = vrot.lane.b32.xlu0 %v11715, 64
  %v11769 = vpop.permute.xlu0 %11768
  %11770 = vrot.lane.b32.xlu0 %v11716, 64
  %v11771 = vpop.permute.xlu0 %11770
  %11772 = vrot.lane.b32.xlu0 %v11717, 64
  %v11773 = vpop.permute.xlu0 %11772
  %11774 = vrot.lane.b32.xlu0 %v11718, 64
  %v11775 = vpop.permute.xlu0 %11774
  %11776 = vrot.lane.b32.xlu0 %v11719, 64
  %v11777 = vpop.permute.xlu0 %11776
  %11778 = vrot.lane.b32.xlu0 %v11720, 64
  %v11779 = vpop.permute.xlu0 %11778
  %11780 = vrot.lane.b32.xlu0 %v11721, 64
  %v11781 = vpop.permute.xlu0 %11780
  %11782 = vrot.lane.b32.xlu0 %v11722, 64
  %v11783 = vpop.permute.xlu0 %11782
  %11784 = vrot.lane.b32.xlu0 %v11723, 64
  %v11785 = vpop.permute.xlu0 %11784
  %11786 = vrot.lane.b32.xlu0 %v11724, 64
  %v11787 = vpop.permute.xlu0 %11786
  %11788 = vrot.lane.b32.xlu0 %v11725, 64
  %v11789 = vpop.permute.xlu0 %11788
  %11790 = vrot.lane.b32.xlu0 %v11726, 64
  %v11791 = vpop.permute.xlu0 %11790
  %11792 = vrot.lane.b32.xlu0 %v11727, 64
  %v11793 = vpop.permute.xlu0 %11792
  %11794 = vrot.lane.b32.xlu0 %v11728, 64
  %v11795 = vpop.permute.xlu0 %11794
  %11796 = vrot.lane.b32.xlu0 %v11729, 64
  %v11797 = vpop.permute.xlu0 %11796
  %11798 = vrot.lane.b32.xlu0 %v11730, 64
  %v11799 = vpop.permute.xlu0 %11798
  %11800 = vrot.lane.b32.xlu0 %v11731, 64
  %v11801 = vpop.permute.xlu0 %11800
  %11802 = vrot.lane.b32.xlu0 %v11732, 64
  %v11803 = vpop.permute.xlu0 %11802
  %11804 = vrot.lane.b32.xlu0 %v11733, 64
  %v11805 = vpop.permute.xlu0 %11804
  %v11830 = vsel %vm17, %v8255, %v11759
  %v11831 = vsel %vm17, %v8256, %v11761
  %v11832 = vsel %vm17, %v8257, %v11763
  %v11833 = vsel %vm17, %v8258, %v11765
  %v11834 = vsel %vm17, %v8259, %v11767
  %v11835 = vsel %vm17, %v8260, %v11769
  %v11836 = vsel %vm17, %v8261, %v11771
  %v11837 = vsel %vm17, %v8262, %v11773
  %v11838 = vsel %vm17, %v8263, %v11775
  %v11839 = vsel %vm17, %v8264, %v11777
  %v11840 = vsel %vm17, %v8265, %v11779
  %v11841 = vsel %vm17, %v8266, %v11781
  %v11842 = vsel %vm17, %v8267, %v11783
  %v11843 = vsel %vm17, %v8268, %v11785
  %v11844 = vsel %vm17, %v8269, %v11787
  %v11845 = vsel %vm17, %v8270, %v11789
  %v11846 = vsel %vm17, %v8271, %v11791
  %v11847 = vsel %vm17, %v8272, %v11793
  %v11848 = vsel %vm17, %v8273, %v11795
  %v11849 = vsel %vm17, %v8274, %v11797
  %v11850 = vsel %vm17, %v8275, %v11799
  %v11851 = vsel %vm17, %v8276, %v11801
  %v11852 = vsel %vm17, %v8277, %v11803
  %v11853 = vsel %vm17, %v8278, %v11805
  %v11854 = vadd.f32 %v11830, %v11831
  %v11855 = vadd.f32 %v11854, %v11832
  %v11856 = vadd.f32 %v11855, %v11833
  %v11857 = vadd.f32 %v11856, %v11834
  %v11858 = vadd.f32 %v11857, %v11835
  %v11859 = vadd.f32 %v11858, %v11836
  %v11860 = vadd.f32 %v11859, %v11837
  %v11861 = vadd.f32 %v11860, %v11838
  %v11862 = vadd.f32 %v11861, %v11839
  %v11863 = vadd.f32 %v11862, %v11840
  %v11864 = vadd.f32 %v11863, %v11841
  %v11865 = vadd.f32 %v11864, %v11842
  %v11866 = vadd.f32 %v11865, %v11843
  %v11867 = vadd.f32 %v11866, %v11844
  %v11868 = vadd.f32 %v11867, %v11845
  %v11869 = vadd.f32 %v11868, %v11846
  %v11870 = vadd.f32 %v11869, %v11847
  %v11871 = vadd.f32 %v11870, %v11848
  %v11872 = vadd.f32 %v11871, %v11849
  %v11873 = vadd.f32 %v11872, %v11850
  %v11874 = vadd.f32 %v11873, %v11851
  %v11875 = vadd.f32 %v11874, %v11852
  %v11876 = vadd.f32 %v11875, %v11853
  %v11877 = vrot.slane %v11876, 4
  %v11878 = vadd.f32 %v11876, %v11877
  %v11879 = vrot.slane %v11878, 2
  %v11880 = vadd.f32 %v11878, %v11879
  %v11881 = vrot.slane %v11880, 1
  %v11882 = vadd.f32 %v11880, %v11881
  %v11883 = vmul.f32 %v11882, 0.0078125
  %v11884 = vmul.f32 %v11883, %v11883
  %11886 = vrot.lane.b32.xlu0 %v11884, 64
  %v11887 = vpop.permute.xlu0 %11886
  %v11889 = vsub.f32 %v11883, %v11887
  %v11890 = vmax.f32 %v11889, 0.0
  %v11891 = vld [vmem:[%s3 + $0x20] sm:$0x1]
  %v11892 = vsub.f32 %v8175, %v11883
  %v11893 = vsub.f32 %v8176, %v11883
  %v11894 = vsub.f32 %v8177, %v11883
  %v11895 = vsub.f32 %v8178, %v11883
  %v11896 = vsub.f32 %v8179, %v11883
  %v11897 = vsub.f32 %v8180, %v11883
  %v11898 = vsub.f32 %v8181, %v11883
  %v11899 = vsub.f32 %v8182, %v11883
  %v11900 = vsub.f32 %v8183, %v11883
  %v11901 = vsub.f32 %v8184, %v11883
  %v11902 = vsub.f32 %v8185, %v11883
  %v11903 = vsub.f32 %v8186, %v11883
  %v11904 = vsub.f32 %v8187, %v11883
  %v11905 = vsub.f32 %v8188, %v11883
  %v11906 = vsub.f32 %v8189, %v11883
  %v11907 = vsub.f32 %v8190, %v11883
  %v11908 = vsub.f32 %v8191, %v11883
  %v11909 = vsub.f32 %v8192, %v11883
  %v11910 = vsub.f32 %v8193, %v11883
  %v11911 = vsub.f32 %v8194, %v11883
  %v11912 = vsub.f32 %v8195, %v11883
  %v11913 = vsub.f32 %v8196, %v11883
  %v11914 = vsub.f32 %v8197, %v11883
  %v11915 = vsub.f32 %v8198, %v11883
  %v11916 = vadd.f32 %v11890, 1e-05
  %v11917 = vrsqrt.pop %v11916
  %v11918 = vlaneseq
  %v11919 = vshrl.u32 %v11918, 7
  %v11920 = vsub.s32 0, %v11919
  %v11921 = vrot.slane %v11917, %v11920
  %11923 = vrot.lane.b32.xlu0 %v11921, 64
  %v11924 = vpop.permute.xlu0 %11923
  %v11926 = vmul.f32 %v11892, %v11924
  %v11927 = vmul.f32 %v11893, %v11924
  %v11928 = vmul.f32 %v11894, %v11924
  %v11929 = vmul.f32 %v11895, %v11924
  %v11930 = vmul.f32 %v11896, %v11924
  %v11931 = vmul.f32 %v11897, %v11924
  %v11932 = vmul.f32 %v11898, %v11924
  %v11933 = vmul.f32 %v11899, %v11924
  %v11934 = vmul.f32 %v11900, %v11924
  %v11935 = vmul.f32 %v11901, %v11924
  %v11936 = vmul.f32 %v11902, %v11924
  %v11937 = vmul.f32 %v11903, %v11924
  %v11938 = vmul.f32 %v11904, %v11924
  %v11939 = vmul.f32 %v11905, %v11924
  %v11940 = vmul.f32 %v11906, %v11924
  %v11941 = vmul.f32 %v11907, %v11924
  %v11942 = vmul.f32 %v11908, %v11924
  %v11943 = vmul.f32 %v11909, %v11924
  %v11944 = vmul.f32 %v11910, %v11924
  %v11945 = vmul.f32 %v11911, %v11924
  %v11946 = vmul.f32 %v11912, %v11924
  %v11947 = vmul.f32 %v11913, %v11924
  %v11948 = vmul.f32 %v11914, %v11924
  %v11949 = vmul.f32 %v11915, %v11924
  %v11950 = vlaneseq
  %v11951 = vshrl.u32 %v11950, 7
  %v11952 = vsub.s32 0, %v11951
  %v11953 = vrot.slane %v11891, %v11952
  %v11954 = vmul.f32 %v11953, %v11926
  %v11955 = vmul.f32 %v11953, %v11927
  %v11956 = vmul.f32 %v11953, %v11928
  %v11957 = vmul.f32 %v11953, %v11929
  %v11958 = vmul.f32 %v11953, %v11930
  %v11959 = vmul.f32 %v11953, %v11931
  %v11960 = vmul.f32 %v11953, %v11932
  %v11961 = vmul.f32 %v11953, %v11933
  %v11962 = vmul.f32 %v11953, %v11934
  %v11963 = vmul.f32 %v11953, %v11935
  %v11964 = vmul.f32 %v11953, %v11936
  %v11965 = vmul.f32 %v11953, %v11937
  %v11966 = vmul.f32 %v11953, %v11938
  %v11967 = vmul.f32 %v11953, %v11939
  %v11968 = vmul.f32 %v11953, %v11940
  %v11969 = vmul.f32 %v11953, %v11941
  %v11970 = vmul.f32 %v11953, %v11942
  %v11971 = vmul.f32 %v11953, %v11943
  %v11972 = vmul.f32 %v11953, %v11944
  %v11973 = vmul.f32 %v11953, %v11945
  %v11974 = vmul.f32 %v11953, %v11946
  %v11975 = vmul.f32 %v11953, %v11947
  %v11976 = vmul.f32 %v11953, %v11948
  %v11977 = vmul.f32 %v11953, %v11949
  %v11978 = vld [vmem:[%s3 + $0x21] sm:$0x1]
  %v11979 = vlaneseq
  %v11980 = vshrl.u32 %v11979, 7
  %v11981 = vsub.s32 0, %v11980
  %v11982 = vrot.slane %v11978, %v11981
  %v11983 = vadd.f32 %v11954, %v11982
  %v11984 = vadd.f32 %v11955, %v11982
  %v11985 = vadd.f32 %v11956, %v11982
  %v11986 = vadd.f32 %v11957, %v11982
  %v11987 = vadd.f32 %v11958, %v11982
  %v11988 = vadd.f32 %v11959, %v11982
  %v11989 = vadd.f32 %v11960, %v11982
  %v11990 = vadd.f32 %v11961, %v11982
  %v11991 = vadd.f32 %v11962, %v11982
  %v11992 = vadd.f32 %v11963, %v11982
  %v11993 = vadd.f32 %v11964, %v11982
  %v11994 = vadd.f32 %v11965, %v11982
  %v11995 = vadd.f32 %v11966, %v11982
  %v11996 = vadd.f32 %v11967, %v11982
  %v11997 = vadd.f32 %v11968, %v11982
  %v11998 = vadd.f32 %v11969, %v11982
  %v11999 = vadd.f32 %v11970, %v11982
  %v12000 = vadd.f32 %v11971, %v11982
  %v12001 = vadd.f32 %v11972, %v11982
  %v12002 = vadd.f32 %v11973, %v11982
  %v12003 = vadd.f32 %v11974, %v11982
  %v12004 = vadd.f32 %v11975, %v11982
  %v12005 = vadd.f32 %v11976, %v11982
  %v12006 = vadd.f32 %v11977, %v11982
  %v12007 = vadd.f32 %v11686, %v11983
  %v12008 = vadd.f32 %v11687, %v11984
  %v12009 = vadd.f32 %v11688, %v11985
  %v12010 = vadd.f32 %v11689, %v11986
  %v12011 = vadd.f32 %v11690, %v11987
  %v12012 = vadd.f32 %v11691, %v11988
  %v12013 = vadd.f32 %v11692, %v11989
  %v12014 = vadd.f32 %v11693, %v11990
  %v12015 = vadd.f32 %v11694, %v11991
  %v12016 = vadd.f32 %v11695, %v11992
  %v12017 = vadd.f32 %v11696, %v11993
  %v12018 = vadd.f32 %v11697, %v11994
  %v12019 = vadd.f32 %v11698, %v11995
  %v12020 = vadd.f32 %v11699, %v11996
  %v12021 = vadd.f32 %v11700, %v11997
  %v12022 = vadd.f32 %v11701, %v11998
  %v12023 = vadd.f32 %v11702, %v11999
  %v12024 = vadd.f32 %v11703, %v12000
  %v12025 = vadd.f32 %v11704, %v12001
  %v12026 = vadd.f32 %v11705, %v12002
  %v12027 = vadd.f32 %v11706, %v12003
  %v12028 = vadd.f32 %v11707, %v12004
  %v12029 = vadd.f32 %v11708, %v12005
  %v12030 = vadd.f32 %v11709, %v12006
  %v12031 = vmax.f32 %v12007, 0.0
  %v12032 = vmax.f32 %v12008, 0.0
  %v12033 = vmax.f32 %v12009, 0.0
  %v12034 = vmax.f32 %v12010, 0.0
  %v12035 = vmax.f32 %v12011, 0.0
  %v12036 = vmax.f32 %v12012, 0.0
  %v12037 = vmax.f32 %v12013, 0.0
  %v12038 = vmax.f32 %v12014, 0.0
  %v12039 = vmax.f32 %v12015, 0.0
  %v12040 = vmax.f32 %v12016, 0.0
  %v12041 = vmax.f32 %v12017, 0.0
  %v12042 = vmax.f32 %v12018, 0.0
  %v12043 = vmax.f32 %v12019, 0.0
  %v12044 = vmax.f32 %v12020, 0.0
  %v12045 = vmax.f32 %v12021, 0.0
  %v12046 = vmax.f32 %v12022, 0.0
  %v12047 = vmax.f32 %v12023, 0.0
  %v12048 = vmax.f32 %v12024, 0.0
  %v12049 = vmax.f32 %v12025, 0.0
  %v12050 = vmax.f32 %v12026, 0.0
  %v12051 = vmax.f32 %v12027, 0.0
  %v12052 = vmax.f32 %v12028, 0.0
  %v12053 = vmax.f32 %v12029, 0.0
  %v12054 = vmax.f32 %v12030, 0.0
  %v12055 = vsel %vm64, %v12031, 0.0
  %v12056 = vsel %vm65, %v12032, 0.0
  %v12057 = vsel %vm66, %v12033, 0.0
  %v12058 = vsel %vm64, %v12034, 0.0
  %v12059 = vsel %vm65, %v12035, 0.0
  %v12060 = vsel %vm66, %v12036, 0.0
  %v12061 = vsel %vm64, %v12037, 0.0
  %v12062 = vsel %vm65, %v12038, 0.0
  %v12063 = vsel %vm66, %v12039, 0.0
  %v12064 = vsel %vm64, %v12040, 0.0
  %v12065 = vsel %vm65, %v12041, 0.0
  %v12066 = vsel %vm66, %v12042, 0.0
  %v12067 = vsel %vm64, %v12043, 0.0
  %v12068 = vsel %vm65, %v12044, 0.0
  %v12069 = vsel %vm66, %v12045, 0.0
  %v12070 = vsel %vm64, %v12046, 0.0
  %v12071 = vsel %vm65, %v12047, 0.0
  %v12072 = vsel %vm66, %v12048, 0.0
  %v12073 = vsel %vm64, %v12049, 0.0
  %v12074 = vsel %vm65, %v12050, 0.0
  %v12075 = vsel %vm66, %v12051, 0.0
  %v12076 = vsel %vm64, %v12052, 0.0
  %v12077 = vsel %vm65, %v12053, 0.0
  %v12078 = vsel %vm66, %v12054, 0.0
  %v12079 = vsel %vm17, %v12055, 0.0
  %v12080 = vsel %vm17, %v12056, 0.0
  %v12081 = vadd.f32 %v12079, %v12080
  %v12082 = vsel %vm17, %v12057, 0.0
  %v12083 = vadd.f32 %v12081, %v12082
  %v12084 = vrot.slane %v12083, 4
  %v12085 = vadd.f32 %v12083, %v12084
  %v12086 = vrot.slane %v12085, 2
  %v12087 = vadd.f32 %v12085, %v12086
  %v12088 = vrot.slane %v12087, 1
  %v12089 = vadd.f32 %v12087, %v12088
  %v12090 = vsel %vm17, %v12058, 0.0
  %v12091 = vsel %vm17, %v12059, 0.0
  %v12092 = vadd.f32 %v12090, %v12091
  %v12093 = vsel %vm17, %v12060, 0.0
  %v12094 = vadd.f32 %v12092, %v12093
  %v12095 = vrot.slane %v12094, 4
  %v12096 = vadd.f32 %v12094, %v12095
  %v12097 = vrot.slane %v12096, 2
  %v12098 = vadd.f32 %v12096, %v12097
  %v12099 = vrot.slane %v12098, 1
  %v12100 = vadd.f32 %v12098, %v12099
  %v12101 = vsel %vm17, %v12061, 0.0
  %v12102 = vsel %vm17, %v12062, 0.0
  %v12103 = vadd.f32 %v12101, %v12102
  %v12104 = vsel %vm17, %v12063, 0.0
  %v12105 = vadd.f32 %v12103, %v12104
  %v12106 = vrot.slane %v12105, 4
  %v12107 = vadd.f32 %v12105, %v12106
  %v12108 = vrot.slane %v12107, 2
  %v12109 = vadd.f32 %v12107, %v12108
  %v12110 = vrot.slane %v12109, 1
  %v12111 = vadd.f32 %v12109, %v12110
  %v12112 = vsel %vm17, %v12064, 0.0
  %v12113 = vsel %vm17, %v12065, 0.0
  %v12114 = vadd.f32 %v12112, %v12113
  %v12115 = vsel %vm17, %v12066, 0.0
  %v12116 = vadd.f32 %v12114, %v12115
  %v12117 = vrot.slane %v12116, 4
  %v12118 = vadd.f32 %v12116, %v12117
  %v12119 = vrot.slane %v12118, 2
  %v12120 = vadd.f32 %v12118, %v12119
  %v12121 = vrot.slane %v12120, 1
  %v12122 = vadd.f32 %v12120, %v12121
  %v12123 = vsel %vm17, %v12067, 0.0
  %v12124 = vsel %vm17, %v12068, 0.0
  %v12125 = vadd.f32 %v12123, %v12124
  %v12126 = vsel %vm17, %v12069, 0.0
  %v12127 = vadd.f32 %v12125, %v12126
  %v12128 = vrot.slane %v12127, 4
  %v12129 = vadd.f32 %v12127, %v12128
  %v12130 = vrot.slane %v12129, 2
  %v12131 = vadd.f32 %v12129, %v12130
  %v12132 = vrot.slane %v12131, 1
  %v12133 = vadd.f32 %v12131, %v12132
  %v12134 = vsel %vm17, %v12070, 0.0
  %v12135 = vsel %vm17, %v12071, 0.0
  %v12136 = vadd.f32 %v12134, %v12135
  %v12137 = vsel %vm17, %v12072, 0.0
  %v12138 = vadd.f32 %v12136, %v12137
  %v12139 = vrot.slane %v12138, 4
  %v12140 = vadd.f32 %v12138, %v12139
  %v12141 = vrot.slane %v12140, 2
  %v12142 = vadd.f32 %v12140, %v12141
  %v12143 = vrot.slane %v12142, 1
  %v12144 = vadd.f32 %v12142, %v12143
  %v12145 = vsel %vm17, %v12073, 0.0
  %v12146 = vsel %vm17, %v12074, 0.0
  %v12147 = vadd.f32 %v12145, %v12146
  %v12148 = vsel %vm17, %v12075, 0.0
  %v12149 = vadd.f32 %v12147, %v12148
  %v12150 = vrot.slane %v12149, 4
  %v12151 = vadd.f32 %v12149, %v12150
  %v12152 = vrot.slane %v12151, 2
  %v12153 = vadd.f32 %v12151, %v12152
  %v12154 = vrot.slane %v12153, 1
  %v12155 = vadd.f32 %v12153, %v12154
  %v12156 = vsel %vm17, %v12076, 0.0
  %v12157 = vsel %vm17, %v12077, 0.0
  %v12158 = vadd.f32 %v12156, %v12157
  %v12159 = vsel %vm17, %v12078, 0.0
  %v12160 = vadd.f32 %v12158, %v12159
  %v12161 = vrot.slane %v12160, 4
  %v12162 = vadd.f32 %v12160, %v12161
  %v12163 = vrot.slane %v12162, 2
  %v12164 = vadd.f32 %v12162, %v12163
  %v12165 = vrot.slane %v12164, 1
  %v12166 = vadd.f32 %v12164, %v12165
  %v12167 = vmul.f32 %v12089, 0.0625
  %v12168 = vmul.f32 %v12100, 0.0625
  %v12169 = vmul.f32 %v12111, 0.0625
  %v12170 = vmul.f32 %v12122, 0.0625
  %v12171 = vmul.f32 %v12133, 0.0625
  %v12172 = vmul.f32 %v12144, 0.0625
  %v12173 = vmul.f32 %v12155, 0.0625
  %v12174 = vmul.f32 %v12166, 0.0625
  %v12175 = vld [vmem:[%s2 + $0x9a8] sm:$0xff]
  %v12176 = vld [vmem:[%s2 + $0x9b0] sm:$0xff]
  %v12177 = vld [vmem:[%s2 + $0x9b8] sm:$0xff]
  %v12178 = vld [vmem:[%s2 + $0x9c0] sm:$0xff]
  %v12179 = vld [vmem:[%s2 + $0x9c8] sm:$0xff]
  %v12180 = vld [vmem:[%s2 + $0x9d0] sm:$0xff]
  %v12181 = vld [vmem:[%s2 + $0x9d8] sm:$0xff]
  %v12182 = vld [vmem:[%s2 + $0x9e0] sm:$0xff]
  %vm12191 = vcmask 1041409
  %v12192 = vsel %vm12191, %v12168, %v12167
  %vm12193 = vcmask 1042434
  %v12194 = vsel %vm12193, %v12169, %v12192
  %vm12195 = vcmask 1043459
  %v12196 = vsel %vm12195, %v12170, %v12194
  %vm12197 = vcmask 1044484
  %v12198 = vsel %vm12197, %v12171, %v12196
  %vm12199 = vcmask 1045509
  %v12200 = vsel %vm12199, %v12172, %v12198
  %vm12201 = vcmask 1046534
  %v12202 = vsel %vm12201, %v12173, %v12200
  %vm12203 = vcmask 1047559
  %v12204 = vsel %vm12203, %v12174, %v12202
  %v12205 = vsel %vm17, %v12204, 0
  %12207 = vmatprep.subr.mxu0 0.0
  %12208 = vmatpush1.msra.mxu0 %v12175
  %12209 = vmatprep.subr.mxu0 0.0
  %12210 = vmatpush1.msra.mxu0 %v12176
  %12211 = vmatprep.subr.mxu0 0.0
  %12212 = vmatpush1.msra.mxu0 %v12177
  %12213 = vmatprep.subr.mxu0 0.0
  %12214 = vmatpush1.msra.mxu0 %v12178
  %12215 = vmatprep.subr.mxu0 0.0
  %12216 = vmatpush1.msra.mxu0 %v12179
  %12217 = vmatprep.subr.mxu0 0.0
  %12218 = vmatpush1.msra.mxu0 %v12180
  %12219 = vmatprep.subr.mxu0 0.0
  %12220 = vmatpush1.msra.mxu0 %v12181
  %12221 = vmatprep.subr.mxu0 0.0
  %12222 = vmatpush1.msra.mxu0 %v12182
  %12223 = vmatprep.subr.mxu0 0.0
  %12224 = vmatpush1.msra.mxu0 0.0
  %12225 = vmatprep.subr.mxu0 0.0
  %12226 = vmatpush1.msra.mxu0 0.0
  %12227 = vmatprep.subr.mxu0 0.0
  %12228 = vmatpush1.msra.mxu0 0.0
  %12229 = vmatprep.subr.mxu0 0.0
  %12230 = vmatpush1.msra.mxu0 0.0
  %12231 = vmatprep.subr.mxu0 0.0
  %12232 = vmatpush1.msra.mxu0 0.0
  %12233 = vmatprep.subr.mxu0 0.0
  %12234 = vmatpush1.msra.mxu0 0.0
  %12235 = vmatprep.subr.mxu0 0.0
  %12236 = vmatpush1.msra.mxu0 0.0
  %12237 = vmatprep.subr.mxu0 0.0
  %12238 = vmatpush1.msra.mxu0 0.0
  %12239 = vmatprep.subr.mxu0 0.0
  %12240 = vmatpush1.msra.mxu0 0.0
  %12241 = vmatprep.subr.mxu0 0.0
  %12242 = vmatpush1.msra.mxu0 0.0
  %12243 = vmatprep.subr.mxu0 0.0
  %12244 = vmatpush1.msra.mxu0 0.0
  %12245 = vmatprep.subr.mxu0 0.0
  %12246 = vmatpush1.msra.mxu0 0.0
  %12247 = vmatprep.subr.mxu0 0.0
  %12248 = vmatpush1.msra.mxu0 0.0
  %12249 = vmatprep.subr.mxu0 0.0
  %12250 = vmatpush1.msra.mxu0 0.0
  %12251 = vmatprep.subr.mxu0 0.0
  %12252 = vmatpush1.msra.mxu0 0.0
  %12253 = vmatprep.subr.mxu0 0.0
  %12254 = vmatpush1.msra.mxu0 0.0
  %12255 = vmatprep.subr.mxu0 0.0
  %12256 = vmatpush1.msra.mxu0 0.0
  %12257 = vmatprep.subr.mxu0 0.0
  %12258 = vmatpush1.msra.mxu0 0.0
  %12259 = vmatprep.subr.mxu0 0.0
  %12260 = vmatpush1.msra.mxu0 0.0
  %12261 = vmatprep.subr.mxu0 0.0
  %12262 = vmatpush1.msra.mxu0 0.0
  %12263 = vmatprep.subr.mxu0 0.0
  %12264 = vmatpush1.msra.mxu0 0.0
  %12265 = vmatprep.subr.mxu0 0.0
  %12266 = vmatpush1.msra.mxu0 0.0
  %12267 = vmatprep.subr.mxu0 0.0
  %12268 = vmatpush1.msra.mxu0 0.0
  %12269 = vmatprep.subr.mxu0 0.0
  %12270 = vmatpush1.msra.mxu0 0.0
  %12271 = vmatprep.mubr.f32.mxu0 0.0
  %12272 = vmatmul.mubr.f32.gmra.mrb[0].mxu0 %v12205
  %v12273 = vpop.f32.mrb[0].mxu0
  %v12274 = vadd.f32 0.0, %v12273
  %v12275 = vpop.f32.mrb[0].mxu0
  %12276 = vdwg.mxu0
  %v12277 = vld [vmem:[%s1] sm:$0xff]
  %v12278 = vld [vmem:[%s3 + $0x22] sm:$0x1]
  %v12279 = vlaneseq
  %v12280 = vshrl.u32 %v12279, 7
  %v12281 = vsub.s32 0, %v12280
  %v12282 = vrot.slane %v12278, %v12281
  %v12284 = vsel %vm884, %v12277, 0
  %12286 = vmatprep.subr.mxu0 0.0
  %12287 = vmatpush1.msra.mxu0 %v12274
  %12288 = vmatprep.subr.mxu0 0.0
  %12289 = vmatpush1.msra.mxu0 0.0
  %12290 = vmatprep.subr.mxu0 0.0
  %12291 = vmatpush1.msra.mxu0 0.0
  %12292 = vmatprep.subr.mxu0 0.0
  %12293 = vmatpush1.msra.mxu0 0.0
  %12294 = vmatprep.subr.mxu0 0.0
  %12295 = vmatpush1.msra.mxu0 0.0
  %12296 = vmatprep.subr.mxu0 0.0
  %12297 = vmatpush1.msra.mxu0 0.0
  %12298 = vmatprep.subr.mxu0 0.0
  %12299 = vmatpush1.msra.mxu0 0.0
  %12300 = vmatprep.subr.mxu0 0.0
  %12301 = vmatpush1.msra.mxu0 0.0
  %12302 = vmatprep.subr.mxu0 0.0
  %12303 = vmatpush1.msra.mxu0 0.0
  %12304 = vmatprep.subr.mxu0 0.0
  %12305 = vmatpush1.msra.mxu0 0.0
  %12306 = vmatprep.subr.mxu0 0.0
  %12307 = vmatpush1.msra.mxu0 0.0
  %12308 = vmatprep.subr.mxu0 0.0
  %12309 = vmatpush1.msra.mxu0 0.0
  %12310 = vmatprep.subr.mxu0 0.0
  %12311 = vmatpush1.msra.mxu0 0.0
  %12312 = vmatprep.subr.mxu0 0.0
  %12313 = vmatpush1.msra.mxu0 0.0
  %12314 = vmatprep.subr.mxu0 0.0
  %12315 = vmatpush1.msra.mxu0 0.0
  %12316 = vmatprep.subr.mxu0 0.0
  %12317 = vmatpush1.msra.mxu0 0.0
  %12318 = vmatprep.subr.mxu0 0.0
  %12319 = vmatpush1.msra.mxu0 0.0
  %12320 = vmatprep.subr.mxu0 0.0
  %12321 = vmatpush1.msra.mxu0 0.0
  %12322 = vmatprep.subr.mxu0 0.0
  %12323 = vmatpush1.msra.mxu0 0.0
  %12324 = vmatprep.subr.mxu0 0.0
  %12325 = vmatpush1.msra.mxu0 0.0
  %12326 = vmatprep.subr.mxu0 0.0
  %12327 = vmatpush1.msra.mxu0 0.0
  %12328 = vmatprep.subr.mxu0 0.0
  %12329 = vmatpush1.msra.mxu0 0.0
  %12330 = vmatprep.subr.mxu0 0.0
  %12331 = vmatpush1.msra.mxu0 0.0
  %12332 = vmatprep.subr.mxu0 0.0
  %12333 = vmatpush1.msra.mxu0 0.0
  %12334 = vmatprep.subr.mxu0 0.0
  %12335 = vmatpush1.msra.mxu0 0.0
  %12336 = vmatprep.subr.mxu0 0.0
  %12337 = vmatpush1.msra.mxu0 0.0
  %12338 = vmatprep.subr.mxu0 0.0
  %12339 = vmatpush1.msra.mxu0 0.0
  %12340 = vmatprep.subr.mxu0 0.0
  %12341 = vmatpush1.msra.mxu0 0.0
  %12342 = vmatprep.subr.mxu0 0.0
  %12343 = vmatpush1.msra.mxu0 0.0
  %12344 = vmatprep.subr.mxu0 0.0
  %12345 = vmatpush1.msra.mxu0 0.0
  %12346 = vmatprep.subr.mxu0 0.0
  %12347 = vmatpush1.msra.mxu0 0.0
  %12348 = vmatprep.subr.mxu0 0.0
  %12349 = vmatpush1.msra.mxu0 0.0
  %12350 = vmatprep.mubr.f32.mxu0 0.0
  %12351 = vmatmul.mubr.f32.gmra.mrb[0].mxu0 %v12284
  %v12352 = vpop.f32.mrb[0].mxu0
  %v12353 = vadd.f32 %v12282, %v12352
  %v12354 = vpop.f32.mrb[0].mxu0
  %12355 = vdwg.mxu0
  %v12356 = vsel %vm91, %v12353, -inf
  %12357 = vmax.xlane.f32.xlu0 %v12356
  %v12358 = vpop.xlane.xlu0 %12357
  %v12359 = vsub.f32 %v12353, %v12358
  %v12360 = vmul.f32 %v12359, 1.442695
  %v12361 = vpow.pop %v12360
  %v12362 = vsel %vm91, %v12361, 0.0
  %12363 = vadd.xlane.f32.xlu0 %v12362
  %v12364 = vpop.xlane.xlu0 %12363
  %v12365 = vlog2.pop %v12364
  %v12366 = vmul.f32 %v12365, 0.6931472
  %v12367 = vsub.f32 %v12359, %v12366
  %12368 = vst.msk [vmem:[%s4] sm:$0xff] %vm91, %v12367
  // Predicated region
  $region18: #{tpu_custom_call.1} parent=0 // pred_check
    _
  $region19: #{tpu_custom_call.1} parent=0 // pred_check_branch
    %12370 = sbr.rel (0) target = $region21
  $region20: #{tpu_custom_call.1} parent=0 // pred_region
    _
  $region21: #{tpu_custom_call.1} parent=0 // pred_fallthru
    _
  // Predicated region
  $region22: #{tpu_custom_call.1} parent=0 // pred_check
    _
  $region23: #{tpu_custom_call.1} parent=0 // pred_check_branch
    %12372 = sbr.rel (0) target = $region25
  $region24: #{tpu_custom_call.1} parent=0 // pred_region
    _
  $region25: #{tpu_custom_call.1} parent=0 // pred_fallthru
    _

</llo_original>
